<compile_context>
chip_gen: v6e
topology: v6e:2x2x1
jax: 0.10.0
libtpu: 0.0.40
codegen_flags: <defaults>
</compile_context>

<pallas_src>
import functools

import jax
import jax.numpy as jnp
from jax import lax
from jax.experimental import pallas as pl
from jax.experimental.pallas import tpu as pltpu

_BN_EPS = 1e-5
_N_STAT_ROWS = 8   # [sum, M2, max, min, 0, 0, 0, 0] -> one (8, tc) aligned store


def _device_kind():
    try:
        return jax.devices()[0].device_kind.lower()
    except Exception:  # pragma: no cover
        return ""


_KIND = _device_kind()
# v7x has two TensorCores per chip; plain "parallel" does not shard across them.
_LEAD_SEM = pltpu.CORE_PARALLEL if ("v7" in _KIND or "7x" in _KIND) else pltpu.PARALLEL
# MXU stat-offload pays off on v6e/v7x (K=128 only half-fills the 256-deep MXU,
# the VALU slot saturates); on v5e/older the matmul dominates -> keep VPU stats.
_OFFLOAD_STATS = not any(v in _KIND for v in ("v2", "v3", "v4", "v5"))


def _pick_row_tile(dim, cap):
    """Largest multiple of 16 (then 8) that divides `dim` and is <= cap."""
    cap = min(cap, dim)
    for step in (16, 8):
        start = cap - cap % step
        for c in range(start, step - 1, -step):
            if dim % c == 0:
                return c
    return dim  # full-extent block (always a legal block shape)


def _pick_lane_tile(dim, cap):
    """Full extent if it fits, else the largest multiple of 128 dividing dim."""
    if dim <= cap:
        return dim
    for c in range(cap - cap % 128, 127, -128):
        if dim % c == 0:
            return c
    return dim


# ---------------------------------------------------------------------------
# Fused kernel:  z = act_in(x) @ W + b   +   per-tile column statistics
# ---------------------------------------------------------------------------
def _conv_bn_stats_kernel(x_ref, w_ref, b_ref, sin_ref, soff_ref, *out_refs,
                          norm_input, emit_z, offload_stats):
    # x_ref:    (tn, K)  raw rows: f32 points or the previous layer's bf16 pre-BN z.
    # w_ref:    (K, tc)  bf16 weight tile (shared or per-batch: folded bmm).
    # b_ref:    (1, tc)  f32 bias.
    # sin/soff: (1, K)   BN affine of the *input* channels (BN+ReLU on load).
    x = x_ref[...].astype(jnp.float32)
    if norm_input:
        x = jnp.maximum(x * sin_ref[...] + soff_ref[...], 0.0)

    tn = x.shape[0]
    inv_n = 1.0 / tn
    w = w_ref[...]                                            # bf16
    b = b_ref[...]                                            # f32 (1, tc)

    # Main matmul: bf16 operands, f32 accumulation (MXU).
    z = jnp.dot(x.astype(jnp.bfloat16), w,
                preferred_element_type=jnp.float32) + b       # (tn, tc) f32
    tc = z.shape[1]

    if offload_stats:
        # Column statistics via the MXU instead of full-tile VPU reductions:
        #   sum_n z              = colsum(x) @ W + tn*b
        #   sum_n (z - mean_z)^2 = diag(W^T Gc W),  Gc = xc^T xc,  xc = x - colmean(x)
        s_x = jnp.sum(x, axis=0, keepdims=True)               # (1, K)
        xc = x - s_x * inv_n                                  # centered input
        w32 = w.astype(jnp.float32)
        sum_row = jnp.dot(s_x, w32, preferred_element_type=jnp.float32) + tn * b
        xcb = xc.astype(jnp.bfloat16)
        g = lax.dot_general(xcb, xcb, (((0,), (0,)), ((), ())),
                            preferred_element_type=jnp.float32)   # (K, K)
        gw = jnp.dot(g.astype(jnp.bfloat16), w,
                     preferred_element_type=jnp.float32)          # (K, tc)
        m2_row = jnp.sum(w32 * gw, axis=0, keepdims=True)         # (1, tc)
    else:
        sum_row = jnp.sum(z, axis=0, keepdims=True)
        zc = z - sum_row * inv_n
        m2_row = jnp.sum(zc * zc, axis=0, keepdims=True)

    rows = [sum_row, m2_row]
    if emit_z:
        z_ref, st_ref = out_refs
        z_ref[...] = z.astype(z_ref.dtype)                    # bf16 intermediate
    else:
        (st_ref,) = out_refs
        # Fused global-max support: BN(+ReLU) is per-channel monotone affine,
        # so per-tile raw column max/min are enough.
        rows.append(jnp.max(z, axis=0, keepdims=True))
        rows.append(jnp.min(z, axis=0, keepdims=True))
    rows.append(jnp.zeros((_N_STAT_ROWS - len(rows), tc), jnp.float32))
    st_ref[...] = jnp.concatenate(rows, axis=0)               # single aligned store


def conv_bn_layer(x, w, bias, in_scale=None, in_shift=None, *, emit_z=True):
    """Fused per-point linear (Conv1d, kernel_size=1) + two-pass BatchNorm stats.

    x:    (B, N, K) f32 points or bf16 raw pre-BN output of the previous layer
          (in_scale/in_shift describe the deferred BN+ReLU applied on load).
    w:    (Bw, K, C), Bw in {1 (shared), B (per-batch: folded bmm)}.
    Returns
      emit_z=True :  (z_bf16 (B,N,C), sum_t (B,T,C), m2_t (B,T,C))
      emit_z=False:  (sum_t, m2_t, zmax (B,C), zmin (B,C))
    where T = #point tiles, sum_t / m2_t are per-tile column sums / centered
    sums of squares (combined host-side with Chan's formula).
    """
    B, N, K = x.shape
    Bw, Kw, C = w.shape
    assert Kw == K and Bw in (1, B)
    norm_input = in_scale is not None

    # Pad K (=3 for the first layers) to a sublane multiple so the contraction
    # runs cleanly on the MXU; padded channels are zero -> no contribution.
    if K % 8 != 0:
        kp = (-K) % 8
        x = jnp.pad(x, ((0, 0), (0, 0), (0, kp)))
        w = jnp.pad(w, ((0, 0), (0, kp), (0, 0)))
        if norm_input:
            in_scale = jnp.pad(jnp.reshape(in_scale, (K,)), ((0, kp),))
            in_shift = jnp.pad(jnp.reshape(in_shift, (K,)), ((0, kp),))
        K += kp

    # Larger tiles for the fused-max (C=1024) layers to amortize grid overhead.
    tn = _pick_row_tile(N, 1024 if emit_z else 2048)
    tc = _pick_lane_tile(C, 512 if emit_z else 1024)
    n_tiles, c_tiles = N // tn, C // tc

    w_in = w.astype(jnp.bfloat16)
    bias2 = jnp.reshape(bias, (1, C)).astype(jnp.float32)
    if norm_input:
        sin = jnp.reshape(in_scale, (1, K)).astype(jnp.float32)
        soff = jnp.reshape(in_shift, (1, K)).astype(jnp.float32)
    else:
        sin = jnp.ones((1, K), jnp.float32)
        soff = jnp.zeros((1, K), jnp.float32)

    per_batch = Bw > 1
    w_idx = (lambda n, b, c: (b, 0, c)) if per_batch else (lambda n, b, c: (0, 0, c))

    st_shape = jax.ShapeDtypeStruct((B, n_tiles, _N_STAT_ROWS, C), jnp.float32)
    st_spec = pl.BlockSpec((None, None, _N_STAT_ROWS, tc),
                           lambda n, b, c: (b, n, 0, c))
    if emit_z:
        out_shape = (jax.ShapeDtypeStruct((B, N, C), jnp.bfloat16), st_shape)
        out_specs = (pl.BlockSpec((None, tn, tc), lambda n, b, c: (b, n, c)),
                     st_spec)
    else:
        out_shape = st_shape
        out_specs = st_spec

    offload = _OFFLOAD_STATS and not emit_z
    kernel = functools.partial(_conv_bn_stats_kernel, norm_input=norm_input,
                               emit_z=emit_z, offload_stats=offload)

    z_bytes = B * N * C * 2 if emit_z else 0
    cost = pl.CostEstimate(
        flops=2 * B * N * K * C,
        transcendentals=0,
        bytes_accessed=int(x.size * x.dtype.itemsize + w_in.size * 2 + z_bytes
                           + B * n_tiles * _N_STAT_ROWS * C * 4))

    result = pl.pallas_call(
        kernel,
        out_shape=out_shape,
        grid_spec=pltpu.PrefetchScalarGridSpec(
            num_scalar_prefetch=0,
            # point-tile axis first (megacore / 2-TC sharding); the x block is
            # constant across the inner c revisits so it is not re-fetched.
            grid=(n_tiles, B, c_tiles),
            in_specs=[
                pl.BlockSpec((None, tn, K), lambda n, b, c: (b, n, 0)),
                pl.BlockSpec((None, K, tc), w_idx),
                pl.BlockSpec((1, tc), lambda n, b, c: (0, c)),
                pl.BlockSpec((1, K), lambda n, b, c: (0, 0)),
                pl.BlockSpec((1, K), lambda n, b, c: (0, 0)),
            ],
            out_specs=out_specs,
        ),
        compiler_params=pltpu.CompilerParams(
            dimension_semantics=(_LEAD_SEM, pltpu.PARALLEL, pltpu.ARBITRARY),
            vmem_limit_bytes=48 * 1024 * 1024),
        cost_estimate=cost,
    )(x, w_in, bias2, sin, soff)

    if emit_z:
        z, st = result
        return z, st[:, :, 0, :], st[:, :, 1, :]
    st = result
    return (st[:, :, 0, :], st[:, :, 1, :],
            jnp.max(st[:, :, 2, :], axis=1), jnp.min(st[:, :, 3, :], axis=1))


# ---------------------------------------------------------------------------
# Tiny XLA glue (all on (C,) / (B, C) / (B, T, C) sized arrays)
# ---------------------------------------------------------------------------
def _bn_affine_from_tiles(sum_t, m2_t, n_points, gamma, beta):
    """Train-mode BatchNorm (biased var) as y = scale*z + shift, combined from
    per-tile [sum, centered-M2] with a numerically stable Chan-style merge."""
    B, T, _ = sum_t.shape
    tn = n_points // T
    count = B * n_points
    mean = jnp.sum(sum_t, axis=(0, 1)) / count
    tile_mean = sum_t / tn
    m2 = (jnp.sum(m2_t, axis=(0, 1))
          + tn * jnp.sum(jnp.square(tile_mean - mean), axis=(0, 1)))
    var = jnp.maximum(m2 / count, 0.0)
    scale = gamma * jax.lax.rsqrt(var + _BN_EPS)
    shift = beta - mean * scale
    return scale, shift


def _bn_max_from_tiles(sum_t, m2_t, zmax, zmin, n_points, gamma, beta, *, relu):
    """max over points of act(BN(z)) from column stats + per-batch raw max/min."""
    scale, shift = _bn_affine_from_tiles(sum_t, m2_t, n_points, gamma, beta)
    picked = jnp.where(scale[None, :] >= 0.0, zmax, zmin)
    y = picked * scale[None, :] + shift[None, :]
    return jnp.maximum(y, 0.0) if relu else y


def _fc_bn_relu(x, p):
    """Linear + train-mode BN over the B rows + ReLU (tiny: M = B <= 32)."""
    z = x @ p['w'] + p['b']
    mean = jnp.mean(z, axis=0, keepdims=True)
    var = jnp.mean(jnp.square(z - mean), axis=0, keepdims=True)
    z = p['gamma'] * (z - mean) * jax.lax.rsqrt(var + _BN_EPS) + p['beta']
    return jnp.maximum(z, 0.0)


# ---------------------------------------------------------------------------
# Parameters (deterministic synthetic init -- shapes follow the PyTorch module)
# ---------------------------------------------------------------------------
def _init_layer(key, cin, cout, bn=True):
    kw, kb, kg, kbe = jax.random.split(key, 4)
    bound = float(cin) ** -0.5
    p = {
        'w': jax.random.uniform(kw, (cin, cout), jnp.float32, -bound, bound),
        'b': jax.random.uniform(kb, (cout,), jnp.float32, -bound, bound),
    }
    if bn:
        p['gamma'] = 1.0 + 0.1 * jax.random.normal(kg, (cout,), jnp.float32)
        p['beta'] = 0.1 * jax.random.normal(kbe, (cout,), jnp.float32)
    return p


def init_tnet_params(key, cin):
    ks = jax.random.split(key, 6)
    return {
        'conv1': _init_layer(ks[0], cin, 64),
        'conv2': _init_layer(ks[1], 64, 128),
        'conv3': _init_layer(ks[2], 128, 1024),
        'fc1': _init_layer(ks[3], 1024, 512),
        'fc2': _init_layer(ks[4], 512, 256),
        'fc3': _init_layer(ks[5], 256, cin * cin, bn=False),
    }


def init_model_params(key):
    # STN3d / Linear_Block layers / conv_block5 are built by the PyTorch module
    # but unused by its forward pass -> omitted.
    ks = jax.random.split(key, 5)
    return {
        'tnet1': init_tnet_params(ks[0], 3),
        'tnet2': init_tnet_params(ks[1], 64),
        'conv_block1': _init_layer(ks[2], 3, 64),
        'conv_block4': _init_layer(ks[3], 64, 128),
        'conv3_bn3': _init_layer(ks[4], 128, 1024),
    }


# ---------------------------------------------------------------------------
# Forward pass (mirrors the PyTorch module)
# ---------------------------------------------------------------------------
def _tnet_transform(x_raw, in_scale, in_shift, p):
    """Transformation_Net up to its (B, C, C) transform matrix (fc3 output).

    x_raw is the producer's raw pre-BN output; in_scale/in_shift (or None)
    describe the BN+ReLU that turns it into the actual tnet input."""
    B, N, C = x_raw.shape

    z1, s1, m21 = conv_bn_layer(x_raw, p['conv1']['w'][None], p['conv1']['b'],
                                in_scale, in_shift)
    sc1, sh1 = _bn_affine_from_tiles(s1, m21, N, p['conv1']['gamma'], p['conv1']['beta'])

    z2, s2, m22 = conv_bn_layer(z1, p['conv2']['w'][None], p['conv2']['b'], sc1, sh1)
    sc2, sh2 = _bn_affine_from_tiles(s2, m22, N, p['conv2']['gamma'], p['conv2']['beta'])

    # conv3 + BN + ReLU + max over points, fused (activation never hits HBM).
    s3, m23, zmax3, zmin3 = conv_bn_layer(z2, p['conv3']['w'][None], p['conv3']['b'],
                                          sc2, sh2, emit_z=False)
    g = _bn_max_from_tiles(s3, m23, zmax3, zmin3, N,
                           p['conv3']['gamma'], p['conv3']['beta'], relu=True)

    # TODO(synk): the B-row FC head (fc1/fc2/fc3) stays in plain XLA -- with
    # M = B <= 32 a Pallas kernel would leave the MXU idle.
    g = _fc_bn_relu(g, p['fc1'])
    g = _fc_bn_relu(g, p['fc2'])
    t = g @ p['fc3']['w'] + p['fc3']['b']
    return t.reshape(B, C, C)


def point_cloud_global_embedding(x, params):
    """x: (B, N, 3) point cloud -> (B, 1024) global embedding."""
    B, N, _ = x.shape
    x = x.astype(jnp.float32)

    # Transformation_Net1 + conv_block1, with bmm(x, t1) folded into the conv:
    # (x @ t1) @ W_cb1 == x @ (t1 @ W_cb1)
    t1 = _tnet_transform(x, None, None, params['tnet1'])                 # (B,3,3)
    w_eff1 = jnp.einsum('bij,jk->bik', t1, params['conv_block1']['w'])   # (B,3,64)
    z_cb1, s_cb1, m2_cb1 = conv_bn_layer(x, w_eff1, params['conv_block1']['b'])
    sc_cb1, sh_cb1 = _bn_affine_from_tiles(s_cb1, m2_cb1, N,
                                           params['conv_block1']['gamma'],
                                           params['conv_block1']['beta'])

    # Transformation_Net2 consumes relu(bn(z_cb1)) lazily (never materialized):
    t2 = _tnet_transform(z_cb1, sc_cb1, sh_cb1, params['tnet2'])         # (B,64,64)
    # Fold bmm(h1, t2) into conv_block4.
    w_eff4 = jnp.einsum('bij,jk->bik', t2, params['conv_block4']['w'])   # (B,64,128)
    z_cb4, s_cb4, m2_cb4 = conv_bn_layer(z_cb1, w_eff4, params['conv_block4']['b'],
                                         sc_cb1, sh_cb1)
    sc_cb4, sh_cb4 = _bn_affine_from_tiles(s_cb4, m2_cb4, N,
                                           params['conv_block4']['gamma'],
                                           params['conv_block4']['beta'])

    # conv3 + bn3 (no ReLU) + global max over points, fused.
    s_c3, m2_c3, zmax, zmin = conv_bn_layer(z_cb4, params['conv3_bn3']['w'][None],
                                            params['conv3_bn3']['b'],
                                            sc_cb4, sh_cb4, emit_z=False)
    return _bn_max_from_tiles(s_c3, m2_c3, zmax, zmin, N,
                              params['conv3_bn3']['gamma'],
                              params['conv3_bn3']['beta'], relu=False)


if __name__ == "__main__":
    key = jax.random.PRNGKey(0)
    kx, kp = jax.random.split(key)
    B, N = 2, 16
    x = jax.random.normal(kx, (B, N, 3), jnp.float32)
    params = init_model_params(kp)

    fwd = jax.jit(point_cloud_global_embedding)
    out = jax.block_until_ready(fwd(x, params))

    assert out.shape == (B, 1024), out.shape
    assert bool(jnp.all(jnp.isfinite(out)))
    print("KERNEL_OK")
</pallas_src>

<mosaic_0001>
module attributes {stable_mosaic.version = 11 : i64} {
  func.func @_conv_bn_stats_kernel(%arg0: i32, %arg1: i32, %arg2: i32, %arg3: memref<1x16x8xf32, #tpu.memory_space<vmem>>, %arg4: memref<1x8x64xbf16, #tpu.memory_space<vmem>>, %arg5: memref<1x64xf32, #tpu.memory_space<vmem>>, %arg6: memref<1x8xf32, #tpu.memory_space<vmem>>, %arg7: memref<1x8xf32, #tpu.memory_space<vmem>>, %arg8: memref<1x16x64xbf16, #tpu.memory_space<vmem>>, %arg9: memref<1x1x8x64xf32, #tpu.memory_space<vmem>>) attributes {dimension_semantics = [#tpu.dimension_semantics<parallel>, #tpu.dimension_semantics<parallel>, #tpu.dimension_semantics<arbitrary>], iteration_bounds = array<i64: 1, 2, 1>, scalar_prefetch = 0 : i64, scratch_operands = 0 : i64, tpu.core_type = #tpu.core_type<tc>, window_params = [{transform_indices = @transform_0, window_bounds = array<i64: 1, 16, 8>}, {transform_indices = @transform_1, window_bounds = array<i64: 1, 8, 64>}, {transform_indices = @transform_2, window_bounds = array<i64: 1, 64>}, {pipeline_mode = #tpu.pipeline_mode<synchronous>, transform_indices = @transform_3, window_bounds = array<i64: 1, 8>}, {pipeline_mode = #tpu.pipeline_mode<synchronous>, transform_indices = @transform_4, window_bounds = array<i64: 1, 8>}, {transform_indices = @transform_5, window_bounds = array<i64: 1, 16, 64>}, {transform_indices = @transform_6, window_bounds = array<i64: 1, 1, 8, 64>}]} {
    %c0 = arith.constant 0 : index
    %c0_0 = arith.constant 0 : index
    %c0_1 = arith.constant 0 : index
    %0 = vector.load %arg3[%c0, %c0_0, %c0_1] : memref<1x16x8xf32, #tpu.memory_space<vmem>>, vector<1x16x8xf32>
    %1 = vector.shape_cast %0 : vector<1x16x8xf32> to vector<16x8xf32>
    %c0_2 = arith.constant 0 : index
    %c0_3 = arith.constant 0 : index
    %c0_4 = arith.constant 0 : index
    %2 = vector.load %arg4[%c0_2, %c0_3, %c0_4] : memref<1x8x64xbf16, #tpu.memory_space<vmem>>, vector<1x8x64xbf16>
    %3 = vector.shape_cast %2 : vector<1x8x64xbf16> to vector<8x64xbf16>
    %c0_5 = arith.constant 0 : index
    %c0_6 = arith.constant 0 : index
    %4 = vector.load %arg5[%c0_5, %c0_6] : memref<1x64xf32, #tpu.memory_space<vmem>>, vector<1x64xf32>
    %5 = arith.truncf %1 : vector<16x8xf32> to vector<16x8xbf16>
    %cst = arith.constant dense<0.000000e+00> : vector<16x64xf32>
    %6 = tpu.matmul %5, %3, %cst {dimension_numbers = #tpu.dot_dimension_numbers<[1], [0], [0], [1], [0, 0, 1, 1], [], []>} : vector<16x8xbf16>, vector<8x64xbf16>, vector<16x64xf32> -> vector<16x64xf32>
    %7 = vector.broadcast %4 : vector<1x64xf32> to vector<16x64xf32>
    %8 = arith.addf %6, %7 : vector<16x64xf32>
    %cst_7 = arith.constant dense<0.000000e+00> : vector<64xf32>
    %9 = vector.multi_reduction <add>, %8, %cst_7 [0] : vector<16x64xf32> to vector<64xf32>
    %10 = vector.shape_cast %9 : vector<64xf32> to vector<1x64xf32>
    %cst_8 = arith.constant 6.250000e-02 : f32
    %11 = vector.broadcast %cst_8 : f32 to vector<1x64xf32>
    %12 = arith.mulf %10, %11 : vector<1x64xf32>
    %13 = vector.broadcast %12 : vector<1x64xf32> to vector<16x64xf32>
    %14 = arith.subf %8, %13 : vector<16x64xf32>
    %15 = arith.mulf %14, %14 : vector<16x64xf32>
    %cst_9 = arith.constant dense<0.000000e+00> : vector<64xf32>
    %16 = vector.multi_reduction <add>, %15, %cst_9 [0] : vector<16x64xf32> to vector<64xf32>
    %17 = vector.shape_cast %16 : vector<64xf32> to vector<1x64xf32>
    %18 = arith.truncf %8 : vector<16x64xf32> to vector<16x64xbf16>
    %c0_10 = arith.constant 0 : index
    %c0_11 = arith.constant 0 : index
    %c0_12 = arith.constant 0 : index
    %19 = vector.load %arg8[%c0_10, %c0_11, %c0_12] : memref<1x16x64xbf16, #tpu.memory_space<vmem>>, vector<1x16x64xbf16>
    %20 = vector.shape_cast %19 : vector<1x16x64xbf16> to vector<16x64xbf16>
    %21 = vector.shape_cast %18 : vector<16x64xbf16> to vector<1x16x64xbf16>
    tpu.vector_store %arg8[%c0_10, %c0_11, %c0_12], %21 {strides = array<i32>} : memref<1x16x64xbf16, #tpu.memory_space<vmem>>, vector<1x16x64xbf16>,
    %cst_13 = arith.constant 0.000000e+00 : f32
    %22 = vector.broadcast %cst_13 : f32 to vector<6x64xf32>
    %23 = tpu.concatenate %10, %17, %22 in 0 : vector<1x64xf32>, vector<1x64xf32>, vector<6x64xf32> -> vector<8x64xf32>
    %c0_14 = arith.constant 0 : index
    %c0_15 = arith.constant 0 : index
    %c0_16 = arith.constant 0 : index
    %c0_17 = arith.constant 0 : index
    %24 = vector.load %arg9[%c0_14, %c0_15, %c0_16, %c0_17] : memref<1x1x8x64xf32, #tpu.memory_space<vmem>>, vector<1x1x8x64xf32>
    %25 = vector.shape_cast %24 : vector<1x1x8x64xf32> to vector<8x64xf32>
    %26 = vector.shape_cast %23 : vector<8x64xf32> to vector<1x1x8x64xf32>
    tpu.vector_store %arg9[%c0_14, %c0_15, %c0_16, %c0_17], %26 {strides = array<i32>} : memref<1x1x8x64xf32, #tpu.memory_space<vmem>>, vector<1x1x8x64xf32>,
    return
  }
  func.func @transform_0(%arg0: i32, %arg1: i32, %arg2: i32) -> (i32, i32, i32) {
    %c0_i32 = arith.constant 0 : i32
    %c0_i32_0 = arith.constant 0 : i32
    return %arg1, %arg0, %c0_i32 : i32, i32, i32
  }
  func.func @transform_1(%arg0: i32, %arg1: i32, %arg2: i32) -> (i32, i32, i32) {
    %c0_i32 = arith.constant 0 : i32
    %c0_i32_0 = arith.constant 0 : i32
    %c0_i32_1 = arith.constant 0 : i32
    return %c0_i32, %c0_i32_0, %arg2 : i32, i32, i32
  }
  func.func @transform_2(%arg0: i32, %arg1: i32, %arg2: i32) -> (i32, i32) {
    %c0_i32 = arith.constant 0 : i32
    %c0_i32_0 = arith.constant 0 : i32
    return %c0_i32, %arg2 : i32, i32
  }
  func.func @transform_3(%arg0: i32, %arg1: i32, %arg2: i32) -> (i32, i32) {
    %c0_i32 = arith.constant 0 : i32
    %c0_i32_0 = arith.constant 0 : i32
    %c0_i32_1 = arith.constant 0 : i32
    return %c0_i32, %c0_i32_0 : i32, i32
  }
  func.func @transform_4(%arg0: i32, %arg1: i32, %arg2: i32) -> (i32, i32) {
    %c0_i32 = arith.constant 0 : i32
    %c0_i32_0 = arith.constant 0 : i32
    %c0_i32_1 = arith.constant 0 : i32
    return %c0_i32, %c0_i32_0 : i32, i32
  }
  func.func @transform_5(%arg0: i32, %arg1: i32, %arg2: i32) -> (i32, i32, i32) {
    %c0_i32 = arith.constant 0 : i32
    return %arg1, %arg0, %arg2 : i32, i32, i32
  }
  func.func @transform_6(%arg0: i32, %arg1: i32, %arg2: i32) -> (i32, i32, i32, i32) {
    %c0_i32 = arith.constant 0 : i32
    %c0_i32_0 = arith.constant 0 : i32
    return %arg1, %arg0, %c0_i32, %arg2 : i32, i32, i32, i32
  }
}

module attributes {stable_mosaic.version = 11 : i64} {
  func.func @_conv_bn_stats_kernel(%arg0: i32, %arg1: i32, %arg2: i32, %arg3: memref<1x16x64xbf16, #tpu.memory_space<vmem>>, %arg4: memref<1x64x128xbf16, #tpu.memory_space<vmem>>, %arg5: memref<1x128xf32, #tpu.memory_space<vmem>>, %arg6: memref<1x64xf32, #tpu.memory_space<vmem>>, %arg7: memref<1x64xf32, #tpu.memory_space<vmem>>, %arg8: memref<1x16x128xbf16, #tpu.memory_space<vmem>>, %arg9: memref<1x1x8x128xf32, #tpu.memory_space<vmem>>) attributes {dimension_semantics = [#tpu.dimension_semantics<parallel>, #tpu.dimension_semantics<parallel>, #tpu.dimension_semantics<arbitrary>], iteration_bounds = array<i64: 1, 2, 1>, scalar_prefetch = 0 : i64, scratch_operands = 0 : i64, tpu.core_type = #tpu.core_type<tc>, window_params = [{transform_indices = @transform_0, window_bounds = array<i64: 1, 16, 64>}, {transform_indices = @transform_1, window_bounds = array<i64: 1, 64, 128>}, {transform_indices = @transform_2, window_bounds = array<i64: 1, 128>}, {pipeline_mode = #tpu.pipeline_mode<synchronous>, transform_indices = @transform_3, window_bounds = array<i64: 1, 64>}, {pipeline_mode = #tpu.pipeline_mode<synchronous>, transform_indices = @transform_4, window_bounds = array<i64: 1, 64>}, {transform_indices = @transform_5, window_bounds = array<i64: 1, 16, 128>}, {transform_indices = @transform_6, window_bounds = array<i64: 1, 1, 8, 128>}]} {
    %c0 = arith.constant 0 : index
    %c0_0 = arith.constant 0 : index
    %c0_1 = arith.constant 0 : index
    %0 = vector.load %arg3[%c0, %c0_0, %c0_1] : memref<1x16x64xbf16, #tpu.memory_space<vmem>>, vector<1x16x64xbf16>
    %1 = vector.shape_cast %0 : vector<1x16x64xbf16> to vector<16x64xbf16>
    %2 = arith.extf %1 : vector<16x64xbf16> to vector<16x64xf32>
    %c0_2 = arith.constant 0 : index
    %c0_3 = arith.constant 0 : index
    %3 = vector.load %arg6[%c0_2, %c0_3] : memref<1x64xf32, #tpu.memory_space<vmem>>, vector<1x64xf32>
    %4 = vector.broadcast %3 : vector<1x64xf32> to vector<16x64xf32>
    %5 = arith.mulf %2, %4 : vector<16x64xf32>
    %c0_4 = arith.constant 0 : index
    %c0_5 = arith.constant 0 : index
    %6 = vector.load %arg7[%c0_4, %c0_5] : memref<1x64xf32, #tpu.memory_space<vmem>>, vector<1x64xf32>
    %7 = vector.broadcast %6 : vector<1x64xf32> to vector<16x64xf32>
    %8 = arith.addf %5, %7 : vector<16x64xf32>
    %cst = arith.constant 0.000000e+00 : f32
    %9 = vector.broadcast %cst : f32 to vector<16x64xf32>
    %10 = arith.maximumf %8, %9 : vector<16x64xf32>
    %c0_6 = arith.constant 0 : index
    %c0_7 = arith.constant 0 : index
    %c0_8 = arith.constant 0 : index
    %11 = vector.load %arg4[%c0_6, %c0_7, %c0_8] : memref<1x64x128xbf16, #tpu.memory_space<vmem>>, vector<1x64x128xbf16>
    %12 = vector.shape_cast %11 : vector<1x64x128xbf16> to vector<64x128xbf16>
    %c0_9 = arith.constant 0 : index
    %c0_10 = arith.constant 0 : index
    %13 = vector.load %arg5[%c0_9, %c0_10] : memref<1x128xf32, #tpu.memory_space<vmem>>, vector<1x128xf32>
    %14 = arith.truncf %10 : vector<16x64xf32> to vector<16x64xbf16>
    %cst_11 = arith.constant dense<0.000000e+00> : vector<16x128xf32>
    %15 = tpu.matmul %14, %12, %cst_11 {dimension_numbers = #tpu.dot_dimension_numbers<[1], [0], [0], [1], [0, 0, 1, 1], [], []>} : vector<16x64xbf16>, vector<64x128xbf16>, vector<16x128xf32> -> vector<16x128xf32>
    %16 = vector.broadcast %13 : vector<1x128xf32> to vector<16x128xf32>
    %17 = arith.addf %15, %16 : vector<16x128xf32>
    %cst_12 = arith.constant dense<0.000000e+00> : vector<128xf32>
    %18 = vector.multi_reduction <add>, %17, %cst_12 [0] : vector<16x128xf32> to vector<128xf32>
    %19 = vector.shape_cast %18 : vector<128xf32> to vector<1x128xf32>
    %cst_13 = arith.constant 6.250000e-02 : f32
    %20 = vector.broadcast %cst_13 : f32 to vector<1x128xf32>
    %21 = arith.mulf %19, %20 : vector<1x128xf32>
    %22 = vector.broadcast %21 : vector<1x128xf32> to vector<16x128xf32>
    %23 = arith.subf %17, %22 : vector<16x128xf32>
    %24 = arith.mulf %23, %23 : vector<16x128xf32>
    %cst_14 = arith.constant dense<0.000000e+00> : vector<128xf32>
    %25 = vector.multi_reduction <add>, %24, %cst_14 [0] : vector<16x128xf32> to vector<128xf32>
    %26 = vector.shape_cast %25 : vector<128xf32> to vector<1x128xf32>
    %27 = arith.truncf %17 : vector<16x128xf32> to vector<16x128xbf16>
    %c0_15 = arith.constant 0 : index
    %c0_16 = arith.constant 0 : index
    %c0_17 = arith.constant 0 : index
    %28 = vector.load %arg8[%c0_15, %c0_16, %c0_17] : memref<1x16x128xbf16, #tpu.memory_space<vmem>>, vector<1x16x128xbf16>
    %29 = vector.shape_cast %28 : vector<1x16x128xbf16> to vector<16x128xbf16>
    %30 = vector.shape_cast %27 : vector<16x128xbf16> to vector<1x16x128xbf16>
    tpu.vector_store %arg8[%c0_15, %c0_16, %c0_17], %30 {strides = array<i32>} : memref<1x16x128xbf16, #tpu.memory_space<vmem>>, vector<1x16x128xbf16>,
    %cst_18 = arith.constant 0.000000e+00 : f32
    %31 = vector.broadcast %cst_18 : f32 to vector<6x128xf32>
    %32 = tpu.concatenate %19, %26, %31 in 0 : vector<1x128xf32>, vector<1x128xf32>, vector<6x128xf32> -> vector<8x128xf32>
    %c0_19 = arith.constant 0 : index
    %c0_20 = arith.constant 0 : index
    %c0_21 = arith.constant 0 : index
    %c0_22 = arith.constant 0 : index
    %33 = vector.load %arg9[%c0_19, %c0_20, %c0_21, %c0_22] : memref<1x1x8x128xf32, #tpu.memory_space<vmem>>, vector<1x1x8x128xf32>
    %34 = vector.shape_cast %33 : vector<1x1x8x128xf32> to vector<8x128xf32>
    %35 = vector.shape_cast %32 : vector<8x128xf32> to vector<1x1x8x128xf32>
    tpu.vector_store %arg9[%c0_19, %c0_20, %c0_21, %c0_22], %35 {strides = array<i32>} : memref<1x1x8x128xf32, #tpu.memory_space<vmem>>, vector<1x1x8x128xf32>,
    return
  }
  func.func @transform_0(%arg0: i32, %arg1: i32, %arg2: i32) -> (i32, i32, i32) {
    %c0_i32 = arith.constant 0 : i32
    %c0_i32_0 = arith.constant 0 : i32
    return %arg1, %arg0, %c0_i32 : i32, i32, i32
  }
  func.func @transform_1(%arg0: i32, %arg1: i32, %arg2: i32) -> (i32, i32, i32) {
    %c0_i32 = arith.constant 0 : i32
    %c0_i32_0 = arith.constant 0 : i32
    %c0_i32_1 = arith.constant 0 : i32
    return %c0_i32, %c0_i32_0, %arg2 : i32, i32, i32
  }
  func.func @transform_2(%arg0: i32, %arg1: i32, %arg2: i32) -> (i32, i32) {
    %c0_i32 = arith.constant 0 : i32
    %c0_i32_0 = arith.constant 0 : i32
    return %c0_i32, %arg2 : i32, i32
  }
  func.func @transform_3(%arg0: i32, %arg1: i32, %arg2: i32) -> (i32, i32) {
    %c0_i32 = arith.constant 0 : i32
    %c0_i32_0 = arith.constant 0 : i32
    %c0_i32_1 = arith.constant 0 : i32
    return %c0_i32, %c0_i32_0 : i32, i32
  }
  func.func @transform_4(%arg0: i32, %arg1: i32, %arg2: i32) -> (i32, i32) {
    %c0_i32 = arith.constant 0 : i32
    %c0_i32_0 = arith.constant 0 : i32
    %c0_i32_1 = arith.constant 0 : i32
    return %c0_i32, %c0_i32_0 : i32, i32
  }
  func.func @transform_5(%arg0: i32, %arg1: i32, %arg2: i32) -> (i32, i32, i32) {
    %c0_i32 = arith.constant 0 : i32
    return %arg1, %arg0, %arg2 : i32, i32, i32
  }
  func.func @transform_6(%arg0: i32, %arg1: i32, %arg2: i32) -> (i32, i32, i32, i32) {
    %c0_i32 = arith.constant 0 : i32
    %c0_i32_0 = arith.constant 0 : i32
    return %arg1, %arg0, %c0_i32, %arg2 : i32, i32, i32, i32
  }
}

module attributes {stable_mosaic.version = 11 : i64} {
  func.func @_conv_bn_stats_kernel(%arg0: i32, %arg1: i32, %arg2: i32, %arg3: memref<1x16x128xbf16, #tpu.memory_space<vmem>>, %arg4: memref<1x128x1024xbf16, #tpu.memory_space<vmem>>, %arg5: memref<1x1024xf32, #tpu.memory_space<vmem>>, %arg6: memref<1x128xf32, #tpu.memory_space<vmem>>, %arg7: memref<1x128xf32, #tpu.memory_space<vmem>>, %arg8: memref<1x1x8x1024xf32, #tpu.memory_space<vmem>>) attributes {dimension_semantics = [#tpu.dimension_semantics<parallel>, #tpu.dimension_semantics<parallel>, #tpu.dimension_semantics<arbitrary>], iteration_bounds = array<i64: 1, 2, 1>, scalar_prefetch = 0 : i64, scratch_operands = 0 : i64, tpu.core_type = #tpu.core_type<tc>, window_params = [{transform_indices = @transform_0, window_bounds = array<i64: 1, 16, 128>}, {transform_indices = @transform_1, window_bounds = array<i64: 1, 128, 1024>}, {transform_indices = @transform_2, window_bounds = array<i64: 1, 1024>}, {pipeline_mode = #tpu.pipeline_mode<synchronous>, transform_indices = @transform_3, window_bounds = array<i64: 1, 128>}, {pipeline_mode = #tpu.pipeline_mode<synchronous>, transform_indices = @transform_4, window_bounds = array<i64: 1, 128>}, {transform_indices = @transform_5, window_bounds = array<i64: 1, 1, 8, 1024>}]} {
    %c0 = arith.constant 0 : index
    %c0_0 = arith.constant 0 : index
    %c0_1 = arith.constant 0 : index
    %0 = vector.load %arg3[%c0, %c0_0, %c0_1] : memref<1x16x128xbf16, #tpu.memory_space<vmem>>, vector<1x16x128xbf16>
    %1 = vector.shape_cast %0 : vector<1x16x128xbf16> to vector<16x128xbf16>
    %2 = arith.extf %1 : vector<16x128xbf16> to vector<16x128xf32>
    %c0_2 = arith.constant 0 : index
    %c0_3 = arith.constant 0 : index
    %3 = vector.load %arg6[%c0_2, %c0_3] : memref<1x128xf32, #tpu.memory_space<vmem>>, vector<1x128xf32>
    %4 = vector.broadcast %3 : vector<1x128xf32> to vector<16x128xf32>
    %5 = arith.mulf %2, %4 : vector<16x128xf32>
    %c0_4 = arith.constant 0 : index
    %c0_5 = arith.constant 0 : index
    %6 = vector.load %arg7[%c0_4, %c0_5] : memref<1x128xf32, #tpu.memory_space<vmem>>, vector<1x128xf32>
    %7 = vector.broadcast %6 : vector<1x128xf32> to vector<16x128xf32>
    %8 = arith.addf %5, %7 : vector<16x128xf32>
    %cst = arith.constant 0.000000e+00 : f32
    %9 = vector.broadcast %cst : f32 to vector<16x128xf32>
    %10 = arith.maximumf %8, %9 : vector<16x128xf32>
    %c0_6 = arith.constant 0 : index
    %c0_7 = arith.constant 0 : index
    %c0_8 = arith.constant 0 : index
    %11 = vector.load %arg4[%c0_6, %c0_7, %c0_8] : memref<1x128x1024xbf16, #tpu.memory_space<vmem>>, vector<1x128x1024xbf16>
    %12 = vector.shape_cast %11 : vector<1x128x1024xbf16> to vector<128x1024xbf16>
    %c0_9 = arith.constant 0 : index
    %c0_10 = arith.constant 0 : index
    %13 = vector.load %arg5[%c0_9, %c0_10] : memref<1x1024xf32, #tpu.memory_space<vmem>>, vector<1x1024xf32>
    %14 = arith.truncf %10 : vector<16x128xf32> to vector<16x128xbf16>
    %cst_11 = arith.constant dense<0.000000e+00> : vector<16x1024xf32>
    %15 = tpu.matmul %14, %12, %cst_11 {dimension_numbers = #tpu.dot_dimension_numbers<[1], [0], [0], [1], [0, 0, 1, 1], [], []>} : vector<16x128xbf16>, vector<128x1024xbf16>, vector<16x1024xf32> -> vector<16x1024xf32>
    %16 = vector.broadcast %13 : vector<1x1024xf32> to vector<16x1024xf32>
    %17 = arith.addf %15, %16 : vector<16x1024xf32>
    %cst_12 = arith.constant dense<0.000000e+00> : vector<128xf32>
    %18 = vector.multi_reduction <add>, %10, %cst_12 [0] : vector<16x128xf32> to vector<128xf32>
    %19 = vector.shape_cast %18 : vector<128xf32> to vector<1x128xf32>
    %cst_13 = arith.constant 6.250000e-02 : f32
    %20 = vector.broadcast %cst_13 : f32 to vector<1x128xf32>
    %21 = arith.mulf %19, %20 : vector<1x128xf32>
    %22 = vector.broadcast %21 : vector<1x128xf32> to vector<16x128xf32>
    %23 = arith.subf %10, %22 : vector<16x128xf32>
    %24 = arith.extf %12 : vector<128x1024xbf16> to vector<128x1024xf32>
    %cst_14 = arith.constant dense<0.000000e+00> : vector<1x1024xf32>
    %25 = tpu.matmul %19, %24, %cst_14 {dimension_numbers = #tpu.dot_dimension_numbers<[1], [0], [0], [1], [0, 0, 1, 1], [], []>} : vector<1x128xf32>, vector<128x1024xf32>, vector<1x1024xf32> -> vector<1x1024xf32>
    %cst_15 = arith.constant 1.600000e+01 : f32
    %26 = vector.broadcast %cst_15 : f32 to vector<1x1024xf32>
    %27 = arith.mulf %26, %13 : vector<1x1024xf32>
    %28 = arith.addf %25, %27 : vector<1x1024xf32>
    %29 = arith.truncf %23 : vector<16x128xf32> to vector<16x128xbf16>
    %cst_16 = arith.constant dense<0.000000e+00> : vector<128x128xf32>
    %30 = tpu.matmul %29, %29, %cst_16 {dimension_numbers = #tpu.dot_dimension_numbers<[0], [0], [1], [1], [0, 1, 1, 1], [], []>} : vector<16x128xbf16>, vector<16x128xbf16>, vector<128x128xf32> -> vector<128x128xf32>
    %31 = arith.truncf %30 : vector<128x128xf32> to vector<128x128xbf16>
    %cst_17 = arith.constant dense<0.000000e+00> : vector<128x1024xf32>
    %32 = tpu.matmul %31, %12, %cst_17 {dimension_numbers = #tpu.dot_dimension_numbers<[1], [0], [0], [1], [0, 0, 1, 1], [], []>} : vector<128x128xbf16>, vector<128x1024xbf16>, vector<128x1024xf32> -> vector<128x1024xf32>
    %33 = arith.mulf %24, %32 : vector<128x1024xf32>
    %cst_18 = arith.constant dense<0.000000e+00> : vector<1024xf32>
    %34 = vector.multi_reduction <add>, %33, %cst_18 [0] : vector<128x1024xf32> to vector<1024xf32>
    %35 = vector.shape_cast %34 : vector<1024xf32> to vector<1x1024xf32>
    %cst_19 = arith.constant dense<0xFF800000> : vector<1024xf32>
    %36 = vector.multi_reduction <maximumf>, %17, %cst_19 [0] : vector<16x1024xf32> to vector<1024xf32>
    %37 = vector.shape_cast %36 : vector<1024xf32> to vector<1x1024xf32>
    %cst_20 = arith.constant dense<0x7F800000> : vector<1024xf32>
    %38 = vector.multi_reduction <minimumf>, %17, %cst_20 [0] : vector<16x1024xf32> to vector<1024xf32>
    %39 = vector.shape_cast %38 : vector<1024xf32> to vector<1x1024xf32>
    %cst_21 = arith.constant 0.000000e+00 : f32
    %40 = vector.broadcast %cst_21 : f32 to vector<4x1024xf32>
    %41 = tpu.concatenate %28, %35, %37, %39, %40 in 0 : vector<1x1024xf32>, vector<1x1024xf32>, vector<1x1024xf32>, vector<1x1024xf32>, vector<4x1024xf32> -> vector<8x1024xf32>
    %c0_22 = arith.constant 0 : index
    %c0_23 = arith.constant 0 : index
    %c0_24 = arith.constant 0 : index
    %c0_25 = arith.constant 0 : index
    %42 = vector.load %arg8[%c0_22, %c0_23, %c0_24, %c0_25] : memref<1x1x8x1024xf32, #tpu.memory_space<vmem>>, vector<1x1x8x1024xf32>
    %43 = vector.shape_cast %42 : vector<1x1x8x1024xf32> to vector<8x1024xf32>
    %44 = vector.shape_cast %41 : vector<8x1024xf32> to vector<1x1x8x1024xf32>
    tpu.vector_store %arg8[%c0_22, %c0_23, %c0_24, %c0_25], %44 {strides = array<i32>} : memref<1x1x8x1024xf32, #tpu.memory_space<vmem>>, vector<1x1x8x1024xf32>,
    return
  }
  func.func @transform_0(%arg0: i32, %arg1: i32, %arg2: i32) -> (i32, i32, i32) {
    %c0_i32 = arith.constant 0 : i32
    %c0_i32_0 = arith.constant 0 : i32
    return %arg1, %arg0, %c0_i32 : i32, i32, i32
  }
  func.func @transform_1(%arg0: i32, %arg1: i32, %arg2: i32) -> (i32, i32, i32) {
    %c0_i32 = arith.constant 0 : i32
    %c0_i32_0 = arith.constant 0 : i32
    %c0_i32_1 = arith.constant 0 : i32
    return %c0_i32, %c0_i32_0, %arg2 : i32, i32, i32
  }
  func.func @transform_2(%arg0: i32, %arg1: i32, %arg2: i32) -> (i32, i32) {
    %c0_i32 = arith.constant 0 : i32
    %c0_i32_0 = arith.constant 0 : i32
    return %c0_i32, %arg2 : i32, i32
  }
  func.func @transform_3(%arg0: i32, %arg1: i32, %arg2: i32) -> (i32, i32) {
    %c0_i32 = arith.constant 0 : i32
    %c0_i32_0 = arith.constant 0 : i32
    %c0_i32_1 = arith.constant 0 : i32
    return %c0_i32, %c0_i32_0 : i32, i32
  }
  func.func @transform_4(%arg0: i32, %arg1: i32, %arg2: i32) -> (i32, i32) {
    %c0_i32 = arith.constant 0 : i32
    %c0_i32_0 = arith.constant 0 : i32
    %c0_i32_1 = arith.constant 0 : i32
    return %c0_i32, %c0_i32_0 : i32, i32
  }
  func.func @transform_5(%arg0: i32, %arg1: i32, %arg2: i32) -> (i32, i32, i32, i32) {
    %c0_i32 = arith.constant 0 : i32
    %c0_i32_0 = arith.constant 0 : i32
    return %arg1, %arg0, %c0_i32, %arg2 : i32, i32, i32, i32
  }
}

module attributes {stable_mosaic.version = 11 : i64} {
  func.func @_conv_bn_stats_kernel(%arg0: i32, %arg1: i32, %arg2: i32, %arg3: memref<1x16x8xf32, #tpu.memory_space<vmem>>, %arg4: memref<1x8x64xbf16, #tpu.memory_space<vmem>>, %arg5: memref<1x64xf32, #tpu.memory_space<vmem>>, %arg6: memref<1x8xf32, #tpu.memory_space<vmem>>, %arg7: memref<1x8xf32, #tpu.memory_space<vmem>>, %arg8: memref<1x16x64xbf16, #tpu.memory_space<vmem>>, %arg9: memref<1x1x8x64xf32, #tpu.memory_space<vmem>>) attributes {dimension_semantics = [#tpu.dimension_semantics<parallel>, #tpu.dimension_semantics<parallel>, #tpu.dimension_semantics<arbitrary>], iteration_bounds = array<i64: 1, 2, 1>, scalar_prefetch = 0 : i64, scratch_operands = 0 : i64, tpu.core_type = #tpu.core_type<tc>, window_params = [{transform_indices = @transform_0, window_bounds = array<i64: 1, 16, 8>}, {transform_indices = @transform_1, window_bounds = array<i64: 1, 8, 64>}, {transform_indices = @transform_2, window_bounds = array<i64: 1, 64>}, {pipeline_mode = #tpu.pipeline_mode<synchronous>, transform_indices = @transform_3, window_bounds = array<i64: 1, 8>}, {pipeline_mode = #tpu.pipeline_mode<synchronous>, transform_indices = @transform_4, window_bounds = array<i64: 1, 8>}, {transform_indices = @transform_5, window_bounds = array<i64: 1, 16, 64>}, {transform_indices = @transform_6, window_bounds = array<i64: 1, 1, 8, 64>}]} {
    %c0 = arith.constant 0 : index
    %c0_0 = arith.constant 0 : index
    %c0_1 = arith.constant 0 : index
    %0 = vector.load %arg3[%c0, %c0_0, %c0_1] : memref<1x16x8xf32, #tpu.memory_space<vmem>>, vector<1x16x8xf32>
    %1 = vector.shape_cast %0 : vector<1x16x8xf32> to vector<16x8xf32>
    %c0_2 = arith.constant 0 : index
    %c0_3 = arith.constant 0 : index
    %c0_4 = arith.constant 0 : index
    %2 = vector.load %arg4[%c0_2, %c0_3, %c0_4] : memref<1x8x64xbf16, #tpu.memory_space<vmem>>, vector<1x8x64xbf16>
    %3 = vector.shape_cast %2 : vector<1x8x64xbf16> to vector<8x64xbf16>
    %c0_5 = arith.constant 0 : index
    %c0_6 = arith.constant 0 : index
    %4 = vector.load %arg5[%c0_5, %c0_6] : memref<1x64xf32, #tpu.memory_space<vmem>>, vector<1x64xf32>
    %5 = arith.truncf %1 : vector<16x8xf32> to vector<16x8xbf16>
    %cst = arith.constant dense<0.000000e+00> : vector<16x64xf32>
    %6 = tpu.matmul %5, %3, %cst {dimension_numbers = #tpu.dot_dimension_numbers<[1], [0], [0], [1], [0, 0, 1, 1], [], []>} : vector<16x8xbf16>, vector<8x64xbf16>, vector<16x64xf32> -> vector<16x64xf32>
    %7 = vector.broadcast %4 : vector<1x64xf32> to vector<16x64xf32>
    %8 = arith.addf %6, %7 : vector<16x64xf32>
    %cst_7 = arith.constant dense<0.000000e+00> : vector<64xf32>
    %9 = vector.multi_reduction <add>, %8, %cst_7 [0] : vector<16x64xf32> to vector<64xf32>
    %10 = vector.shape_cast %9 : vector<64xf32> to vector<1x64xf32>
    %cst_8 = arith.constant 6.250000e-02 : f32
    %11 = vector.broadcast %cst_8 : f32 to vector<1x64xf32>
    %12 = arith.mulf %10, %11 : vector<1x64xf32>
    %13 = vector.broadcast %12 : vector<1x64xf32> to vector<16x64xf32>
    %14 = arith.subf %8, %13 : vector<16x64xf32>
    %15 = arith.mulf %14, %14 : vector<16x64xf32>
    %cst_9 = arith.constant dense<0.000000e+00> : vector<64xf32>
    %16 = vector.multi_reduction <add>, %15, %cst_9 [0] : vector<16x64xf32> to vector<64xf32>
    %17 = vector.shape_cast %16 : vector<64xf32> to vector<1x64xf32>
    %18 = arith.truncf %8 : vector<16x64xf32> to vector<16x64xbf16>
    %c0_10 = arith.constant 0 : index
    %c0_11 = arith.constant 0 : index
    %c0_12 = arith.constant 0 : index
    %19 = vector.load %arg8[%c0_10, %c0_11, %c0_12] : memref<1x16x64xbf16, #tpu.memory_space<vmem>>, vector<1x16x64xbf16>
    %20 = vector.shape_cast %19 : vector<1x16x64xbf16> to vector<16x64xbf16>
    %21 = vector.shape_cast %18 : vector<16x64xbf16> to vector<1x16x64xbf16>
    tpu.vector_store %arg8[%c0_10, %c0_11, %c0_12], %21 {strides = array<i32>} : memref<1x16x64xbf16, #tpu.memory_space<vmem>>, vector<1x16x64xbf16>,
    %cst_13 = arith.constant 0.000000e+00 : f32
    %22 = vector.broadcast %cst_13 : f32 to vector<6x64xf32>
    %23 = tpu.concatenate %10, %17, %22 in 0 : vector<1x64xf32>, vector<1x64xf32>, vector<6x64xf32> -> vector<8x64xf32>
    %c0_14 = arith.constant 0 : index
    %c0_15 = arith.constant 0 : index
    %c0_16 = arith.constant 0 : index
    %c0_17 = arith.constant 0 : index
    %24 = vector.load %arg9[%c0_14, %c0_15, %c0_16, %c0_17] : memref<1x1x8x64xf32, #tpu.memory_space<vmem>>, vector<1x1x8x64xf32>
    %25 = vector.shape_cast %24 : vector<1x1x8x64xf32> to vector<8x64xf32>
    %26 = vector.shape_cast %23 : vector<8x64xf32> to vector<1x1x8x64xf32>
    tpu.vector_store %arg9[%c0_14, %c0_15, %c0_16, %c0_17], %26 {strides = array<i32>} : memref<1x1x8x64xf32, #tpu.memory_space<vmem>>, vector<1x1x8x64xf32>,
    return
  }
  func.func @transform_0(%arg0: i32, %arg1: i32, %arg2: i32) -> (i32, i32, i32) {
    %c0_i32 = arith.constant 0 : i32
    %c0_i32_0 = arith.constant 0 : i32
    return %arg1, %arg0, %c0_i32 : i32, i32, i32
  }
  func.func @transform_1(%arg0: i32, %arg1: i32, %arg2: i32) -> (i32, i32, i32) {
    %c0_i32 = arith.constant 0 : i32
    %c0_i32_0 = arith.constant 0 : i32
    return %arg1, %c0_i32, %arg2 : i32, i32, i32
  }
  func.func @transform_2(%arg0: i32, %arg1: i32, %arg2: i32) -> (i32, i32) {
    %c0_i32 = arith.constant 0 : i32
    %c0_i32_0 = arith.constant 0 : i32
    return %c0_i32, %arg2 : i32, i32
  }
  func.func @transform_3(%arg0: i32, %arg1: i32, %arg2: i32) -> (i32, i32) {
    %c0_i32 = arith.constant 0 : i32
    %c0_i32_0 = arith.constant 0 : i32
    %c0_i32_1 = arith.constant 0 : i32
    return %c0_i32, %c0_i32_0 : i32, i32
  }
  func.func @transform_4(%arg0: i32, %arg1: i32, %arg2: i32) -> (i32, i32) {
    %c0_i32 = arith.constant 0 : i32
    %c0_i32_0 = arith.constant 0 : i32
    %c0_i32_1 = arith.constant 0 : i32
    return %c0_i32, %c0_i32_0 : i32, i32
  }
  func.func @transform_5(%arg0: i32, %arg1: i32, %arg2: i32) -> (i32, i32, i32) {
    %c0_i32 = arith.constant 0 : i32
    return %arg1, %arg0, %arg2 : i32, i32, i32
  }
  func.func @transform_6(%arg0: i32, %arg1: i32, %arg2: i32) -> (i32, i32, i32, i32) {
    %c0_i32 = arith.constant 0 : i32
    %c0_i32_0 = arith.constant 0 : i32
    return %arg1, %arg0, %c0_i32, %arg2 : i32, i32, i32, i32
  }
}

module attributes {stable_mosaic.version = 11 : i64} {
  func.func @_conv_bn_stats_kernel(%arg0: i32, %arg1: i32, %arg2: i32, %arg3: memref<1x16x64xbf16, #tpu.memory_space<vmem>>, %arg4: memref<1x64x64xbf16, #tpu.memory_space<vmem>>, %arg5: memref<1x64xf32, #tpu.memory_space<vmem>>, %arg6: memref<1x64xf32, #tpu.memory_space<vmem>>, %arg7: memref<1x64xf32, #tpu.memory_space<vmem>>, %arg8: memref<1x16x64xbf16, #tpu.memory_space<vmem>>, %arg9: memref<1x1x8x64xf32, #tpu.memory_space<vmem>>) attributes {dimension_semantics = [#tpu.dimension_semantics<parallel>, #tpu.dimension_semantics<parallel>, #tpu.dimension_semantics<arbitrary>], iteration_bounds = array<i64: 1, 2, 1>, scalar_prefetch = 0 : i64, scratch_operands = 0 : i64, tpu.core_type = #tpu.core_type<tc>, window_params = [{transform_indices = @transform_0, window_bounds = array<i64: 1, 16, 64>}, {transform_indices = @transform_1, window_bounds = array<i64: 1, 64, 64>}, {transform_indices = @transform_2, window_bounds = array<i64: 1, 64>}, {pipeline_mode = #tpu.pipeline_mode<synchronous>, transform_indices = @transform_3, window_bounds = array<i64: 1, 64>}, {pipeline_mode = #tpu.pipeline_mode<synchronous>, transform_indices = @transform_4, window_bounds = array<i64: 1, 64>}, {transform_indices = @transform_5, window_bounds = array<i64: 1, 16, 64>}, {transform_indices = @transform_6, window_bounds = array<i64: 1, 1, 8, 64>}]} {
    %c0 = arith.constant 0 : index
    %c0_0 = arith.constant 0 : index
    %c0_1 = arith.constant 0 : index
    %0 = vector.load %arg3[%c0, %c0_0, %c0_1] : memref<1x16x64xbf16, #tpu.memory_space<vmem>>, vector<1x16x64xbf16>
    %1 = vector.shape_cast %0 : vector<1x16x64xbf16> to vector<16x64xbf16>
    %2 = arith.extf %1 : vector<16x64xbf16> to vector<16x64xf32>
    %c0_2 = arith.constant 0 : index
    %c0_3 = arith.constant 0 : index
    %3 = vector.load %arg6[%c0_2, %c0_3] : memref<1x64xf32, #tpu.memory_space<vmem>>, vector<1x64xf32>
    %4 = vector.broadcast %3 : vector<1x64xf32> to vector<16x64xf32>
    %5 = arith.mulf %2, %4 : vector<16x64xf32>
    %c0_4 = arith.constant 0 : index
    %c0_5 = arith.constant 0 : index
    %6 = vector.load %arg7[%c0_4, %c0_5] : memref<1x64xf32, #tpu.memory_space<vmem>>, vector<1x64xf32>
    %7 = vector.broadcast %6 : vector<1x64xf32> to vector<16x64xf32>
    %8 = arith.addf %5, %7 : vector<16x64xf32>
    %cst = arith.constant 0.000000e+00 : f32
    %9 = vector.broadcast %cst : f32 to vector<16x64xf32>
    %10 = arith.maximumf %8, %9 : vector<16x64xf32>
    %c0_6 = arith.constant 0 : index
    %c0_7 = arith.constant 0 : index
    %c0_8 = arith.constant 0 : index
    %11 = vector.load %arg4[%c0_6, %c0_7, %c0_8] : memref<1x64x64xbf16, #tpu.memory_space<vmem>>, vector<1x64x64xbf16>
    %12 = vector.shape_cast %11 : vector<1x64x64xbf16> to vector<64x64xbf16>
    %c0_9 = arith.constant 0 : index
    %c0_10 = arith.constant 0 : index
    %13 = vector.load %arg5[%c0_9, %c0_10] : memref<1x64xf32, #tpu.memory_space<vmem>>, vector<1x64xf32>
    %14 = arith.truncf %10 : vector<16x64xf32> to vector<16x64xbf16>
    %cst_11 = arith.constant dense<0.000000e+00> : vector<16x64xf32>
    %15 = tpu.matmul %14, %12, %cst_11 {dimension_numbers = #tpu.dot_dimension_numbers<[1], [0], [0], [1], [0, 0, 1, 1], [], []>} : vector<16x64xbf16>, vector<64x64xbf16>, vector<16x64xf32> -> vector<16x64xf32>
    %16 = vector.broadcast %13 : vector<1x64xf32> to vector<16x64xf32>
    %17 = arith.addf %15, %16 : vector<16x64xf32>
    %cst_12 = arith.constant dense<0.000000e+00> : vector<64xf32>
    %18 = vector.multi_reduction <add>, %17, %cst_12 [0] : vector<16x64xf32> to vector<64xf32>
    %19 = vector.shape_cast %18 : vector<64xf32> to vector<1x64xf32>
    %cst_13 = arith.constant 6.250000e-02 : f32
    %20 = vector.broadcast %cst_13 : f32 to vector<1x64xf32>
    %21 = arith.mulf %19, %20 : vector<1x64xf32>
    %22 = vector.broadcast %21 : vector<1x64xf32> to vector<16x64xf32>
    %23 = arith.subf %17, %22 : vector<16x64xf32>
    %24 = arith.mulf %23, %23 : vector<16x64xf32>
    %cst_14 = arith.constant dense<0.000000e+00> : vector<64xf32>
    %25 = vector.multi_reduction <add>, %24, %cst_14 [0] : vector<16x64xf32> to vector<64xf32>
    %26 = vector.shape_cast %25 : vector<64xf32> to vector<1x64xf32>
    %27 = arith.truncf %17 : vector<16x64xf32> to vector<16x64xbf16>
    %c0_15 = arith.constant 0 : index
    %c0_16 = arith.constant 0 : index
    %c0_17 = arith.constant 0 : index
    %28 = vector.load %arg8[%c0_15, %c0_16, %c0_17] : memref<1x16x64xbf16, #tpu.memory_space<vmem>>, vector<1x16x64xbf16>
    %29 = vector.shape_cast %28 : vector<1x16x64xbf16> to vector<16x64xbf16>
    %30 = vector.shape_cast %27 : vector<16x64xbf16> to vector<1x16x64xbf16>
    tpu.vector_store %arg8[%c0_15, %c0_16, %c0_17], %30 {strides = array<i32>} : memref<1x16x64xbf16, #tpu.memory_space<vmem>>, vector<1x16x64xbf16>,
    %cst_18 = arith.constant 0.000000e+00 : f32
    %31 = vector.broadcast %cst_18 : f32 to vector<6x64xf32>
    %32 = tpu.concatenate %19, %26, %31 in 0 : vector<1x64xf32>, vector<1x64xf32>, vector<6x64xf32> -> vector<8x64xf32>
    %c0_19 = arith.constant 0 : index
    %c0_20 = arith.constant 0 : index
    %c0_21 = arith.constant 0 : index
    %c0_22 = arith.constant 0 : index
    %33 = vector.load %arg9[%c0_19, %c0_20, %c0_21, %c0_22] : memref<1x1x8x64xf32, #tpu.memory_space<vmem>>, vector<1x1x8x64xf32>
    %34 = vector.shape_cast %33 : vector<1x1x8x64xf32> to vector<8x64xf32>
    %35 = vector.shape_cast %32 : vector<8x64xf32> to vector<1x1x8x64xf32>
    tpu.vector_store %arg9[%c0_19, %c0_20, %c0_21, %c0_22], %35 {strides = array<i32>} : memref<1x1x8x64xf32, #tpu.memory_space<vmem>>, vector<1x1x8x64xf32>,
    return
  }
  func.func @transform_0(%arg0: i32, %arg1: i32, %arg2: i32) -> (i32, i32, i32) {
    %c0_i32 = arith.constant 0 : i32
    %c0_i32_0 = arith.constant 0 : i32
    return %arg1, %arg0, %c0_i32 : i32, i32, i32
  }
  func.func @transform_1(%arg0: i32, %arg1: i32, %arg2: i32) -> (i32, i32, i32) {
    %c0_i32 = arith.constant 0 : i32
    %c0_i32_0 = arith.constant 0 : i32
    %c0_i32_1 = arith.constant 0 : i32
    return %c0_i32, %c0_i32_0, %arg2 : i32, i32, i32
  }
  func.func @transform_2(%arg0: i32, %arg1: i32, %arg2: i32) -> (i32, i32) {
    %c0_i32 = arith.constant 0 : i32
    %c0_i32_0 = arith.constant 0 : i32
    return %c0_i32, %arg2 : i32, i32
  }
  func.func @transform_3(%arg0: i32, %arg1: i32, %arg2: i32) -> (i32, i32) {
    %c0_i32 = arith.constant 0 : i32
    %c0_i32_0 = arith.constant 0 : i32
    %c0_i32_1 = arith.constant 0 : i32
    return %c0_i32, %c0_i32_0 : i32, i32
  }
  func.func @transform_4(%arg0: i32, %arg1: i32, %arg2: i32) -> (i32, i32) {
    %c0_i32 = arith.constant 0 : i32
    %c0_i32_0 = arith.constant 0 : i32
    %c0_i32_1 = arith.constant 0 : i32
    return %c0_i32, %c0_i32_0 : i32, i32
  }
  func.func @transform_5(%arg0: i32, %arg1: i32, %arg2: i32) -> (i32, i32, i32) {
    %c0_i32 = arith.constant 0 : i32
    return %arg1, %arg0, %arg2 : i32, i32, i32
  }
  func.func @transform_6(%arg0: i32, %arg1: i32, %arg2: i32) -> (i32, i32, i32, i32) {
    %c0_i32 = arith.constant 0 : i32
    %c0_i32_0 = arith.constant 0 : i32
    return %arg1, %arg0, %c0_i32, %arg2 : i32, i32, i32, i32
  }
}

module attributes {stable_mosaic.version = 11 : i64} {
  func.func @_conv_bn_stats_kernel(%arg0: i32, %arg1: i32, %arg2: i32, %arg3: memref<1x16x64xbf16, #tpu.memory_space<vmem>>, %arg4: memref<1x64x128xbf16, #tpu.memory_space<vmem>>, %arg5: memref<1x128xf32, #tpu.memory_space<vmem>>, %arg6: memref<1x64xf32, #tpu.memory_space<vmem>>, %arg7: memref<1x64xf32, #tpu.memory_space<vmem>>, %arg8: memref<1x16x128xbf16, #tpu.memory_space<vmem>>, %arg9: memref<1x1x8x128xf32, #tpu.memory_space<vmem>>) attributes {dimension_semantics = [#tpu.dimension_semantics<parallel>, #tpu.dimension_semantics<parallel>, #tpu.dimension_semantics<arbitrary>], iteration_bounds = array<i64: 1, 2, 1>, scalar_prefetch = 0 : i64, scratch_operands = 0 : i64, tpu.core_type = #tpu.core_type<tc>, window_params = [{transform_indices = @transform_0, window_bounds = array<i64: 1, 16, 64>}, {transform_indices = @transform_1, window_bounds = array<i64: 1, 64, 128>}, {transform_indices = @transform_2, window_bounds = array<i64: 1, 128>}, {pipeline_mode = #tpu.pipeline_mode<synchronous>, transform_indices = @transform_3, window_bounds = array<i64: 1, 64>}, {pipeline_mode = #tpu.pipeline_mode<synchronous>, transform_indices = @transform_4, window_bounds = array<i64: 1, 64>}, {transform_indices = @transform_5, window_bounds = array<i64: 1, 16, 128>}, {transform_indices = @transform_6, window_bounds = array<i64: 1, 1, 8, 128>}]} {
    %c0 = arith.constant 0 : index
    %c0_0 = arith.constant 0 : index
    %c0_1 = arith.constant 0 : index
    %0 = vector.load %arg3[%c0, %c0_0, %c0_1] : memref<1x16x64xbf16, #tpu.memory_space<vmem>>, vector<1x16x64xbf16>
    %1 = vector.shape_cast %0 : vector<1x16x64xbf16> to vector<16x64xbf16>
    %2 = arith.extf %1 : vector<16x64xbf16> to vector<16x64xf32>
    %c0_2 = arith.constant 0 : index
    %c0_3 = arith.constant 0 : index
    %3 = vector.load %arg6[%c0_2, %c0_3] : memref<1x64xf32, #tpu.memory_space<vmem>>, vector<1x64xf32>
    %4 = vector.broadcast %3 : vector<1x64xf32> to vector<16x64xf32>
    %5 = arith.mulf %2, %4 : vector<16x64xf32>
    %c0_4 = arith.constant 0 : index
    %c0_5 = arith.constant 0 : index
    %6 = vector.load %arg7[%c0_4, %c0_5] : memref<1x64xf32, #tpu.memory_space<vmem>>, vector<1x64xf32>
    %7 = vector.broadcast %6 : vector<1x64xf32> to vector<16x64xf32>
    %8 = arith.addf %5, %7 : vector<16x64xf32>
    %cst = arith.constant 0.000000e+00 : f32
    %9 = vector.broadcast %cst : f32 to vector<16x64xf32>
    %10 = arith.maximumf %8, %9 : vector<16x64xf32>
    %c0_6 = arith.constant 0 : index
    %c0_7 = arith.constant 0 : index
    %c0_8 = arith.constant 0 : index
    %11 = vector.load %arg4[%c0_6, %c0_7, %c0_8] : memref<1x64x128xbf16, #tpu.memory_space<vmem>>, vector<1x64x128xbf16>
    %12 = vector.shape_cast %11 : vector<1x64x128xbf16> to vector<64x128xbf16>
    %c0_9 = arith.constant 0 : index
    %c0_10 = arith.constant 0 : index
    %13 = vector.load %arg5[%c0_9, %c0_10] : memref<1x128xf32, #tpu.memory_space<vmem>>, vector<1x128xf32>
    %14 = arith.truncf %10 : vector<16x64xf32> to vector<16x64xbf16>
    %cst_11 = arith.constant dense<0.000000e+00> : vector<16x128xf32>
    %15 = tpu.matmul %14, %12, %cst_11 {dimension_numbers = #tpu.dot_dimension_numbers<[1], [0], [0], [1], [0, 0, 1, 1], [], []>} : vector<16x64xbf16>, vector<64x128xbf16>, vector<16x128xf32> -> vector<16x128xf32>
    %16 = vector.broadcast %13 : vector<1x128xf32> to vector<16x128xf32>
    %17 = arith.addf %15, %16 : vector<16x128xf32>
    %cst_12 = arith.constant dense<0.000000e+00> : vector<128xf32>
    %18 = vector.multi_reduction <add>, %17, %cst_12 [0] : vector<16x128xf32> to vector<128xf32>
    %19 = vector.shape_cast %18 : vector<128xf32> to vector<1x128xf32>
    %cst_13 = arith.constant 6.250000e-02 : f32
    %20 = vector.broadcast %cst_13 : f32 to vector<1x128xf32>
    %21 = arith.mulf %19, %20 : vector<1x128xf32>
    %22 = vector.broadcast %21 : vector<1x128xf32> to vector<16x128xf32>
    %23 = arith.subf %17, %22 : vector<16x128xf32>
    %24 = arith.mulf %23, %23 : vector<16x128xf32>
    %cst_14 = arith.constant dense<0.000000e+00> : vector<128xf32>
    %25 = vector.multi_reduction <add>, %24, %cst_14 [0] : vector<16x128xf32> to vector<128xf32>
    %26 = vector.shape_cast %25 : vector<128xf32> to vector<1x128xf32>
    %27 = arith.truncf %17 : vector<16x128xf32> to vector<16x128xbf16>
    %c0_15 = arith.constant 0 : index
    %c0_16 = arith.constant 0 : index
    %c0_17 = arith.constant 0 : index
    %28 = vector.load %arg8[%c0_15, %c0_16, %c0_17] : memref<1x16x128xbf16, #tpu.memory_space<vmem>>, vector<1x16x128xbf16>
    %29 = vector.shape_cast %28 : vector<1x16x128xbf16> to vector<16x128xbf16>
    %30 = vector.shape_cast %27 : vector<16x128xbf16> to vector<1x16x128xbf16>
    tpu.vector_store %arg8[%c0_15, %c0_16, %c0_17], %30 {strides = array<i32>} : memref<1x16x128xbf16, #tpu.memory_space<vmem>>, vector<1x16x128xbf16>,
    %cst_18 = arith.constant 0.000000e+00 : f32
    %31 = vector.broadcast %cst_18 : f32 to vector<6x128xf32>
    %32 = tpu.concatenate %19, %26, %31 in 0 : vector<1x128xf32>, vector<1x128xf32>, vector<6x128xf32> -> vector<8x128xf32>
    %c0_19 = arith.constant 0 : index
    %c0_20 = arith.constant 0 : index
    %c0_21 = arith.constant 0 : index
    %c0_22 = arith.constant 0 : index
    %33 = vector.load %arg9[%c0_19, %c0_20, %c0_21, %c0_22] : memref<1x1x8x128xf32, #tpu.memory_space<vmem>>, vector<1x1x8x128xf32>
    %34 = vector.shape_cast %33 : vector<1x1x8x128xf32> to vector<8x128xf32>
    %35 = vector.shape_cast %32 : vector<8x128xf32> to vector<1x1x8x128xf32>
    tpu.vector_store %arg9[%c0_19, %c0_20, %c0_21, %c0_22], %35 {strides = array<i32>} : memref<1x1x8x128xf32, #tpu.memory_space<vmem>>, vector<1x1x8x128xf32>,
    return
  }
  func.func @transform_0(%arg0: i32, %arg1: i32, %arg2: i32) -> (i32, i32, i32) {
    %c0_i32 = arith.constant 0 : i32
    %c0_i32_0 = arith.constant 0 : i32
    return %arg1, %arg0, %c0_i32 : i32, i32, i32
  }
  func.func @transform_1(%arg0: i32, %arg1: i32, %arg2: i32) -> (i32, i32, i32) {
    %c0_i32 = arith.constant 0 : i32
    %c0_i32_0 = arith.constant 0 : i32
    %c0_i32_1 = arith.constant 0 : i32
    return %c0_i32, %c0_i32_0, %arg2 : i32, i32, i32
  }
  func.func @transform_2(%arg0: i32, %arg1: i32, %arg2: i32) -> (i32, i32) {
    %c0_i32 = arith.constant 0 : i32
    %c0_i32_0 = arith.constant 0 : i32
    return %c0_i32, %arg2 : i32, i32
  }
  func.func @transform_3(%arg0: i32, %arg1: i32, %arg2: i32) -> (i32, i32) {
    %c0_i32 = arith.constant 0 : i32
    %c0_i32_0 = arith.constant 0 : i32
    %c0_i32_1 = arith.constant 0 : i32
    return %c0_i32, %c0_i32_0 : i32, i32
  }
  func.func @transform_4(%arg0: i32, %arg1: i32, %arg2: i32) -> (i32, i32) {
    %c0_i32 = arith.constant 0 : i32
    %c0_i32_0 = arith.constant 0 : i32
    %c0_i32_1 = arith.constant 0 : i32
    return %c0_i32, %c0_i32_0 : i32, i32
  }
  func.func @transform_5(%arg0: i32, %arg1: i32, %arg2: i32) -> (i32, i32, i32) {
    %c0_i32 = arith.constant 0 : i32
    return %arg1, %arg0, %arg2 : i32, i32, i32
  }
  func.func @transform_6(%arg0: i32, %arg1: i32, %arg2: i32) -> (i32, i32, i32, i32) {
    %c0_i32 = arith.constant 0 : i32
    %c0_i32_0 = arith.constant 0 : i32
    return %arg1, %arg0, %c0_i32, %arg2 : i32, i32, i32, i32
  }
}

module attributes {stable_mosaic.version = 11 : i64} {
  func.func @_conv_bn_stats_kernel(%arg0: i32, %arg1: i32, %arg2: i32, %arg3: memref<1x16x128xbf16, #tpu.memory_space<vmem>>, %arg4: memref<1x128x1024xbf16, #tpu.memory_space<vmem>>, %arg5: memref<1x1024xf32, #tpu.memory_space<vmem>>, %arg6: memref<1x128xf32, #tpu.memory_space<vmem>>, %arg7: memref<1x128xf32, #tpu.memory_space<vmem>>, %arg8: memref<1x1x8x1024xf32, #tpu.memory_space<vmem>>) attributes {dimension_semantics = [#tpu.dimension_semantics<parallel>, #tpu.dimension_semantics<parallel>, #tpu.dimension_semantics<arbitrary>], iteration_bounds = array<i64: 1, 2, 1>, scalar_prefetch = 0 : i64, scratch_operands = 0 : i64, tpu.core_type = #tpu.core_type<tc>, window_params = [{transform_indices = @transform_0, window_bounds = array<i64: 1, 16, 128>}, {transform_indices = @transform_1, window_bounds = array<i64: 1, 128, 1024>}, {transform_indices = @transform_2, window_bounds = array<i64: 1, 1024>}, {pipeline_mode = #tpu.pipeline_mode<synchronous>, transform_indices = @transform_3, window_bounds = array<i64: 1, 128>}, {pipeline_mode = #tpu.pipeline_mode<synchronous>, transform_indices = @transform_4, window_bounds = array<i64: 1, 128>}, {transform_indices = @transform_5, window_bounds = array<i64: 1, 1, 8, 1024>}]} {
    %c0 = arith.constant 0 : index
    %c0_0 = arith.constant 0 : index
    %c0_1 = arith.constant 0 : index
    %0 = vector.load %arg3[%c0, %c0_0, %c0_1] : memref<1x16x128xbf16, #tpu.memory_space<vmem>>, vector<1x16x128xbf16>
    %1 = vector.shape_cast %0 : vector<1x16x128xbf16> to vector<16x128xbf16>
    %2 = arith.extf %1 : vector<16x128xbf16> to vector<16x128xf32>
    %c0_2 = arith.constant 0 : index
    %c0_3 = arith.constant 0 : index
    %3 = vector.load %arg6[%c0_2, %c0_3] : memref<1x128xf32, #tpu.memory_space<vmem>>, vector<1x128xf32>
    %4 = vector.broadcast %3 : vector<1x128xf32> to vector<16x128xf32>
    %5 = arith.mulf %2, %4 : vector<16x128xf32>
    %c0_4 = arith.constant 0 : index
    %c0_5 = arith.constant 0 : index
    %6 = vector.load %arg7[%c0_4, %c0_5] : memref<1x128xf32, #tpu.memory_space<vmem>>, vector<1x128xf32>
    %7 = vector.broadcast %6 : vector<1x128xf32> to vector<16x128xf32>
    %8 = arith.addf %5, %7 : vector<16x128xf32>
    %cst = arith.constant 0.000000e+00 : f32
    %9 = vector.broadcast %cst : f32 to vector<16x128xf32>
    %10 = arith.maximumf %8, %9 : vector<16x128xf32>
    %c0_6 = arith.constant 0 : index
    %c0_7 = arith.constant 0 : index
    %c0_8 = arith.constant 0 : index
    %11 = vector.load %arg4[%c0_6, %c0_7, %c0_8] : memref<1x128x1024xbf16, #tpu.memory_space<vmem>>, vector<1x128x1024xbf16>
    %12 = vector.shape_cast %11 : vector<1x128x1024xbf16> to vector<128x1024xbf16>
    %c0_9 = arith.constant 0 : index
    %c0_10 = arith.constant 0 : index
    %13 = vector.load %arg5[%c0_9, %c0_10] : memref<1x1024xf32, #tpu.memory_space<vmem>>, vector<1x1024xf32>
    %14 = arith.truncf %10 : vector<16x128xf32> to vector<16x128xbf16>
    %cst_11 = arith.constant dense<0.000000e+00> : vector<16x1024xf32>
    %15 = tpu.matmul %14, %12, %cst_11 {dimension_numbers = #tpu.dot_dimension_numbers<[1], [0], [0], [1], [0, 0, 1, 1], [], []>} : vector<16x128xbf16>, vector<128x1024xbf16>, vector<16x1024xf32> -> vector<16x1024xf32>
    %16 = vector.broadcast %13 : vector<1x1024xf32> to vector<16x1024xf32>
    %17 = arith.addf %15, %16 : vector<16x1024xf32>
    %cst_12 = arith.constant dense<0.000000e+00> : vector<128xf32>
    %18 = vector.multi_reduction <add>, %10, %cst_12 [0] : vector<16x128xf32> to vector<128xf32>
    %19 = vector.shape_cast %18 : vector<128xf32> to vector<1x128xf32>
    %cst_13 = arith.constant 6.250000e-02 : f32
    %20 = vector.broadcast %cst_13 : f32 to vector<1x128xf32>
    %21 = arith.mulf %19, %20 : vector<1x128xf32>
    %22 = vector.broadcast %21 : vector<1x128xf32> to vector<16x128xf32>
    %23 = arith.subf %10, %22 : vector<16x128xf32>
    %24 = arith.extf %12 : vector<128x1024xbf16> to vector<128x1024xf32>
    %cst_14 = arith.constant dense<0.000000e+00> : vector<1x1024xf32>
    %25 = tpu.matmul %19, %24, %cst_14 {dimension_numbers = #tpu.dot_dimension_numbers<[1], [0], [0], [1], [0, 0, 1, 1], [], []>} : vector<1x128xf32>, vector<128x1024xf32>, vector<1x1024xf32> -> vector<1x1024xf32>
    %cst_15 = arith.constant 1.600000e+01 : f32
    %26 = vector.broadcast %cst_15 : f32 to vector<1x1024xf32>
    %27 = arith.mulf %26, %13 : vector<1x1024xf32>
    %28 = arith.addf %25, %27 : vector<1x1024xf32>
    %29 = arith.truncf %23 : vector<16x128xf32> to vector<16x128xbf16>
    %cst_16 = arith.constant dense<0.000000e+00> : vector<128x128xf32>
    %30 = tpu.matmul %29, %29, %cst_16 {dimension_numbers = #tpu.dot_dimension_numbers<[0], [0], [1], [1], [0, 1, 1, 1], [], []>} : vector<16x128xbf16>, vector<16x128xbf16>, vector<128x128xf32> -> vector<128x128xf32>
    %31 = arith.truncf %30 : vector<128x128xf32> to vector<128x128xbf16>
    %cst_17 = arith.constant dense<0.000000e+00> : vector<128x1024xf32>
    %32 = tpu.matmul %31, %12, %cst_17 {dimension_numbers = #tpu.dot_dimension_numbers<[1], [0], [0], [1], [0, 0, 1, 1], [], []>} : vector<128x128xbf16>, vector<128x1024xbf16>, vector<128x1024xf32> -> vector<128x1024xf32>
    %33 = arith.mulf %24, %32 : vector<128x1024xf32>
    %cst_18 = arith.constant dense<0.000000e+00> : vector<1024xf32>
    %34 = vector.multi_reduction <add>, %33, %cst_18 [0] : vector<128x1024xf32> to vector<1024xf32>
    %35 = vector.shape_cast %34 : vector<1024xf32> to vector<1x1024xf32>
    %cst_19 = arith.constant dense<0xFF800000> : vector<1024xf32>
    %36 = vector.multi_reduction <maximumf>, %17, %cst_19 [0] : vector<16x1024xf32> to vector<1024xf32>
    %37 = vector.shape_cast %36 : vector<1024xf32> to vector<1x1024xf32>
    %cst_20 = arith.constant dense<0x7F800000> : vector<1024xf32>
    %38 = vector.multi_reduction <minimumf>, %17, %cst_20 [0] : vector<16x1024xf32> to vector<1024xf32>
    %39 = vector.shape_cast %38 : vector<1024xf32> to vector<1x1024xf32>
    %cst_21 = arith.constant 0.000000e+00 : f32
    %40 = vector.broadcast %cst_21 : f32 to vector<4x1024xf32>
    %41 = tpu.concatenate %28, %35, %37, %39, %40 in 0 : vector<1x1024xf32>, vector<1x1024xf32>, vector<1x1024xf32>, vector<1x1024xf32>, vector<4x1024xf32> -> vector<8x1024xf32>
    %c0_22 = arith.constant 0 : index
    %c0_23 = arith.constant 0 : index
    %c0_24 = arith.constant 0 : index
    %c0_25 = arith.constant 0 : index
    %42 = vector.load %arg8[%c0_22, %c0_23, %c0_24, %c0_25] : memref<1x1x8x1024xf32, #tpu.memory_space<vmem>>, vector<1x1x8x1024xf32>
    %43 = vector.shape_cast %42 : vector<1x1x8x1024xf32> to vector<8x1024xf32>
    %44 = vector.shape_cast %41 : vector<8x1024xf32> to vector<1x1x8x1024xf32>
    tpu.vector_store %arg8[%c0_22, %c0_23, %c0_24, %c0_25], %44 {strides = array<i32>} : memref<1x1x8x1024xf32, #tpu.memory_space<vmem>>, vector<1x1x8x1024xf32>,
    return
  }
  func.func @transform_0(%arg0: i32, %arg1: i32, %arg2: i32) -> (i32, i32, i32) {
    %c0_i32 = arith.constant 0 : i32
    %c0_i32_0 = arith.constant 0 : i32
    return %arg1, %arg0, %c0_i32 : i32, i32, i32
  }
  func.func @transform_1(%arg0: i32, %arg1: i32, %arg2: i32) -> (i32, i32, i32) {
    %c0_i32 = arith.constant 0 : i32
    %c0_i32_0 = arith.constant 0 : i32
    %c0_i32_1 = arith.constant 0 : i32
    return %c0_i32, %c0_i32_0, %arg2 : i32, i32, i32
  }
  func.func @transform_2(%arg0: i32, %arg1: i32, %arg2: i32) -> (i32, i32) {
    %c0_i32 = arith.constant 0 : i32
    %c0_i32_0 = arith.constant 0 : i32
    return %c0_i32, %arg2 : i32, i32
  }
  func.func @transform_3(%arg0: i32, %arg1: i32, %arg2: i32) -> (i32, i32) {
    %c0_i32 = arith.constant 0 : i32
    %c0_i32_0 = arith.constant 0 : i32
    %c0_i32_1 = arith.constant 0 : i32
    return %c0_i32, %c0_i32_0 : i32, i32
  }
  func.func @transform_4(%arg0: i32, %arg1: i32, %arg2: i32) -> (i32, i32) {
    %c0_i32 = arith.constant 0 : i32
    %c0_i32_0 = arith.constant 0 : i32
    %c0_i32_1 = arith.constant 0 : i32
    return %c0_i32, %c0_i32_0 : i32, i32
  }
  func.func @transform_5(%arg0: i32, %arg1: i32, %arg2: i32) -> (i32, i32, i32, i32) {
    %c0_i32 = arith.constant 0 : i32
    %c0_i32_0 = arith.constant 0 : i32
    return %arg1, %arg0, %c0_i32, %arg2 : i32, i32, i32, i32
  }
}

module attributes {stable_mosaic.version = 11 : i64} {
  func.func @_conv_bn_stats_kernel(%arg0: i32, %arg1: i32, %arg2: i32, %arg3: memref<1x16x64xbf16, #tpu.memory_space<vmem>>, %arg4: memref<1x64x128xbf16, #tpu.memory_space<vmem>>, %arg5: memref<1x128xf32, #tpu.memory_space<vmem>>, %arg6: memref<1x64xf32, #tpu.memory_space<vmem>>, %arg7: memref<1x64xf32, #tpu.memory_space<vmem>>, %arg8: memref<1x16x128xbf16, #tpu.memory_space<vmem>>, %arg9: memref<1x1x8x128xf32, #tpu.memory_space<vmem>>) attributes {dimension_semantics = [#tpu.dimension_semantics<parallel>, #tpu.dimension_semantics<parallel>, #tpu.dimension_semantics<arbitrary>], iteration_bounds = array<i64: 1, 2, 1>, scalar_prefetch = 0 : i64, scratch_operands = 0 : i64, tpu.core_type = #tpu.core_type<tc>, window_params = [{transform_indices = @transform_0, window_bounds = array<i64: 1, 16, 64>}, {transform_indices = @transform_1, window_bounds = array<i64: 1, 64, 128>}, {transform_indices = @transform_2, window_bounds = array<i64: 1, 128>}, {pipeline_mode = #tpu.pipeline_mode<synchronous>, transform_indices = @transform_3, window_bounds = array<i64: 1, 64>}, {pipeline_mode = #tpu.pipeline_mode<synchronous>, transform_indices = @transform_4, window_bounds = array<i64: 1, 64>}, {transform_indices = @transform_5, window_bounds = array<i64: 1, 16, 128>}, {transform_indices = @transform_6, window_bounds = array<i64: 1, 1, 8, 128>}]} {
    %c0 = arith.constant 0 : index
    %c0_0 = arith.constant 0 : index
    %c0_1 = arith.constant 0 : index
    %0 = vector.load %arg3[%c0, %c0_0, %c0_1] : memref<1x16x64xbf16, #tpu.memory_space<vmem>>, vector<1x16x64xbf16>
    %1 = vector.shape_cast %0 : vector<1x16x64xbf16> to vector<16x64xbf16>
    %2 = arith.extf %1 : vector<16x64xbf16> to vector<16x64xf32>
    %c0_2 = arith.constant 0 : index
    %c0_3 = arith.constant 0 : index
    %3 = vector.load %arg6[%c0_2, %c0_3] : memref<1x64xf32, #tpu.memory_space<vmem>>, vector<1x64xf32>
    %4 = vector.broadcast %3 : vector<1x64xf32> to vector<16x64xf32>
    %5 = arith.mulf %2, %4 : vector<16x64xf32>
    %c0_4 = arith.constant 0 : index
    %c0_5 = arith.constant 0 : index
    %6 = vector.load %arg7[%c0_4, %c0_5] : memref<1x64xf32, #tpu.memory_space<vmem>>, vector<1x64xf32>
    %7 = vector.broadcast %6 : vector<1x64xf32> to vector<16x64xf32>
    %8 = arith.addf %5, %7 : vector<16x64xf32>
    %cst = arith.constant 0.000000e+00 : f32
    %9 = vector.broadcast %cst : f32 to vector<16x64xf32>
    %10 = arith.maximumf %8, %9 : vector<16x64xf32>
    %c0_6 = arith.constant 0 : index
    %c0_7 = arith.constant 0 : index
    %c0_8 = arith.constant 0 : index
    %11 = vector.load %arg4[%c0_6, %c0_7, %c0_8] : memref<1x64x128xbf16, #tpu.memory_space<vmem>>, vector<1x64x128xbf16>
    %12 = vector.shape_cast %11 : vector<1x64x128xbf16> to vector<64x128xbf16>
    %c0_9 = arith.constant 0 : index
    %c0_10 = arith.constant 0 : index
    %13 = vector.load %arg5[%c0_9, %c0_10] : memref<1x128xf32, #tpu.memory_space<vmem>>, vector<1x128xf32>
    %14 = arith.truncf %10 : vector<16x64xf32> to vector<16x64xbf16>
    %cst_11 = arith.constant dense<0.000000e+00> : vector<16x128xf32>
    %15 = tpu.matmul %14, %12, %cst_11 {dimension_numbers = #tpu.dot_dimension_numbers<[1], [0], [0], [1], [0, 0, 1, 1], [], []>} : vector<16x64xbf16>, vector<64x128xbf16>, vector<16x128xf32> -> vector<16x128xf32>
    %16 = vector.broadcast %13 : vector<1x128xf32> to vector<16x128xf32>
    %17 = arith.addf %15, %16 : vector<16x128xf32>
    %cst_12 = arith.constant dense<0.000000e+00> : vector<128xf32>
    %18 = vector.multi_reduction <add>, %17, %cst_12 [0] : vector<16x128xf32> to vector<128xf32>
    %19 = vector.shape_cast %18 : vector<128xf32> to vector<1x128xf32>
    %cst_13 = arith.constant 6.250000e-02 : f32
    %20 = vector.broadcast %cst_13 : f32 to vector<1x128xf32>
    %21 = arith.mulf %19, %20 : vector<1x128xf32>
    %22 = vector.broadcast %21 : vector<1x128xf32> to vector<16x128xf32>
    %23 = arith.subf %17, %22 : vector<16x128xf32>
    %24 = arith.mulf %23, %23 : vector<16x128xf32>
    %cst_14 = arith.constant dense<0.000000e+00> : vector<128xf32>
    %25 = vector.multi_reduction <add>, %24, %cst_14 [0] : vector<16x128xf32> to vector<128xf32>
    %26 = vector.shape_cast %25 : vector<128xf32> to vector<1x128xf32>
    %27 = arith.truncf %17 : vector<16x128xf32> to vector<16x128xbf16>
    %c0_15 = arith.constant 0 : index
    %c0_16 = arith.constant 0 : index
    %c0_17 = arith.constant 0 : index
    %28 = vector.load %arg8[%c0_15, %c0_16, %c0_17] : memref<1x16x128xbf16, #tpu.memory_space<vmem>>, vector<1x16x128xbf16>
    %29 = vector.shape_cast %28 : vector<1x16x128xbf16> to vector<16x128xbf16>
    %30 = vector.shape_cast %27 : vector<16x128xbf16> to vector<1x16x128xbf16>
    tpu.vector_store %arg8[%c0_15, %c0_16, %c0_17], %30 {strides = array<i32>} : memref<1x16x128xbf16, #tpu.memory_space<vmem>>, vector<1x16x128xbf16>,
    %cst_18 = arith.constant 0.000000e+00 : f32
    %31 = vector.broadcast %cst_18 : f32 to vector<6x128xf32>
    %32 = tpu.concatenate %19, %26, %31 in 0 : vector<1x128xf32>, vector<1x128xf32>, vector<6x128xf32> -> vector<8x128xf32>
    %c0_19 = arith.constant 0 : index
    %c0_20 = arith.constant 0 : index
    %c0_21 = arith.constant 0 : index
    %c0_22 = arith.constant 0 : index
    %33 = vector.load %arg9[%c0_19, %c0_20, %c0_21, %c0_22] : memref<1x1x8x128xf32, #tpu.memory_space<vmem>>, vector<1x1x8x128xf32>
    %34 = vector.shape_cast %33 : vector<1x1x8x128xf32> to vector<8x128xf32>
    %35 = vector.shape_cast %32 : vector<8x128xf32> to vector<1x1x8x128xf32>
    tpu.vector_store %arg9[%c0_19, %c0_20, %c0_21, %c0_22], %35 {strides = array<i32>} : memref<1x1x8x128xf32, #tpu.memory_space<vmem>>, vector<1x1x8x128xf32>,
    return
  }
  func.func @transform_0(%arg0: i32, %arg1: i32, %arg2: i32) -> (i32, i32, i32) {
    %c0_i32 = arith.constant 0 : i32
    %c0_i32_0 = arith.constant 0 : i32
    return %arg1, %arg0, %c0_i32 : i32, i32, i32
  }
  func.func @transform_1(%arg0: i32, %arg1: i32, %arg2: i32) -> (i32, i32, i32) {
    %c0_i32 = arith.constant 0 : i32
    %c0_i32_0 = arith.constant 0 : i32
    return %arg1, %c0_i32, %arg2 : i32, i32, i32
  }
  func.func @transform_2(%arg0: i32, %arg1: i32, %arg2: i32) -> (i32, i32) {
    %c0_i32 = arith.constant 0 : i32
    %c0_i32_0 = arith.constant 0 : i32
    return %c0_i32, %arg2 : i32, i32
  }
  func.func @transform_3(%arg0: i32, %arg1: i32, %arg2: i32) -> (i32, i32) {
    %c0_i32 = arith.constant 0 : i32
    %c0_i32_0 = arith.constant 0 : i32
    %c0_i32_1 = arith.constant 0 : i32
    return %c0_i32, %c0_i32_0 : i32, i32
  }
  func.func @transform_4(%arg0: i32, %arg1: i32, %arg2: i32) -> (i32, i32) {
    %c0_i32 = arith.constant 0 : i32
    %c0_i32_0 = arith.constant 0 : i32
    %c0_i32_1 = arith.constant 0 : i32
    return %c0_i32, %c0_i32_0 : i32, i32
  }
  func.func @transform_5(%arg0: i32, %arg1: i32, %arg2: i32) -> (i32, i32, i32) {
    %c0_i32 = arith.constant 0 : i32
    return %arg1, %arg0, %arg2 : i32, i32, i32
  }
  func.func @transform_6(%arg0: i32, %arg1: i32, %arg2: i32) -> (i32, i32, i32, i32) {
    %c0_i32 = arith.constant 0 : i32
    %c0_i32_0 = arith.constant 0 : i32
    return %arg1, %arg0, %c0_i32, %arg2 : i32, i32, i32, i32
  }
}

</mosaic_0001>

<llo_original>
// kernel: point_cloud_global_embedding.10
$region0: #{point_cloud_global_embedding.10}
  #allocation0 [shape = 'u32[]', space=smem, size = 0x4, offset = 0x4, fixed_abs, tag = 'smem constant byte address 0x4 - core index']
  #allocation1 [shape = 'u32[144,128]{1,0:T(1,128)}', space=vmem, size = 0x12000, scoped, tag = 'internal scratch']
  %s0 = inlined_call_operand.vmem [shape: bf16[2,16,64], index: 0, kind: input, shape index: {}]
  %s1 = inlined_call_operand.vmem [shape: bf16[1,64,128], index: 1, kind: input, shape index: {}]
  %s2 = inlined_call_operand.hbm [shape: f32[1,128], index: 2, kind: input, shape index: {}]
  %s3 = inlined_call_operand.vmem [shape: f32[1,64], index: 3, kind: input, shape index: {}]
  %s4 = inlined_call_operand.vmem [shape: f32[1,64], index: 4, kind: input, shape index: {}]
  %s5 = inlined_call_operand.vmem [shape: bf16[2,16,128], index: 5, kind: output, shape index: {0}]
  %s6 = inlined_call_operand.vmem [shape: f32[2,1,8,128], index: 6, kind: output, shape index: {1}]
  %7 = xla_tuple %s5, %s6
  %s8 = sld [smem:[#allocation0]]
  $region65: #{point_cloud_global_embedding.10} parent=0
    _
  %s10 = ssub.s32 1, %s8
  %s11 = scalar_select 0, %s10, %s8
  $region1: #{point_cloud_global_embedding.10} parent=0
    #allocation2 [shape = 'u8[512]{0}', space=vmem, size = 0x400, scoped, tag = 'input window, operand 2, single buffered']
    #allocation3 [shape = 's32[2]{0}', space=sflag, size = 0x8, scoped, tag = 'scoped memory for point_cloud_global_embedding.10']
    %12 = vsyncpa [#allocation3], 0
    loop: start=0, step=1, limit=4
    $region2: #{point_cloud_global_embedding.10} parent=1 // loop_pre_header
      _
    $region3: #{point_cloud_global_embedding.10} parent=1 // loop_header
      %s14 = sphi 0, %s18
      %p15 = scmp.ge.s32.totalorder %s14, 4
      %s21 = sphi 0, %s40
      %s22 = sphi 0, %s36
      %s23 = sphi 0, %s32
      %s24 = sphi 0, %s21
      %s25 = sphi 0, %s22
      %s26 = sphi 0, %s23
      %s27 = sphi 0, %s24
      %s28 = sphi 0, %s25
      %s29 = sphi 0, %s26
      %s45 = sphi 0, %s47
      %s48 = sphi 0, %s45
      %s49 = sphi 0, %s48
      %s65 = sphi 0, %s49
      %s71 = sphi 0, %s73
      %s74 = sphi 0, %s71
      %s75 = sphi 0, %s74
      %s91 = sphi 0, %s75
      %s97 = sphi 0, %s99
      %s100 = sphi 0, %s97
      %s101 = sphi 0, %s100
      %s117 = sphi 0, %s101
      %s121 = sphi 0, %s121
      %s123 = sphi 0, %s121
      %s124 = sphi 0, %s123
      %s138 = sphi 0, %s124
      %s142 = sphi 0, %s142
      %s144 = sphi 0, %s142
      %s145 = sphi 0, %s144
      %s159 = sphi 0, %s145
      %s169 = sphi 0, %s171
      %s172 = sphi 0, %s169
      %s173 = sphi 0, %s172
      %s189 = sphi 0, %s173
      %s199 = sphi 0, %s201
      %s202 = sphi 0, %s199
      %s203 = sphi 0, %s202
      %s219 = sphi 0, %s203
    $region4: #{point_cloud_global_embedding.10} parent=1 // loop_header_branch
      %17 = sbr.rel (%p15) target = $region8
    $region5: #{point_cloud_global_embedding.10} parent=1 // loop_body
      %s19 = ssub.s32 %s14, 1
      %s20 = ssub.s32 %s14, 2
      %s30 = sadd.s32 1, %s23
      %p31 = scmp.ge.s32.totalorder %s30, 1
      %s32 = scalar_select %p31, 0, %s30
      %s33 = sadd.s32 1, %s22
      %s34 = scalar_select %p31, %s33, %s22
      %p35 = scmp.ge.s32.totalorder %s34, 2
      %s36 = scalar_select %p35, 0, %s34
      %s37 = sadd.s32 1, %s21
      %s38 = scalar_select %p35, %s37, %s21
      %p39 = scmp.ge.s32.totalorder %s38, 1
      %s40 = scalar_select %p39, 0, %s38
      %s41 = ssub.s32 %s22, %s36
      %s42 = ssub.s32 %s21, %s40
      %s43 = sor.u32 %s41, %s42
      %p44 = scmp.eq.s32.totalorder %s43, 0
      %s46 = sadd.s32 %s45, 1
      %s47 = scalar_select %p44, %s45, %s46
      %p50 = pneg %p44
      %p51 = scmp.eq.s32.totalorder %s14, 1
      %p52 = por %p50, %p51
      %p53 = scmp.ne.s32.totalorder %s45, %s48
      %p54 = scmp.eq.s32.totalorder %s14, 0
      %p55 = por %p53, %p54
      %p56 = scmp.ne.s32.totalorder %s45, %s48
      %p57 = scmp.eq.s32.totalorder %s19, 1
      %p58 = por %p56, %p57
      %p59 = scmp.ne.s32.totalorder %s48, %s49
      %p60 = scmp.eq.s32.totalorder %s19, 0
      %p61 = por %p59, %p60
      %p62 = scmp.ne.s32.totalorder %s48, %s49
      %p63 = scmp.eq.s32.totalorder %s20, 1
      %p64 = por %p62, %p63
      %p66 = scmp.ne.s32.totalorder %s49, %s65
      %p67 = scmp.eq.s32.totalorder %s20, 0
      %p68 = por %p66, %p67
      %s69 = ssub.s32 %s23, %s32
      %p70 = scmp.eq.s32.totalorder %s69, 0
      %s72 = sadd.s32 %s71, 1
      %s73 = scalar_select %p70, %s71, %s72
      %p76 = pneg %p70
      %p77 = scmp.eq.s32.totalorder %s14, 1
      %p78 = por %p76, %p77
      %p79 = scmp.ne.s32.totalorder %s71, %s74
      %p80 = scmp.eq.s32.totalorder %s14, 0
      %p81 = por %p79, %p80
      %p82 = scmp.ne.s32.totalorder %s71, %s74
      %p83 = scmp.eq.s32.totalorder %s19, 1
      %p84 = por %p82, %p83
      %p85 = scmp.ne.s32.totalorder %s74, %s75
      %p86 = scmp.eq.s32.totalorder %s19, 0
      %p87 = por %p85, %p86
      %p88 = scmp.ne.s32.totalorder %s74, %s75
      %p89 = scmp.eq.s32.totalorder %s20, 1
      %p90 = por %p88, %p89
      %p92 = scmp.ne.s32.totalorder %s75, %s91
      %p93 = scmp.eq.s32.totalorder %s20, 0
      %p94 = por %p92, %p93
      %s95 = ssub.s32 %s23, %s32
      %p96 = scmp.eq.s32.totalorder %s95, 0
      %s98 = sadd.s32 %s97, 1
      %s99 = scalar_select %p96, %s97, %s98
      %p102 = pneg %p96
      %p103 = scmp.eq.s32.totalorder %s14, 1
      %p104 = por %p102, %p103
      %p105 = scmp.ne.s32.totalorder %s97, %s100
      %p106 = scmp.eq.s32.totalorder %s14, 0
      %p107 = por %p105, %p106
      %p108 = scmp.ne.s32.totalorder %s97, %s100
      %p109 = scmp.eq.s32.totalorder %s19, 1
      %p110 = por %p108, %p109
      %p111 = scmp.ne.s32.totalorder %s100, %s101
      %p112 = scmp.eq.s32.totalorder %s19, 0
      %p113 = por %p111, %p112
      %p114 = scmp.ne.s32.totalorder %s100, %s101
      %p115 = scmp.eq.s32.totalorder %s20, 1
      %p116 = por %p114, %p115
      %p118 = scmp.ne.s32.totalorder %s101, %s117
      %p119 = scmp.eq.s32.totalorder %s20, 0
      %p120 = por %p118, %p119
      %s122 = sadd.s32 %s121, 1
      %p125 = scmp.eq.s32.totalorder %s14, 1
      %p126 = scmp.ne.s32.totalorder %s121, %s123
      %p127 = scmp.eq.s32.totalorder %s14, 0
      %p128 = por %p126, %p127
      %p129 = scmp.ne.s32.totalorder %s121, %s123
      %p130 = scmp.eq.s32.totalorder %s19, 1
      %p131 = por %p129, %p130
      %p132 = scmp.ne.s32.totalorder %s123, %s124
      %p133 = scmp.eq.s32.totalorder %s19, 0
      %p134 = por %p132, %p133
      %p135 = scmp.ne.s32.totalorder %s123, %s124
      %p136 = scmp.eq.s32.totalorder %s20, 1
      %p137 = por %p135, %p136
      %p139 = scmp.ne.s32.totalorder %s124, %s138
      %p140 = scmp.eq.s32.totalorder %s20, 0
      %p141 = por %p139, %p140
      %s143 = sadd.s32 %s142, 1
      %p146 = scmp.eq.s32.totalorder %s14, 1
      %p147 = scmp.ne.s32.totalorder %s142, %s144
      %p148 = scmp.eq.s32.totalorder %s14, 0
      %p149 = por %p147, %p148
      %p150 = scmp.ne.s32.totalorder %s142, %s144
      %p151 = scmp.eq.s32.totalorder %s19, 1
      %p152 = por %p150, %p151
      %p153 = scmp.ne.s32.totalorder %s144, %s145
      %p154 = scmp.eq.s32.totalorder %s19, 0
      %p155 = por %p153, %p154
      %p156 = scmp.ne.s32.totalorder %s144, %s145
      %p157 = scmp.eq.s32.totalorder %s20, 1
      %p158 = por %p156, %p157
      %p160 = scmp.ne.s32.totalorder %s145, %s159
      %p161 = scmp.eq.s32.totalorder %s20, 0
      %p162 = por %p160, %p161
      %s163 = ssub.s32 %s22, %s36
      %s164 = ssub.s32 %s21, %s40
      %s165 = sor.u32 %s163, %s164
      %s166 = ssub.s32 %s23, %s32
      %s167 = sor.u32 %s165, %s166
      %p168 = scmp.eq.s32.totalorder %s167, 0
      %s170 = sadd.s32 %s169, 1
      %s171 = scalar_select %p168, %s169, %s170
      %p174 = pneg %p168
      %p175 = scmp.eq.s32.totalorder %s14, 1
      %p176 = por %p174, %p175
      %p177 = scmp.ne.s32.totalorder %s169, %s172
      %p178 = scmp.eq.s32.totalorder %s14, 0
      %p179 = por %p177, %p178
      %p180 = scmp.ne.s32.totalorder %s169, %s172
      %p181 = scmp.eq.s32.totalorder %s19, 1
      %p182 = por %p180, %p181
      %p183 = scmp.ne.s32.totalorder %s172, %s173
      %p184 = scmp.eq.s32.totalorder %s19, 0
      %p185 = por %p183, %p184
      %p186 = scmp.ne.s32.totalorder %s172, %s173
      %p187 = scmp.eq.s32.totalorder %s20, 1
      %p188 = por %p186, %p187
      %p190 = scmp.ne.s32.totalorder %s173, %s189
      %p191 = scmp.eq.s32.totalorder %s20, 0
      %p192 = por %p190, %p191
      %s193 = ssub.s32 %s22, %s36
      %s194 = ssub.s32 %s21, %s40
      %s195 = sor.u32 %s193, %s194
      %s196 = ssub.s32 %s23, %s32
      %s197 = sor.u32 %s195, %s196
      %p198 = scmp.eq.s32.totalorder %s197, 0
      %s200 = sadd.s32 %s199, 1
      %s201 = scalar_select %p198, %s199, %s200
      %p204 = pneg %p198
      %p205 = scmp.eq.s32.totalorder %s14, 1
      %p206 = por %p204, %p205
      %p207 = scmp.ne.s32.totalorder %s199, %s202
      %p208 = scmp.eq.s32.totalorder %s14, 0
      %p209 = por %p207, %p208
      %p210 = scmp.ne.s32.totalorder %s199, %s202
      %p211 = scmp.eq.s32.totalorder %s19, 1
      %p212 = por %p210, %p211
      %p213 = scmp.ne.s32.totalorder %s202, %s203
      %p214 = scmp.eq.s32.totalorder %s19, 0
      %p215 = por %p213, %p214
      %p216 = scmp.ne.s32.totalorder %s202, %s203
      %p217 = scmp.eq.s32.totalorder %s20, 1
      %p218 = por %p216, %p217
      %p220 = scmp.ne.s32.totalorder %s203, %s219
      %p221 = scmp.eq.s32.totalorder %s20, 0
      %p222 = por %p220, %p221
      %p223 = scmp.le.s32.totalorder 1, %s14
      %p224 = scmp.lt.s32.totalorder %s14, 3
      %p225 = pnand %p223, %p224
      %p226 = pneg %p225
      // Predicated region
      $region9: #{point_cloud_global_embedding.10} parent=5 // pred_check
        _
      $region10: #{point_cloud_global_embedding.10} parent=5 // pred_check_branch
        %228 = sbr.rel (%p225) target = $region12
      $region11: #{point_cloud_global_embedding.10} parent=5 // pred_region
        %s229 = ssub.s32 %s14, 1
        // Predicated region
        $region13: #{point_cloud_global_embedding.10} parent=11 // pred_check
          %p230 = pneg %p87
        $region14: #{point_cloud_global_embedding.10} parent=11 // pred_check_branch
          %232 = sbr.rel (%p230) target = $region16
        $region15: #{point_cloud_global_embedding.10} parent=11 // pred_region
          %p233 = scmp.lt.s32.totalorder %s26, 0
          %s234 = scalar_select %p233, %s26, 0
          %s235 = smul.addr %s234, 4
          %s236 = scalar_lea.vmem %s1, %s235
        $region16: #{point_cloud_global_embedding.10} parent=11 // pred_fallthru
          _
        // Predicated region
        $region17: #{point_cloud_global_embedding.10} parent=11 // pred_check
          %p237 = pneg %p113
        $region18: #{point_cloud_global_embedding.10} parent=11 // pred_check_branch
          %239 = sbr.rel (%p237) target = $region20
        $region19: #{point_cloud_global_embedding.10} parent=11 // pred_region
          %s241 = ssub.s32 16, 16
          %242 = vsyncadd [#allocation3], %s241
          %s243 = smul.addr %s26, 16
          %s244 = scalar_lea.hbm %s2, %s243
          %s246 = sshll.u32 [#allocation2], 4
          %s247 = int_to_ptr.vmem [resolvable:$true] %s246
          %249 = dma.hbm_to_vmem [thread:$0]  %s244, 16, %s247, [#allocation3]
        $region20: #{point_cloud_global_embedding.10} parent=11 // pred_fallthru
          _
        // Predicated region
        $region21: #{point_cloud_global_embedding.10} parent=11 // pred_check
          %p250 = pneg %p134
        $region22: #{point_cloud_global_embedding.10} parent=11 // pred_check_branch
          %252 = sbr.rel (%p250) target = $region24
        $region23: #{point_cloud_global_embedding.10} parent=11 // pred_region
          _
        $region24: #{point_cloud_global_embedding.10} parent=11 // pred_fallthru
          _
        // Predicated region
        $region25: #{point_cloud_global_embedding.10} parent=11 // pred_check
          %p253 = pneg %p155
        $region26: #{point_cloud_global_embedding.10} parent=11 // pred_check_branch
          %255 = sbr.rel (%p253) target = $region28
        $region27: #{point_cloud_global_embedding.10} parent=11 // pred_region
          _
        $region28: #{point_cloud_global_embedding.10} parent=11 // pred_fallthru
          _
      $region12: #{point_cloud_global_embedding.10} parent=5 // pred_fallthru
        _
      %p256 = scmp.lt.s32.totalorder %s14, 2
      // Predicated region
      $region29: #{point_cloud_global_embedding.10} parent=5 // pred_check
        %p257 = pneg %p256
      $region30: #{point_cloud_global_embedding.10} parent=5 // pred_check_branch
        %259 = sbr.rel (%p257) target = $region32
      $region31: #{point_cloud_global_embedding.10} parent=5 // pred_region
        // Predicated region
        $region33: #{point_cloud_global_embedding.10} parent=31 // pred_check
          %p260 = pneg %p55
        $region34: #{point_cloud_global_embedding.10} parent=31 // pred_check_branch
          %262 = sbr.rel (%p260) target = $region36
        $region35: #{point_cloud_global_embedding.10} parent=31 // pred_region
          %s263 = smul.u32 2, %s21
          %p264 = scmp.lt.s32.totalorder %s22, 1
          %s265 = scalar_select %p264, %s22, 1
          %p266 = scmp.lt.s32.totalorder %s263, 1
          %s267 = scalar_select %p266, %s263, 1
          %s268 = smul.addr %s265, 2
          %s269 = sadd.s32 %s267, %s268
          %s270 = smul.addr %s269, 4
          %s271 = scalar_lea.vmem %s0, %s270
          %s272 = smul.u32 2, %s21
        $region36: #{point_cloud_global_embedding.10} parent=31 // pred_fallthru
          _
      $region32: #{point_cloud_global_embedding.10} parent=5 // pred_fallthru
        _
      %p273 = scmp.le.s32.totalorder 1, %s14
      %p274 = scmp.lt.s32.totalorder %s14, 3
      %p275 = pnand %p273, %p274
      %p276 = pneg %p275
      // Predicated region
      $region37: #{point_cloud_global_embedding.10} parent=5 // pred_check
        _
      $region38: #{point_cloud_global_embedding.10} parent=5 // pred_check_branch
        %278 = sbr.rel (%p275) target = $region40
      $region39: #{point_cloud_global_embedding.10} parent=5 // pred_region
        %s279 = ssub.s32 %s14, 1
        // Predicated region
        $region41: #{point_cloud_global_embedding.10} parent=39 // pred_check
          %p280 = pneg %p113
        $region42: #{point_cloud_global_embedding.10} parent=39 // pred_check_branch
          %282 = sbr.rel (%p280) target = $region44
        $region43: #{point_cloud_global_embedding.10} parent=39 // pred_region
          %283 = dma.done [#allocation3], 16
        $region44: #{point_cloud_global_embedding.10} parent=39 // pred_fallthru
          _
        %s284 = smul.u32 2, %s24
        %p285 = scmp.lt.s32.totalorder %s25, 1
        %s286 = scalar_select %p285, %s25, 1
        %p287 = scmp.lt.s32.totalorder %s284, 1
        %s288 = scalar_select %p287, %s284, 1
        %s289 = smul.addr %s286, 2
        %s290 = sadd.s32 %s288, %s289
        %s291 = smul.addr %s290, 4
        %s292 = scalar_lea.vmem %s0, %s291
        %p293 = pneg %p61
        %p294 = pneg %p58
        %p295 = scmp.lt.s32.totalorder %s26, 0
        %s296 = scalar_select %p295, %s26, 0
        %s297 = smul.addr %s296, 4
        %s298 = scalar_lea.vmem %s1, %s297
        %p299 = pneg %p87
        %p300 = pneg %p84
        %p301 = pneg %p113
        %p302 = pneg %p110
        %p303 = pneg %p134
        %p304 = pneg %p131
        %p305 = pneg %p155
        %p306 = pneg %p152
        %p307 = pneg %p185
        %p308 = pneg %p182
        %s309 = smul.u32 2, %s24
        %p310 = scmp.lt.s32.totalorder %s25, 1
        %s311 = scalar_select %p310, %s25, 1
        %p312 = scmp.lt.s32.totalorder %s309, 1
        %s313 = scalar_select %p312, %s309, 1
        %p314 = scmp.lt.s32.totalorder %s26, 0
        %s315 = scalar_select %p314, %s26, 0
        %s316 = sadd.s32 %s315, %s313
        %s317 = smul.addr %s311, 2
        %s318 = sadd.s32 %s316, %s317
        %s319 = smul.addr %s318, 4
        %s320 = scalar_lea.vmem %s5, %s319
        %p321 = pneg %p215
        %p322 = pneg %p212
        %p323 = scmp.lt.s32.totalorder %s25, 1
        %s324 = scalar_select %p323, %s25, 1
        %p325 = scmp.lt.s32.totalorder %s24, 0
        %s326 = scalar_select %p325, %s24, 0
        %p327 = scmp.lt.s32.totalorder %s26, 0
        %s328 = scalar_select %p327, %s26, 0
        %s329 = sadd.s32 %s328, %s326
        %s330 = sadd.s32 %s329, %s324
        %s331 = smul.addr %s330, 8
        %s332 = scalar_lea.vmem %s6, %s331
        %s333 = smul.u32 2, %s24
        %p334 = scmp.lt.s32.totalorder %s25, 1
        %s335 = scalar_select %p334, %s25, 1
        %p336 = scmp.lt.s32.totalorder %s333, 1
        %s337 = scalar_select %p336, %s333, 1
        %s338 = smul.addr %s335, 2
        %s339 = sadd.s32 %s337, %s338
        %s340 = smul.addr %s339, 4
        %s341 = scalar_lea.vmem %s0, %s340
        %s342 = smul.u32 2, %s24
        %p343 = scmp.lt.s32.totalorder %s26, 0
        %s344 = scalar_select %p343, %s26, 0
        %s345 = smul.addr %s344, 4
        %s346 = scalar_lea.vmem %s1, %s345
        %s347 = smul.u32 2, %s24
        %p348 = scmp.lt.s32.totalorder %s25, 1
        %s349 = scalar_select %p348, %s25, 1
        %p350 = scmp.lt.s32.totalorder %s347, 1
        %s351 = scalar_select %p350, %s347, 1
        %p352 = scmp.lt.s32.totalorder %s26, 0
        %s353 = scalar_select %p352, %s26, 0
        %s354 = sadd.s32 %s353, %s351
        %s355 = smul.addr %s349, 2
        %s356 = sadd.s32 %s354, %s355
        %s357 = smul.addr %s356, 4
        %s358 = scalar_lea.vmem %s5, %s357
        %s359 = smul.u32 2, %s24
        %p360 = scmp.lt.s32.totalorder %s25, 1
        %s361 = scalar_select %p360, %s25, 1
        %p362 = scmp.lt.s32.totalorder %s24, 0
        %s363 = scalar_select %p362, %s24, 0
        %p364 = scmp.lt.s32.totalorder %s26, 0
        %s365 = scalar_select %p364, %s26, 0
        %s366 = sadd.s32 %s365, %s363
        %s367 = sadd.s32 %s366, %s361
        %s368 = smul.addr %s367, 8
        %s369 = scalar_lea.vmem %s6, %s368
        %v371 = vld [vmem:[%s341] sm:$0xf]
        %v372 = vld [vmem:[%s341 + $0x4] sm:$0xf]
        %v373 = vunpack.c.l.bf16 %v371
        %v374 = vunpack.c.l.bf16 %v372
        %v375 = vld [vmem:[%s3] sm:$0x1]
        %v377 = vlaneseq
        %v378 = vshrl.u32 %v377, 7
        %v379 = vsub.s32 0, %v378
        %v380 = vrot.slane %v375, %v379
        %v382 = vmul.f32 %v373, %v380
        %v383 = vmul.f32 %v374, %v380
        %v384 = vld [vmem:[%s4] sm:$0x1]
        %v386 = vlaneseq
        %v387 = vshrl.u32 %v386, 7
        %v388 = vsub.s32 0, %v387
        %v389 = vrot.slane %v384, %v388
        %v391 = vadd.f32 %v382, %v389
        %v392 = vadd.f32 %v383, %v389
        %v393 = vmax.f32 %v391, 0.0
        %v394 = vmax.f32 %v392, 0.0
        %v395 = vld [vmem:[%s346] sm:$0xf]
        %v396 = vld [vmem:[%s346 + $0x4] sm:$0xf]
        %v397 = vld [vmem:[%s346 + $0x8] sm:$0xf]
        %v398 = vld [vmem:[%s346 + $0xc] sm:$0xf]
        %v399 = vld [vmem:[%s346 + $0x10] sm:$0xf]
        %v400 = vld [vmem:[%s346 + $0x14] sm:$0xf]
        %v401 = vld [vmem:[%s346 + $0x18] sm:$0xf]
        %v402 = vld [vmem:[%s346 + $0x1c] sm:$0xf]
        %v403 = vld [vmem:[#allocation2] sm:$0x1]
        %v404 = vpack.c.bf16 %v394, %v393
        %v406 = vlaneseq
        %v407 = vshrl.u32 %v406, 7
        %v408 = vsub.s32 0, %v407
        %v409 = vrot.slane %v403, %v408
        %v419 = vunpack.c.l.b16 %v395
        %v420 = vunpack.c.l.b16 %v396
        %v421 = vunpack.c.l.b16 %v397
        %v422 = vunpack.c.l.b16 %v398
        %v423 = vunpack.c.l.b16 %v399
        %v424 = vunpack.c.l.b16 %v400
        %v425 = vunpack.c.l.b16 %v401
        %v426 = vunpack.c.l.b16 %v402
        %v427 = vpack.c.b16 %v420, %v419
        %v428 = vpack.c.b16 %v422, %v421
        %v429 = vpack.c.b16 %v424, %v423
        %v430 = vpack.c.b16 %v426, %v425
        %vm435 = vcmask 523264
        %v437 = vsel %vm435, %v404, 0
        %439 = vmatprep.subr.bf16.mxu0 0
        %440 = vmatpush1.bf16.msra.mxu0 0
        %441 = vmatprep.subr.bf16.mxu0 0
        %442 = vmatpush1.bf16.msra.mxu0 0
        %443 = vmatprep.subr.bf16.mxu0 0
        %444 = vmatpush1.bf16.msra.mxu0 0
        %445 = vmatprep.subr.bf16.mxu0 0
        %446 = vmatpush1.bf16.msra.mxu0 0
        %447 = vmatprep.subr.bf16.mxu0 0
        %448 = vmatpush1.bf16.msra.mxu0 %v430
        %449 = vmatprep.subr.bf16.mxu0 0
        %450 = vmatpush1.bf16.msra.mxu0 %v429
        %451 = vmatprep.subr.bf16.mxu0 0
        %452 = vmatpush1.bf16.msra.mxu0 %v428
        %453 = vmatprep.subr.bf16.mxu0 0
        %454 = vmatpush1.bf16.msra.mxu0 %v427
        %455 = vmatprep.subr.bf16.mxu0 0
        %456 = vmatpush2.bf16.msra.mxu0 0
        %457 = vmatprep.subr.bf16.mxu0 0
        %458 = vmatpush2.bf16.msra.mxu0 0
        %459 = vmatprep.subr.bf16.mxu0 0
        %460 = vmatpush2.bf16.msra.mxu0 0
        %461 = vmatprep.subr.bf16.mxu0 0
        %462 = vmatpush2.bf16.msra.mxu0 0
        %463 = vmatprep.subr.bf16.mxu0 0
        %464 = vmatpush2.bf16.msra.mxu0 0
        %465 = vmatprep.subr.bf16.mxu0 0
        %466 = vmatpush2.bf16.msra.mxu0 0
        %467 = vmatprep.subr.bf16.mxu0 0
        %468 = vmatpush2.bf16.msra.mxu0 0
        %469 = vmatprep.subr.bf16.mxu0 0
        %470 = vmatpush2.bf16.msra.mxu0 0
        %471 = vmatprep.mubr.bf16.mxu0 0
        %472 = vmatmul.mubr.bf16.gmra.mxu0 %v437
        %v473 = vpop.f32.mrf.mxu0
        %v474 = vadd.f32 %v409, %v473
        %v475 = vpop.f32.mrf.mxu0
        %v476 = vpop.f32.mrf.mxu0
        %v477 = vadd.f32 %v409, %v476
        %v478 = vpop.f32.mrf.mxu0
        %479 = vdwg.mxu0
        %v480 = vadd.f32 %v474, %v477
        %v481 = vrot.slane %v480, 4
        %v482 = vadd.f32 %v480, %v481
        %v483 = vrot.slane %v482, 2
        %v484 = vadd.f32 %v482, %v483
        %v485 = vrot.slane %v484, 1
        %v486 = vadd.f32 %v484, %v485
        %v487 = vmul.f32 %v486, 0.0625
        %v488 = vsub.f32 %v474, %v487
        %v489 = vsub.f32 %v477, %v487
        %v490 = vmul.f32 %v488, %v488
        %v491 = vmul.f32 %v489, %v489
        %v492 = vadd.f32 %v490, %v491
        %v493 = vrot.slane %v492, 4
        %v494 = vadd.f32 %v492, %v493
        %v495 = vrot.slane %v494, 2
        %v496 = vadd.f32 %v494, %v495
        %v497 = vrot.slane %v496, 1
        %v498 = vadd.f32 %v496, %v497
        %v499 = vpack.c.bf16 %v477, %v474
        %v501 = vunpack.c.l.b16 %v499
        %v502 = vunpack.c.h.b16 %v499
        %v503 = vpack.c.b16 %v501, %v501
        %v504 = vpack.c.b16 %v502, %v502
        %507 = vst [vmem:[%s358] sm:$0xf] %v503
        %508 = vst [vmem:[%s358 + $0x4] sm:$0xf] %v504
        %vm509 = vcmask 1040384
        %v510 = vsel %vm509, %v486, %v498
        %vm511 = vcmask 1041408
        %v512 = vsel %vm511, %v510, 0.0
        %513 = vst [vmem:[%s369] sm:$0xff] %v512
        %s514 = smul.u32 2, %s24
        %p515 = scmp.lt.s32.totalorder %s25, 1
        %s516 = scalar_select %p515, %s25, 1
        %p517 = scmp.lt.s32.totalorder %s514, 1
        %s518 = scalar_select %p517, %s514, 1
        %p519 = scmp.lt.s32.totalorder %s26, 0
        %s520 = scalar_select %p519, %s26, 0
        %s521 = sadd.s32 %s520, %s518
        %s522 = smul.addr %s516, 2
        %s523 = sadd.s32 %s521, %s522
        %s524 = smul.addr %s523, 4
        %s525 = scalar_lea.vmem %s5, %s524
        %p526 = scmp.lt.s32.totalorder %s25, 1
        %s527 = scalar_select %p526, %s25, 1
        %p528 = scmp.lt.s32.totalorder %s24, 0
        %s529 = scalar_select %p528, %s24, 0
        %p530 = scmp.lt.s32.totalorder %s26, 0
        %s531 = scalar_select %p530, %s26, 0
        %s532 = sadd.s32 %s531, %s529
        %s533 = sadd.s32 %s532, %s527
        %s534 = smul.addr %s533, 8
        %s535 = scalar_lea.vmem %s6, %s534
        // Predicated region
        $region45: #{point_cloud_global_embedding.10} parent=39 // pred_check
          %p536 = pneg %p182
        $region46: #{point_cloud_global_embedding.10} parent=39 // pred_check_branch
          %538 = sbr.rel (%p536) target = $region48
        $region47: #{point_cloud_global_embedding.10} parent=39 // pred_region
          %s539 = smul.u32 2, %s24
        $region48: #{point_cloud_global_embedding.10} parent=39 // pred_fallthru
          _
        // Predicated region
        $region49: #{point_cloud_global_embedding.10} parent=39 // pred_check
          %p540 = pneg %p212
        $region50: #{point_cloud_global_embedding.10} parent=39 // pred_check_branch
          %542 = sbr.rel (%p540) target = $region52
        $region51: #{point_cloud_global_embedding.10} parent=39 // pred_region
          _
        $region52: #{point_cloud_global_embedding.10} parent=39 // pred_fallthru
          _
      $region40: #{point_cloud_global_embedding.10} parent=5 // pred_fallthru
        _
      %p543 = scmp.le.s32.totalorder 2, %s14
      // Predicated region
      $region53: #{point_cloud_global_embedding.10} parent=5 // pred_check
        %p544 = pneg %p543
      $region54: #{point_cloud_global_embedding.10} parent=5 // pred_check_branch
        %546 = sbr.rel (%p544) target = $region56
      $region55: #{point_cloud_global_embedding.10} parent=5 // pred_region
        %s547 = ssub.s32 %s14, 2
        // Predicated region
        $region57: #{point_cloud_global_embedding.10} parent=55 // pred_check
          %p548 = pneg %p188
        $region58: #{point_cloud_global_embedding.10} parent=55 // pred_check_branch
          %550 = sbr.rel (%p548) target = $region60
        $region59: #{point_cloud_global_embedding.10} parent=55 // pred_region
          %s551 = smul.u32 2, %s27
          %p552 = scmp.lt.s32.totalorder %s28, 1
          %s553 = scalar_select %p552, %s28, 1
          %p554 = scmp.lt.s32.totalorder %s551, 1
          %s555 = scalar_select %p554, %s551, 1
          %p556 = scmp.lt.s32.totalorder %s29, 0
          %s557 = scalar_select %p556, %s29, 0
          %s558 = sadd.s32 %s557, %s555
          %s559 = smul.addr %s553, 2
          %s560 = sadd.s32 %s558, %s559
          %s561 = smul.addr %s560, 4
          %s562 = scalar_lea.vmem %s5, %s561
        $region60: #{point_cloud_global_embedding.10} parent=55 // pred_fallthru
          _
        // Predicated region
        $region61: #{point_cloud_global_embedding.10} parent=55 // pred_check
          %p563 = pneg %p218
        $region62: #{point_cloud_global_embedding.10} parent=55 // pred_check_branch
          %565 = sbr.rel (%p563) target = $region64
        $region63: #{point_cloud_global_embedding.10} parent=55 // pred_region
          %p566 = scmp.lt.s32.totalorder %s28, 1
          %s567 = scalar_select %p566, %s28, 1
          %p568 = scmp.lt.s32.totalorder %s27, 0
          %s569 = scalar_select %p568, %s27, 0
          %p570 = scmp.lt.s32.totalorder %s29, 0
          %s571 = scalar_select %p570, %s29, 0
          %s572 = sadd.s32 %s571, %s569
          %s573 = sadd.s32 %s572, %s567
          %s574 = smul.addr %s573, 8
          %s575 = scalar_lea.vmem %s6, %s574
        $region64: #{point_cloud_global_embedding.10} parent=55 // pred_fallthru
          _
      $region56: #{point_cloud_global_embedding.10} parent=5 // pred_fallthru
        _
    $region6: #{point_cloud_global_embedding.10} parent=1 // loop_footer
      %s18 = sadd.s32 1, %s14
    $region7: #{point_cloud_global_embedding.10} parent=1 // loop_footer_branch
      %13 = sbr.rel target = $region3
    $region8: #{point_cloud_global_embedding.10} parent=1 // loop_exit
      _
    %576 = vsyncpa [#allocation3], 1
    %s577 = scalar_lea.sflag [#allocation3], 1
    %578 = vsyncpa %s577, 1

// kernel: point_cloud_global_embedding.9
$region0: #{point_cloud_global_embedding.9}
  #allocation0 [shape = 'u32[]', space=smem, size = 0x4, offset = 0x4, fixed_abs, tag = 'smem constant byte address 0x4 - core index']
  #allocation1 [shape = 'u32[144,128]{1,0:T(1,128)}', space=vmem, size = 0x12000, scoped, tag = 'internal scratch']
  %s0 = inlined_call_operand.vmem [shape: f32[2,16,8], index: 0, kind: input, shape index: {}]
  %s1 = inlined_call_operand.vmem [shape: bf16[1,8,64], index: 1, kind: input, shape index: {}]
  %s2 = inlined_call_operand.hbm [shape: f32[1,64], index: 2, kind: input, shape index: {}]
  %s3 = inlined_call_operand.vmem [shape: f32[1,8], index: 3, kind: input, shape index: {}]
  %s4 = inlined_call_operand.vmem [shape: f32[1,8], index: 4, kind: input, shape index: {}]
  %s5 = inlined_call_operand.vmem [shape: bf16[2,16,64], index: 5, kind: output, shape index: {0}]
  %s6 = inlined_call_operand.vmem [shape: f32[2,1,8,64], index: 6, kind: output, shape index: {1}]
  %7 = xla_tuple %s5, %s6
  %s8 = sld [smem:[#allocation0]]
  $region65: #{point_cloud_global_embedding.9} parent=0
    _
  %s10 = ssub.s32 1, %s8
  %s11 = scalar_select 0, %s10, %s8
  $region1: #{point_cloud_global_embedding.9} parent=0
    #allocation2 [shape = 'u8[512]{0}', space=vmem, size = 0x400, scoped, tag = 'input window, operand 2, single buffered']
    #allocation3 [shape = 's32[2]{0}', space=sflag, size = 0x8, scoped, tag = 'scoped memory for point_cloud_global_embedding.9']
    %12 = vsyncpa [#allocation3], 0
    loop: start=0, step=1, limit=4
    $region2: #{point_cloud_global_embedding.9} parent=1 // loop_pre_header
      _
    $region3: #{point_cloud_global_embedding.9} parent=1 // loop_header
      %s14 = sphi 0, %s18
      %p15 = scmp.ge.s32.totalorder %s14, 4
      %s21 = sphi 0, %s40
      %s22 = sphi 0, %s36
      %s23 = sphi 0, %s32
      %s24 = sphi 0, %s21
      %s25 = sphi 0, %s22
      %s26 = sphi 0, %s23
      %s27 = sphi 0, %s24
      %s28 = sphi 0, %s25
      %s29 = sphi 0, %s26
      %s45 = sphi 0, %s47
      %s48 = sphi 0, %s45
      %s49 = sphi 0, %s48
      %s65 = sphi 0, %s49
      %s71 = sphi 0, %s73
      %s74 = sphi 0, %s71
      %s75 = sphi 0, %s74
      %s91 = sphi 0, %s75
      %s97 = sphi 0, %s99
      %s100 = sphi 0, %s97
      %s101 = sphi 0, %s100
      %s117 = sphi 0, %s101
      %s121 = sphi 0, %s121
      %s123 = sphi 0, %s121
      %s124 = sphi 0, %s123
      %s138 = sphi 0, %s124
      %s142 = sphi 0, %s142
      %s144 = sphi 0, %s142
      %s145 = sphi 0, %s144
      %s159 = sphi 0, %s145
      %s169 = sphi 0, %s171
      %s172 = sphi 0, %s169
      %s173 = sphi 0, %s172
      %s189 = sphi 0, %s173
      %s199 = sphi 0, %s201
      %s202 = sphi 0, %s199
      %s203 = sphi 0, %s202
      %s219 = sphi 0, %s203
    $region4: #{point_cloud_global_embedding.9} parent=1 // loop_header_branch
      %17 = sbr.rel (%p15) target = $region8
    $region5: #{point_cloud_global_embedding.9} parent=1 // loop_body
      %s19 = ssub.s32 %s14, 1
      %s20 = ssub.s32 %s14, 2
      %s30 = sadd.s32 1, %s23
      %p31 = scmp.ge.s32.totalorder %s30, 1
      %s32 = scalar_select %p31, 0, %s30
      %s33 = sadd.s32 1, %s22
      %s34 = scalar_select %p31, %s33, %s22
      %p35 = scmp.ge.s32.totalorder %s34, 2
      %s36 = scalar_select %p35, 0, %s34
      %s37 = sadd.s32 1, %s21
      %s38 = scalar_select %p35, %s37, %s21
      %p39 = scmp.ge.s32.totalorder %s38, 1
      %s40 = scalar_select %p39, 0, %s38
      %s41 = ssub.s32 %s22, %s36
      %s42 = ssub.s32 %s21, %s40
      %s43 = sor.u32 %s41, %s42
      %p44 = scmp.eq.s32.totalorder %s43, 0
      %s46 = sadd.s32 %s45, 1
      %s47 = scalar_select %p44, %s45, %s46
      %p50 = pneg %p44
      %p51 = scmp.eq.s32.totalorder %s14, 1
      %p52 = por %p50, %p51
      %p53 = scmp.ne.s32.totalorder %s45, %s48
      %p54 = scmp.eq.s32.totalorder %s14, 0
      %p55 = por %p53, %p54
      %p56 = scmp.ne.s32.totalorder %s45, %s48
      %p57 = scmp.eq.s32.totalorder %s19, 1
      %p58 = por %p56, %p57
      %p59 = scmp.ne.s32.totalorder %s48, %s49
      %p60 = scmp.eq.s32.totalorder %s19, 0
      %p61 = por %p59, %p60
      %p62 = scmp.ne.s32.totalorder %s48, %s49
      %p63 = scmp.eq.s32.totalorder %s20, 1
      %p64 = por %p62, %p63
      %p66 = scmp.ne.s32.totalorder %s49, %s65
      %p67 = scmp.eq.s32.totalorder %s20, 0
      %p68 = por %p66, %p67
      %s69 = ssub.s32 %s23, %s32
      %p70 = scmp.eq.s32.totalorder %s69, 0
      %s72 = sadd.s32 %s71, 1
      %s73 = scalar_select %p70, %s71, %s72
      %p76 = pneg %p70
      %p77 = scmp.eq.s32.totalorder %s14, 1
      %p78 = por %p76, %p77
      %p79 = scmp.ne.s32.totalorder %s71, %s74
      %p80 = scmp.eq.s32.totalorder %s14, 0
      %p81 = por %p79, %p80
      %p82 = scmp.ne.s32.totalorder %s71, %s74
      %p83 = scmp.eq.s32.totalorder %s19, 1
      %p84 = por %p82, %p83
      %p85 = scmp.ne.s32.totalorder %s74, %s75
      %p86 = scmp.eq.s32.totalorder %s19, 0
      %p87 = por %p85, %p86
      %p88 = scmp.ne.s32.totalorder %s74, %s75
      %p89 = scmp.eq.s32.totalorder %s20, 1
      %p90 = por %p88, %p89
      %p92 = scmp.ne.s32.totalorder %s75, %s91
      %p93 = scmp.eq.s32.totalorder %s20, 0
      %p94 = por %p92, %p93
      %s95 = ssub.s32 %s23, %s32
      %p96 = scmp.eq.s32.totalorder %s95, 0
      %s98 = sadd.s32 %s97, 1
      %s99 = scalar_select %p96, %s97, %s98
      %p102 = pneg %p96
      %p103 = scmp.eq.s32.totalorder %s14, 1
      %p104 = por %p102, %p103
      %p105 = scmp.ne.s32.totalorder %s97, %s100
      %p106 = scmp.eq.s32.totalorder %s14, 0
      %p107 = por %p105, %p106
      %p108 = scmp.ne.s32.totalorder %s97, %s100
      %p109 = scmp.eq.s32.totalorder %s19, 1
      %p110 = por %p108, %p109
      %p111 = scmp.ne.s32.totalorder %s100, %s101
      %p112 = scmp.eq.s32.totalorder %s19, 0
      %p113 = por %p111, %p112
      %p114 = scmp.ne.s32.totalorder %s100, %s101
      %p115 = scmp.eq.s32.totalorder %s20, 1
      %p116 = por %p114, %p115
      %p118 = scmp.ne.s32.totalorder %s101, %s117
      %p119 = scmp.eq.s32.totalorder %s20, 0
      %p120 = por %p118, %p119
      %s122 = sadd.s32 %s121, 1
      %p125 = scmp.eq.s32.totalorder %s14, 1
      %p126 = scmp.ne.s32.totalorder %s121, %s123
      %p127 = scmp.eq.s32.totalorder %s14, 0
      %p128 = por %p126, %p127
      %p129 = scmp.ne.s32.totalorder %s121, %s123
      %p130 = scmp.eq.s32.totalorder %s19, 1
      %p131 = por %p129, %p130
      %p132 = scmp.ne.s32.totalorder %s123, %s124
      %p133 = scmp.eq.s32.totalorder %s19, 0
      %p134 = por %p132, %p133
      %p135 = scmp.ne.s32.totalorder %s123, %s124
      %p136 = scmp.eq.s32.totalorder %s20, 1
      %p137 = por %p135, %p136
      %p139 = scmp.ne.s32.totalorder %s124, %s138
      %p140 = scmp.eq.s32.totalorder %s20, 0
      %p141 = por %p139, %p140
      %s143 = sadd.s32 %s142, 1
      %p146 = scmp.eq.s32.totalorder %s14, 1
      %p147 = scmp.ne.s32.totalorder %s142, %s144
      %p148 = scmp.eq.s32.totalorder %s14, 0
      %p149 = por %p147, %p148
      %p150 = scmp.ne.s32.totalorder %s142, %s144
      %p151 = scmp.eq.s32.totalorder %s19, 1
      %p152 = por %p150, %p151
      %p153 = scmp.ne.s32.totalorder %s144, %s145
      %p154 = scmp.eq.s32.totalorder %s19, 0
      %p155 = por %p153, %p154
      %p156 = scmp.ne.s32.totalorder %s144, %s145
      %p157 = scmp.eq.s32.totalorder %s20, 1
      %p158 = por %p156, %p157
      %p160 = scmp.ne.s32.totalorder %s145, %s159
      %p161 = scmp.eq.s32.totalorder %s20, 0
      %p162 = por %p160, %p161
      %s163 = ssub.s32 %s22, %s36
      %s164 = ssub.s32 %s21, %s40
      %s165 = sor.u32 %s163, %s164
      %s166 = ssub.s32 %s23, %s32
      %s167 = sor.u32 %s165, %s166
      %p168 = scmp.eq.s32.totalorder %s167, 0
      %s170 = sadd.s32 %s169, 1
      %s171 = scalar_select %p168, %s169, %s170
      %p174 = pneg %p168
      %p175 = scmp.eq.s32.totalorder %s14, 1
      %p176 = por %p174, %p175
      %p177 = scmp.ne.s32.totalorder %s169, %s172
      %p178 = scmp.eq.s32.totalorder %s14, 0
      %p179 = por %p177, %p178
      %p180 = scmp.ne.s32.totalorder %s169, %s172
      %p181 = scmp.eq.s32.totalorder %s19, 1
      %p182 = por %p180, %p181
      %p183 = scmp.ne.s32.totalorder %s172, %s173
      %p184 = scmp.eq.s32.totalorder %s19, 0
      %p185 = por %p183, %p184
      %p186 = scmp.ne.s32.totalorder %s172, %s173
      %p187 = scmp.eq.s32.totalorder %s20, 1
      %p188 = por %p186, %p187
      %p190 = scmp.ne.s32.totalorder %s173, %s189
      %p191 = scmp.eq.s32.totalorder %s20, 0
      %p192 = por %p190, %p191
      %s193 = ssub.s32 %s22, %s36
      %s194 = ssub.s32 %s21, %s40
      %s195 = sor.u32 %s193, %s194
      %s196 = ssub.s32 %s23, %s32
      %s197 = sor.u32 %s195, %s196
      %p198 = scmp.eq.s32.totalorder %s197, 0
      %s200 = sadd.s32 %s199, 1
      %s201 = scalar_select %p198, %s199, %s200
      %p204 = pneg %p198
      %p205 = scmp.eq.s32.totalorder %s14, 1
      %p206 = por %p204, %p205
      %p207 = scmp.ne.s32.totalorder %s199, %s202
      %p208 = scmp.eq.s32.totalorder %s14, 0
      %p209 = por %p207, %p208
      %p210 = scmp.ne.s32.totalorder %s199, %s202
      %p211 = scmp.eq.s32.totalorder %s19, 1
      %p212 = por %p210, %p211
      %p213 = scmp.ne.s32.totalorder %s202, %s203
      %p214 = scmp.eq.s32.totalorder %s19, 0
      %p215 = por %p213, %p214
      %p216 = scmp.ne.s32.totalorder %s202, %s203
      %p217 = scmp.eq.s32.totalorder %s20, 1
      %p218 = por %p216, %p217
      %p220 = scmp.ne.s32.totalorder %s203, %s219
      %p221 = scmp.eq.s32.totalorder %s20, 0
      %p222 = por %p220, %p221
      %p223 = scmp.le.s32.totalorder 1, %s14
      %p224 = scmp.lt.s32.totalorder %s14, 3
      %p225 = pnand %p223, %p224
      %p226 = pneg %p225
      // Predicated region
      $region9: #{point_cloud_global_embedding.9} parent=5 // pred_check
        _
      $region10: #{point_cloud_global_embedding.9} parent=5 // pred_check_branch
        %228 = sbr.rel (%p225) target = $region12
      $region11: #{point_cloud_global_embedding.9} parent=5 // pred_region
        %s229 = ssub.s32 %s14, 1
        // Predicated region
        $region13: #{point_cloud_global_embedding.9} parent=11 // pred_check
          %p230 = pneg %p87
        $region14: #{point_cloud_global_embedding.9} parent=11 // pred_check_branch
          %232 = sbr.rel (%p230) target = $region16
        $region15: #{point_cloud_global_embedding.9} parent=11 // pred_region
          %p233 = scmp.lt.s32.totalorder %s26, 0
          %s234 = scalar_select %p233, %s26, 0
          %s235 = smul.addr %s234, 4
          %s236 = scalar_lea.vmem %s1, %s235
        $region16: #{point_cloud_global_embedding.9} parent=11 // pred_fallthru
          _
        // Predicated region
        $region17: #{point_cloud_global_embedding.9} parent=11 // pred_check
          %p237 = pneg %p113
        $region18: #{point_cloud_global_embedding.9} parent=11 // pred_check_branch
          %239 = sbr.rel (%p237) target = $region20
        $region19: #{point_cloud_global_embedding.9} parent=11 // pred_region
          %s241 = ssub.s32 16, 16
          %242 = vsyncadd [#allocation3], %s241
          %s243 = smul.addr %s26, 16
          %s244 = scalar_lea.hbm %s2, %s243
          %s246 = sshll.u32 [#allocation2], 4
          %s247 = int_to_ptr.vmem [resolvable:$true] %s246
          %249 = dma.hbm_to_vmem [thread:$0]  %s244, 16, %s247, [#allocation3]
        $region20: #{point_cloud_global_embedding.9} parent=11 // pred_fallthru
          _
        // Predicated region
        $region21: #{point_cloud_global_embedding.9} parent=11 // pred_check
          %p250 = pneg %p134
        $region22: #{point_cloud_global_embedding.9} parent=11 // pred_check_branch
          %252 = sbr.rel (%p250) target = $region24
        $region23: #{point_cloud_global_embedding.9} parent=11 // pred_region
          _
        $region24: #{point_cloud_global_embedding.9} parent=11 // pred_fallthru
          _
        // Predicated region
        $region25: #{point_cloud_global_embedding.9} parent=11 // pred_check
          %p253 = pneg %p155
        $region26: #{point_cloud_global_embedding.9} parent=11 // pred_check_branch
          %255 = sbr.rel (%p253) target = $region28
        $region27: #{point_cloud_global_embedding.9} parent=11 // pred_region
          _
        $region28: #{point_cloud_global_embedding.9} parent=11 // pred_fallthru
          _
      $region12: #{point_cloud_global_embedding.9} parent=5 // pred_fallthru
        _
      %p256 = scmp.lt.s32.totalorder %s14, 2
      // Predicated region
      $region29: #{point_cloud_global_embedding.9} parent=5 // pred_check
        %p257 = pneg %p256
      $region30: #{point_cloud_global_embedding.9} parent=5 // pred_check_branch
        %259 = sbr.rel (%p257) target = $region32
      $region31: #{point_cloud_global_embedding.9} parent=5 // pred_region
        // Predicated region
        $region33: #{point_cloud_global_embedding.9} parent=31 // pred_check
          %p260 = pneg %p55
        $region34: #{point_cloud_global_embedding.9} parent=31 // pred_check_branch
          %262 = sbr.rel (%p260) target = $region36
        $region35: #{point_cloud_global_embedding.9} parent=31 // pred_region
          %s263 = smul.u32 2, %s21
          %p264 = scmp.lt.s32.totalorder %s22, 1
          %s265 = scalar_select %p264, %s22, 1
          %p266 = scmp.lt.s32.totalorder %s263, 1
          %s267 = scalar_select %p266, %s263, 1
          %s268 = smul.addr %s265, 2
          %s269 = sadd.s32 %s267, %s268
          %s270 = smul.addr %s269, 8
          %s271 = scalar_lea.vmem %s0, %s270
          %s272 = smul.u32 2, %s21
        $region36: #{point_cloud_global_embedding.9} parent=31 // pred_fallthru
          _
      $region32: #{point_cloud_global_embedding.9} parent=5 // pred_fallthru
        _
      %p273 = scmp.le.s32.totalorder 1, %s14
      %p274 = scmp.lt.s32.totalorder %s14, 3
      %p275 = pnand %p273, %p274
      %p276 = pneg %p275
      // Predicated region
      $region37: #{point_cloud_global_embedding.9} parent=5 // pred_check
        _
      $region38: #{point_cloud_global_embedding.9} parent=5 // pred_check_branch
        %278 = sbr.rel (%p275) target = $region40
      $region39: #{point_cloud_global_embedding.9} parent=5 // pred_region
        %s279 = ssub.s32 %s14, 1
        // Predicated region
        $region41: #{point_cloud_global_embedding.9} parent=39 // pred_check
          %p280 = pneg %p113
        $region42: #{point_cloud_global_embedding.9} parent=39 // pred_check_branch
          %282 = sbr.rel (%p280) target = $region44
        $region43: #{point_cloud_global_embedding.9} parent=39 // pred_region
          %283 = dma.done [#allocation3], 16
        $region44: #{point_cloud_global_embedding.9} parent=39 // pred_fallthru
          _
        %s284 = smul.u32 2, %s24
        %p285 = scmp.lt.s32.totalorder %s25, 1
        %s286 = scalar_select %p285, %s25, 1
        %p287 = scmp.lt.s32.totalorder %s284, 1
        %s288 = scalar_select %p287, %s284, 1
        %s289 = smul.addr %s286, 2
        %s290 = sadd.s32 %s288, %s289
        %s291 = smul.addr %s290, 8
        %s292 = scalar_lea.vmem %s0, %s291
        %p293 = pneg %p61
        %p294 = pneg %p58
        %p295 = scmp.lt.s32.totalorder %s26, 0
        %s296 = scalar_select %p295, %s26, 0
        %s297 = smul.addr %s296, 4
        %s298 = scalar_lea.vmem %s1, %s297
        %p299 = pneg %p87
        %p300 = pneg %p84
        %p301 = pneg %p113
        %p302 = pneg %p110
        %p303 = pneg %p134
        %p304 = pneg %p131
        %p305 = pneg %p155
        %p306 = pneg %p152
        %p307 = pneg %p185
        %p308 = pneg %p182
        %s309 = smul.u32 2, %s24
        %p310 = scmp.lt.s32.totalorder %s25, 1
        %s311 = scalar_select %p310, %s25, 1
        %p312 = scmp.lt.s32.totalorder %s309, 1
        %s313 = scalar_select %p312, %s309, 1
        %p314 = scmp.lt.s32.totalorder %s26, 0
        %s315 = scalar_select %p314, %s26, 0
        %s316 = sadd.s32 %s315, %s313
        %s317 = smul.addr %s311, 2
        %s318 = sadd.s32 %s316, %s317
        %s319 = smul.addr %s318, 4
        %s320 = scalar_lea.vmem %s5, %s319
        %p321 = pneg %p215
        %p322 = pneg %p212
        %p323 = scmp.lt.s32.totalorder %s25, 1
        %s324 = scalar_select %p323, %s25, 1
        %p325 = scmp.lt.s32.totalorder %s24, 0
        %s326 = scalar_select %p325, %s24, 0
        %p327 = scmp.lt.s32.totalorder %s26, 0
        %s328 = scalar_select %p327, %s26, 0
        %s329 = sadd.s32 %s328, %s326
        %s330 = sadd.s32 %s329, %s324
        %s331 = smul.addr %s330, 8
        %s332 = scalar_lea.vmem %s6, %s331
        %s333 = smul.u32 2, %s24
        %p334 = scmp.lt.s32.totalorder %s25, 1
        %s335 = scalar_select %p334, %s25, 1
        %p336 = scmp.lt.s32.totalorder %s333, 1
        %s337 = scalar_select %p336, %s333, 1
        %s338 = smul.addr %s335, 2
        %s339 = sadd.s32 %s337, %s338
        %s340 = smul.addr %s339, 8
        %s341 = scalar_lea.vmem %s0, %s340
        %s342 = smul.u32 2, %s24
        %p343 = scmp.lt.s32.totalorder %s26, 0
        %s344 = scalar_select %p343, %s26, 0
        %s345 = smul.addr %s344, 4
        %s346 = scalar_lea.vmem %s1, %s345
        %s347 = smul.u32 2, %s24
        %p348 = scmp.lt.s32.totalorder %s25, 1
        %s349 = scalar_select %p348, %s25, 1
        %p350 = scmp.lt.s32.totalorder %s347, 1
        %s351 = scalar_select %p350, %s347, 1
        %p352 = scmp.lt.s32.totalorder %s26, 0
        %s353 = scalar_select %p352, %s26, 0
        %s354 = sadd.s32 %s353, %s351
        %s355 = smul.addr %s349, 2
        %s356 = sadd.s32 %s354, %s355
        %s357 = smul.addr %s356, 4
        %s358 = scalar_lea.vmem %s5, %s357
        %s359 = smul.u32 2, %s24
        %p360 = scmp.lt.s32.totalorder %s25, 1
        %s361 = scalar_select %p360, %s25, 1
        %p362 = scmp.lt.s32.totalorder %s24, 0
        %s363 = scalar_select %p362, %s24, 0
        %p364 = scmp.lt.s32.totalorder %s26, 0
        %s365 = scalar_select %p364, %s26, 0
        %s366 = sadd.s32 %s365, %s363
        %s367 = sadd.s32 %s366, %s361
        %s368 = smul.addr %s367, 8
        %s369 = scalar_lea.vmem %s6, %s368
        %v371 = vld [vmem:[%s341] sm:$0xff]
        %v372 = vld [vmem:[%s341 + $0x8] sm:$0xff]
        %v373 = vld [vmem:[%s346] sm:$0xf]
        %v374 = vld [vmem:[#allocation2] sm:$0x1]
        %v375 = vpack.c.bf16 %v372, %v371
        %v377 = vlaneseq
        %v378 = vshrl.u32 %v377, 7
        %v379 = vsub.s32 0, %v378
        %v380 = vrot.slane %v374, %v379
        %vm382 = vcmask 64512
        %v384 = vsel %vm382, %v375, 0
        %vm386 = vcmask 1043456
        %v388 = vsel %vm386, %v373, 0
        %390 = vmatprep.subr.bf16.mxu0 0
        %391 = vmatpush1.bf16.msra.mxu0 0
        %392 = vmatprep.subr.bf16.mxu0 0
        %393 = vmatpush1.bf16.msra.mxu0 0
        %394 = vmatprep.subr.bf16.mxu0 0
        %395 = vmatpush1.bf16.msra.mxu0 0
        %396 = vmatprep.subr.bf16.mxu0 0
        %397 = vmatpush1.bf16.msra.mxu0 0
        %398 = vmatprep.subr.bf16.mxu0 0
        %399 = vmatpush1.bf16.msra.mxu0 0
        %400 = vmatprep.subr.bf16.mxu0 0
        %401 = vmatpush1.bf16.msra.mxu0 0
        %402 = vmatprep.subr.bf16.mxu0 0
        %403 = vmatpush1.bf16.msra.mxu0 0
        %404 = vmatprep.subr.bf16.mxu0 0
        %405 = vmatpush1.bf16.msra.mxu0 %v388
        %406 = vmatprep.subr.bf16.mxu0 0
        %407 = vmatpush2.bf16.msra.mxu0 0
        %408 = vmatprep.subr.bf16.mxu0 0
        %409 = vmatpush2.bf16.msra.mxu0 0
        %410 = vmatprep.subr.bf16.mxu0 0
        %411 = vmatpush2.bf16.msra.mxu0 0
        %412 = vmatprep.subr.bf16.mxu0 0
        %413 = vmatpush2.bf16.msra.mxu0 0
        %414 = vmatprep.subr.bf16.mxu0 0
        %415 = vmatpush2.bf16.msra.mxu0 0
        %416 = vmatprep.subr.bf16.mxu0 0
        %417 = vmatpush2.bf16.msra.mxu0 0
        %418 = vmatprep.subr.bf16.mxu0 0
        %419 = vmatpush2.bf16.msra.mxu0 0
        %420 = vmatprep.subr.bf16.mxu0 0
        %421 = vmatpush2.bf16.msra.mxu0 0
        %422 = vmatprep.mubr.bf16.mxu0 0
        %423 = vmatmul.mubr.bf16.gmra.mxu0 %v384
        %v424 = vpop.f32.mrf.mxu0
        %v425 = vadd.f32 %v380, %v424
        %v426 = vpop.f32.mrf.mxu0
        %v427 = vpop.f32.mrf.mxu0
        %v428 = vadd.f32 %v380, %v427
        %v429 = vpop.f32.mrf.mxu0
        %430 = vdwg.mxu0
        %vm431 = vcmask 523264
        %v432 = vsel %vm431, %v425, 0.0
        %v433 = vsel %vm431, %v428, 0.0
        %v434 = vadd.f32 %v432, %v433
        %v435 = vrot.slane %v434, 4
        %v436 = vadd.f32 %v434, %v435
        %v437 = vrot.slane %v436, 2
        %v438 = vadd.f32 %v436, %v437
        %v439 = vrot.slane %v438, 1
        %v440 = vadd.f32 %v438, %v439
        %v441 = vmul.f32 %v440, 0.0625
        %v442 = vsub.f32 %v425, %v441
        %v443 = vsub.f32 %v428, %v441
        %v444 = vmul.f32 %v442, %v442
        %v445 = vmul.f32 %v443, %v443
        %v446 = vsel %vm431, %v444, 0.0
        %v447 = vsel %vm431, %v445, 0.0
        %v448 = vadd.f32 %v446, %v447
        %v449 = vrot.slane %v448, 4
        %v450 = vadd.f32 %v448, %v449
        %v451 = vrot.slane %v450, 2
        %v452 = vadd.f32 %v450, %v451
        %v453 = vrot.slane %v452, 1
        %v454 = vadd.f32 %v452, %v453
        %v455 = vpack.c.bf16 %v428, %v425
        %v457 = vunpack.c.l.b16 %v455
        %v458 = vunpack.c.h.b16 %v455
        %v459 = vpack.c.b16 %v457, %v457
        %v460 = vpack.c.b16 %v458, %v458
        %vm463 = vcmask 519168
        %464 = vst.msk [vmem:[%s358] sm:$0xf] %vm463, %v459
        %465 = vst.msk [vmem:[%s358 + $0x4] sm:$0xf] %vm463, %v460
        %vm466 = vcmask 1040384
        %v467 = vsel %vm466, %v440, %v454
        %vm468 = vcmask 1041408
        %v469 = vsel %vm468, %v467, 0.0
        %470 = vst.msk [vmem:[%s369] sm:$0xff] %vm431, %v469
        %s471 = smul.u32 2, %s24
        %p472 = scmp.lt.s32.totalorder %s25, 1
        %s473 = scalar_select %p472, %s25, 1
        %p474 = scmp.lt.s32.totalorder %s471, 1
        %s475 = scalar_select %p474, %s471, 1
        %p476 = scmp.lt.s32.totalorder %s26, 0
        %s477 = scalar_select %p476, %s26, 0
        %s478 = sadd.s32 %s477, %s475
        %s479 = smul.addr %s473, 2
        %s480 = sadd.s32 %s478, %s479
        %s481 = smul.addr %s480, 4
        %s482 = scalar_lea.vmem %s5, %s481
        %p483 = scmp.lt.s32.totalorder %s25, 1
        %s484 = scalar_select %p483, %s25, 1
        %p485 = scmp.lt.s32.totalorder %s24, 0
        %s486 = scalar_select %p485, %s24, 0
        %p487 = scmp.lt.s32.totalorder %s26, 0
        %s488 = scalar_select %p487, %s26, 0
        %s489 = sadd.s32 %s488, %s486
        %s490 = sadd.s32 %s489, %s484
        %s491 = smul.addr %s490, 8
        %s492 = scalar_lea.vmem %s6, %s491
        // Predicated region
        $region45: #{point_cloud_global_embedding.9} parent=39 // pred_check
          %p493 = pneg %p182
        $region46: #{point_cloud_global_embedding.9} parent=39 // pred_check_branch
          %495 = sbr.rel (%p493) target = $region48
        $region47: #{point_cloud_global_embedding.9} parent=39 // pred_region
          %s496 = smul.u32 2, %s24
        $region48: #{point_cloud_global_embedding.9} parent=39 // pred_fallthru
          _
        // Predicated region
        $region49: #{point_cloud_global_embedding.9} parent=39 // pred_check
          %p497 = pneg %p212
        $region50: #{point_cloud_global_embedding.9} parent=39 // pred_check_branch
          %499 = sbr.rel (%p497) target = $region52
        $region51: #{point_cloud_global_embedding.9} parent=39 // pred_region
          _
        $region52: #{point_cloud_global_embedding.9} parent=39 // pred_fallthru
          _
      $region40: #{point_cloud_global_embedding.9} parent=5 // pred_fallthru
        _
      %p500 = scmp.le.s32.totalorder 2, %s14
      // Predicated region
      $region53: #{point_cloud_global_embedding.9} parent=5 // pred_check
        %p501 = pneg %p500
      $region54: #{point_cloud_global_embedding.9} parent=5 // pred_check_branch
        %503 = sbr.rel (%p501) target = $region56
      $region55: #{point_cloud_global_embedding.9} parent=5 // pred_region
        %s504 = ssub.s32 %s14, 2
        // Predicated region
        $region57: #{point_cloud_global_embedding.9} parent=55 // pred_check
          %p505 = pneg %p188
        $region58: #{point_cloud_global_embedding.9} parent=55 // pred_check_branch
          %507 = sbr.rel (%p505) target = $region60
        $region59: #{point_cloud_global_embedding.9} parent=55 // pred_region
          %s508 = smul.u32 2, %s27
          %p509 = scmp.lt.s32.totalorder %s28, 1
          %s510 = scalar_select %p509, %s28, 1
          %p511 = scmp.lt.s32.totalorder %s508, 1
          %s512 = scalar_select %p511, %s508, 1
          %p513 = scmp.lt.s32.totalorder %s29, 0
          %s514 = scalar_select %p513, %s29, 0
          %s515 = sadd.s32 %s514, %s512
          %s516 = smul.addr %s510, 2
          %s517 = sadd.s32 %s515, %s516
          %s518 = smul.addr %s517, 4
          %s519 = scalar_lea.vmem %s5, %s518
        $region60: #{point_cloud_global_embedding.9} parent=55 // pred_fallthru
          _
        // Predicated region
        $region61: #{point_cloud_global_embedding.9} parent=55 // pred_check
          %p520 = pneg %p218
        $region62: #{point_cloud_global_embedding.9} parent=55 // pred_check_branch
          %522 = sbr.rel (%p520) target = $region64
        $region63: #{point_cloud_global_embedding.9} parent=55 // pred_region
          %p523 = scmp.lt.s32.totalorder %s28, 1
          %s524 = scalar_select %p523, %s28, 1
          %p525 = scmp.lt.s32.totalorder %s27, 0
          %s526 = scalar_select %p525, %s27, 0
          %p527 = scmp.lt.s32.totalorder %s29, 0
          %s528 = scalar_select %p527, %s29, 0
          %s529 = sadd.s32 %s528, %s526
          %s530 = sadd.s32 %s529, %s524
          %s531 = smul.addr %s530, 8
          %s532 = scalar_lea.vmem %s6, %s531
        $region64: #{point_cloud_global_embedding.9} parent=55 // pred_fallthru
          _
      $region56: #{point_cloud_global_embedding.9} parent=5 // pred_fallthru
        _
    $region6: #{point_cloud_global_embedding.9} parent=1 // loop_footer
      %s18 = sadd.s32 1, %s14
    $region7: #{point_cloud_global_embedding.9} parent=1 // loop_footer_branch
      %13 = sbr.rel target = $region3
    $region8: #{point_cloud_global_embedding.9} parent=1 // loop_exit
      _
    %533 = vsyncpa [#allocation3], 1
    %s534 = scalar_lea.sflag [#allocation3], 1
    %535 = vsyncpa %s534, 1

// kernel: point_cloud_global_embedding.11
$region0: #{point_cloud_global_embedding.11}
  #allocation0 [shape = 'u32[]', space=smem, size = 0x4, offset = 0x4, fixed_abs, tag = 'smem constant byte address 0x4 - core index']
  #allocation1 [shape = 'u32[144,128]{1,0:T(1,128)}', space=vmem, size = 0x12000, scoped, tag = 'internal scratch']
  %s0 = inlined_call_operand.vmem [shape: bf16[2,16,128], index: 0, kind: input, shape index: {}]
  %s1 = inlined_call_operand.vmem [shape: bf16[1,128,1024], index: 1, kind: input, shape index: {}]
  %s2 = inlined_call_operand.hbm [shape: f32[1,1024], index: 2, kind: input, shape index: {}]
  %s3 = inlined_call_operand.vmem [shape: f32[1,128], index: 3, kind: input, shape index: {}]
  %s4 = inlined_call_operand.vmem [shape: f32[1,128], index: 4, kind: input, shape index: {}]
  %s5 = inlined_call_operand.vmem [shape: f32[2,1,8,1024], index: 5, kind: output, shape index: {}]
  %s6 = sld [smem:[#allocation0]]
  $region57: #{point_cloud_global_embedding.11} parent=0
    _
  %s8 = ssub.s32 1, %s6
  %s9 = scalar_select 0, %s8, %s6
  $region1: #{point_cloud_global_embedding.11} parent=0
    #allocation2 [shape = 'u8[4096]{0}', space=vmem, size = 0x1000, scoped, tag = 'input window, operand 2, single buffered']
    #allocation3 [shape = 's32[2]{0}', space=sflag, size = 0x8, scoped, tag = 'scoped memory for point_cloud_global_embedding.11']
    %10 = vsyncpa [#allocation3], 0
    loop: start=0, step=1, limit=4
    $region2: #{point_cloud_global_embedding.11} parent=1 // loop_pre_header
      _
    $region3: #{point_cloud_global_embedding.11} parent=1 // loop_header
      %s12 = sphi 0, %s16
      %p13 = scmp.ge.s32.totalorder %s12, 4
      %s19 = sphi 0, %s38
      %s20 = sphi 0, %s34
      %s21 = sphi 0, %s30
      %s22 = sphi 0, %s19
      %s23 = sphi 0, %s20
      %s24 = sphi 0, %s21
      %s25 = sphi 0, %s22
      %s26 = sphi 0, %s23
      %s27 = sphi 0, %s24
      %s43 = sphi 0, %s45
      %s46 = sphi 0, %s43
      %s47 = sphi 0, %s46
      %s63 = sphi 0, %s47
      %s69 = sphi 0, %s71
      %s72 = sphi 0, %s69
      %s73 = sphi 0, %s72
      %s89 = sphi 0, %s73
      %s95 = sphi 0, %s97
      %s98 = sphi 0, %s95
      %s99 = sphi 0, %s98
      %s115 = sphi 0, %s99
      %s119 = sphi 0, %s119
      %s121 = sphi 0, %s119
      %s122 = sphi 0, %s121
      %s136 = sphi 0, %s122
      %s140 = sphi 0, %s140
      %s142 = sphi 0, %s140
      %s143 = sphi 0, %s142
      %s157 = sphi 0, %s143
      %s167 = sphi 0, %s169
      %s170 = sphi 0, %s167
      %s171 = sphi 0, %s170
      %s187 = sphi 0, %s171
    $region4: #{point_cloud_global_embedding.11} parent=1 // loop_header_branch
      %15 = sbr.rel (%p13) target = $region8
    $region5: #{point_cloud_global_embedding.11} parent=1 // loop_body
      %s17 = ssub.s32 %s12, 1
      %s18 = ssub.s32 %s12, 2
      %s28 = sadd.s32 1, %s21
      %p29 = scmp.ge.s32.totalorder %s28, 1
      %s30 = scalar_select %p29, 0, %s28
      %s31 = sadd.s32 1, %s20
      %s32 = scalar_select %p29, %s31, %s20
      %p33 = scmp.ge.s32.totalorder %s32, 2
      %s34 = scalar_select %p33, 0, %s32
      %s35 = sadd.s32 1, %s19
      %s36 = scalar_select %p33, %s35, %s19
      %p37 = scmp.ge.s32.totalorder %s36, 1
      %s38 = scalar_select %p37, 0, %s36
      %s39 = ssub.s32 %s20, %s34
      %s40 = ssub.s32 %s19, %s38
      %s41 = sor.u32 %s39, %s40
      %p42 = scmp.eq.s32.totalorder %s41, 0
      %s44 = sadd.s32 %s43, 1
      %s45 = scalar_select %p42, %s43, %s44
      %p48 = pneg %p42
      %p49 = scmp.eq.s32.totalorder %s12, 1
      %p50 = por %p48, %p49
      %p51 = scmp.ne.s32.totalorder %s43, %s46
      %p52 = scmp.eq.s32.totalorder %s12, 0
      %p53 = por %p51, %p52
      %p54 = scmp.ne.s32.totalorder %s43, %s46
      %p55 = scmp.eq.s32.totalorder %s17, 1
      %p56 = por %p54, %p55
      %p57 = scmp.ne.s32.totalorder %s46, %s47
      %p58 = scmp.eq.s32.totalorder %s17, 0
      %p59 = por %p57, %p58
      %p60 = scmp.ne.s32.totalorder %s46, %s47
      %p61 = scmp.eq.s32.totalorder %s18, 1
      %p62 = por %p60, %p61
      %p64 = scmp.ne.s32.totalorder %s47, %s63
      %p65 = scmp.eq.s32.totalorder %s18, 0
      %p66 = por %p64, %p65
      %s67 = ssub.s32 %s21, %s30
      %p68 = scmp.eq.s32.totalorder %s67, 0
      %s70 = sadd.s32 %s69, 1
      %s71 = scalar_select %p68, %s69, %s70
      %p74 = pneg %p68
      %p75 = scmp.eq.s32.totalorder %s12, 1
      %p76 = por %p74, %p75
      %p77 = scmp.ne.s32.totalorder %s69, %s72
      %p78 = scmp.eq.s32.totalorder %s12, 0
      %p79 = por %p77, %p78
      %p80 = scmp.ne.s32.totalorder %s69, %s72
      %p81 = scmp.eq.s32.totalorder %s17, 1
      %p82 = por %p80, %p81
      %p83 = scmp.ne.s32.totalorder %s72, %s73
      %p84 = scmp.eq.s32.totalorder %s17, 0
      %p85 = por %p83, %p84
      %p86 = scmp.ne.s32.totalorder %s72, %s73
      %p87 = scmp.eq.s32.totalorder %s18, 1
      %p88 = por %p86, %p87
      %p90 = scmp.ne.s32.totalorder %s73, %s89
      %p91 = scmp.eq.s32.totalorder %s18, 0
      %p92 = por %p90, %p91
      %s93 = ssub.s32 %s21, %s30
      %p94 = scmp.eq.s32.totalorder %s93, 0
      %s96 = sadd.s32 %s95, 1
      %s97 = scalar_select %p94, %s95, %s96
      %p100 = pneg %p94
      %p101 = scmp.eq.s32.totalorder %s12, 1
      %p102 = por %p100, %p101
      %p103 = scmp.ne.s32.totalorder %s95, %s98
      %p104 = scmp.eq.s32.totalorder %s12, 0
      %p105 = por %p103, %p104
      %p106 = scmp.ne.s32.totalorder %s95, %s98
      %p107 = scmp.eq.s32.totalorder %s17, 1
      %p108 = por %p106, %p107
      %p109 = scmp.ne.s32.totalorder %s98, %s99
      %p110 = scmp.eq.s32.totalorder %s17, 0
      %p111 = por %p109, %p110
      %p112 = scmp.ne.s32.totalorder %s98, %s99
      %p113 = scmp.eq.s32.totalorder %s18, 1
      %p114 = por %p112, %p113
      %p116 = scmp.ne.s32.totalorder %s99, %s115
      %p117 = scmp.eq.s32.totalorder %s18, 0
      %p118 = por %p116, %p117
      %s120 = sadd.s32 %s119, 1
      %p123 = scmp.eq.s32.totalorder %s12, 1
      %p124 = scmp.ne.s32.totalorder %s119, %s121
      %p125 = scmp.eq.s32.totalorder %s12, 0
      %p126 = por %p124, %p125
      %p127 = scmp.ne.s32.totalorder %s119, %s121
      %p128 = scmp.eq.s32.totalorder %s17, 1
      %p129 = por %p127, %p128
      %p130 = scmp.ne.s32.totalorder %s121, %s122
      %p131 = scmp.eq.s32.totalorder %s17, 0
      %p132 = por %p130, %p131
      %p133 = scmp.ne.s32.totalorder %s121, %s122
      %p134 = scmp.eq.s32.totalorder %s18, 1
      %p135 = por %p133, %p134
      %p137 = scmp.ne.s32.totalorder %s122, %s136
      %p138 = scmp.eq.s32.totalorder %s18, 0
      %p139 = por %p137, %p138
      %s141 = sadd.s32 %s140, 1
      %p144 = scmp.eq.s32.totalorder %s12, 1
      %p145 = scmp.ne.s32.totalorder %s140, %s142
      %p146 = scmp.eq.s32.totalorder %s12, 0
      %p147 = por %p145, %p146
      %p148 = scmp.ne.s32.totalorder %s140, %s142
      %p149 = scmp.eq.s32.totalorder %s17, 1
      %p150 = por %p148, %p149
      %p151 = scmp.ne.s32.totalorder %s142, %s143
      %p152 = scmp.eq.s32.totalorder %s17, 0
      %p153 = por %p151, %p152
      %p154 = scmp.ne.s32.totalorder %s142, %s143
      %p155 = scmp.eq.s32.totalorder %s18, 1
      %p156 = por %p154, %p155
      %p158 = scmp.ne.s32.totalorder %s143, %s157
      %p159 = scmp.eq.s32.totalorder %s18, 0
      %p160 = por %p158, %p159
      %s161 = ssub.s32 %s20, %s34
      %s162 = ssub.s32 %s19, %s38
      %s163 = sor.u32 %s161, %s162
      %s164 = ssub.s32 %s21, %s30
      %s165 = sor.u32 %s163, %s164
      %p166 = scmp.eq.s32.totalorder %s165, 0
      %s168 = sadd.s32 %s167, 1
      %s169 = scalar_select %p166, %s167, %s168
      %p172 = pneg %p166
      %p173 = scmp.eq.s32.totalorder %s12, 1
      %p174 = por %p172, %p173
      %p175 = scmp.ne.s32.totalorder %s167, %s170
      %p176 = scmp.eq.s32.totalorder %s12, 0
      %p177 = por %p175, %p176
      %p178 = scmp.ne.s32.totalorder %s167, %s170
      %p179 = scmp.eq.s32.totalorder %s17, 1
      %p180 = por %p178, %p179
      %p181 = scmp.ne.s32.totalorder %s170, %s171
      %p182 = scmp.eq.s32.totalorder %s17, 0
      %p183 = por %p181, %p182
      %p184 = scmp.ne.s32.totalorder %s170, %s171
      %p185 = scmp.eq.s32.totalorder %s18, 1
      %p186 = por %p184, %p185
      %p188 = scmp.ne.s32.totalorder %s171, %s187
      %p189 = scmp.eq.s32.totalorder %s18, 0
      %p190 = por %p188, %p189
      %p191 = scmp.le.s32.totalorder 1, %s12
      %p192 = scmp.lt.s32.totalorder %s12, 3
      %p193 = pnand %p191, %p192
      %p194 = pneg %p193
      // Predicated region
      $region9: #{point_cloud_global_embedding.11} parent=5 // pred_check
        _
      $region10: #{point_cloud_global_embedding.11} parent=5 // pred_check_branch
        %196 = sbr.rel (%p193) target = $region12
      $region11: #{point_cloud_global_embedding.11} parent=5 // pred_region
        %s197 = ssub.s32 %s12, 1
        // Predicated region
        $region13: #{point_cloud_global_embedding.11} parent=11 // pred_check
          %p198 = pneg %p85
        $region14: #{point_cloud_global_embedding.11} parent=11 // pred_check_branch
          %200 = sbr.rel (%p198) target = $region16
        $region15: #{point_cloud_global_embedding.11} parent=11 // pred_region
          %s201 = smul.u32 8, %s24
          %p202 = scmp.lt.s32.totalorder %s201, 7
          %s203 = scalar_select %p202, %s201, 7
          %s204 = smul.addr %s203, 4
          %s205 = scalar_lea.vmem %s1, %s204
          %s206 = smul.u32 8, %s24
        $region16: #{point_cloud_global_embedding.11} parent=11 // pred_fallthru
          _
        // Predicated region
        $region17: #{point_cloud_global_embedding.11} parent=11 // pred_check
          %p207 = pneg %p111
        $region18: #{point_cloud_global_embedding.11} parent=11 // pred_check_branch
          %209 = sbr.rel (%p207) target = $region20
        $region19: #{point_cloud_global_embedding.11} parent=11 // pred_region
          %s210 = smul.u32 8, %s24
          %s212 = ssub.s32 128, 128
          %213 = vsyncadd [#allocation3], %s212
          %s214 = smul.addr %s210, 16
          %s215 = scalar_lea.hbm %s2, %s214
          %s217 = sshll.u32 [#allocation2], 4
          %s218 = int_to_ptr.vmem [resolvable:$true] %s217
          %220 = dma.hbm_to_vmem [thread:$0]  %s215, 128, %s218, [#allocation3]
        $region20: #{point_cloud_global_embedding.11} parent=11 // pred_fallthru
          _
        // Predicated region
        $region21: #{point_cloud_global_embedding.11} parent=11 // pred_check
          %p221 = pneg %p132
        $region22: #{point_cloud_global_embedding.11} parent=11 // pred_check_branch
          %223 = sbr.rel (%p221) target = $region24
        $region23: #{point_cloud_global_embedding.11} parent=11 // pred_region
          _
        $region24: #{point_cloud_global_embedding.11} parent=11 // pred_fallthru
          _
        // Predicated region
        $region25: #{point_cloud_global_embedding.11} parent=11 // pred_check
          %p224 = pneg %p153
        $region26: #{point_cloud_global_embedding.11} parent=11 // pred_check_branch
          %226 = sbr.rel (%p224) target = $region28
        $region27: #{point_cloud_global_embedding.11} parent=11 // pred_region
          _
        $region28: #{point_cloud_global_embedding.11} parent=11 // pred_fallthru
          _
      $region12: #{point_cloud_global_embedding.11} parent=5 // pred_fallthru
        _
      %p227 = scmp.lt.s32.totalorder %s12, 2
      // Predicated region
      $region29: #{point_cloud_global_embedding.11} parent=5 // pred_check
        %p228 = pneg %p227
      $region30: #{point_cloud_global_embedding.11} parent=5 // pred_check_branch
        %230 = sbr.rel (%p228) target = $region32
      $region31: #{point_cloud_global_embedding.11} parent=5 // pred_region
        // Predicated region
        $region33: #{point_cloud_global_embedding.11} parent=31 // pred_check
          %p231 = pneg %p53
        $region34: #{point_cloud_global_embedding.11} parent=31 // pred_check_branch
          %233 = sbr.rel (%p231) target = $region36
        $region35: #{point_cloud_global_embedding.11} parent=31 // pred_region
          %s234 = smul.u32 2, %s19
          %p235 = scmp.lt.s32.totalorder %s20, 1
          %s236 = scalar_select %p235, %s20, 1
          %p237 = scmp.lt.s32.totalorder %s234, 1
          %s238 = scalar_select %p237, %s234, 1
          %s239 = smul.addr %s236, 2
          %s240 = sadd.s32 %s238, %s239
          %s241 = smul.addr %s240, 4
          %s242 = scalar_lea.vmem %s0, %s241
          %s243 = smul.u32 2, %s19
        $region36: #{point_cloud_global_embedding.11} parent=31 // pred_fallthru
          _
      $region32: #{point_cloud_global_embedding.11} parent=5 // pred_fallthru
        _
      %p244 = scmp.le.s32.totalorder 1, %s12
      %p245 = scmp.lt.s32.totalorder %s12, 3
      %p246 = pnand %p244, %p245
      %p247 = pneg %p246
      // Predicated region
      $region37: #{point_cloud_global_embedding.11} parent=5 // pred_check
        _
      $region38: #{point_cloud_global_embedding.11} parent=5 // pred_check_branch
        %249 = sbr.rel (%p246) target = $region40
      $region39: #{point_cloud_global_embedding.11} parent=5 // pred_region
        %s250 = ssub.s32 %s12, 1
        // Predicated region
        $region41: #{point_cloud_global_embedding.11} parent=39 // pred_check
          %p251 = pneg %p111
        $region42: #{point_cloud_global_embedding.11} parent=39 // pred_check_branch
          %253 = sbr.rel (%p251) target = $region44
        $region43: #{point_cloud_global_embedding.11} parent=39 // pred_region
          %254 = dma.done [#allocation3], 128
        $region44: #{point_cloud_global_embedding.11} parent=39 // pred_fallthru
          _
        %s255 = smul.u32 2, %s22
        %p256 = scmp.lt.s32.totalorder %s23, 1
        %s257 = scalar_select %p256, %s23, 1
        %p258 = scmp.lt.s32.totalorder %s255, 1
        %s259 = scalar_select %p258, %s255, 1
        %s260 = smul.addr %s257, 2
        %s261 = sadd.s32 %s259, %s260
        %s262 = smul.addr %s261, 4
        %s263 = scalar_lea.vmem %s0, %s262
        %p264 = pneg %p59
        %p265 = pneg %p56
        %s266 = smul.u32 8, %s24
        %p267 = scmp.lt.s32.totalorder %s266, 7
        %s268 = scalar_select %p267, %s266, 7
        %s269 = smul.addr %s268, 4
        %s270 = scalar_lea.vmem %s1, %s269
        %p271 = pneg %p85
        %p272 = pneg %p82
        %p273 = pneg %p111
        %p274 = pneg %p108
        %p275 = pneg %p132
        %p276 = pneg %p129
        %p277 = pneg %p153
        %p278 = pneg %p150
        %p279 = pneg %p183
        %p280 = pneg %p180
        %s281 = smul.u32 8, %s24
        %p282 = scmp.lt.s32.totalorder %s23, 1
        %s283 = scalar_select %p282, %s23, 1
        %p284 = scmp.lt.s32.totalorder %s22, 0
        %s285 = scalar_select %p284, %s22, 0
        %p286 = scmp.lt.s32.totalorder %s281, 7
        %s287 = scalar_select %p286, %s281, 7
        %s288 = smul.addr %s285, 8
        %s289 = sadd.s32 %s287, %s288
        %s290 = smul.addr %s283, 8
        %s291 = sadd.s32 %s289, %s290
        %s292 = smul.addr %s291, 8
        %s293 = scalar_lea.vmem %s5, %s292
        %s294 = smul.u32 2, %s22
        %p295 = scmp.lt.s32.totalorder %s23, 1
        %s296 = scalar_select %p295, %s23, 1
        %p297 = scmp.lt.s32.totalorder %s294, 1
        %s298 = scalar_select %p297, %s294, 1
        %s299 = smul.addr %s296, 2
        %s300 = sadd.s32 %s298, %s299
        %s301 = smul.addr %s300, 4
        %s302 = scalar_lea.vmem %s0, %s301
        %s303 = smul.u32 2, %s22
        %s304 = smul.u32 8, %s24
        %p305 = scmp.lt.s32.totalorder %s304, 7
        %s306 = scalar_select %p305, %s304, 7
        %s307 = smul.addr %s306, 4
        %s308 = scalar_lea.vmem %s1, %s307
        %s309 = smul.u32 8, %s24
        %s310 = smul.u32 8, %s24
        %s311 = smul.u32 8, %s24
        %p312 = scmp.lt.s32.totalorder %s23, 1
        %s313 = scalar_select %p312, %s23, 1
        %p314 = scmp.lt.s32.totalorder %s22, 0
        %s315 = scalar_select %p314, %s22, 0
        %p316 = scmp.lt.s32.totalorder %s311, 7
        %s317 = scalar_select %p316, %s311, 7
        %s318 = smul.addr %s315, 8
        %s319 = sadd.s32 %s317, %s318
        %s320 = smul.addr %s313, 8
        %s321 = sadd.s32 %s319, %s320
        %s322 = smul.addr %s321, 8
        %s323 = scalar_lea.vmem %s5, %s322
        %s324 = smul.u32 8, %s24
        %v326 = vld [vmem:[%s302] sm:$0xf]
        %v327 = vld [vmem:[%s302 + $0x4] sm:$0xf]
        %v328 = vunpack.c.l.bf16 %v326
        %v329 = vunpack.c.l.bf16 %v327
        %v330 = vld [vmem:[%s3] sm:$0x1]
        %v332 = vlaneseq
        %v333 = vshrl.u32 %v332, 7
        %v334 = vsub.s32 0, %v333
        %v335 = vrot.slane %v330, %v334
        %v337 = vmul.f32 %v328, %v335
        %v338 = vmul.f32 %v329, %v335
        %v339 = vld [vmem:[%s4] sm:$0x1]
        %v341 = vlaneseq
        %v342 = vshrl.u32 %v341, 7
        %v343 = vsub.s32 0, %v342
        %v344 = vrot.slane %v339, %v343
        %v346 = vadd.f32 %v337, %v344
        %v347 = vadd.f32 %v338, %v344
        %v348 = vmax.f32 %v346, 0.0
        %v349 = vmax.f32 %v347, 0.0
        %v350 = vld [vmem:[%s308] sm:$0xff]
        %v351 = vld [vmem:[%s308 + $0x8] sm:$0xff]
        %v352 = vld [vmem:[%s308 + $0x10] sm:$0xff]
        %v353 = vld [vmem:[%s308 + $0x18] sm:$0xff]
        %v354 = vld [vmem:[%s308 + $0x20] sm:$0xff]
        %v355 = vld [vmem:[%s308 + $0x28] sm:$0xff]
        %v356 = vld [vmem:[%s308 + $0x30] sm:$0xff]
        %v357 = vld [vmem:[%s308 + $0x38] sm:$0xff]
        %v358 = vld [vmem:[%s308 + $0x40] sm:$0xff]
        %v359 = vld [vmem:[%s308 + $0x48] sm:$0xff]
        %v360 = vld [vmem:[%s308 + $0x50] sm:$0xff]
        %v361 = vld [vmem:[%s308 + $0x58] sm:$0xff]
        %v362 = vld [vmem:[%s308 + $0x60] sm:$0xff]
        %v363 = vld [vmem:[%s308 + $0x68] sm:$0xff]
        %v364 = vld [vmem:[%s308 + $0x70] sm:$0xff]
        %v365 = vld [vmem:[%s308 + $0x78] sm:$0xff]
        %v366 = vld [vmem:[%s308 + $0x80] sm:$0xff]
        %v367 = vld [vmem:[%s308 + $0x88] sm:$0xff]
        %v368 = vld [vmem:[%s308 + $0x90] sm:$0xff]
        %v369 = vld [vmem:[%s308 + $0x98] sm:$0xff]
        %v370 = vld [vmem:[%s308 + $0xa0] sm:$0xff]
        %v371 = vld [vmem:[%s308 + $0xa8] sm:$0xff]
        %v372 = vld [vmem:[%s308 + $0xb0] sm:$0xff]
        %v373 = vld [vmem:[%s308 + $0xb8] sm:$0xff]
        %v374 = vld [vmem:[%s308 + $0xc0] sm:$0xff]
        %v375 = vld [vmem:[%s308 + $0xc8] sm:$0xff]
        %v376 = vld [vmem:[%s308 + $0xd0] sm:$0xff]
        %v377 = vld [vmem:[%s308 + $0xd8] sm:$0xff]
        %v378 = vld [vmem:[%s308 + $0xe0] sm:$0xff]
        %v379 = vld [vmem:[%s308 + $0xe8] sm:$0xff]
        %v380 = vld [vmem:[%s308 + $0xf0] sm:$0xff]
        %v381 = vld [vmem:[%s308 + $0xf8] sm:$0xff]
        %v382 = vld [vmem:[%s308 + $0x100] sm:$0xff]
        %v383 = vld [vmem:[%s308 + $0x108] sm:$0xff]
        %v384 = vld [vmem:[%s308 + $0x110] sm:$0xff]
        %v385 = vld [vmem:[%s308 + $0x118] sm:$0xff]
        %v386 = vld [vmem:[%s308 + $0x120] sm:$0xff]
        %v387 = vld [vmem:[%s308 + $0x128] sm:$0xff]
        %v388 = vld [vmem:[%s308 + $0x130] sm:$0xff]
        %v389 = vld [vmem:[%s308 + $0x138] sm:$0xff]
        %v390 = vld [vmem:[%s308 + $0x140] sm:$0xff]
        %v391 = vld [vmem:[%s308 + $0x148] sm:$0xff]
        %v392 = vld [vmem:[%s308 + $0x150] sm:$0xff]
        %v393 = vld [vmem:[%s308 + $0x158] sm:$0xff]
        %v394 = vld [vmem:[%s308 + $0x160] sm:$0xff]
        %v395 = vld [vmem:[%s308 + $0x168] sm:$0xff]
        %v396 = vld [vmem:[%s308 + $0x170] sm:$0xff]
        %v397 = vld [vmem:[%s308 + $0x178] sm:$0xff]
        %v398 = vld [vmem:[%s308 + $0x180] sm:$0xff]
        %v399 = vld [vmem:[%s308 + $0x188] sm:$0xff]
        %v400 = vld [vmem:[%s308 + $0x190] sm:$0xff]
        %v401 = vld [vmem:[%s308 + $0x198] sm:$0xff]
        %v402 = vld [vmem:[%s308 + $0x1a0] sm:$0xff]
        %v403 = vld [vmem:[%s308 + $0x1a8] sm:$0xff]
        %v404 = vld [vmem:[%s308 + $0x1b0] sm:$0xff]
        %v405 = vld [vmem:[%s308 + $0x1b8] sm:$0xff]
        %v406 = vld [vmem:[%s308 + $0x1c0] sm:$0xff]
        %v407 = vld [vmem:[%s308 + $0x1c8] sm:$0xff]
        %v408 = vld [vmem:[%s308 + $0x1d0] sm:$0xff]
        %v409 = vld [vmem:[%s308 + $0x1d8] sm:$0xff]
        %v410 = vld [vmem:[%s308 + $0x1e0] sm:$0xff]
        %v411 = vld [vmem:[%s308 + $0x1e8] sm:$0xff]
        %v412 = vld [vmem:[%s308 + $0x1f0] sm:$0xff]
        %v413 = vld [vmem:[%s308 + $0x1f8] sm:$0xff]
        %v414 = vld [vmem:[#allocation2] sm:$0xff]
        %v415 = vpack.c.bf16 %v349, %v348
        %v417 = vlaneseq
        %v418 = vshrl.u32 %v417, 7
        %v419 = vsub.s32 0, %v418
        %v420 = vrot.slane %v414, %v419
        %v421 = vlaneseq
        %v422 = vshrl.u32 %v421, 7
        %v423 = vsub.s32 1, %v422
        %v424 = vrot.slane %v414, %v423
        %v425 = vlaneseq
        %v426 = vshrl.u32 %v425, 7
        %v427 = vsub.s32 2, %v426
        %v428 = vrot.slane %v414, %v427
        %v429 = vlaneseq
        %v430 = vshrl.u32 %v429, 7
        %v431 = vsub.s32 3, %v430
        %v432 = vrot.slane %v414, %v431
        %v433 = vlaneseq
        %v434 = vshrl.u32 %v433, 7
        %v435 = vsub.s32 4, %v434
        %v436 = vrot.slane %v414, %v435
        %v437 = vlaneseq
        %v438 = vshrl.u32 %v437, 7
        %v439 = vsub.s32 5, %v438
        %v440 = vrot.slane %v414, %v439
        %v441 = vlaneseq
        %v442 = vshrl.u32 %v441, 7
        %v443 = vsub.s32 6, %v442
        %v444 = vrot.slane %v414, %v443
        %v445 = vlaneseq
        %v446 = vshrl.u32 %v445, 7
        %v447 = vsub.s32 7, %v446
        %v448 = vrot.slane %v414, %v447
        %v521 = vunpack.c.l.b16 %v350
        %v522 = vunpack.c.h.b16 %v350
        %v523 = vunpack.c.l.b16 %v351
        %v524 = vunpack.c.h.b16 %v351
        %v525 = vunpack.c.l.b16 %v352
        %v526 = vunpack.c.h.b16 %v352
        %v527 = vunpack.c.l.b16 %v353
        %v528 = vunpack.c.h.b16 %v353
        %v529 = vunpack.c.l.b16 %v354
        %v530 = vunpack.c.h.b16 %v354
        %v531 = vunpack.c.l.b16 %v355
        %v532 = vunpack.c.h.b16 %v355
        %v533 = vunpack.c.l.b16 %v356
        %v534 = vunpack.c.h.b16 %v356
        %v535 = vunpack.c.l.b16 %v357
        %v536 = vunpack.c.h.b16 %v357
        %v537 = vunpack.c.l.b16 %v358
        %v538 = vunpack.c.h.b16 %v358
        %v539 = vunpack.c.l.b16 %v359
        %v540 = vunpack.c.h.b16 %v359
        %v541 = vunpack.c.l.b16 %v360
        %v542 = vunpack.c.h.b16 %v360
        %v543 = vunpack.c.l.b16 %v361
        %v544 = vunpack.c.h.b16 %v361
        %v545 = vunpack.c.l.b16 %v362
        %v546 = vunpack.c.h.b16 %v362
        %v547 = vunpack.c.l.b16 %v363
        %v548 = vunpack.c.h.b16 %v363
        %v549 = vunpack.c.l.b16 %v364
        %v550 = vunpack.c.h.b16 %v364
        %v551 = vunpack.c.l.b16 %v365
        %v552 = vunpack.c.h.b16 %v365
        %v553 = vunpack.c.l.b16 %v366
        %v554 = vunpack.c.h.b16 %v366
        %v555 = vunpack.c.l.b16 %v367
        %v556 = vunpack.c.h.b16 %v367
        %v557 = vunpack.c.l.b16 %v368
        %v558 = vunpack.c.h.b16 %v368
        %v559 = vunpack.c.l.b16 %v369
        %v560 = vunpack.c.h.b16 %v369
        %v561 = vunpack.c.l.b16 %v370
        %v562 = vunpack.c.h.b16 %v370
        %v563 = vunpack.c.l.b16 %v371
        %v564 = vunpack.c.h.b16 %v371
        %v565 = vunpack.c.l.b16 %v372
        %v566 = vunpack.c.h.b16 %v372
        %v567 = vunpack.c.l.b16 %v373
        %v568 = vunpack.c.h.b16 %v373
        %v569 = vunpack.c.l.b16 %v374
        %v570 = vunpack.c.h.b16 %v374
        %v571 = vunpack.c.l.b16 %v375
        %v572 = vunpack.c.h.b16 %v375
        %v573 = vunpack.c.l.b16 %v376
        %v574 = vunpack.c.h.b16 %v376
        %v575 = vunpack.c.l.b16 %v377
        %v576 = vunpack.c.h.b16 %v377
        %v577 = vunpack.c.l.b16 %v378
        %v578 = vunpack.c.h.b16 %v378
        %v579 = vunpack.c.l.b16 %v379
        %v580 = vunpack.c.h.b16 %v379
        %v581 = vunpack.c.l.b16 %v380
        %v582 = vunpack.c.h.b16 %v380
        %v583 = vunpack.c.l.b16 %v381
        %v584 = vunpack.c.h.b16 %v381
        %v585 = vunpack.c.l.b16 %v382
        %v586 = vunpack.c.h.b16 %v382
        %v587 = vunpack.c.l.b16 %v383
        %v588 = vunpack.c.h.b16 %v383
        %v589 = vunpack.c.l.b16 %v384
        %v590 = vunpack.c.h.b16 %v384
        %v591 = vunpack.c.l.b16 %v385
        %v592 = vunpack.c.h.b16 %v385
        %v593 = vunpack.c.l.b16 %v386
        %v594 = vunpack.c.h.b16 %v386
        %v595 = vunpack.c.l.b16 %v387
        %v596 = vunpack.c.h.b16 %v387
        %v597 = vunpack.c.l.b16 %v388
        %v598 = vunpack.c.h.b16 %v388
        %v599 = vunpack.c.l.b16 %v389
        %v600 = vunpack.c.h.b16 %v389
        %v601 = vunpack.c.l.b16 %v390
        %v602 = vunpack.c.h.b16 %v390
        %v603 = vunpack.c.l.b16 %v391
        %v604 = vunpack.c.h.b16 %v391
        %v605 = vunpack.c.l.b16 %v392
        %v606 = vunpack.c.h.b16 %v392
        %v607 = vunpack.c.l.b16 %v393
        %v608 = vunpack.c.h.b16 %v393
        %v609 = vunpack.c.l.b16 %v394
        %v610 = vunpack.c.h.b16 %v394
        %v611 = vunpack.c.l.b16 %v395
        %v612 = vunpack.c.h.b16 %v395
        %v613 = vunpack.c.l.b16 %v396
        %v614 = vunpack.c.h.b16 %v396
        %v615 = vunpack.c.l.b16 %v397
        %v616 = vunpack.c.h.b16 %v397
        %v617 = vunpack.c.l.b16 %v398
        %v618 = vunpack.c.h.b16 %v398
        %v619 = vunpack.c.l.b16 %v399
        %v620 = vunpack.c.h.b16 %v399
        %v621 = vunpack.c.l.b16 %v400
        %v622 = vunpack.c.h.b16 %v400
        %v623 = vunpack.c.l.b16 %v401
        %v624 = vunpack.c.h.b16 %v401
        %v625 = vunpack.c.l.b16 %v402
        %v626 = vunpack.c.h.b16 %v402
        %v627 = vunpack.c.l.b16 %v403
        %v628 = vunpack.c.h.b16 %v403
        %v629 = vunpack.c.l.b16 %v404
        %v630 = vunpack.c.h.b16 %v404
        %v631 = vunpack.c.l.b16 %v405
        %v632 = vunpack.c.h.b16 %v405
        %v633 = vunpack.c.l.b16 %v406
        %v634 = vunpack.c.h.b16 %v406
        %v635 = vunpack.c.l.b16 %v407
        %v636 = vunpack.c.h.b16 %v407
        %v637 = vunpack.c.l.b16 %v408
        %v638 = vunpack.c.h.b16 %v408
        %v639 = vunpack.c.l.b16 %v409
        %v640 = vunpack.c.h.b16 %v409
        %v641 = vunpack.c.l.b16 %v410
        %v642 = vunpack.c.h.b16 %v410
        %v643 = vunpack.c.l.b16 %v411
        %v644 = vunpack.c.h.b16 %v411
        %v645 = vunpack.c.l.b16 %v412
        %v646 = vunpack.c.h.b16 %v412
        %v647 = vunpack.c.l.b16 %v413
        %v648 = vunpack.c.h.b16 %v413
        %v649 = vpack.c.b16 %v529, %v521
        %v650 = vpack.c.b16 %v530, %v522
        %v651 = vpack.c.b16 %v531, %v523
        %v652 = vpack.c.b16 %v532, %v524
        %v653 = vpack.c.b16 %v533, %v525
        %v654 = vpack.c.b16 %v534, %v526
        %v655 = vpack.c.b16 %v535, %v527
        %v656 = vpack.c.b16 %v536, %v528
        %v657 = vpack.c.b16 %v545, %v537
        %v658 = vpack.c.b16 %v546, %v538
        %v659 = vpack.c.b16 %v547, %v539
        %v660 = vpack.c.b16 %v548, %v540
        %v661 = vpack.c.b16 %v549, %v541
        %v662 = vpack.c.b16 %v550, %v542
        %v663 = vpack.c.b16 %v551, %v543
        %v664 = vpack.c.b16 %v552, %v544
        %v665 = vpack.c.b16 %v561, %v553
        %v666 = vpack.c.b16 %v562, %v554
        %v667 = vpack.c.b16 %v563, %v555
        %v668 = vpack.c.b16 %v564, %v556
        %v669 = vpack.c.b16 %v565, %v557
        %v670 = vpack.c.b16 %v566, %v558
        %v671 = vpack.c.b16 %v567, %v559
        %v672 = vpack.c.b16 %v568, %v560
        %v673 = vpack.c.b16 %v577, %v569
        %v674 = vpack.c.b16 %v578, %v570
        %v675 = vpack.c.b16 %v579, %v571
        %v676 = vpack.c.b16 %v580, %v572
        %v677 = vpack.c.b16 %v581, %v573
        %v678 = vpack.c.b16 %v582, %v574
        %v679 = vpack.c.b16 %v583, %v575
        %v680 = vpack.c.b16 %v584, %v576
        %v681 = vpack.c.b16 %v593, %v585
        %v682 = vpack.c.b16 %v594, %v586
        %v683 = vpack.c.b16 %v595, %v587
        %v684 = vpack.c.b16 %v596, %v588
        %v685 = vpack.c.b16 %v597, %v589
        %v686 = vpack.c.b16 %v598, %v590
        %v687 = vpack.c.b16 %v599, %v591
        %v688 = vpack.c.b16 %v600, %v592
        %v689 = vpack.c.b16 %v609, %v601
        %v690 = vpack.c.b16 %v610, %v602
        %v691 = vpack.c.b16 %v611, %v603
        %v692 = vpack.c.b16 %v612, %v604
        %v693 = vpack.c.b16 %v613, %v605
        %v694 = vpack.c.b16 %v614, %v606
        %v695 = vpack.c.b16 %v615, %v607
        %v696 = vpack.c.b16 %v616, %v608
        %v697 = vpack.c.b16 %v625, %v617
        %v698 = vpack.c.b16 %v626, %v618
        %v699 = vpack.c.b16 %v627, %v619
        %v700 = vpack.c.b16 %v628, %v620
        %v701 = vpack.c.b16 %v629, %v621
        %v702 = vpack.c.b16 %v630, %v622
        %v703 = vpack.c.b16 %v631, %v623
        %v704 = vpack.c.b16 %v632, %v624
        %v705 = vpack.c.b16 %v641, %v633
        %v706 = vpack.c.b16 %v642, %v634
        %v707 = vpack.c.b16 %v643, %v635
        %v708 = vpack.c.b16 %v644, %v636
        %v709 = vpack.c.b16 %v645, %v637
        %v710 = vpack.c.b16 %v646, %v638
        %v711 = vpack.c.b16 %v647, %v639
        %v712 = vpack.c.b16 %v648, %v640
        %777 = vmatprep.subr.bf16.mxu0 %v706
        %778 = vmatpush1.bf16.msra.mxu0 %v705
        %779 = vmatprep.subr.bf16.mxu0 %v698
        %780 = vmatpush1.bf16.msra.mxu0 %v697
        %781 = vmatprep.subr.bf16.mxu0 %v690
        %782 = vmatpush1.bf16.msra.mxu0 %v689
        %783 = vmatprep.subr.bf16.mxu0 %v682
        %784 = vmatpush1.bf16.msra.mxu0 %v681
        %785 = vmatprep.subr.bf16.mxu0 %v674
        %786 = vmatpush1.bf16.msra.mxu0 %v673
        %787 = vmatprep.subr.bf16.mxu0 %v666
        %788 = vmatpush1.bf16.msra.mxu0 %v665
        %789 = vmatprep.subr.bf16.mxu0 %v658
        %790 = vmatpush1.bf16.msra.mxu0 %v657
        %791 = vmatprep.subr.bf16.mxu0 %v650
        %792 = vmatpush1.bf16.msra.mxu0 %v649
        %793 = vmatprep.subr.bf16.mxu0 0
        %794 = vmatpush2.bf16.msra.mxu0 0
        %795 = vmatprep.subr.bf16.mxu0 0
        %796 = vmatpush2.bf16.msra.mxu0 0
        %797 = vmatprep.subr.bf16.mxu0 0
        %798 = vmatpush2.bf16.msra.mxu0 0
        %799 = vmatprep.subr.bf16.mxu0 0
        %800 = vmatpush2.bf16.msra.mxu0 0
        %801 = vmatprep.subr.bf16.mxu0 0
        %802 = vmatpush2.bf16.msra.mxu0 0
        %803 = vmatprep.subr.bf16.mxu0 0
        %804 = vmatpush2.bf16.msra.mxu0 0
        %805 = vmatprep.subr.bf16.mxu0 0
        %806 = vmatpush2.bf16.msra.mxu0 0
        %807 = vmatprep.subr.bf16.mxu0 0
        %808 = vmatpush2.bf16.msra.mxu0 0
        %809 = vmatprep.mubr.bf16.mxu0 0
        %810 = vmatmul.mubr.bf16.gmra.mxu0 %v415
        %v811 = vpop.f32.mrf.mxu0
        %v812 = vadd.f32 %v420, %v811
        %v813 = vpop.f32.mrf.mxu0
        %v814 = vadd.f32 %v424, %v813
        %v815 = vpop.f32.mrf.mxu0
        %v816 = vadd.f32 %v420, %v815
        %v817 = vpop.f32.mrf.mxu0
        %v818 = vadd.f32 %v424, %v817
        %819 = vdwg.mxu0
        %820 = vmatprep.subr.bf16.mxu0 %v708
        %821 = vmatpush1.bf16.msra.mxu0 %v707
        %822 = vmatprep.subr.bf16.mxu0 %v700
        %823 = vmatpush1.bf16.msra.mxu0 %v699
        %824 = vmatprep.subr.bf16.mxu0 %v692
        %825 = vmatpush1.bf16.msra.mxu0 %v691
        %826 = vmatprep.subr.bf16.mxu0 %v684
        %827 = vmatpush1.bf16.msra.mxu0 %v683
        %828 = vmatprep.subr.bf16.mxu0 %v676
        %829 = vmatpush1.bf16.msra.mxu0 %v675
        %830 = vmatprep.subr.bf16.mxu0 %v668
        %831 = vmatpush1.bf16.msra.mxu0 %v667
        %832 = vmatprep.subr.bf16.mxu0 %v660
        %833 = vmatpush1.bf16.msra.mxu0 %v659
        %834 = vmatprep.subr.bf16.mxu0 %v652
        %835 = vmatpush1.bf16.msra.mxu0 %v651
        %836 = vmatprep.subr.bf16.mxu0 0
        %837 = vmatpush2.bf16.msra.mxu0 0
        %838 = vmatprep.subr.bf16.mxu0 0
        %839 = vmatpush2.bf16.msra.mxu0 0
        %840 = vmatprep.subr.bf16.mxu0 0
        %841 = vmatpush2.bf16.msra.mxu0 0
        %842 = vmatprep.subr.bf16.mxu0 0
        %843 = vmatpush2.bf16.msra.mxu0 0
        %844 = vmatprep.subr.bf16.mxu0 0
        %845 = vmatpush2.bf16.msra.mxu0 0
        %846 = vmatprep.subr.bf16.mxu0 0
        %847 = vmatpush2.bf16.msra.mxu0 0
        %848 = vmatprep.subr.bf16.mxu0 0
        %849 = vmatpush2.bf16.msra.mxu0 0
        %850 = vmatprep.subr.bf16.mxu0 0
        %851 = vmatpush2.bf16.msra.mxu0 0
        %852 = vmatprep.mubr.bf16.mxu0 0
        %853 = vmatmul.mubr.bf16.gmra.mxu0 %v415
        %v854 = vpop.f32.mrf.mxu0
        %v855 = vadd.f32 %v428, %v854
        %v856 = vpop.f32.mrf.mxu0
        %v857 = vadd.f32 %v432, %v856
        %v858 = vpop.f32.mrf.mxu0
        %v859 = vadd.f32 %v428, %v858
        %v860 = vpop.f32.mrf.mxu0
        %v861 = vadd.f32 %v432, %v860
        %862 = vdwg.mxu0
        %863 = vmatprep.subr.bf16.mxu0 %v710
        %864 = vmatpush1.bf16.msra.mxu0 %v709
        %865 = vmatprep.subr.bf16.mxu0 %v702
        %866 = vmatpush1.bf16.msra.mxu0 %v701
        %867 = vmatprep.subr.bf16.mxu0 %v694
        %868 = vmatpush1.bf16.msra.mxu0 %v693
        %869 = vmatprep.subr.bf16.mxu0 %v686
        %870 = vmatpush1.bf16.msra.mxu0 %v685
        %871 = vmatprep.subr.bf16.mxu0 %v678
        %872 = vmatpush1.bf16.msra.mxu0 %v677
        %873 = vmatprep.subr.bf16.mxu0 %v670
        %874 = vmatpush1.bf16.msra.mxu0 %v669
        %875 = vmatprep.subr.bf16.mxu0 %v662
        %876 = vmatpush1.bf16.msra.mxu0 %v661
        %877 = vmatprep.subr.bf16.mxu0 %v654
        %878 = vmatpush1.bf16.msra.mxu0 %v653
        %879 = vmatprep.subr.bf16.mxu0 0
        %880 = vmatpush2.bf16.msra.mxu0 0
        %881 = vmatprep.subr.bf16.mxu0 0
        %882 = vmatpush2.bf16.msra.mxu0 0
        %883 = vmatprep.subr.bf16.mxu0 0
        %884 = vmatpush2.bf16.msra.mxu0 0
        %885 = vmatprep.subr.bf16.mxu0 0
        %886 = vmatpush2.bf16.msra.mxu0 0
        %887 = vmatprep.subr.bf16.mxu0 0
        %888 = vmatpush2.bf16.msra.mxu0 0
        %889 = vmatprep.subr.bf16.mxu0 0
        %890 = vmatpush2.bf16.msra.mxu0 0
        %891 = vmatprep.subr.bf16.mxu0 0
        %892 = vmatpush2.bf16.msra.mxu0 0
        %893 = vmatprep.subr.bf16.mxu0 0
        %894 = vmatpush2.bf16.msra.mxu0 0
        %895 = vmatprep.mubr.bf16.mxu0 0
        %896 = vmatmul.mubr.bf16.gmra.mxu0 %v415
        %v897 = vpop.f32.mrf.mxu0
        %v898 = vadd.f32 %v436, %v897
        %v899 = vpop.f32.mrf.mxu0
        %v900 = vadd.f32 %v440, %v899
        %v901 = vpop.f32.mrf.mxu0
        %v902 = vadd.f32 %v436, %v901
        %v903 = vpop.f32.mrf.mxu0
        %v904 = vadd.f32 %v440, %v903
        %905 = vdwg.mxu0
        %906 = vmatprep.subr.bf16.mxu0 %v712
        %907 = vmatpush1.bf16.msra.mxu0 %v711
        %908 = vmatprep.subr.bf16.mxu0 %v704
        %909 = vmatpush1.bf16.msra.mxu0 %v703
        %910 = vmatprep.subr.bf16.mxu0 %v696
        %911 = vmatpush1.bf16.msra.mxu0 %v695
        %912 = vmatprep.subr.bf16.mxu0 %v688
        %913 = vmatpush1.bf16.msra.mxu0 %v687
        %914 = vmatprep.subr.bf16.mxu0 %v680
        %915 = vmatpush1.bf16.msra.mxu0 %v679
        %916 = vmatprep.subr.bf16.mxu0 %v672
        %917 = vmatpush1.bf16.msra.mxu0 %v671
        %918 = vmatprep.subr.bf16.mxu0 %v664
        %919 = vmatpush1.bf16.msra.mxu0 %v663
        %920 = vmatprep.subr.bf16.mxu0 %v656
        %921 = vmatpush1.bf16.msra.mxu0 %v655
        %922 = vmatprep.subr.bf16.mxu0 0
        %923 = vmatpush2.bf16.msra.mxu0 0
        %924 = vmatprep.subr.bf16.mxu0 0
        %925 = vmatpush2.bf16.msra.mxu0 0
        %926 = vmatprep.subr.bf16.mxu0 0
        %927 = vmatpush2.bf16.msra.mxu0 0
        %928 = vmatprep.subr.bf16.mxu0 0
        %929 = vmatpush2.bf16.msra.mxu0 0
        %930 = vmatprep.subr.bf16.mxu0 0
        %931 = vmatpush2.bf16.msra.mxu0 0
        %932 = vmatprep.subr.bf16.mxu0 0
        %933 = vmatpush2.bf16.msra.mxu0 0
        %934 = vmatprep.subr.bf16.mxu0 0
        %935 = vmatpush2.bf16.msra.mxu0 0
        %936 = vmatprep.subr.bf16.mxu0 0
        %937 = vmatpush2.bf16.msra.mxu0 0
        %938 = vmatprep.mubr.bf16.mxu0 0
        %939 = vmatmul.mubr.bf16.gmra.mxu0 %v415
        %v940 = vpop.f32.mrf.mxu0
        %v941 = vadd.f32 %v444, %v940
        %v942 = vpop.f32.mrf.mxu0
        %v943 = vadd.f32 %v448, %v942
        %v944 = vpop.f32.mrf.mxu0
        %v945 = vadd.f32 %v444, %v944
        %v946 = vpop.f32.mrf.mxu0
        %v947 = vadd.f32 %v448, %v946
        %948 = vdwg.mxu0
        %v949 = vadd.f32 %v348, %v349
        %v950 = vrot.slane %v949, 4
        %v951 = vadd.f32 %v949, %v950
        %v952 = vrot.slane %v951, 2
        %v953 = vadd.f32 %v951, %v952
        %v954 = vrot.slane %v953, 1
        %v955 = vadd.f32 %v953, %v954
        %v956 = vmul.f32 %v955, 0.0625
        %v957 = vsub.f32 %v348, %v956
        %v958 = vsub.f32 %v349, %v956
        %v959 = vunpack.c.l.bf16 %v350
        %v960 = vunpack.c.h.bf16 %v350
        %v961 = vunpack.c.l.bf16 %v351
        %v962 = vunpack.c.h.bf16 %v351
        %v963 = vunpack.c.l.bf16 %v352
        %v964 = vunpack.c.h.bf16 %v352
        %v965 = vunpack.c.l.bf16 %v353
        %v966 = vunpack.c.h.bf16 %v353
        %v967 = vunpack.c.l.bf16 %v354
        %v968 = vunpack.c.h.bf16 %v354
        %v969 = vunpack.c.l.bf16 %v355
        %v970 = vunpack.c.h.bf16 %v355
        %v971 = vunpack.c.l.bf16 %v356
        %v972 = vunpack.c.h.bf16 %v356
        %v973 = vunpack.c.l.bf16 %v357
        %v974 = vunpack.c.h.bf16 %v357
        %v975 = vunpack.c.l.bf16 %v358
        %v976 = vunpack.c.h.bf16 %v358
        %v977 = vunpack.c.l.bf16 %v359
        %v978 = vunpack.c.h.bf16 %v359
        %v979 = vunpack.c.l.bf16 %v360
        %v980 = vunpack.c.h.bf16 %v360
        %v981 = vunpack.c.l.bf16 %v361
        %v982 = vunpack.c.h.bf16 %v361
        %v983 = vunpack.c.l.bf16 %v362
        %v984 = vunpack.c.h.bf16 %v362
        %v985 = vunpack.c.l.bf16 %v363
        %v986 = vunpack.c.h.bf16 %v363
        %v987 = vunpack.c.l.bf16 %v364
        %v988 = vunpack.c.h.bf16 %v364
        %v989 = vunpack.c.l.bf16 %v365
        %v990 = vunpack.c.h.bf16 %v365
        %v991 = vunpack.c.l.bf16 %v366
        %v992 = vunpack.c.h.bf16 %v366
        %v993 = vunpack.c.l.bf16 %v367
        %v994 = vunpack.c.h.bf16 %v367
        %v995 = vunpack.c.l.bf16 %v368
        %v996 = vunpack.c.h.bf16 %v368
        %v997 = vunpack.c.l.bf16 %v369
        %v998 = vunpack.c.h.bf16 %v369
        %v999 = vunpack.c.l.bf16 %v370
        %v1000 = vunpack.c.h.bf16 %v370
        %v1001 = vunpack.c.l.bf16 %v371
        %v1002 = vunpack.c.h.bf16 %v371
        %v1003 = vunpack.c.l.bf16 %v372
        %v1004 = vunpack.c.h.bf16 %v372
        %v1005 = vunpack.c.l.bf16 %v373
        %v1006 = vunpack.c.h.bf16 %v373
        %v1007 = vunpack.c.l.bf16 %v374
        %v1008 = vunpack.c.h.bf16 %v374
        %v1009 = vunpack.c.l.bf16 %v375
        %v1010 = vunpack.c.h.bf16 %v375
        %v1011 = vunpack.c.l.bf16 %v376
        %v1012 = vunpack.c.h.bf16 %v376
        %v1013 = vunpack.c.l.bf16 %v377
        %v1014 = vunpack.c.h.bf16 %v377
        %v1015 = vunpack.c.l.bf16 %v378
        %v1016 = vunpack.c.h.bf16 %v378
        %v1017 = vunpack.c.l.bf16 %v379
        %v1018 = vunpack.c.h.bf16 %v379
        %v1019 = vunpack.c.l.bf16 %v380
        %v1020 = vunpack.c.h.bf16 %v380
        %v1021 = vunpack.c.l.bf16 %v381
        %v1022 = vunpack.c.h.bf16 %v381
        %v1023 = vunpack.c.l.bf16 %v382
        %v1024 = vunpack.c.h.bf16 %v382
        %v1025 = vunpack.c.l.bf16 %v383
        %v1026 = vunpack.c.h.bf16 %v383
        %v1027 = vunpack.c.l.bf16 %v384
        %v1028 = vunpack.c.h.bf16 %v384
        %v1029 = vunpack.c.l.bf16 %v385
        %v1030 = vunpack.c.h.bf16 %v385
        %v1031 = vunpack.c.l.bf16 %v386
        %v1032 = vunpack.c.h.bf16 %v386
        %v1033 = vunpack.c.l.bf16 %v387
        %v1034 = vunpack.c.h.bf16 %v387
        %v1035 = vunpack.c.l.bf16 %v388
        %v1036 = vunpack.c.h.bf16 %v388
        %v1037 = vunpack.c.l.bf16 %v389
        %v1038 = vunpack.c.h.bf16 %v389
        %v1039 = vunpack.c.l.bf16 %v390
        %v1040 = vunpack.c.h.bf16 %v390
        %v1041 = vunpack.c.l.bf16 %v391
        %v1042 = vunpack.c.h.bf16 %v391
        %v1043 = vunpack.c.l.bf16 %v392
        %v1044 = vunpack.c.h.bf16 %v392
        %v1045 = vunpack.c.l.bf16 %v393
        %v1046 = vunpack.c.h.bf16 %v393
        %v1047 = vunpack.c.l.bf16 %v394
        %v1048 = vunpack.c.h.bf16 %v394
        %v1049 = vunpack.c.l.bf16 %v395
        %v1050 = vunpack.c.h.bf16 %v395
        %v1051 = vunpack.c.l.bf16 %v396
        %v1052 = vunpack.c.h.bf16 %v396
        %v1053 = vunpack.c.l.bf16 %v397
        %v1054 = vunpack.c.h.bf16 %v397
        %v1055 = vunpack.c.l.bf16 %v398
        %v1056 = vunpack.c.h.bf16 %v398
        %v1057 = vunpack.c.l.bf16 %v399
        %v1058 = vunpack.c.h.bf16 %v399
        %v1059 = vunpack.c.l.bf16 %v400
        %v1060 = vunpack.c.h.bf16 %v400
        %v1061 = vunpack.c.l.bf16 %v401
        %v1062 = vunpack.c.h.bf16 %v401
        %v1063 = vunpack.c.l.bf16 %v402
        %v1064 = vunpack.c.h.bf16 %v402
        %v1065 = vunpack.c.l.bf16 %v403
        %v1066 = vunpack.c.h.bf16 %v403
        %v1067 = vunpack.c.l.bf16 %v404
        %v1068 = vunpack.c.h.bf16 %v404
        %v1069 = vunpack.c.l.bf16 %v405
        %v1070 = vunpack.c.h.bf16 %v405
        %v1071 = vunpack.c.l.bf16 %v406
        %v1072 = vunpack.c.h.bf16 %v406
        %v1073 = vunpack.c.l.bf16 %v407
        %v1074 = vunpack.c.h.bf16 %v407
        %v1075 = vunpack.c.l.bf16 %v408
        %v1076 = vunpack.c.h.bf16 %v408
        %v1077 = vunpack.c.l.bf16 %v409
        %v1078 = vunpack.c.h.bf16 %v409
        %v1079 = vunpack.c.l.bf16 %v410
        %v1080 = vunpack.c.h.bf16 %v410
        %v1081 = vunpack.c.l.bf16 %v411
        %v1082 = vunpack.c.h.bf16 %v411
        %v1083 = vunpack.c.l.bf16 %v412
        %v1084 = vunpack.c.h.bf16 %v412
        %v1085 = vunpack.c.l.bf16 %v413
        %v1086 = vunpack.c.h.bf16 %v413
        %v1087 = vmul.f32 %v414, 16.0
        %v1089 = vlaneseq
        %v1090 = vshrl.u32 %v1089, 7
        %v1091 = vsub.s32 0, %v1090
        %v1092 = vrot.slane %v1087, %v1091
        %v1093 = vlaneseq
        %v1094 = vshrl.u32 %v1093, 7
        %v1095 = vsub.s32 1, %v1094
        %v1096 = vrot.slane %v1087, %v1095
        %v1097 = vlaneseq
        %v1098 = vshrl.u32 %v1097, 7
        %v1099 = vsub.s32 2, %v1098
        %v1100 = vrot.slane %v1087, %v1099
        %v1101 = vlaneseq
        %v1102 = vshrl.u32 %v1101, 7
        %v1103 = vsub.s32 3, %v1102
        %v1104 = vrot.slane %v1087, %v1103
        %v1105 = vlaneseq
        %v1106 = vshrl.u32 %v1105, 7
        %v1107 = vsub.s32 4, %v1106
        %v1108 = vrot.slane %v1087, %v1107
        %v1109 = vlaneseq
        %v1110 = vshrl.u32 %v1109, 7
        %v1111 = vsub.s32 5, %v1110
        %v1112 = vrot.slane %v1087, %v1111
        %v1113 = vlaneseq
        %v1114 = vshrl.u32 %v1113, 7
        %v1115 = vsub.s32 6, %v1114
        %v1116 = vrot.slane %v1087, %v1115
        %v1117 = vlaneseq
        %v1118 = vshrl.u32 %v1117, 7
        %v1119 = vsub.s32 7, %v1118
        %v1120 = vrot.slane %v1087, %v1119
        %1129 = vmatprep.subr.mxu0 %v1080
        %1130 = vmatpush1.msra.mxu0 %v1079
        %1131 = vmatprep.subr.mxu0 %v1072
        %1132 = vmatpush1.msra.mxu0 %v1071
        %1133 = vmatprep.subr.mxu0 %v1064
        %1134 = vmatpush1.msra.mxu0 %v1063
        %1135 = vmatprep.subr.mxu0 %v1056
        %1136 = vmatpush1.msra.mxu0 %v1055
        %1137 = vmatprep.subr.mxu0 %v1048
        %1138 = vmatpush1.msra.mxu0 %v1047
        %1139 = vmatprep.subr.mxu0 %v1040
        %1140 = vmatpush1.msra.mxu0 %v1039
        %1141 = vmatprep.subr.mxu0 %v1032
        %1142 = vmatpush1.msra.mxu0 %v1031
        %1143 = vmatprep.subr.mxu0 %v1024
        %1144 = vmatpush1.msra.mxu0 %v1023
        %1145 = vmatprep.subr.mxu0 %v1016
        %1146 = vmatpush1.msra.mxu0 %v1015
        %1147 = vmatprep.subr.mxu0 %v1008
        %1148 = vmatpush1.msra.mxu0 %v1007
        %1149 = vmatprep.subr.mxu0 %v1000
        %1150 = vmatpush1.msra.mxu0 %v999
        %1151 = vmatprep.subr.mxu0 %v992
        %1152 = vmatpush1.msra.mxu0 %v991
        %1153 = vmatprep.subr.mxu0 %v984
        %1154 = vmatpush1.msra.mxu0 %v983
        %1155 = vmatprep.subr.mxu0 %v976
        %1156 = vmatpush1.msra.mxu0 %v975
        %1157 = vmatprep.subr.mxu0 %v968
        %1158 = vmatpush1.msra.mxu0 %v967
        %1159 = vmatprep.subr.mxu0 %v960
        %1160 = vmatpush1.msra.mxu0 %v959
        %1161 = vmatprep.subr.mxu0 0.0
        %1162 = vmatpush2.msra.mxu0 0.0
        %1163 = vmatprep.subr.mxu0 0.0
        %1164 = vmatpush2.msra.mxu0 0.0
        %1165 = vmatprep.subr.mxu0 0.0
        %1166 = vmatpush2.msra.mxu0 0.0
        %1167 = vmatprep.subr.mxu0 0.0
        %1168 = vmatpush2.msra.mxu0 0.0
        %1169 = vmatprep.subr.mxu0 0.0
        %1170 = vmatpush2.msra.mxu0 0.0
        %1171 = vmatprep.subr.mxu0 0.0
        %1172 = vmatpush2.msra.mxu0 0.0
        %1173 = vmatprep.subr.mxu0 0.0
        %1174 = vmatpush2.msra.mxu0 0.0
        %1175 = vmatprep.subr.mxu0 0.0
        %1176 = vmatpush2.msra.mxu0 0.0
        %1177 = vmatprep.subr.mxu0 0.0
        %1178 = vmatpush2.msra.mxu0 0.0
        %1179 = vmatprep.subr.mxu0 0.0
        %1180 = vmatpush2.msra.mxu0 0.0
        %1181 = vmatprep.subr.mxu0 0.0
        %1182 = vmatpush2.msra.mxu0 0.0
        %1183 = vmatprep.subr.mxu0 0.0
        %1184 = vmatpush2.msra.mxu0 0.0
        %1185 = vmatprep.subr.mxu0 0.0
        %1186 = vmatpush2.msra.mxu0 0.0
        %1187 = vmatprep.subr.mxu0 0.0
        %1188 = vmatpush2.msra.mxu0 0.0
        %1189 = vmatprep.subr.mxu0 0.0
        %1190 = vmatpush2.msra.mxu0 0.0
        %1191 = vmatprep.subr.mxu0 0.0
        %1192 = vmatpush2.msra.mxu0 0.0
        %1193 = vmatprep.mubr.f32.mxu0 0.0
        %1194 = vmatmul.mubr.f32.gmra.mxu0 %v955
        %v1195 = vpop.f32.mrf.mxu0
        %v1196 = vadd.f32 %v1092, %v1195
        %v1197 = vpop.f32.mrf.mxu0
        %v1198 = vadd.f32 %v1096, %v1197
        %1199 = vdwg.mxu0
        %1200 = vmatprep.subr.mxu0 %v1082
        %1201 = vmatpush1.msra.mxu0 %v1081
        %1202 = vmatprep.subr.mxu0 %v1074
        %1203 = vmatpush1.msra.mxu0 %v1073
        %1204 = vmatprep.subr.mxu0 %v1066
        %1205 = vmatpush1.msra.mxu0 %v1065
        %1206 = vmatprep.subr.mxu0 %v1058
        %1207 = vmatpush1.msra.mxu0 %v1057
        %1208 = vmatprep.subr.mxu0 %v1050
        %1209 = vmatpush1.msra.mxu0 %v1049
        %1210 = vmatprep.subr.mxu0 %v1042
        %1211 = vmatpush1.msra.mxu0 %v1041
        %1212 = vmatprep.subr.mxu0 %v1034
        %1213 = vmatpush1.msra.mxu0 %v1033
        %1214 = vmatprep.subr.mxu0 %v1026
        %1215 = vmatpush1.msra.mxu0 %v1025
        %1216 = vmatprep.subr.mxu0 %v1018
        %1217 = vmatpush1.msra.mxu0 %v1017
        %1218 = vmatprep.subr.mxu0 %v1010
        %1219 = vmatpush1.msra.mxu0 %v1009
        %1220 = vmatprep.subr.mxu0 %v1002
        %1221 = vmatpush1.msra.mxu0 %v1001
        %1222 = vmatprep.subr.mxu0 %v994
        %1223 = vmatpush1.msra.mxu0 %v993
        %1224 = vmatprep.subr.mxu0 %v986
        %1225 = vmatpush1.msra.mxu0 %v985
        %1226 = vmatprep.subr.mxu0 %v978
        %1227 = vmatpush1.msra.mxu0 %v977
        %1228 = vmatprep.subr.mxu0 %v970
        %1229 = vmatpush1.msra.mxu0 %v969
        %1230 = vmatprep.subr.mxu0 %v962
        %1231 = vmatpush1.msra.mxu0 %v961
        %1232 = vmatprep.subr.mxu0 0.0
        %1233 = vmatpush2.msra.mxu0 0.0
        %1234 = vmatprep.subr.mxu0 0.0
        %1235 = vmatpush2.msra.mxu0 0.0
        %1236 = vmatprep.subr.mxu0 0.0
        %1237 = vmatpush2.msra.mxu0 0.0
        %1238 = vmatprep.subr.mxu0 0.0
        %1239 = vmatpush2.msra.mxu0 0.0
        %1240 = vmatprep.subr.mxu0 0.0
        %1241 = vmatpush2.msra.mxu0 0.0
        %1242 = vmatprep.subr.mxu0 0.0
        %1243 = vmatpush2.msra.mxu0 0.0
        %1244 = vmatprep.subr.mxu0 0.0
        %1245 = vmatpush2.msra.mxu0 0.0
        %1246 = vmatprep.subr.mxu0 0.0
        %1247 = vmatpush2.msra.mxu0 0.0
        %1248 = vmatprep.subr.mxu0 0.0
        %1249 = vmatpush2.msra.mxu0 0.0
        %1250 = vmatprep.subr.mxu0 0.0
        %1251 = vmatpush2.msra.mxu0 0.0
        %1252 = vmatprep.subr.mxu0 0.0
        %1253 = vmatpush2.msra.mxu0 0.0
        %1254 = vmatprep.subr.mxu0 0.0
        %1255 = vmatpush2.msra.mxu0 0.0
        %1256 = vmatprep.subr.mxu0 0.0
        %1257 = vmatpush2.msra.mxu0 0.0
        %1258 = vmatprep.subr.mxu0 0.0
        %1259 = vmatpush2.msra.mxu0 0.0
        %1260 = vmatprep.subr.mxu0 0.0
        %1261 = vmatpush2.msra.mxu0 0.0
        %1262 = vmatprep.subr.mxu0 0.0
        %1263 = vmatpush2.msra.mxu0 0.0
        %1264 = vmatprep.mubr.f32.mxu0 0.0
        %1265 = vmatmul.mubr.f32.gmra.mxu0 %v955
        %v1266 = vpop.f32.mrf.mxu0
        %v1267 = vadd.f32 %v1100, %v1266
        %v1268 = vpop.f32.mrf.mxu0
        %v1269 = vadd.f32 %v1104, %v1268
        %1270 = vdwg.mxu0
        %1271 = vmatprep.subr.mxu0 %v1084
        %1272 = vmatpush1.msra.mxu0 %v1083
        %1273 = vmatprep.subr.mxu0 %v1076
        %1274 = vmatpush1.msra.mxu0 %v1075
        %1275 = vmatprep.subr.mxu0 %v1068
        %1276 = vmatpush1.msra.mxu0 %v1067
        %1277 = vmatprep.subr.mxu0 %v1060
        %1278 = vmatpush1.msra.mxu0 %v1059
        %1279 = vmatprep.subr.mxu0 %v1052
        %1280 = vmatpush1.msra.mxu0 %v1051
        %1281 = vmatprep.subr.mxu0 %v1044
        %1282 = vmatpush1.msra.mxu0 %v1043
        %1283 = vmatprep.subr.mxu0 %v1036
        %1284 = vmatpush1.msra.mxu0 %v1035
        %1285 = vmatprep.subr.mxu0 %v1028
        %1286 = vmatpush1.msra.mxu0 %v1027
        %1287 = vmatprep.subr.mxu0 %v1020
        %1288 = vmatpush1.msra.mxu0 %v1019
        %1289 = vmatprep.subr.mxu0 %v1012
        %1290 = vmatpush1.msra.mxu0 %v1011
        %1291 = vmatprep.subr.mxu0 %v1004
        %1292 = vmatpush1.msra.mxu0 %v1003
        %1293 = vmatprep.subr.mxu0 %v996
        %1294 = vmatpush1.msra.mxu0 %v995
        %1295 = vmatprep.subr.mxu0 %v988
        %1296 = vmatpush1.msra.mxu0 %v987
        %1297 = vmatprep.subr.mxu0 %v980
        %1298 = vmatpush1.msra.mxu0 %v979
        %1299 = vmatprep.subr.mxu0 %v972
        %1300 = vmatpush1.msra.mxu0 %v971
        %1301 = vmatprep.subr.mxu0 %v964
        %1302 = vmatpush1.msra.mxu0 %v963
        %1303 = vmatprep.subr.mxu0 0.0
        %1304 = vmatpush2.msra.mxu0 0.0
        %1305 = vmatprep.subr.mxu0 0.0
        %1306 = vmatpush2.msra.mxu0 0.0
        %1307 = vmatprep.subr.mxu0 0.0
        %1308 = vmatpush2.msra.mxu0 0.0
        %1309 = vmatprep.subr.mxu0 0.0
        %1310 = vmatpush2.msra.mxu0 0.0
        %1311 = vmatprep.subr.mxu0 0.0
        %1312 = vmatpush2.msra.mxu0 0.0
        %1313 = vmatprep.subr.mxu0 0.0
        %1314 = vmatpush2.msra.mxu0 0.0
        %1315 = vmatprep.subr.mxu0 0.0
        %1316 = vmatpush2.msra.mxu0 0.0
        %1317 = vmatprep.subr.mxu0 0.0
        %1318 = vmatpush2.msra.mxu0 0.0
        %1319 = vmatprep.subr.mxu0 0.0
        %1320 = vmatpush2.msra.mxu0 0.0
        %1321 = vmatprep.subr.mxu0 0.0
        %1322 = vmatpush2.msra.mxu0 0.0
        %1323 = vmatprep.subr.mxu0 0.0
        %1324 = vmatpush2.msra.mxu0 0.0
        %1325 = vmatprep.subr.mxu0 0.0
        %1326 = vmatpush2.msra.mxu0 0.0
        %1327 = vmatprep.subr.mxu0 0.0
        %1328 = vmatpush2.msra.mxu0 0.0
        %1329 = vmatprep.subr.mxu0 0.0
        %1330 = vmatpush2.msra.mxu0 0.0
        %1331 = vmatprep.subr.mxu0 0.0
        %1332 = vmatpush2.msra.mxu0 0.0
        %1333 = vmatprep.subr.mxu0 0.0
        %1334 = vmatpush2.msra.mxu0 0.0
        %1335 = vmatprep.mubr.f32.mxu0 0.0
        %1336 = vmatmul.mubr.f32.gmra.mxu0 %v955
        %v1337 = vpop.f32.mrf.mxu0
        %v1338 = vadd.f32 %v1108, %v1337
        %v1339 = vpop.f32.mrf.mxu0
        %v1340 = vadd.f32 %v1112, %v1339
        %1341 = vdwg.mxu0
        %1342 = vmatprep.subr.mxu0 %v1086
        %1343 = vmatpush1.msra.mxu0 %v1085
        %1344 = vmatprep.subr.mxu0 %v1078
        %1345 = vmatpush1.msra.mxu0 %v1077
        %1346 = vmatprep.subr.mxu0 %v1070
        %1347 = vmatpush1.msra.mxu0 %v1069
        %1348 = vmatprep.subr.mxu0 %v1062
        %1349 = vmatpush1.msra.mxu0 %v1061
        %1350 = vmatprep.subr.mxu0 %v1054
        %1351 = vmatpush1.msra.mxu0 %v1053
        %1352 = vmatprep.subr.mxu0 %v1046
        %1353 = vmatpush1.msra.mxu0 %v1045
        %1354 = vmatprep.subr.mxu0 %v1038
        %1355 = vmatpush1.msra.mxu0 %v1037
        %1356 = vmatprep.subr.mxu0 %v1030
        %1357 = vmatpush1.msra.mxu0 %v1029
        %1358 = vmatprep.subr.mxu0 %v1022
        %1359 = vmatpush1.msra.mxu0 %v1021
        %1360 = vmatprep.subr.mxu0 %v1014
        %1361 = vmatpush1.msra.mxu0 %v1013
        %1362 = vmatprep.subr.mxu0 %v1006
        %1363 = vmatpush1.msra.mxu0 %v1005
        %1364 = vmatprep.subr.mxu0 %v998
        %1365 = vmatpush1.msra.mxu0 %v997
        %1366 = vmatprep.subr.mxu0 %v990
        %1367 = vmatpush1.msra.mxu0 %v989
        %1368 = vmatprep.subr.mxu0 %v982
        %1369 = vmatpush1.msra.mxu0 %v981
        %1370 = vmatprep.subr.mxu0 %v974
        %1371 = vmatpush1.msra.mxu0 %v973
        %1372 = vmatprep.subr.mxu0 %v966
        %1373 = vmatpush1.msra.mxu0 %v965
        %1374 = vmatprep.subr.mxu0 0.0
        %1375 = vmatpush2.msra.mxu0 0.0
        %1376 = vmatprep.subr.mxu0 0.0
        %1377 = vmatpush2.msra.mxu0 0.0
        %1378 = vmatprep.subr.mxu0 0.0
        %1379 = vmatpush2.msra.mxu0 0.0
        %1380 = vmatprep.subr.mxu0 0.0
        %1381 = vmatpush2.msra.mxu0 0.0
        %1382 = vmatprep.subr.mxu0 0.0
        %1383 = vmatpush2.msra.mxu0 0.0
        %1384 = vmatprep.subr.mxu0 0.0
        %1385 = vmatpush2.msra.mxu0 0.0
        %1386 = vmatprep.subr.mxu0 0.0
        %1387 = vmatpush2.msra.mxu0 0.0
        %1388 = vmatprep.subr.mxu0 0.0
        %1389 = vmatpush2.msra.mxu0 0.0
        %1390 = vmatprep.subr.mxu0 0.0
        %1391 = vmatpush2.msra.mxu0 0.0
        %1392 = vmatprep.subr.mxu0 0.0
        %1393 = vmatpush2.msra.mxu0 0.0
        %1394 = vmatprep.subr.mxu0 0.0
        %1395 = vmatpush2.msra.mxu0 0.0
        %1396 = vmatprep.subr.mxu0 0.0
        %1397 = vmatpush2.msra.mxu0 0.0
        %1398 = vmatprep.subr.mxu0 0.0
        %1399 = vmatpush2.msra.mxu0 0.0
        %1400 = vmatprep.subr.mxu0 0.0
        %1401 = vmatpush2.msra.mxu0 0.0
        %1402 = vmatprep.subr.mxu0 0.0
        %1403 = vmatpush2.msra.mxu0 0.0
        %1404 = vmatprep.subr.mxu0 0.0
        %1405 = vmatpush2.msra.mxu0 0.0
        %1406 = vmatprep.mubr.f32.mxu0 0.0
        %1407 = vmatmul.mubr.f32.gmra.mxu0 %v955
        %v1408 = vpop.f32.mrf.mxu0
        %v1409 = vadd.f32 %v1116, %v1408
        %v1410 = vpop.f32.mrf.mxu0
        %v1411 = vadd.f32 %v1120, %v1410
        %1412 = vdwg.mxu0
        %v1413 = vpack.c.bf16 %v958, %v957
        %1414 = vxpose.xlu0.c.b16.start [1/8] %v1413, 128
        %1415 = vxpose.xlu0.c.b16.cont [2/8] 0, 128
        %1416 = vxpose.xlu0.c.b16.cont [3/8] 0, 128
        %1417 = vxpose.xlu0.c.b16.cont [4/8] 0, 128
        %1418 = vxpose.xlu0.c.b16.cont [5/8] 0, 128
        %1419 = vxpose.xlu0.c.b16.cont [6/8] 0, 128
        %1420 = vxpose.xlu0.c.b16.cont [7/8] 0, 128
        %1421 = vxpose.xlu0.c.b16.end [8/8] 0, 128
        %v1422 = vpop.trf.xlu0
        %v1423 = vpop.trf.xlu0
        %v1424 = vpop.trf.xlu0
        %v1425 = vpop.trf.xlu0
        %v1426 = vpop.trf.xlu0
        %v1427 = vpop.trf.xlu0
        %v1428 = vpop.trf.xlu0
        %v1429 = vpop.trf.xlu0
        %vm1430 = vcmask 130048
        %v1432 = vsel %vm1430, %v1422, 0
        %v1435 = vsel %vm1430, %v1423, 0
        %v1438 = vsel %vm1430, %v1424, 0
        %v1441 = vsel %vm1430, %v1425, 0
        %v1444 = vsel %vm1430, %v1426, 0
        %v1447 = vsel %vm1430, %v1427, 0
        %v1450 = vsel %vm1430, %v1428, 0
        %v1453 = vsel %vm1430, %v1429, 0
        %1455 = vmatprep.subr.bf16.mxu0 0
        %1456 = vmatpush1.bf16.msra.mxu0 0
        %1457 = vmatprep.subr.bf16.mxu0 0
        %1458 = vmatpush1.bf16.msra.mxu0 0
        %1459 = vmatprep.subr.bf16.mxu0 0
        %1460 = vmatpush1.bf16.msra.mxu0 0
        %1461 = vmatprep.subr.bf16.mxu0 0
        %1462 = vmatpush1.bf16.msra.mxu0 0
        %1463 = vmatprep.subr.bf16.mxu0 0
        %1464 = vmatpush1.bf16.msra.mxu0 0
        %1465 = vmatprep.subr.bf16.mxu0 0
        %1466 = vmatpush1.bf16.msra.mxu0 0
        %1467 = vmatprep.subr.bf16.mxu0 0
        %1468 = vmatpush1.bf16.msra.mxu0 0
        %1469 = vmatprep.subr.bf16.mxu0 0
        %1470 = vmatpush1.bf16.msra.mxu0 %v1413
        %1471 = vmatprep.subr.bf16.mxu0 0
        %1472 = vmatpush2.bf16.msra.mxu0 0
        %1473 = vmatprep.subr.bf16.mxu0 0
        %1474 = vmatpush2.bf16.msra.mxu0 0
        %1475 = vmatprep.subr.bf16.mxu0 0
        %1476 = vmatpush2.bf16.msra.mxu0 0
        %1477 = vmatprep.subr.bf16.mxu0 0
        %1478 = vmatpush2.bf16.msra.mxu0 0
        %1479 = vmatprep.subr.bf16.mxu0 0
        %1480 = vmatpush2.bf16.msra.mxu0 0
        %1481 = vmatprep.subr.bf16.mxu0 0
        %1482 = vmatpush2.bf16.msra.mxu0 0
        %1483 = vmatprep.subr.bf16.mxu0 0
        %1484 = vmatpush2.bf16.msra.mxu0 0
        %1485 = vmatprep.subr.bf16.mxu0 0
        %1486 = vmatpush2.bf16.msra.mxu0 0
        %1487 = vmatprep.mubr.bf16.mxu0 0
        %1488 = vmatmul.mubr.bf16.gmra.mxu0 %v1432
        %v1489 = vpop.f32.mrf.mxu0
        %v1490 = vadd.f32 0.0, %v1489
        %v1491 = vpop.f32.mrf.mxu0
        %v1492 = vpop.f32.mrf.mxu0
        %v1493 = vadd.f32 0.0, %v1492
        %v1494 = vpop.f32.mrf.mxu0
        %1495 = vmatprep.mubr.bf16.mxu0 0
        %1496 = vmatmul.mubr.bf16.gmra.mxu0 %v1435
        %v1497 = vpop.f32.mrf.mxu0
        %v1498 = vadd.f32 0.0, %v1497
        %v1499 = vpop.f32.mrf.mxu0
        %v1500 = vpop.f32.mrf.mxu0
        %v1501 = vadd.f32 0.0, %v1500
        %v1502 = vpop.f32.mrf.mxu0
        %1503 = vmatprep.mubr.bf16.mxu0 0
        %1504 = vmatmul.mubr.bf16.gmra.mxu0 %v1438
        %v1505 = vpop.f32.mrf.mxu0
        %v1506 = vadd.f32 0.0, %v1505
        %v1507 = vpop.f32.mrf.mxu0
        %v1508 = vpop.f32.mrf.mxu0
        %v1509 = vadd.f32 0.0, %v1508
        %v1510 = vpop.f32.mrf.mxu0
        %1511 = vmatprep.mubr.bf16.mxu0 0
        %1512 = vmatmul.mubr.bf16.gmra.mxu0 %v1441
        %v1513 = vpop.f32.mrf.mxu0
        %v1514 = vadd.f32 0.0, %v1513
        %v1515 = vpop.f32.mrf.mxu0
        %v1516 = vpop.f32.mrf.mxu0
        %v1517 = vadd.f32 0.0, %v1516
        %v1518 = vpop.f32.mrf.mxu0
        %1519 = vmatprep.mubr.bf16.mxu0 0
        %1520 = vmatmul.mubr.bf16.gmra.mxu0 %v1444
        %v1521 = vpop.f32.mrf.mxu0
        %v1522 = vadd.f32 0.0, %v1521
        %v1523 = vpop.f32.mrf.mxu0
        %v1524 = vpop.f32.mrf.mxu0
        %v1525 = vadd.f32 0.0, %v1524
        %v1526 = vpop.f32.mrf.mxu0
        %1527 = vmatprep.mubr.bf16.mxu0 0
        %1528 = vmatmul.mubr.bf16.gmra.mxu0 %v1447
        %v1529 = vpop.f32.mrf.mxu0
        %v1530 = vadd.f32 0.0, %v1529
        %v1531 = vpop.f32.mrf.mxu0
        %v1532 = vpop.f32.mrf.mxu0
        %v1533 = vadd.f32 0.0, %v1532
        %v1534 = vpop.f32.mrf.mxu0
        %1535 = vmatprep.mubr.bf16.mxu0 0
        %1536 = vmatmul.mubr.bf16.gmra.mxu0 %v1450
        %v1537 = vpop.f32.mrf.mxu0
        %v1538 = vadd.f32 0.0, %v1537
        %v1539 = vpop.f32.mrf.mxu0
        %v1540 = vpop.f32.mrf.mxu0
        %v1541 = vadd.f32 0.0, %v1540
        %v1542 = vpop.f32.mrf.mxu0
        %1543 = vmatprep.mubr.bf16.mxu0 0
        %1544 = vmatmul.mubr.bf16.gmra.mxu0 %v1453
        %v1545 = vpop.f32.mrf.mxu0
        %v1546 = vadd.f32 0.0, %v1545
        %v1547 = vpop.f32.mrf.mxu0
        %v1548 = vpop.f32.mrf.mxu0
        %v1549 = vadd.f32 0.0, %v1548
        %v1550 = vpop.f32.mrf.mxu0
        %1551 = vdwg.mxu0
        %v1552 = vpack.c.bf16 %v1493, %v1490
        %v1553 = vpack.c.bf16 %v1501, %v1498
        %v1554 = vpack.c.bf16 %v1509, %v1506
        %v1555 = vpack.c.bf16 %v1517, %v1514
        %v1556 = vpack.c.bf16 %v1525, %v1522
        %v1557 = vpack.c.bf16 %v1533, %v1530
        %v1558 = vpack.c.bf16 %v1541, %v1538
        %v1559 = vpack.c.bf16 %v1549, %v1546
        %1560 = vmatprep.subr.bf16.mxu0 %v706
        %1561 = vmatpush1.bf16.msra.mxu0 %v705
        %1562 = vmatprep.subr.bf16.mxu0 %v698
        %1563 = vmatpush1.bf16.msra.mxu0 %v697
        %1564 = vmatprep.subr.bf16.mxu0 %v690
        %1565 = vmatpush1.bf16.msra.mxu0 %v689
        %1566 = vmatprep.subr.bf16.mxu0 %v682
        %1567 = vmatpush1.bf16.msra.mxu0 %v681
        %1568 = vmatprep.subr.bf16.mxu0 %v674
        %1569 = vmatpush1.bf16.msra.mxu0 %v673
        %1570 = vmatprep.subr.bf16.mxu0 %v666
        %1571 = vmatpush1.bf16.msra.mxu0 %v665
        %1572 = vmatprep.subr.bf16.mxu0 %v658
        %1573 = vmatpush1.bf16.msra.mxu0 %v657
        %1574 = vmatprep.subr.bf16.mxu0 %v650
        %1575 = vmatpush1.bf16.msra.mxu0 %v649
        %1576 = vmatprep.subr.bf16.mxu0 0
        %1577 = vmatpush2.bf16.msra.mxu0 0
        %1578 = vmatprep.subr.bf16.mxu0 0
        %1579 = vmatpush2.bf16.msra.mxu0 0
        %1580 = vmatprep.subr.bf16.mxu0 0
        %1581 = vmatpush2.bf16.msra.mxu0 0
        %1582 = vmatprep.subr.bf16.mxu0 0
        %1583 = vmatpush2.bf16.msra.mxu0 0
        %1584 = vmatprep.subr.bf16.mxu0 0
        %1585 = vmatpush2.bf16.msra.mxu0 0
        %1586 = vmatprep.subr.bf16.mxu0 0
        %1587 = vmatpush2.bf16.msra.mxu0 0
        %1588 = vmatprep.subr.bf16.mxu0 0
        %1589 = vmatpush2.bf16.msra.mxu0 0
        %1590 = vmatprep.subr.bf16.mxu0 0
        %1591 = vmatpush2.bf16.msra.mxu0 0
        %1592 = vmatprep.mubr.bf16.mxu0 0
        %1593 = vmatmul.mubr.bf16.gmra.mxu0 %v1552
        %v1594 = vpop.f32.mrf.mxu0
        %v1595 = vadd.f32 0.0, %v1594
        %v1596 = vpop.f32.mrf.mxu0
        %v1597 = vadd.f32 0.0, %v1596
        %v1598 = vpop.f32.mrf.mxu0
        %v1599 = vadd.f32 0.0, %v1598
        %v1600 = vpop.f32.mrf.mxu0
        %v1601 = vadd.f32 0.0, %v1600
        %1602 = vmatprep.mubr.bf16.mxu0 0
        %1603 = vmatmul.mubr.bf16.gmra.mxu0 %v1553
        %v1604 = vpop.f32.mrf.mxu0
        %v1605 = vadd.f32 0.0, %v1604
        %v1606 = vpop.f32.mrf.mxu0
        %v1607 = vadd.f32 0.0, %v1606
        %v1608 = vpop.f32.mrf.mxu0
        %v1609 = vadd.f32 0.0, %v1608
        %v1610 = vpop.f32.mrf.mxu0
        %v1611 = vadd.f32 0.0, %v1610
        %1612 = vmatprep.mubr.bf16.mxu0 0
        %1613 = vmatmul.mubr.bf16.gmra.mxu0 %v1554
        %v1614 = vpop.f32.mrf.mxu0
        %v1615 = vadd.f32 0.0, %v1614
        %v1616 = vpop.f32.mrf.mxu0
        %v1617 = vadd.f32 0.0, %v1616
        %v1618 = vpop.f32.mrf.mxu0
        %v1619 = vadd.f32 0.0, %v1618
        %v1620 = vpop.f32.mrf.mxu0
        %v1621 = vadd.f32 0.0, %v1620
        %1622 = vmatprep.mubr.bf16.mxu0 0
        %1623 = vmatmul.mubr.bf16.gmra.mxu0 %v1555
        %v1624 = vpop.f32.mrf.mxu0
        %v1625 = vadd.f32 0.0, %v1624
        %v1626 = vpop.f32.mrf.mxu0
        %v1627 = vadd.f32 0.0, %v1626
        %v1628 = vpop.f32.mrf.mxu0
        %v1629 = vadd.f32 0.0, %v1628
        %v1630 = vpop.f32.mrf.mxu0
        %v1631 = vadd.f32 0.0, %v1630
        %1632 = vmatprep.mubr.bf16.mxu0 0
        %1633 = vmatmul.mubr.bf16.gmra.mxu0 %v1556
        %v1634 = vpop.f32.mrf.mxu0
        %v1635 = vadd.f32 0.0, %v1634
        %v1636 = vpop.f32.mrf.mxu0
        %v1637 = vadd.f32 0.0, %v1636
        %v1638 = vpop.f32.mrf.mxu0
        %v1639 = vadd.f32 0.0, %v1638
        %v1640 = vpop.f32.mrf.mxu0
        %v1641 = vadd.f32 0.0, %v1640
        %1642 = vmatprep.mubr.bf16.mxu0 0
        %1643 = vmatmul.mubr.bf16.gmra.mxu0 %v1557
        %v1644 = vpop.f32.mrf.mxu0
        %v1645 = vadd.f32 0.0, %v1644
        %v1646 = vpop.f32.mrf.mxu0
        %v1647 = vadd.f32 0.0, %v1646
        %v1648 = vpop.f32.mrf.mxu0
        %v1649 = vadd.f32 0.0, %v1648
        %v1650 = vpop.f32.mrf.mxu0
        %v1651 = vadd.f32 0.0, %v1650
        %1652 = vmatprep.mubr.bf16.mxu0 0
        %1653 = vmatmul.mubr.bf16.gmra.mxu0 %v1558
        %v1654 = vpop.f32.mrf.mxu0
        %v1655 = vadd.f32 0.0, %v1654
        %v1656 = vpop.f32.mrf.mxu0
        %v1657 = vadd.f32 0.0, %v1656
        %v1658 = vpop.f32.mrf.mxu0
        %v1659 = vadd.f32 0.0, %v1658
        %v1660 = vpop.f32.mrf.mxu0
        %v1661 = vadd.f32 0.0, %v1660
        %1662 = vmatprep.mubr.bf16.mxu0 0
        %1663 = vmatmul.mubr.bf16.gmra.mxu0 %v1559
        %v1664 = vpop.f32.mrf.mxu0
        %v1665 = vadd.f32 0.0, %v1664
        %v1666 = vpop.f32.mrf.mxu0
        %v1667 = vadd.f32 0.0, %v1666
        %v1668 = vpop.f32.mrf.mxu0
        %v1669 = vadd.f32 0.0, %v1668
        %v1670 = vpop.f32.mrf.mxu0
        %v1671 = vadd.f32 0.0, %v1670
        %1672 = vdwg.mxu0
        %1673 = vmatprep.subr.bf16.mxu0 %v708
        %1674 = vmatpush1.bf16.msra.mxu0 %v707
        %1675 = vmatprep.subr.bf16.mxu0 %v700
        %1676 = vmatpush1.bf16.msra.mxu0 %v699
        %1677 = vmatprep.subr.bf16.mxu0 %v692
        %1678 = vmatpush1.bf16.msra.mxu0 %v691
        %1679 = vmatprep.subr.bf16.mxu0 %v684
        %1680 = vmatpush1.bf16.msra.mxu0 %v683
        %1681 = vmatprep.subr.bf16.mxu0 %v676
        %1682 = vmatpush1.bf16.msra.mxu0 %v675
        %1683 = vmatprep.subr.bf16.mxu0 %v668
        %1684 = vmatpush1.bf16.msra.mxu0 %v667
        %1685 = vmatprep.subr.bf16.mxu0 %v660
        %1686 = vmatpush1.bf16.msra.mxu0 %v659
        %1687 = vmatprep.subr.bf16.mxu0 %v652
        %1688 = vmatpush1.bf16.msra.mxu0 %v651
        %1689 = vmatprep.subr.bf16.mxu0 0
        %1690 = vmatpush2.bf16.msra.mxu0 0
        %1691 = vmatprep.subr.bf16.mxu0 0
        %1692 = vmatpush2.bf16.msra.mxu0 0
        %1693 = vmatprep.subr.bf16.mxu0 0
        %1694 = vmatpush2.bf16.msra.mxu0 0
        %1695 = vmatprep.subr.bf16.mxu0 0
        %1696 = vmatpush2.bf16.msra.mxu0 0
        %1697 = vmatprep.subr.bf16.mxu0 0
        %1698 = vmatpush2.bf16.msra.mxu0 0
        %1699 = vmatprep.subr.bf16.mxu0 0
        %1700 = vmatpush2.bf16.msra.mxu0 0
        %1701 = vmatprep.subr.bf16.mxu0 0
        %1702 = vmatpush2.bf16.msra.mxu0 0
        %1703 = vmatprep.subr.bf16.mxu0 0
        %1704 = vmatpush2.bf16.msra.mxu0 0
        %1705 = vmatprep.mubr.bf16.mxu0 0
        %1706 = vmatmul.mubr.bf16.gmra.mxu0 %v1552
        %v1707 = vpop.f32.mrf.mxu0
        %v1708 = vadd.f32 0.0, %v1707
        %v1709 = vpop.f32.mrf.mxu0
        %v1710 = vadd.f32 0.0, %v1709
        %v1711 = vpop.f32.mrf.mxu0
        %v1712 = vadd.f32 0.0, %v1711
        %v1713 = vpop.f32.mrf.mxu0
        %v1714 = vadd.f32 0.0, %v1713
        %1715 = vmatprep.mubr.bf16.mxu0 0
        %1716 = vmatmul.mubr.bf16.gmra.mxu0 %v1553
        %v1717 = vpop.f32.mrf.mxu0
        %v1718 = vadd.f32 0.0, %v1717
        %v1719 = vpop.f32.mrf.mxu0
        %v1720 = vadd.f32 0.0, %v1719
        %v1721 = vpop.f32.mrf.mxu0
        %v1722 = vadd.f32 0.0, %v1721
        %v1723 = vpop.f32.mrf.mxu0
        %v1724 = vadd.f32 0.0, %v1723
        %1725 = vmatprep.mubr.bf16.mxu0 0
        %1726 = vmatmul.mubr.bf16.gmra.mxu0 %v1554
        %v1727 = vpop.f32.mrf.mxu0
        %v1728 = vadd.f32 0.0, %v1727
        %v1729 = vpop.f32.mrf.mxu0
        %v1730 = vadd.f32 0.0, %v1729
        %v1731 = vpop.f32.mrf.mxu0
        %v1732 = vadd.f32 0.0, %v1731
        %v1733 = vpop.f32.mrf.mxu0
        %v1734 = vadd.f32 0.0, %v1733
        %1735 = vmatprep.mubr.bf16.mxu0 0
        %1736 = vmatmul.mubr.bf16.gmra.mxu0 %v1555
        %v1737 = vpop.f32.mrf.mxu0
        %v1738 = vadd.f32 0.0, %v1737
        %v1739 = vpop.f32.mrf.mxu0
        %v1740 = vadd.f32 0.0, %v1739
        %v1741 = vpop.f32.mrf.mxu0
        %v1742 = vadd.f32 0.0, %v1741
        %v1743 = vpop.f32.mrf.mxu0
        %v1744 = vadd.f32 0.0, %v1743
        %1745 = vmatprep.mubr.bf16.mxu0 0
        %1746 = vmatmul.mubr.bf16.gmra.mxu0 %v1556
        %v1747 = vpop.f32.mrf.mxu0
        %v1748 = vadd.f32 0.0, %v1747
        %v1749 = vpop.f32.mrf.mxu0
        %v1750 = vadd.f32 0.0, %v1749
        %v1751 = vpop.f32.mrf.mxu0
        %v1752 = vadd.f32 0.0, %v1751
        %v1753 = vpop.f32.mrf.mxu0
        %v1754 = vadd.f32 0.0, %v1753
        %1755 = vmatprep.mubr.bf16.mxu0 0
        %1756 = vmatmul.mubr.bf16.gmra.mxu0 %v1557
        %v1757 = vpop.f32.mrf.mxu0
        %v1758 = vadd.f32 0.0, %v1757
        %v1759 = vpop.f32.mrf.mxu0
        %v1760 = vadd.f32 0.0, %v1759
        %v1761 = vpop.f32.mrf.mxu0
        %v1762 = vadd.f32 0.0, %v1761
        %v1763 = vpop.f32.mrf.mxu0
        %v1764 = vadd.f32 0.0, %v1763
        %1765 = vmatprep.mubr.bf16.mxu0 0
        %1766 = vmatmul.mubr.bf16.gmra.mxu0 %v1558
        %v1767 = vpop.f32.mrf.mxu0
        %v1768 = vadd.f32 0.0, %v1767
        %v1769 = vpop.f32.mrf.mxu0
        %v1770 = vadd.f32 0.0, %v1769
        %v1771 = vpop.f32.mrf.mxu0
        %v1772 = vadd.f32 0.0, %v1771
        %v1773 = vpop.f32.mrf.mxu0
        %v1774 = vadd.f32 0.0, %v1773
        %1775 = vmatprep.mubr.bf16.mxu0 0
        %1776 = vmatmul.mubr.bf16.gmra.mxu0 %v1559
        %v1777 = vpop.f32.mrf.mxu0
        %v1778 = vadd.f32 0.0, %v1777
        %v1779 = vpop.f32.mrf.mxu0
        %v1780 = vadd.f32 0.0, %v1779
        %v1781 = vpop.f32.mrf.mxu0
        %v1782 = vadd.f32 0.0, %v1781
        %v1783 = vpop.f32.mrf.mxu0
        %v1784 = vadd.f32 0.0, %v1783
        %1785 = vdwg.mxu0
        %1786 = vmatprep.subr.bf16.mxu0 %v710
        %1787 = vmatpush1.bf16.msra.mxu0 %v709
        %1788 = vmatprep.subr.bf16.mxu0 %v702
        %1789 = vmatpush1.bf16.msra.mxu0 %v701
        %1790 = vmatprep.subr.bf16.mxu0 %v694
        %1791 = vmatpush1.bf16.msra.mxu0 %v693
        %1792 = vmatprep.subr.bf16.mxu0 %v686
        %1793 = vmatpush1.bf16.msra.mxu0 %v685
        %1794 = vmatprep.subr.bf16.mxu0 %v678
        %1795 = vmatpush1.bf16.msra.mxu0 %v677
        %1796 = vmatprep.subr.bf16.mxu0 %v670
        %1797 = vmatpush1.bf16.msra.mxu0 %v669
        %1798 = vmatprep.subr.bf16.mxu0 %v662
        %1799 = vmatpush1.bf16.msra.mxu0 %v661
        %1800 = vmatprep.subr.bf16.mxu0 %v654
        %1801 = vmatpush1.bf16.msra.mxu0 %v653
        %1802 = vmatprep.subr.bf16.mxu0 0
        %1803 = vmatpush2.bf16.msra.mxu0 0
        %1804 = vmatprep.subr.bf16.mxu0 0
        %1805 = vmatpush2.bf16.msra.mxu0 0
        %1806 = vmatprep.subr.bf16.mxu0 0
        %1807 = vmatpush2.bf16.msra.mxu0 0
        %1808 = vmatprep.subr.bf16.mxu0 0
        %1809 = vmatpush2.bf16.msra.mxu0 0
        %1810 = vmatprep.subr.bf16.mxu0 0
        %1811 = vmatpush2.bf16.msra.mxu0 0
        %1812 = vmatprep.subr.bf16.mxu0 0
        %1813 = vmatpush2.bf16.msra.mxu0 0
        %1814 = vmatprep.subr.bf16.mxu0 0
        %1815 = vmatpush2.bf16.msra.mxu0 0
        %1816 = vmatprep.subr.bf16.mxu0 0
        %1817 = vmatpush2.bf16.msra.mxu0 0
        %1818 = vmatprep.mubr.bf16.mxu0 0
        %1819 = vmatmul.mubr.bf16.gmra.mxu0 %v1552
        %v1820 = vpop.f32.mrf.mxu0
        %v1821 = vadd.f32 0.0, %v1820
        %v1822 = vpop.f32.mrf.mxu0
        %v1823 = vadd.f32 0.0, %v1822
        %v1824 = vpop.f32.mrf.mxu0
        %v1825 = vadd.f32 0.0, %v1824
        %v1826 = vpop.f32.mrf.mxu0
        %v1827 = vadd.f32 0.0, %v1826
        %1828 = vmatprep.mubr.bf16.mxu0 0
        %1829 = vmatmul.mubr.bf16.gmra.mxu0 %v1553
        %v1830 = vpop.f32.mrf.mxu0
        %v1831 = vadd.f32 0.0, %v1830
        %v1832 = vpop.f32.mrf.mxu0
        %v1833 = vadd.f32 0.0, %v1832
        %v1834 = vpop.f32.mrf.mxu0
        %v1835 = vadd.f32 0.0, %v1834
        %v1836 = vpop.f32.mrf.mxu0
        %v1837 = vadd.f32 0.0, %v1836
        %1838 = vmatprep.mubr.bf16.mxu0 0
        %1839 = vmatmul.mubr.bf16.gmra.mxu0 %v1554
        %v1840 = vpop.f32.mrf.mxu0
        %v1841 = vadd.f32 0.0, %v1840
        %v1842 = vpop.f32.mrf.mxu0
        %v1843 = vadd.f32 0.0, %v1842
        %v1844 = vpop.f32.mrf.mxu0
        %v1845 = vadd.f32 0.0, %v1844
        %v1846 = vpop.f32.mrf.mxu0
        %v1847 = vadd.f32 0.0, %v1846
        %1848 = vmatprep.mubr.bf16.mxu0 0
        %1849 = vmatmul.mubr.bf16.gmra.mxu0 %v1555
        %v1850 = vpop.f32.mrf.mxu0
        %v1851 = vadd.f32 0.0, %v1850
        %v1852 = vpop.f32.mrf.mxu0
        %v1853 = vadd.f32 0.0, %v1852
        %v1854 = vpop.f32.mrf.mxu0
        %v1855 = vadd.f32 0.0, %v1854
        %v1856 = vpop.f32.mrf.mxu0
        %v1857 = vadd.f32 0.0, %v1856
        %1858 = vmatprep.mubr.bf16.mxu0 0
        %1859 = vmatmul.mubr.bf16.gmra.mxu0 %v1556
        %v1860 = vpop.f32.mrf.mxu0
        %v1861 = vadd.f32 0.0, %v1860
        %v1862 = vpop.f32.mrf.mxu0
        %v1863 = vadd.f32 0.0, %v1862
        %v1864 = vpop.f32.mrf.mxu0
        %v1865 = vadd.f32 0.0, %v1864
        %v1866 = vpop.f32.mrf.mxu0
        %v1867 = vadd.f32 0.0, %v1866
        %1868 = vmatprep.mubr.bf16.mxu0 0
        %1869 = vmatmul.mubr.bf16.gmra.mxu0 %v1557
        %v1870 = vpop.f32.mrf.mxu0
        %v1871 = vadd.f32 0.0, %v1870
        %v1872 = vpop.f32.mrf.mxu0
        %v1873 = vadd.f32 0.0, %v1872
        %v1874 = vpop.f32.mrf.mxu0
        %v1875 = vadd.f32 0.0, %v1874
        %v1876 = vpop.f32.mrf.mxu0
        %v1877 = vadd.f32 0.0, %v1876
        %1878 = vmatprep.mubr.bf16.mxu0 0
        %1879 = vmatmul.mubr.bf16.gmra.mxu0 %v1558
        %v1880 = vpop.f32.mrf.mxu0
        %v1881 = vadd.f32 0.0, %v1880
        %v1882 = vpop.f32.mrf.mxu0
        %v1883 = vadd.f32 0.0, %v1882
        %v1884 = vpop.f32.mrf.mxu0
        %v1885 = vadd.f32 0.0, %v1884
        %v1886 = vpop.f32.mrf.mxu0
        %v1887 = vadd.f32 0.0, %v1886
        %1888 = vmatprep.mubr.bf16.mxu0 0
        %1889 = vmatmul.mubr.bf16.gmra.mxu0 %v1559
        %v1890 = vpop.f32.mrf.mxu0
        %v1891 = vadd.f32 0.0, %v1890
        %v1892 = vpop.f32.mrf.mxu0
        %v1893 = vadd.f32 0.0, %v1892
        %v1894 = vpop.f32.mrf.mxu0
        %v1895 = vadd.f32 0.0, %v1894
        %v1896 = vpop.f32.mrf.mxu0
        %v1897 = vadd.f32 0.0, %v1896
        %1898 = vdwg.mxu0
        %1899 = vmatprep.subr.bf16.mxu0 %v712
        %1900 = vmatpush1.bf16.msra.mxu0 %v711
        %1901 = vmatprep.subr.bf16.mxu0 %v704
        %1902 = vmatpush1.bf16.msra.mxu0 %v703
        %1903 = vmatprep.subr.bf16.mxu0 %v696
        %1904 = vmatpush1.bf16.msra.mxu0 %v695
        %1905 = vmatprep.subr.bf16.mxu0 %v688
        %1906 = vmatpush1.bf16.msra.mxu0 %v687
        %1907 = vmatprep.subr.bf16.mxu0 %v680
        %1908 = vmatpush1.bf16.msra.mxu0 %v679
        %1909 = vmatprep.subr.bf16.mxu0 %v672
        %1910 = vmatpush1.bf16.msra.mxu0 %v671
        %1911 = vmatprep.subr.bf16.mxu0 %v664
        %1912 = vmatpush1.bf16.msra.mxu0 %v663
        %1913 = vmatprep.subr.bf16.mxu0 %v656
        %1914 = vmatpush1.bf16.msra.mxu0 %v655
        %1915 = vmatprep.subr.bf16.mxu0 0
        %1916 = vmatpush2.bf16.msra.mxu0 0
        %1917 = vmatprep.subr.bf16.mxu0 0
        %1918 = vmatpush2.bf16.msra.mxu0 0
        %1919 = vmatprep.subr.bf16.mxu0 0
        %1920 = vmatpush2.bf16.msra.mxu0 0
        %1921 = vmatprep.subr.bf16.mxu0 0
        %1922 = vmatpush2.bf16.msra.mxu0 0
        %1923 = vmatprep.subr.bf16.mxu0 0
        %1924 = vmatpush2.bf16.msra.mxu0 0
        %1925 = vmatprep.subr.bf16.mxu0 0
        %1926 = vmatpush2.bf16.msra.mxu0 0
        %1927 = vmatprep.subr.bf16.mxu0 0
        %1928 = vmatpush2.bf16.msra.mxu0 0
        %1929 = vmatprep.subr.bf16.mxu0 0
        %1930 = vmatpush2.bf16.msra.mxu0 0
        %1931 = vmatprep.mubr.bf16.mxu0 0
        %1932 = vmatmul.mubr.bf16.gmra.mxu0 %v1552
        %v1933 = vpop.f32.mrf.mxu0
        %v1934 = vadd.f32 0.0, %v1933
        %v1935 = vpop.f32.mrf.mxu0
        %v1936 = vadd.f32 0.0, %v1935
        %v1937 = vpop.f32.mrf.mxu0
        %v1938 = vadd.f32 0.0, %v1937
        %v1939 = vpop.f32.mrf.mxu0
        %v1940 = vadd.f32 0.0, %v1939
        %1941 = vmatprep.mubr.bf16.mxu0 0
        %1942 = vmatmul.mubr.bf16.gmra.mxu0 %v1553
        %v1943 = vpop.f32.mrf.mxu0
        %v1944 = vadd.f32 0.0, %v1943
        %v1945 = vpop.f32.mrf.mxu0
        %v1946 = vadd.f32 0.0, %v1945
        %v1947 = vpop.f32.mrf.mxu0
        %v1948 = vadd.f32 0.0, %v1947
        %v1949 = vpop.f32.mrf.mxu0
        %v1950 = vadd.f32 0.0, %v1949
        %1951 = vmatprep.mubr.bf16.mxu0 0
        %1952 = vmatmul.mubr.bf16.gmra.mxu0 %v1554
        %v1953 = vpop.f32.mrf.mxu0
        %v1954 = vadd.f32 0.0, %v1953
        %v1955 = vpop.f32.mrf.mxu0
        %v1956 = vadd.f32 0.0, %v1955
        %v1957 = vpop.f32.mrf.mxu0
        %v1958 = vadd.f32 0.0, %v1957
        %v1959 = vpop.f32.mrf.mxu0
        %v1960 = vadd.f32 0.0, %v1959
        %1961 = vmatprep.mubr.bf16.mxu0 0
        %1962 = vmatmul.mubr.bf16.gmra.mxu0 %v1555
        %v1963 = vpop.f32.mrf.mxu0
        %v1964 = vadd.f32 0.0, %v1963
        %v1965 = vpop.f32.mrf.mxu0
        %v1966 = vadd.f32 0.0, %v1965
        %v1967 = vpop.f32.mrf.mxu0
        %v1968 = vadd.f32 0.0, %v1967
        %v1969 = vpop.f32.mrf.mxu0
        %v1970 = vadd.f32 0.0, %v1969
        %1971 = vmatprep.mubr.bf16.mxu0 0
        %1972 = vmatmul.mubr.bf16.gmra.mxu0 %v1556
        %v1973 = vpop.f32.mrf.mxu0
        %v1974 = vadd.f32 0.0, %v1973
        %v1975 = vpop.f32.mrf.mxu0
        %v1976 = vadd.f32 0.0, %v1975
        %v1977 = vpop.f32.mrf.mxu0
        %v1978 = vadd.f32 0.0, %v1977
        %v1979 = vpop.f32.mrf.mxu0
        %v1980 = vadd.f32 0.0, %v1979
        %1981 = vmatprep.mubr.bf16.mxu0 0
        %1982 = vmatmul.mubr.bf16.gmra.mxu0 %v1557
        %v1983 = vpop.f32.mrf.mxu0
        %v1984 = vadd.f32 0.0, %v1983
        %v1985 = vpop.f32.mrf.mxu0
        %v1986 = vadd.f32 0.0, %v1985
        %v1987 = vpop.f32.mrf.mxu0
        %v1988 = vadd.f32 0.0, %v1987
        %v1989 = vpop.f32.mrf.mxu0
        %v1990 = vadd.f32 0.0, %v1989
        %1991 = vmatprep.mubr.bf16.mxu0 0
        %1992 = vmatmul.mubr.bf16.gmra.mxu0 %v1558
        %v1993 = vpop.f32.mrf.mxu0
        %v1994 = vadd.f32 0.0, %v1993
        %v1995 = vpop.f32.mrf.mxu0
        %v1996 = vadd.f32 0.0, %v1995
        %v1997 = vpop.f32.mrf.mxu0
        %v1998 = vadd.f32 0.0, %v1997
        %v1999 = vpop.f32.mrf.mxu0
        %v2000 = vadd.f32 0.0, %v1999
        %2001 = vmatprep.mubr.bf16.mxu0 0
        %2002 = vmatmul.mubr.bf16.gmra.mxu0 %v1559
        %v2003 = vpop.f32.mrf.mxu0
        %v2004 = vadd.f32 0.0, %v2003
        %v2005 = vpop.f32.mrf.mxu0
        %v2006 = vadd.f32 0.0, %v2005
        %v2007 = vpop.f32.mrf.mxu0
        %v2008 = vadd.f32 0.0, %v2007
        %v2009 = vpop.f32.mrf.mxu0
        %v2010 = vadd.f32 0.0, %v2009
        %2011 = vdwg.mxu0
        %v2012 = vmul.f32 %v959, %v1595
        %v2013 = vmul.f32 %v960, %v1597
        %v2014 = vmul.f32 %v961, %v1708
        %v2015 = vmul.f32 %v962, %v1710
        %v2016 = vmul.f32 %v963, %v1821
        %v2017 = vmul.f32 %v964, %v1823
        %v2018 = vmul.f32 %v965, %v1934
        %v2019 = vmul.f32 %v966, %v1936
        %v2020 = vmul.f32 %v967, %v1599
        %v2021 = vmul.f32 %v968, %v1601
        %v2022 = vmul.f32 %v969, %v1712
        %v2023 = vmul.f32 %v970, %v1714
        %v2024 = vmul.f32 %v971, %v1825
        %v2025 = vmul.f32 %v972, %v1827
        %v2026 = vmul.f32 %v973, %v1938
        %v2027 = vmul.f32 %v974, %v1940
        %v2028 = vmul.f32 %v975, %v1605
        %v2029 = vmul.f32 %v976, %v1607
        %v2030 = vmul.f32 %v977, %v1718
        %v2031 = vmul.f32 %v978, %v1720
        %v2032 = vmul.f32 %v979, %v1831
        %v2033 = vmul.f32 %v980, %v1833
        %v2034 = vmul.f32 %v981, %v1944
        %v2035 = vmul.f32 %v982, %v1946
        %v2036 = vmul.f32 %v983, %v1609
        %v2037 = vmul.f32 %v984, %v1611
        %v2038 = vmul.f32 %v985, %v1722
        %v2039 = vmul.f32 %v986, %v1724
        %v2040 = vmul.f32 %v987, %v1835
        %v2041 = vmul.f32 %v988, %v1837
        %v2042 = vmul.f32 %v989, %v1948
        %v2043 = vmul.f32 %v990, %v1950
        %v2044 = vmul.f32 %v991, %v1615
        %v2045 = vmul.f32 %v992, %v1617
        %v2046 = vmul.f32 %v993, %v1728
        %v2047 = vmul.f32 %v994, %v1730
        %v2048 = vmul.f32 %v995, %v1841
        %v2049 = vmul.f32 %v996, %v1843
        %v2050 = vmul.f32 %v997, %v1954
        %v2051 = vmul.f32 %v998, %v1956
        %v2052 = vmul.f32 %v999, %v1619
        %v2053 = vmul.f32 %v1000, %v1621
        %v2054 = vmul.f32 %v1001, %v1732
        %v2055 = vmul.f32 %v1002, %v1734
        %v2056 = vmul.f32 %v1003, %v1845
        %v2057 = vmul.f32 %v1004, %v1847
        %v2058 = vmul.f32 %v1005, %v1958
        %v2059 = vmul.f32 %v1006, %v1960
        %v2060 = vmul.f32 %v1007, %v1625
        %v2061 = vmul.f32 %v1008, %v1627
        %v2062 = vmul.f32 %v1009, %v1738
        %v2063 = vmul.f32 %v1010, %v1740
        %v2064 = vmul.f32 %v1011, %v1851
        %v2065 = vmul.f32 %v1012, %v1853
        %v2066 = vmul.f32 %v1013, %v1964
        %v2067 = vmul.f32 %v1014, %v1966
        %v2068 = vmul.f32 %v1015, %v1629
        %v2069 = vmul.f32 %v1016, %v1631
        %v2070 = vmul.f32 %v1017, %v1742
        %v2071 = vmul.f32 %v1018, %v1744
        %v2072 = vmul.f32 %v1019, %v1855
        %v2073 = vmul.f32 %v1020, %v1857
        %v2074 = vmul.f32 %v1021, %v1968
        %v2075 = vmul.f32 %v1022, %v1970
        %v2076 = vmul.f32 %v1023, %v1635
        %v2077 = vmul.f32 %v1024, %v1637
        %v2078 = vmul.f32 %v1025, %v1748
        %v2079 = vmul.f32 %v1026, %v1750
        %v2080 = vmul.f32 %v1027, %v1861
        %v2081 = vmul.f32 %v1028, %v1863
        %v2082 = vmul.f32 %v1029, %v1974
        %v2083 = vmul.f32 %v1030, %v1976
        %v2084 = vmul.f32 %v1031, %v1639
        %v2085 = vmul.f32 %v1032, %v1641
        %v2086 = vmul.f32 %v1033, %v1752
        %v2087 = vmul.f32 %v1034, %v1754
        %v2088 = vmul.f32 %v1035, %v1865
        %v2089 = vmul.f32 %v1036, %v1867
        %v2090 = vmul.f32 %v1037, %v1978
        %v2091 = vmul.f32 %v1038, %v1980
        %v2092 = vmul.f32 %v1039, %v1645
        %v2093 = vmul.f32 %v1040, %v1647
        %v2094 = vmul.f32 %v1041, %v1758
        %v2095 = vmul.f32 %v1042, %v1760
        %v2096 = vmul.f32 %v1043, %v1871
        %v2097 = vmul.f32 %v1044, %v1873
        %v2098 = vmul.f32 %v1045, %v1984
        %v2099 = vmul.f32 %v1046, %v1986
        %v2100 = vmul.f32 %v1047, %v1649
        %v2101 = vmul.f32 %v1048, %v1651
        %v2102 = vmul.f32 %v1049, %v1762
        %v2103 = vmul.f32 %v1050, %v1764
        %v2104 = vmul.f32 %v1051, %v1875
        %v2105 = vmul.f32 %v1052, %v1877
        %v2106 = vmul.f32 %v1053, %v1988
        %v2107 = vmul.f32 %v1054, %v1990
        %v2108 = vmul.f32 %v1055, %v1655
        %v2109 = vmul.f32 %v1056, %v1657
        %v2110 = vmul.f32 %v1057, %v1768
        %v2111 = vmul.f32 %v1058, %v1770
        %v2112 = vmul.f32 %v1059, %v1881
        %v2113 = vmul.f32 %v1060, %v1883
        %v2114 = vmul.f32 %v1061, %v1994
        %v2115 = vmul.f32 %v1062, %v1996
        %v2116 = vmul.f32 %v1063, %v1659
        %v2117 = vmul.f32 %v1064, %v1661
        %v2118 = vmul.f32 %v1065, %v1772
        %v2119 = vmul.f32 %v1066, %v1774
        %v2120 = vmul.f32 %v1067, %v1885
        %v2121 = vmul.f32 %v1068, %v1887
        %v2122 = vmul.f32 %v1069, %v1998
        %v2123 = vmul.f32 %v1070, %v2000
        %v2124 = vmul.f32 %v1071, %v1665
        %v2125 = vmul.f32 %v1072, %v1667
        %v2126 = vmul.f32 %v1073, %v1778
        %v2127 = vmul.f32 %v1074, %v1780
        %v2128 = vmul.f32 %v1075, %v1891
        %v2129 = vmul.f32 %v1076, %v1893
        %v2130 = vmul.f32 %v1077, %v2004
        %v2131 = vmul.f32 %v1078, %v2006
        %v2132 = vmul.f32 %v1079, %v1669
        %v2133 = vmul.f32 %v1080, %v1671
        %v2134 = vmul.f32 %v1081, %v1782
        %v2135 = vmul.f32 %v1082, %v1784
        %v2136 = vmul.f32 %v1083, %v1895
        %v2137 = vmul.f32 %v1084, %v1897
        %v2138 = vmul.f32 %v1085, %v2008
        %v2139 = vmul.f32 %v1086, %v2010
        %v2140 = vadd.f32 %v2012, %v2020
        %v2141 = vadd.f32 %v2140, %v2028
        %v2142 = vadd.f32 %v2141, %v2036
        %v2143 = vadd.f32 %v2142, %v2044
        %v2144 = vadd.f32 %v2143, %v2052
        %v2145 = vadd.f32 %v2144, %v2060
        %v2146 = vadd.f32 %v2145, %v2068
        %v2147 = vadd.f32 %v2146, %v2076
        %v2148 = vadd.f32 %v2147, %v2084
        %v2149 = vadd.f32 %v2148, %v2092
        %v2150 = vadd.f32 %v2149, %v2100
        %v2151 = vadd.f32 %v2150, %v2108
        %v2152 = vadd.f32 %v2151, %v2116
        %v2153 = vadd.f32 %v2152, %v2124
        %v2154 = vadd.f32 %v2153, %v2132
        %v2155 = vrot.slane %v2154, 4
        %v2156 = vadd.f32 %v2154, %v2155
        %v2157 = vrot.slane %v2156, 2
        %v2158 = vadd.f32 %v2156, %v2157
        %v2159 = vrot.slane %v2158, 1
        %v2160 = vadd.f32 %v2158, %v2159
        %v2161 = vadd.f32 %v2013, %v2021
        %v2162 = vadd.f32 %v2161, %v2029
        %v2163 = vadd.f32 %v2162, %v2037
        %v2164 = vadd.f32 %v2163, %v2045
        %v2165 = vadd.f32 %v2164, %v2053
        %v2166 = vadd.f32 %v2165, %v2061
        %v2167 = vadd.f32 %v2166, %v2069
        %v2168 = vadd.f32 %v2167, %v2077
        %v2169 = vadd.f32 %v2168, %v2085
        %v2170 = vadd.f32 %v2169, %v2093
        %v2171 = vadd.f32 %v2170, %v2101
        %v2172 = vadd.f32 %v2171, %v2109
        %v2173 = vadd.f32 %v2172, %v2117
        %v2174 = vadd.f32 %v2173, %v2125
        %v2175 = vadd.f32 %v2174, %v2133
        %v2176 = vrot.slane %v2175, 4
        %v2177 = vadd.f32 %v2175, %v2176
        %v2178 = vrot.slane %v2177, 2
        %v2179 = vadd.f32 %v2177, %v2178
        %v2180 = vrot.slane %v2179, 1
        %v2181 = vadd.f32 %v2179, %v2180
        %v2182 = vadd.f32 %v2014, %v2022
        %v2183 = vadd.f32 %v2182, %v2030
        %v2184 = vadd.f32 %v2183, %v2038
        %v2185 = vadd.f32 %v2184, %v2046
        %v2186 = vadd.f32 %v2185, %v2054
        %v2187 = vadd.f32 %v2186, %v2062
        %v2188 = vadd.f32 %v2187, %v2070
        %v2189 = vadd.f32 %v2188, %v2078
        %v2190 = vadd.f32 %v2189, %v2086
        %v2191 = vadd.f32 %v2190, %v2094
        %v2192 = vadd.f32 %v2191, %v2102
        %v2193 = vadd.f32 %v2192, %v2110
        %v2194 = vadd.f32 %v2193, %v2118
        %v2195 = vadd.f32 %v2194, %v2126
        %v2196 = vadd.f32 %v2195, %v2134
        %v2197 = vrot.slane %v2196, 4
        %v2198 = vadd.f32 %v2196, %v2197
        %v2199 = vrot.slane %v2198, 2
        %v2200 = vadd.f32 %v2198, %v2199
        %v2201 = vrot.slane %v2200, 1
        %v2202 = vadd.f32 %v2200, %v2201
        %v2203 = vadd.f32 %v2015, %v2023
        %v2204 = vadd.f32 %v2203, %v2031
        %v2205 = vadd.f32 %v2204, %v2039
        %v2206 = vadd.f32 %v2205, %v2047
        %v2207 = vadd.f32 %v2206, %v2055
        %v2208 = vadd.f32 %v2207, %v2063
        %v2209 = vadd.f32 %v2208, %v2071
        %v2210 = vadd.f32 %v2209, %v2079
        %v2211 = vadd.f32 %v2210, %v2087
        %v2212 = vadd.f32 %v2211, %v2095
        %v2213 = vadd.f32 %v2212, %v2103
        %v2214 = vadd.f32 %v2213, %v2111
        %v2215 = vadd.f32 %v2214, %v2119
        %v2216 = vadd.f32 %v2215, %v2127
        %v2217 = vadd.f32 %v2216, %v2135
        %v2218 = vrot.slane %v2217, 4
        %v2219 = vadd.f32 %v2217, %v2218
        %v2220 = vrot.slane %v2219, 2
        %v2221 = vadd.f32 %v2219, %v2220
        %v2222 = vrot.slane %v2221, 1
        %v2223 = vadd.f32 %v2221, %v2222
        %v2224 = vadd.f32 %v2016, %v2024
        %v2225 = vadd.f32 %v2224, %v2032
        %v2226 = vadd.f32 %v2225, %v2040
        %v2227 = vadd.f32 %v2226, %v2048
        %v2228 = vadd.f32 %v2227, %v2056
        %v2229 = vadd.f32 %v2228, %v2064
        %v2230 = vadd.f32 %v2229, %v2072
        %v2231 = vadd.f32 %v2230, %v2080
        %v2232 = vadd.f32 %v2231, %v2088
        %v2233 = vadd.f32 %v2232, %v2096
        %v2234 = vadd.f32 %v2233, %v2104
        %v2235 = vadd.f32 %v2234, %v2112
        %v2236 = vadd.f32 %v2235, %v2120
        %v2237 = vadd.f32 %v2236, %v2128
        %v2238 = vadd.f32 %v2237, %v2136
        %v2239 = vrot.slane %v2238, 4
        %v2240 = vadd.f32 %v2238, %v2239
        %v2241 = vrot.slane %v2240, 2
        %v2242 = vadd.f32 %v2240, %v2241
        %v2243 = vrot.slane %v2242, 1
        %v2244 = vadd.f32 %v2242, %v2243
        %v2245 = vadd.f32 %v2017, %v2025
        %v2246 = vadd.f32 %v2245, %v2033
        %v2247 = vadd.f32 %v2246, %v2041
        %v2248 = vadd.f32 %v2247, %v2049
        %v2249 = vadd.f32 %v2248, %v2057
        %v2250 = vadd.f32 %v2249, %v2065
        %v2251 = vadd.f32 %v2250, %v2073
        %v2252 = vadd.f32 %v2251, %v2081
        %v2253 = vadd.f32 %v2252, %v2089
        %v2254 = vadd.f32 %v2253, %v2097
        %v2255 = vadd.f32 %v2254, %v2105
        %v2256 = vadd.f32 %v2255, %v2113
        %v2257 = vadd.f32 %v2256, %v2121
        %v2258 = vadd.f32 %v2257, %v2129
        %v2259 = vadd.f32 %v2258, %v2137
        %v2260 = vrot.slane %v2259, 4
        %v2261 = vadd.f32 %v2259, %v2260
        %v2262 = vrot.slane %v2261, 2
        %v2263 = vadd.f32 %v2261, %v2262
        %v2264 = vrot.slane %v2263, 1
        %v2265 = vadd.f32 %v2263, %v2264
        %v2266 = vadd.f32 %v2018, %v2026
        %v2267 = vadd.f32 %v2266, %v2034
        %v2268 = vadd.f32 %v2267, %v2042
        %v2269 = vadd.f32 %v2268, %v2050
        %v2270 = vadd.f32 %v2269, %v2058
        %v2271 = vadd.f32 %v2270, %v2066
        %v2272 = vadd.f32 %v2271, %v2074
        %v2273 = vadd.f32 %v2272, %v2082
        %v2274 = vadd.f32 %v2273, %v2090
        %v2275 = vadd.f32 %v2274, %v2098
        %v2276 = vadd.f32 %v2275, %v2106
        %v2277 = vadd.f32 %v2276, %v2114
        %v2278 = vadd.f32 %v2277, %v2122
        %v2279 = vadd.f32 %v2278, %v2130
        %v2280 = vadd.f32 %v2279, %v2138
        %v2281 = vrot.slane %v2280, 4
        %v2282 = vadd.f32 %v2280, %v2281
        %v2283 = vrot.slane %v2282, 2
        %v2284 = vadd.f32 %v2282, %v2283
        %v2285 = vrot.slane %v2284, 1
        %v2286 = vadd.f32 %v2284, %v2285
        %v2287 = vadd.f32 %v2019, %v2027
        %v2288 = vadd.f32 %v2287, %v2035
        %v2289 = vadd.f32 %v2288, %v2043
        %v2290 = vadd.f32 %v2289, %v2051
        %v2291 = vadd.f32 %v2290, %v2059
        %v2292 = vadd.f32 %v2291, %v2067
        %v2293 = vadd.f32 %v2292, %v2075
        %v2294 = vadd.f32 %v2293, %v2083
        %v2295 = vadd.f32 %v2294, %v2091
        %v2296 = vadd.f32 %v2295, %v2099
        %v2297 = vadd.f32 %v2296, %v2107
        %v2298 = vadd.f32 %v2297, %v2115
        %v2299 = vadd.f32 %v2298, %v2123
        %v2300 = vadd.f32 %v2299, %v2131
        %v2301 = vadd.f32 %v2300, %v2139
        %v2302 = vrot.slane %v2301, 4
        %v2303 = vadd.f32 %v2301, %v2302
        %v2304 = vrot.slane %v2303, 2
        %v2305 = vadd.f32 %v2303, %v2304
        %v2306 = vrot.slane %v2305, 1
        %v2307 = vadd.f32 %v2305, %v2306
        %v2308 = vmax.f32 %v812, %v816
        %v2309 = vrot.slane %v2308, 4
        %v2310 = vmax.f32 %v2308, %v2309
        %v2311 = vrot.slane %v2310, 2
        %v2312 = vmax.f32 %v2310, %v2311
        %v2313 = vrot.slane %v2312, 1
        %v2314 = vmax.f32 %v2312, %v2313
        %v2315 = vmax.f32 %v814, %v818
        %v2316 = vrot.slane %v2315, 4
        %v2317 = vmax.f32 %v2315, %v2316
        %v2318 = vrot.slane %v2317, 2
        %v2319 = vmax.f32 %v2317, %v2318
        %v2320 = vrot.slane %v2319, 1
        %v2321 = vmax.f32 %v2319, %v2320
        %v2322 = vmax.f32 %v855, %v859
        %v2323 = vrot.slane %v2322, 4
        %v2324 = vmax.f32 %v2322, %v2323
        %v2325 = vrot.slane %v2324, 2
        %v2326 = vmax.f32 %v2324, %v2325
        %v2327 = vrot.slane %v2326, 1
        %v2328 = vmax.f32 %v2326, %v2327
        %v2329 = vmax.f32 %v857, %v861
        %v2330 = vrot.slane %v2329, 4
        %v2331 = vmax.f32 %v2329, %v2330
        %v2332 = vrot.slane %v2331, 2
        %v2333 = vmax.f32 %v2331, %v2332
        %v2334 = vrot.slane %v2333, 1
        %v2335 = vmax.f32 %v2333, %v2334
        %v2336 = vmax.f32 %v898, %v902
        %v2337 = vrot.slane %v2336, 4
        %v2338 = vmax.f32 %v2336, %v2337
        %v2339 = vrot.slane %v2338, 2
        %v2340 = vmax.f32 %v2338, %v2339
        %v2341 = vrot.slane %v2340, 1
        %v2342 = vmax.f32 %v2340, %v2341
        %v2343 = vmax.f32 %v900, %v904
        %v2344 = vrot.slane %v2343, 4
        %v2345 = vmax.f32 %v2343, %v2344
        %v2346 = vrot.slane %v2345, 2
        %v2347 = vmax.f32 %v2345, %v2346
        %v2348 = vrot.slane %v2347, 1
        %v2349 = vmax.f32 %v2347, %v2348
        %v2350 = vmax.f32 %v941, %v945
        %v2351 = vrot.slane %v2350, 4
        %v2352 = vmax.f32 %v2350, %v2351
        %v2353 = vrot.slane %v2352, 2
        %v2354 = vmax.f32 %v2352, %v2353
        %v2355 = vrot.slane %v2354, 1
        %v2356 = vmax.f32 %v2354, %v2355
        %v2357 = vmax.f32 %v943, %v947
        %v2358 = vrot.slane %v2357, 4
        %v2359 = vmax.f32 %v2357, %v2358
        %v2360 = vrot.slane %v2359, 2
        %v2361 = vmax.f32 %v2359, %v2360
        %v2362 = vrot.slane %v2361, 1
        %v2363 = vmax.f32 %v2361, %v2362
        %v2364 = vmin.f32 %v812, %v816
        %v2365 = vrot.slane %v2364, 4
        %v2366 = vmin.f32 %v2364, %v2365
        %v2367 = vrot.slane %v2366, 2
        %v2368 = vmin.f32 %v2366, %v2367
        %v2369 = vrot.slane %v2368, 1
        %v2370 = vmin.f32 %v2368, %v2369
        %v2371 = vmin.f32 %v814, %v818
        %v2372 = vrot.slane %v2371, 4
        %v2373 = vmin.f32 %v2371, %v2372
        %v2374 = vrot.slane %v2373, 2
        %v2375 = vmin.f32 %v2373, %v2374
        %v2376 = vrot.slane %v2375, 1
        %v2377 = vmin.f32 %v2375, %v2376
        %v2378 = vmin.f32 %v855, %v859
        %v2379 = vrot.slane %v2378, 4
        %v2380 = vmin.f32 %v2378, %v2379
        %v2381 = vrot.slane %v2380, 2
        %v2382 = vmin.f32 %v2380, %v2381
        %v2383 = vrot.slane %v2382, 1
        %v2384 = vmin.f32 %v2382, %v2383
        %v2385 = vmin.f32 %v857, %v861
        %v2386 = vrot.slane %v2385, 4
        %v2387 = vmin.f32 %v2385, %v2386
        %v2388 = vrot.slane %v2387, 2
        %v2389 = vmin.f32 %v2387, %v2388
        %v2390 = vrot.slane %v2389, 1
        %v2391 = vmin.f32 %v2389, %v2390
        %v2392 = vmin.f32 %v898, %v902
        %v2393 = vrot.slane %v2392, 4
        %v2394 = vmin.f32 %v2392, %v2393
        %v2395 = vrot.slane %v2394, 2
        %v2396 = vmin.f32 %v2394, %v2395
        %v2397 = vrot.slane %v2396, 1
        %v2398 = vmin.f32 %v2396, %v2397
        %v2399 = vmin.f32 %v900, %v904
        %v2400 = vrot.slane %v2399, 4
        %v2401 = vmin.f32 %v2399, %v2400
        %v2402 = vrot.slane %v2401, 2
        %v2403 = vmin.f32 %v2401, %v2402
        %v2404 = vrot.slane %v2403, 1
        %v2405 = vmin.f32 %v2403, %v2404
        %v2406 = vmin.f32 %v941, %v945
        %v2407 = vrot.slane %v2406, 4
        %v2408 = vmin.f32 %v2406, %v2407
        %v2409 = vrot.slane %v2408, 2
        %v2410 = vmin.f32 %v2408, %v2409
        %v2411 = vrot.slane %v2410, 1
        %v2412 = vmin.f32 %v2410, %v2411
        %v2413 = vmin.f32 %v943, %v947
        %v2414 = vrot.slane %v2413, 4
        %v2415 = vmin.f32 %v2413, %v2414
        %v2416 = vrot.slane %v2415, 2
        %v2417 = vmin.f32 %v2415, %v2416
        %v2418 = vrot.slane %v2417, 1
        %v2419 = vmin.f32 %v2417, %v2418
        %vm2420 = vcmask 1040384
        %v2421 = vsel %vm2420, %v1196, %v2160
        %v2422 = vsel %vm2420, %v1198, %v2181
        %v2423 = vsel %vm2420, %v1267, %v2202
        %v2424 = vsel %vm2420, %v1269, %v2223
        %v2425 = vsel %vm2420, %v1338, %v2244
        %v2426 = vsel %vm2420, %v1340, %v2265
        %v2427 = vsel %vm2420, %v1409, %v2286
        %v2428 = vsel %vm2420, %v1411, %v2307
        %vm2429 = vcmask 1041408
        %v2430 = vsel %vm2429, %v2421, %v2314
        %v2431 = vsel %vm2429, %v2422, %v2321
        %v2432 = vsel %vm2429, %v2423, %v2328
        %v2433 = vsel %vm2429, %v2424, %v2335
        %v2434 = vsel %vm2429, %v2425, %v2342
        %v2435 = vsel %vm2429, %v2426, %v2349
        %v2436 = vsel %vm2429, %v2427, %v2356
        %v2437 = vsel %vm2429, %v2428, %v2363
        %vm2438 = vcmask 1042432
        %v2439 = vsel %vm2438, %v2430, %v2370
        %v2440 = vsel %vm2438, %v2431, %v2377
        %v2441 = vsel %vm2438, %v2432, %v2384
        %v2442 = vsel %vm2438, %v2433, %v2391
        %v2443 = vsel %vm2438, %v2434, %v2398
        %v2444 = vsel %vm2438, %v2435, %v2405
        %v2445 = vsel %vm2438, %v2436, %v2412
        %v2446 = vsel %vm2438, %v2437, %v2419
        %vm2447 = vcmask 1043456
        %v2448 = vsel %vm2447, %v2439, 0.0
        %v2449 = vsel %vm2447, %v2440, 0.0
        %v2450 = vsel %vm2447, %v2441, 0.0
        %v2451 = vsel %vm2447, %v2442, 0.0
        %v2452 = vsel %vm2447, %v2443, 0.0
        %v2453 = vsel %vm2447, %v2444, 0.0
        %v2454 = vsel %vm2447, %v2445, 0.0
        %v2455 = vsel %vm2447, %v2446, 0.0
        %2456 = vst [vmem:[%s323] sm:$0xff] %v2448
        %2457 = vst [vmem:[%s323 + $0x8] sm:$0xff] %v2449
        %2458 = vst [vmem:[%s323 + $0x10] sm:$0xff] %v2450
        %2459 = vst [vmem:[%s323 + $0x18] sm:$0xff] %v2451
        %2460 = vst [vmem:[%s323 + $0x20] sm:$0xff] %v2452
        %2461 = vst [vmem:[%s323 + $0x28] sm:$0xff] %v2453
        %2462 = vst [vmem:[%s323 + $0x30] sm:$0xff] %v2454
        %2463 = vst [vmem:[%s323 + $0x38] sm:$0xff] %v2455
        %s2464 = smul.u32 8, %s24
        %p2465 = scmp.lt.s32.totalorder %s23, 1
        %s2466 = scalar_select %p2465, %s23, 1
        %p2467 = scmp.lt.s32.totalorder %s22, 0
        %s2468 = scalar_select %p2467, %s22, 0
        %p2469 = scmp.lt.s32.totalorder %s2464, 7
        %s2470 = scalar_select %p2469, %s2464, 7
        %s2471 = smul.addr %s2468, 8
        %s2472 = sadd.s32 %s2470, %s2471
        %s2473 = smul.addr %s2466, 8
        %s2474 = sadd.s32 %s2472, %s2473
        %s2475 = smul.addr %s2474, 8
        %s2476 = scalar_lea.vmem %s5, %s2475
        // Predicated region
        $region45: #{point_cloud_global_embedding.11} parent=39 // pred_check
          %p2477 = pneg %p180
        $region46: #{point_cloud_global_embedding.11} parent=39 // pred_check_branch
          %2479 = sbr.rel (%p2477) target = $region48
        $region47: #{point_cloud_global_embedding.11} parent=39 // pred_region
          %s2480 = smul.u32 8, %s24
        $region48: #{point_cloud_global_embedding.11} parent=39 // pred_fallthru
          _
      $region40: #{point_cloud_global_embedding.11} parent=5 // pred_fallthru
        _
      %p2481 = scmp.le.s32.totalorder 2, %s12
      // Predicated region
      $region49: #{point_cloud_global_embedding.11} parent=5 // pred_check
        %p2482 = pneg %p2481
      $region50: #{point_cloud_global_embedding.11} parent=5 // pred_check_branch
        %2484 = sbr.rel (%p2482) target = $region52
      $region51: #{point_cloud_global_embedding.11} parent=5 // pred_region
        %s2485 = ssub.s32 %s12, 2
        // Predicated region
        $region53: #{point_cloud_global_embedding.11} parent=51 // pred_check
          %p2486 = pneg %p186
        $region54: #{point_cloud_global_embedding.11} parent=51 // pred_check_branch
          %2488 = sbr.rel (%p2486) target = $region56
        $region55: #{point_cloud_global_embedding.11} parent=51 // pred_region
          %s2489 = smul.u32 8, %s27
          %p2490 = scmp.lt.s32.totalorder %s26, 1
          %s2491 = scalar_select %p2490, %s26, 1
          %p2492 = scmp.lt.s32.totalorder %s25, 0
          %s2493 = scalar_select %p2492, %s25, 0
          %p2494 = scmp.lt.s32.totalorder %s2489, 7
          %s2495 = scalar_select %p2494, %s2489, 7
          %s2496 = smul.addr %s2493, 8
          %s2497 = sadd.s32 %s2495, %s2496
          %s2498 = smul.addr %s2491, 8
          %s2499 = sadd.s32 %s2497, %s2498
          %s2500 = smul.addr %s2499, 8
          %s2501 = scalar_lea.vmem %s5, %s2500
        $region56: #{point_cloud_global_embedding.11} parent=51 // pred_fallthru
          _
      $region52: #{point_cloud_global_embedding.11} parent=5 // pred_fallthru
        _
    $region6: #{point_cloud_global_embedding.11} parent=1 // loop_footer
      %s16 = sadd.s32 1, %s12
    $region7: #{point_cloud_global_embedding.11} parent=1 // loop_footer_branch
      %11 = sbr.rel target = $region3
    $region8: #{point_cloud_global_embedding.11} parent=1 // loop_exit
      _
    %2502 = vsyncpa [#allocation3], 1
    %s2503 = scalar_lea.sflag [#allocation3], 1
    %2504 = vsyncpa %s2503, 1

// kernel: point_cloud_global_embedding.12
$region0: #{point_cloud_global_embedding.12}
  #allocation0 [shape = 'u32[]', space=smem, size = 0x4, offset = 0x4, fixed_abs, tag = 'smem constant byte address 0x4 - core index']
  #allocation1 [shape = 'u32[144,128]{1,0:T(1,128)}', space=vmem, size = 0x12000, scoped, tag = 'internal scratch']
  %s0 = inlined_call_operand.vmem [shape: f32[2,16,8], index: 0, kind: input, shape index: {}]
  %s1 = inlined_call_operand.vmem [shape: bf16[2,8,64], index: 1, kind: input, shape index: {}]
  %s2 = inlined_call_operand.vmem [shape: f32[1,64], index: 2, kind: input, shape index: {}]
  %s3 = inlined_call_operand.vmem [shape: f32[1,8], index: 3, kind: input, shape index: {}]
  %s4 = inlined_call_operand.vmem [shape: f32[1,8], index: 4, kind: input, shape index: {}]
  %s5 = inlined_call_operand.vmem [shape: bf16[2,16,64], index: 5, kind: output, shape index: {0}]
  %s6 = inlined_call_operand.vmem [shape: f32[2,1,8,64], index: 6, kind: output, shape index: {1}]
  %7 = xla_tuple %s5, %s6
  %s8 = sld [smem:[#allocation0]]
  $region61: #{point_cloud_global_embedding.12} parent=0
    _
  %s10 = ssub.s32 1, %s8
  %s11 = scalar_select 0, %s10, %s8
  loop: start=0, step=1, limit=4
  $region2: #{point_cloud_global_embedding.12} parent=0 // loop_pre_header
    _
  $region3: #{point_cloud_global_embedding.12} parent=0 // loop_header
    %s13 = sphi 0, %s17
    %p14 = scmp.ge.s32.totalorder %s13, 4
    %s20 = sphi 0, %s39
    %s21 = sphi 0, %s35
    %s22 = sphi 0, %s31
    %s23 = sphi 0, %s20
    %s24 = sphi 0, %s21
    %s25 = sphi 0, %s22
    %s26 = sphi 0, %s23
    %s27 = sphi 0, %s24
    %s28 = sphi 0, %s25
    %s44 = sphi 0, %s46
    %s47 = sphi 0, %s44
    %s48 = sphi 0, %s47
    %s64 = sphi 0, %s48
    %s72 = sphi 0, %s74
    %s75 = sphi 0, %s72
    %s76 = sphi 0, %s75
    %s92 = sphi 0, %s76
    %s98 = sphi 0, %s100
    %s101 = sphi 0, %s98
    %s102 = sphi 0, %s101
    %s118 = sphi 0, %s102
    %s122 = sphi 0, %s122
    %s124 = sphi 0, %s122
    %s125 = sphi 0, %s124
    %s139 = sphi 0, %s125
    %s143 = sphi 0, %s143
    %s145 = sphi 0, %s143
    %s146 = sphi 0, %s145
    %s160 = sphi 0, %s146
    %s170 = sphi 0, %s172
    %s173 = sphi 0, %s170
    %s174 = sphi 0, %s173
    %s190 = sphi 0, %s174
    %s200 = sphi 0, %s202
    %s203 = sphi 0, %s200
    %s204 = sphi 0, %s203
    %s220 = sphi 0, %s204
  $region4: #{point_cloud_global_embedding.12} parent=0 // loop_header_branch
    %16 = sbr.rel (%p14) target = $region8
  $region5: #{point_cloud_global_embedding.12} parent=0 // loop_body
    %s18 = ssub.s32 %s13, 1
    %s19 = ssub.s32 %s13, 2
    %s29 = sadd.s32 1, %s22
    %p30 = scmp.ge.s32.totalorder %s29, 1
    %s31 = scalar_select %p30, 0, %s29
    %s32 = sadd.s32 1, %s21
    %s33 = scalar_select %p30, %s32, %s21
    %p34 = scmp.ge.s32.totalorder %s33, 2
    %s35 = scalar_select %p34, 0, %s33
    %s36 = sadd.s32 1, %s20
    %s37 = scalar_select %p34, %s36, %s20
    %p38 = scmp.ge.s32.totalorder %s37, 1
    %s39 = scalar_select %p38, 0, %s37
    %s40 = ssub.s32 %s21, %s35
    %s41 = ssub.s32 %s20, %s39
    %s42 = sor.u32 %s40, %s41
    %p43 = scmp.eq.s32.totalorder %s42, 0
    %s45 = sadd.s32 %s44, 1
    %s46 = scalar_select %p43, %s44, %s45
    %p49 = pneg %p43
    %p50 = scmp.eq.s32.totalorder %s13, 1
    %p51 = por %p49, %p50
    %p52 = scmp.ne.s32.totalorder %s44, %s47
    %p53 = scmp.eq.s32.totalorder %s13, 0
    %p54 = por %p52, %p53
    %p55 = scmp.ne.s32.totalorder %s44, %s47
    %p56 = scmp.eq.s32.totalorder %s18, 1
    %p57 = por %p55, %p56
    %p58 = scmp.ne.s32.totalorder %s47, %s48
    %p59 = scmp.eq.s32.totalorder %s18, 0
    %p60 = por %p58, %p59
    %p61 = scmp.ne.s32.totalorder %s47, %s48
    %p62 = scmp.eq.s32.totalorder %s19, 1
    %p63 = por %p61, %p62
    %p65 = scmp.ne.s32.totalorder %s48, %s64
    %p66 = scmp.eq.s32.totalorder %s19, 0
    %p67 = por %p65, %p66
    %s68 = ssub.s32 %s21, %s35
    %s69 = ssub.s32 %s22, %s31
    %s70 = sor.u32 %s68, %s69
    %p71 = scmp.eq.s32.totalorder %s70, 0
    %s73 = sadd.s32 %s72, 1
    %s74 = scalar_select %p71, %s72, %s73
    %p77 = pneg %p71
    %p78 = scmp.eq.s32.totalorder %s13, 1
    %p79 = por %p77, %p78
    %p80 = scmp.ne.s32.totalorder %s72, %s75
    %p81 = scmp.eq.s32.totalorder %s13, 0
    %p82 = por %p80, %p81
    %p83 = scmp.ne.s32.totalorder %s72, %s75
    %p84 = scmp.eq.s32.totalorder %s18, 1
    %p85 = por %p83, %p84
    %p86 = scmp.ne.s32.totalorder %s75, %s76
    %p87 = scmp.eq.s32.totalorder %s18, 0
    %p88 = por %p86, %p87
    %p89 = scmp.ne.s32.totalorder %s75, %s76
    %p90 = scmp.eq.s32.totalorder %s19, 1
    %p91 = por %p89, %p90
    %p93 = scmp.ne.s32.totalorder %s76, %s92
    %p94 = scmp.eq.s32.totalorder %s19, 0
    %p95 = por %p93, %p94
    %s96 = ssub.s32 %s22, %s31
    %p97 = scmp.eq.s32.totalorder %s96, 0
    %s99 = sadd.s32 %s98, 1
    %s100 = scalar_select %p97, %s98, %s99
    %p103 = pneg %p97
    %p104 = scmp.eq.s32.totalorder %s13, 1
    %p105 = por %p103, %p104
    %p106 = scmp.ne.s32.totalorder %s98, %s101
    %p107 = scmp.eq.s32.totalorder %s13, 0
    %p108 = por %p106, %p107
    %p109 = scmp.ne.s32.totalorder %s98, %s101
    %p110 = scmp.eq.s32.totalorder %s18, 1
    %p111 = por %p109, %p110
    %p112 = scmp.ne.s32.totalorder %s101, %s102
    %p113 = scmp.eq.s32.totalorder %s18, 0
    %p114 = por %p112, %p113
    %p115 = scmp.ne.s32.totalorder %s101, %s102
    %p116 = scmp.eq.s32.totalorder %s19, 1
    %p117 = por %p115, %p116
    %p119 = scmp.ne.s32.totalorder %s102, %s118
    %p120 = scmp.eq.s32.totalorder %s19, 0
    %p121 = por %p119, %p120
    %s123 = sadd.s32 %s122, 1
    %p126 = scmp.eq.s32.totalorder %s13, 1
    %p127 = scmp.ne.s32.totalorder %s122, %s124
    %p128 = scmp.eq.s32.totalorder %s13, 0
    %p129 = por %p127, %p128
    %p130 = scmp.ne.s32.totalorder %s122, %s124
    %p131 = scmp.eq.s32.totalorder %s18, 1
    %p132 = por %p130, %p131
    %p133 = scmp.ne.s32.totalorder %s124, %s125
    %p134 = scmp.eq.s32.totalorder %s18, 0
    %p135 = por %p133, %p134
    %p136 = scmp.ne.s32.totalorder %s124, %s125
    %p137 = scmp.eq.s32.totalorder %s19, 1
    %p138 = por %p136, %p137
    %p140 = scmp.ne.s32.totalorder %s125, %s139
    %p141 = scmp.eq.s32.totalorder %s19, 0
    %p142 = por %p140, %p141
    %s144 = sadd.s32 %s143, 1
    %p147 = scmp.eq.s32.totalorder %s13, 1
    %p148 = scmp.ne.s32.totalorder %s143, %s145
    %p149 = scmp.eq.s32.totalorder %s13, 0
    %p150 = por %p148, %p149
    %p151 = scmp.ne.s32.totalorder %s143, %s145
    %p152 = scmp.eq.s32.totalorder %s18, 1
    %p153 = por %p151, %p152
    %p154 = scmp.ne.s32.totalorder %s145, %s146
    %p155 = scmp.eq.s32.totalorder %s18, 0
    %p156 = por %p154, %p155
    %p157 = scmp.ne.s32.totalorder %s145, %s146
    %p158 = scmp.eq.s32.totalorder %s19, 1
    %p159 = por %p157, %p158
    %p161 = scmp.ne.s32.totalorder %s146, %s160
    %p162 = scmp.eq.s32.totalorder %s19, 0
    %p163 = por %p161, %p162
    %s164 = ssub.s32 %s21, %s35
    %s165 = ssub.s32 %s20, %s39
    %s166 = sor.u32 %s164, %s165
    %s167 = ssub.s32 %s22, %s31
    %s168 = sor.u32 %s166, %s167
    %p169 = scmp.eq.s32.totalorder %s168, 0
    %s171 = sadd.s32 %s170, 1
    %s172 = scalar_select %p169, %s170, %s171
    %p175 = pneg %p169
    %p176 = scmp.eq.s32.totalorder %s13, 1
    %p177 = por %p175, %p176
    %p178 = scmp.ne.s32.totalorder %s170, %s173
    %p179 = scmp.eq.s32.totalorder %s13, 0
    %p180 = por %p178, %p179
    %p181 = scmp.ne.s32.totalorder %s170, %s173
    %p182 = scmp.eq.s32.totalorder %s18, 1
    %p183 = por %p181, %p182
    %p184 = scmp.ne.s32.totalorder %s173, %s174
    %p185 = scmp.eq.s32.totalorder %s18, 0
    %p186 = por %p184, %p185
    %p187 = scmp.ne.s32.totalorder %s173, %s174
    %p188 = scmp.eq.s32.totalorder %s19, 1
    %p189 = por %p187, %p188
    %p191 = scmp.ne.s32.totalorder %s174, %s190
    %p192 = scmp.eq.s32.totalorder %s19, 0
    %p193 = por %p191, %p192
    %s194 = ssub.s32 %s21, %s35
    %s195 = ssub.s32 %s20, %s39
    %s196 = sor.u32 %s194, %s195
    %s197 = ssub.s32 %s22, %s31
    %s198 = sor.u32 %s196, %s197
    %p199 = scmp.eq.s32.totalorder %s198, 0
    %s201 = sadd.s32 %s200, 1
    %s202 = scalar_select %p199, %s200, %s201
    %p205 = pneg %p199
    %p206 = scmp.eq.s32.totalorder %s13, 1
    %p207 = por %p205, %p206
    %p208 = scmp.ne.s32.totalorder %s200, %s203
    %p209 = scmp.eq.s32.totalorder %s13, 0
    %p210 = por %p208, %p209
    %p211 = scmp.ne.s32.totalorder %s200, %s203
    %p212 = scmp.eq.s32.totalorder %s18, 1
    %p213 = por %p211, %p212
    %p214 = scmp.ne.s32.totalorder %s203, %s204
    %p215 = scmp.eq.s32.totalorder %s18, 0
    %p216 = por %p214, %p215
    %p217 = scmp.ne.s32.totalorder %s203, %s204
    %p218 = scmp.eq.s32.totalorder %s19, 1
    %p219 = por %p217, %p218
    %p221 = scmp.ne.s32.totalorder %s204, %s220
    %p222 = scmp.eq.s32.totalorder %s19, 0
    %p223 = por %p221, %p222
    %p224 = scmp.le.s32.totalorder 1, %s13
    %p225 = scmp.lt.s32.totalorder %s13, 3
    %p226 = pnand %p224, %p225
    %p227 = pneg %p226
    // Predicated region
    $region9: #{point_cloud_global_embedding.12} parent=5 // pred_check
      _
    $region10: #{point_cloud_global_embedding.12} parent=5 // pred_check_branch
      %229 = sbr.rel (%p226) target = $region12
    $region11: #{point_cloud_global_embedding.12} parent=5 // pred_region
      %s230 = ssub.s32 %s13, 1
      // Predicated region
      $region13: #{point_cloud_global_embedding.12} parent=11 // pred_check
        %p231 = pneg %p114
      $region14: #{point_cloud_global_embedding.12} parent=11 // pred_check_branch
        %233 = sbr.rel (%p231) target = $region16
      $region15: #{point_cloud_global_embedding.12} parent=11 // pred_region
        %p234 = scmp.lt.s32.totalorder %s25, 0
        %s235 = scalar_select %p234, %s25, 0
        %s236 = scalar_lea.vmem %s2, %s235
      $region16: #{point_cloud_global_embedding.12} parent=11 // pred_fallthru
        _
      // Predicated region
      $region17: #{point_cloud_global_embedding.12} parent=11 // pred_check
        %p237 = pneg %p135
      $region18: #{point_cloud_global_embedding.12} parent=11 // pred_check_branch
        %239 = sbr.rel (%p237) target = $region20
      $region19: #{point_cloud_global_embedding.12} parent=11 // pred_region
        _
      $region20: #{point_cloud_global_embedding.12} parent=11 // pred_fallthru
        _
      // Predicated region
      $region21: #{point_cloud_global_embedding.12} parent=11 // pred_check
        %p240 = pneg %p156
      $region22: #{point_cloud_global_embedding.12} parent=11 // pred_check_branch
        %242 = sbr.rel (%p240) target = $region24
      $region23: #{point_cloud_global_embedding.12} parent=11 // pred_region
        _
      $region24: #{point_cloud_global_embedding.12} parent=11 // pred_fallthru
        _
    $region12: #{point_cloud_global_embedding.12} parent=5 // pred_fallthru
      _
    %p243 = scmp.lt.s32.totalorder %s13, 2
    // Predicated region
    $region25: #{point_cloud_global_embedding.12} parent=5 // pred_check
      %p244 = pneg %p243
    $region26: #{point_cloud_global_embedding.12} parent=5 // pred_check_branch
      %246 = sbr.rel (%p244) target = $region28
    $region27: #{point_cloud_global_embedding.12} parent=5 // pred_region
      // Predicated region
      $region29: #{point_cloud_global_embedding.12} parent=27 // pred_check
        %p247 = pneg %p54
      $region30: #{point_cloud_global_embedding.12} parent=27 // pred_check_branch
        %249 = sbr.rel (%p247) target = $region32
      $region31: #{point_cloud_global_embedding.12} parent=27 // pred_region
        %s250 = smul.u32 2, %s20
        %p251 = scmp.lt.s32.totalorder %s21, 1
        %s252 = scalar_select %p251, %s21, 1
        %p253 = scmp.lt.s32.totalorder %s250, 1
        %s254 = scalar_select %p253, %s250, 1
        %s255 = smul.addr %s252, 2
        %s256 = sadd.s32 %s254, %s255
        %s257 = smul.addr %s256, 8
        %s258 = scalar_lea.vmem %s0, %s257
        %s259 = smul.u32 2, %s20
      $region32: #{point_cloud_global_embedding.12} parent=27 // pred_fallthru
        _
      // Predicated region
      $region33: #{point_cloud_global_embedding.12} parent=27 // pred_check
        %p260 = pneg %p82
      $region34: #{point_cloud_global_embedding.12} parent=27 // pred_check_branch
        %262 = sbr.rel (%p260) target = $region36
      $region35: #{point_cloud_global_embedding.12} parent=27 // pred_region
        %p263 = scmp.lt.s32.totalorder %s21, 1
        %s264 = scalar_select %p263, %s21, 1
        %p265 = scmp.lt.s32.totalorder %s22, 0
        %s266 = scalar_select %p265, %s22, 0
        %s267 = sadd.s32 %s266, %s264
        %s268 = smul.addr %s267, 4
        %s269 = scalar_lea.vmem %s1, %s268
      $region36: #{point_cloud_global_embedding.12} parent=27 // pred_fallthru
        _
    $region28: #{point_cloud_global_embedding.12} parent=5 // pred_fallthru
      _
    %p270 = scmp.le.s32.totalorder 1, %s13
    %p271 = scmp.lt.s32.totalorder %s13, 3
    %p272 = pnand %p270, %p271
    %p273 = pneg %p272
    // Predicated region
    $region37: #{point_cloud_global_embedding.12} parent=5 // pred_check
      _
    $region38: #{point_cloud_global_embedding.12} parent=5 // pred_check_branch
      %275 = sbr.rel (%p272) target = $region40
    $region39: #{point_cloud_global_embedding.12} parent=5 // pred_region
      %s276 = ssub.s32 %s13, 1
      %s277 = smul.u32 2, %s23
      %p278 = scmp.lt.s32.totalorder %s24, 1
      %s279 = scalar_select %p278, %s24, 1
      %p280 = scmp.lt.s32.totalorder %s277, 1
      %s281 = scalar_select %p280, %s277, 1
      %s282 = smul.addr %s279, 2
      %s283 = sadd.s32 %s281, %s282
      %s284 = smul.addr %s283, 8
      %s285 = scalar_lea.vmem %s0, %s284
      %p286 = pneg %p60
      %p287 = pneg %p57
      %p288 = scmp.lt.s32.totalorder %s24, 1
      %s289 = scalar_select %p288, %s24, 1
      %p290 = scmp.lt.s32.totalorder %s25, 0
      %s291 = scalar_select %p290, %s25, 0
      %s292 = sadd.s32 %s291, %s289
      %s293 = smul.addr %s292, 4
      %s294 = scalar_lea.vmem %s1, %s293
      %p295 = pneg %p88
      %p296 = pneg %p85
      %p297 = scmp.lt.s32.totalorder %s25, 0
      %s298 = scalar_select %p297, %s25, 0
      %s299 = scalar_lea.vmem %s2, %s298
      %p300 = pneg %p114
      %p301 = pneg %p111
      %p302 = pneg %p135
      %p303 = pneg %p132
      %p304 = pneg %p156
      %p305 = pneg %p153
      %p306 = pneg %p186
      %p307 = pneg %p183
      %s308 = smul.u32 2, %s23
      %p309 = scmp.lt.s32.totalorder %s24, 1
      %s310 = scalar_select %p309, %s24, 1
      %p311 = scmp.lt.s32.totalorder %s308, 1
      %s312 = scalar_select %p311, %s308, 1
      %p313 = scmp.lt.s32.totalorder %s25, 0
      %s314 = scalar_select %p313, %s25, 0
      %s315 = sadd.s32 %s314, %s312
      %s316 = smul.addr %s310, 2
      %s317 = sadd.s32 %s315, %s316
      %s318 = smul.addr %s317, 4
      %s319 = scalar_lea.vmem %s5, %s318
      %p320 = pneg %p216
      %p321 = pneg %p213
      %p322 = scmp.lt.s32.totalorder %s24, 1
      %s323 = scalar_select %p322, %s24, 1
      %p324 = scmp.lt.s32.totalorder %s23, 0
      %s325 = scalar_select %p324, %s23, 0
      %p326 = scmp.lt.s32.totalorder %s25, 0
      %s327 = scalar_select %p326, %s25, 0
      %s328 = sadd.s32 %s327, %s325
      %s329 = sadd.s32 %s328, %s323
      %s330 = smul.addr %s329, 8
      %s331 = scalar_lea.vmem %s6, %s330
      %s332 = smul.u32 2, %s23
      %p333 = scmp.lt.s32.totalorder %s24, 1
      %s334 = scalar_select %p333, %s24, 1
      %p335 = scmp.lt.s32.totalorder %s332, 1
      %s336 = scalar_select %p335, %s332, 1
      %s337 = smul.addr %s334, 2
      %s338 = sadd.s32 %s336, %s337
      %s339 = smul.addr %s338, 8
      %s340 = scalar_lea.vmem %s0, %s339
      %s341 = smul.u32 2, %s23
      %p342 = scmp.lt.s32.totalorder %s24, 1
      %s343 = scalar_select %p342, %s24, 1
      %p344 = scmp.lt.s32.totalorder %s25, 0
      %s345 = scalar_select %p344, %s25, 0
      %s346 = sadd.s32 %s345, %s343
      %s347 = smul.addr %s346, 4
      %s348 = scalar_lea.vmem %s1, %s347
      %p349 = scmp.lt.s32.totalorder %s25, 0
      %s350 = scalar_select %p349, %s25, 0
      %s351 = scalar_lea.vmem %s2, %s350
      %s352 = smul.u32 2, %s23
      %p353 = scmp.lt.s32.totalorder %s24, 1
      %s354 = scalar_select %p353, %s24, 1
      %p355 = scmp.lt.s32.totalorder %s352, 1
      %s356 = scalar_select %p355, %s352, 1
      %p357 = scmp.lt.s32.totalorder %s25, 0
      %s358 = scalar_select %p357, %s25, 0
      %s359 = sadd.s32 %s358, %s356
      %s360 = smul.addr %s354, 2
      %s361 = sadd.s32 %s359, %s360
      %s362 = smul.addr %s361, 4
      %s363 = scalar_lea.vmem %s5, %s362
      %s364 = smul.u32 2, %s23
      %p365 = scmp.lt.s32.totalorder %s24, 1
      %s366 = scalar_select %p365, %s24, 1
      %p367 = scmp.lt.s32.totalorder %s23, 0
      %s368 = scalar_select %p367, %s23, 0
      %p369 = scmp.lt.s32.totalorder %s25, 0
      %s370 = scalar_select %p369, %s25, 0
      %s371 = sadd.s32 %s370, %s368
      %s372 = sadd.s32 %s371, %s366
      %s373 = smul.addr %s372, 8
      %s374 = scalar_lea.vmem %s6, %s373
      %v376 = vld [vmem:[%s340] sm:$0xff]
      %v377 = vld [vmem:[%s340 + $0x8] sm:$0xff]
      %v378 = vld [vmem:[%s348] sm:$0xf]
      %v379 = vld [vmem:[%s351] sm:$0x1]
      %v380 = vpack.c.bf16 %v377, %v376
      %v382 = vlaneseq
      %v383 = vshrl.u32 %v382, 7
      %v384 = vsub.s32 0, %v383
      %v385 = vrot.slane %v379, %v384
      %vm387 = vcmask 64512
      %v389 = vsel %vm387, %v380, 0
      %vm391 = vcmask 1043456
      %v393 = vsel %vm391, %v378, 0
      %395 = vmatprep.subr.bf16.mxu0 0
      %396 = vmatpush1.bf16.msra.mxu0 0
      %397 = vmatprep.subr.bf16.mxu0 0
      %398 = vmatpush1.bf16.msra.mxu0 0
      %399 = vmatprep.subr.bf16.mxu0 0
      %400 = vmatpush1.bf16.msra.mxu0 0
      %401 = vmatprep.subr.bf16.mxu0 0
      %402 = vmatpush1.bf16.msra.mxu0 0
      %403 = vmatprep.subr.bf16.mxu0 0
      %404 = vmatpush1.bf16.msra.mxu0 0
      %405 = vmatprep.subr.bf16.mxu0 0
      %406 = vmatpush1.bf16.msra.mxu0 0
      %407 = vmatprep.subr.bf16.mxu0 0
      %408 = vmatpush1.bf16.msra.mxu0 0
      %409 = vmatprep.subr.bf16.mxu0 0
      %410 = vmatpush1.bf16.msra.mxu0 %v393
      %411 = vmatprep.subr.bf16.mxu0 0
      %412 = vmatpush2.bf16.msra.mxu0 0
      %413 = vmatprep.subr.bf16.mxu0 0
      %414 = vmatpush2.bf16.msra.mxu0 0
      %415 = vmatprep.subr.bf16.mxu0 0
      %416 = vmatpush2.bf16.msra.mxu0 0
      %417 = vmatprep.subr.bf16.mxu0 0
      %418 = vmatpush2.bf16.msra.mxu0 0
      %419 = vmatprep.subr.bf16.mxu0 0
      %420 = vmatpush2.bf16.msra.mxu0 0
      %421 = vmatprep.subr.bf16.mxu0 0
      %422 = vmatpush2.bf16.msra.mxu0 0
      %423 = vmatprep.subr.bf16.mxu0 0
      %424 = vmatpush2.bf16.msra.mxu0 0
      %425 = vmatprep.subr.bf16.mxu0 0
      %426 = vmatpush2.bf16.msra.mxu0 0
      %427 = vmatprep.mubr.bf16.mxu0 0
      %428 = vmatmul.mubr.bf16.gmra.mxu0 %v389
      %v429 = vpop.f32.mrf.mxu0
      %v430 = vadd.f32 %v385, %v429
      %v431 = vpop.f32.mrf.mxu0
      %v432 = vpop.f32.mrf.mxu0
      %v433 = vadd.f32 %v385, %v432
      %v434 = vpop.f32.mrf.mxu0
      %435 = vdwg.mxu0
      %vm436 = vcmask 523264
      %v437 = vsel %vm436, %v430, 0.0
      %v438 = vsel %vm436, %v433, 0.0
      %v439 = vadd.f32 %v437, %v438
      %v440 = vrot.slane %v439, 4
      %v441 = vadd.f32 %v439, %v440
      %v442 = vrot.slane %v441, 2
      %v443 = vadd.f32 %v441, %v442
      %v444 = vrot.slane %v443, 1
      %v445 = vadd.f32 %v443, %v444
      %v446 = vmul.f32 %v445, 0.0625
      %v447 = vsub.f32 %v430, %v446
      %v448 = vsub.f32 %v433, %v446
      %v449 = vmul.f32 %v447, %v447
      %v450 = vmul.f32 %v448, %v448
      %v451 = vsel %vm436, %v449, 0.0
      %v452 = vsel %vm436, %v450, 0.0
      %v453 = vadd.f32 %v451, %v452
      %v454 = vrot.slane %v453, 4
      %v455 = vadd.f32 %v453, %v454
      %v456 = vrot.slane %v455, 2
      %v457 = vadd.f32 %v455, %v456
      %v458 = vrot.slane %v457, 1
      %v459 = vadd.f32 %v457, %v458
      %v460 = vpack.c.bf16 %v433, %v430
      %v462 = vunpack.c.l.b16 %v460
      %v463 = vunpack.c.h.b16 %v460
      %v464 = vpack.c.b16 %v462, %v462
      %v465 = vpack.c.b16 %v463, %v463
      %vm468 = vcmask 519168
      %469 = vst.msk [vmem:[%s363] sm:$0xf] %vm468, %v464
      %470 = vst.msk [vmem:[%s363 + $0x4] sm:$0xf] %vm468, %v465
      %vm471 = vcmask 1040384
      %v472 = vsel %vm471, %v445, %v459
      %vm473 = vcmask 1041408
      %v474 = vsel %vm473, %v472, 0.0
      %475 = vst.msk [vmem:[%s374] sm:$0xff] %vm436, %v474
      %s476 = smul.u32 2, %s23
      %p477 = scmp.lt.s32.totalorder %s24, 1
      %s478 = scalar_select %p477, %s24, 1
      %p479 = scmp.lt.s32.totalorder %s476, 1
      %s480 = scalar_select %p479, %s476, 1
      %p481 = scmp.lt.s32.totalorder %s25, 0
      %s482 = scalar_select %p481, %s25, 0
      %s483 = sadd.s32 %s482, %s480
      %s484 = smul.addr %s478, 2
      %s485 = sadd.s32 %s483, %s484
      %s486 = smul.addr %s485, 4
      %s487 = scalar_lea.vmem %s5, %s486
      %p488 = scmp.lt.s32.totalorder %s24, 1
      %s489 = scalar_select %p488, %s24, 1
      %p490 = scmp.lt.s32.totalorder %s23, 0
      %s491 = scalar_select %p490, %s23, 0
      %p492 = scmp.lt.s32.totalorder %s25, 0
      %s493 = scalar_select %p492, %s25, 0
      %s494 = sadd.s32 %s493, %s491
      %s495 = sadd.s32 %s494, %s489
      %s496 = smul.addr %s495, 8
      %s497 = scalar_lea.vmem %s6, %s496
      // Predicated region
      $region41: #{point_cloud_global_embedding.12} parent=39 // pred_check
        %p498 = pneg %p183
      $region42: #{point_cloud_global_embedding.12} parent=39 // pred_check_branch
        %500 = sbr.rel (%p498) target = $region44
      $region43: #{point_cloud_global_embedding.12} parent=39 // pred_region
        %s501 = smul.u32 2, %s23
      $region44: #{point_cloud_global_embedding.12} parent=39 // pred_fallthru
        _
      // Predicated region
      $region45: #{point_cloud_global_embedding.12} parent=39 // pred_check
        %p502 = pneg %p213
      $region46: #{point_cloud_global_embedding.12} parent=39 // pred_check_branch
        %504 = sbr.rel (%p502) target = $region48
      $region47: #{point_cloud_global_embedding.12} parent=39 // pred_region
        _
      $region48: #{point_cloud_global_embedding.12} parent=39 // pred_fallthru
        _
    $region40: #{point_cloud_global_embedding.12} parent=5 // pred_fallthru
      _
    %p505 = scmp.le.s32.totalorder 2, %s13
    // Predicated region
    $region49: #{point_cloud_global_embedding.12} parent=5 // pred_check
      %p506 = pneg %p505
    $region50: #{point_cloud_global_embedding.12} parent=5 // pred_check_branch
      %508 = sbr.rel (%p506) target = $region52
    $region51: #{point_cloud_global_embedding.12} parent=5 // pred_region
      %s509 = ssub.s32 %s13, 2
      // Predicated region
      $region53: #{point_cloud_global_embedding.12} parent=51 // pred_check
        %p510 = pneg %p189
      $region54: #{point_cloud_global_embedding.12} parent=51 // pred_check_branch
        %512 = sbr.rel (%p510) target = $region56
      $region55: #{point_cloud_global_embedding.12} parent=51 // pred_region
        %s513 = smul.u32 2, %s26
        %p514 = scmp.lt.s32.totalorder %s27, 1
        %s515 = scalar_select %p514, %s27, 1
        %p516 = scmp.lt.s32.totalorder %s513, 1
        %s517 = scalar_select %p516, %s513, 1
        %p518 = scmp.lt.s32.totalorder %s28, 0
        %s519 = scalar_select %p518, %s28, 0
        %s520 = sadd.s32 %s519, %s517
        %s521 = smul.addr %s515, 2
        %s522 = sadd.s32 %s520, %s521
        %s523 = smul.addr %s522, 4
        %s524 = scalar_lea.vmem %s5, %s523
      $region56: #{point_cloud_global_embedding.12} parent=51 // pred_fallthru
        _
      // Predicated region
      $region57: #{point_cloud_global_embedding.12} parent=51 // pred_check
        %p525 = pneg %p219
      $region58: #{point_cloud_global_embedding.12} parent=51 // pred_check_branch
        %527 = sbr.rel (%p525) target = $region60
      $region59: #{point_cloud_global_embedding.12} parent=51 // pred_region
        %p528 = scmp.lt.s32.totalorder %s27, 1
        %s529 = scalar_select %p528, %s27, 1
        %p530 = scmp.lt.s32.totalorder %s26, 0
        %s531 = scalar_select %p530, %s26, 0
        %p532 = scmp.lt.s32.totalorder %s28, 0
        %s533 = scalar_select %p532, %s28, 0
        %s534 = sadd.s32 %s533, %s531
        %s535 = sadd.s32 %s534, %s529
        %s536 = smul.addr %s535, 8
        %s537 = scalar_lea.vmem %s6, %s536
      $region60: #{point_cloud_global_embedding.12} parent=51 // pred_fallthru
        _
    $region52: #{point_cloud_global_embedding.12} parent=5 // pred_fallthru
      _
  $region6: #{point_cloud_global_embedding.12} parent=0 // loop_footer
    %s17 = sadd.s32 1, %s13
  $region7: #{point_cloud_global_embedding.12} parent=0 // loop_footer_branch
    %12 = sbr.rel target = $region3
  $region8: #{point_cloud_global_embedding.12} parent=0 // loop_exit
    _

// kernel: point_cloud_global_embedding.13
$region0: #{point_cloud_global_embedding.13}
  #allocation0 [shape = 'u32[]', space=smem, size = 0x4, offset = 0x4, fixed_abs, tag = 'smem constant byte address 0x4 - core index']
  #allocation1 [shape = 'u32[144,128]{1,0:T(1,128)}', space=vmem, size = 0x12000, scoped, tag = 'internal scratch']
  %s0 = inlined_call_operand.vmem [shape: bf16[2,16,64], index: 0, kind: input, shape index: {}]
  %s1 = inlined_call_operand.vmem [shape: bf16[1,64,64], index: 1, kind: input, shape index: {}]
  %s2 = inlined_call_operand.vmem [shape: f32[1,64], index: 2, kind: input, shape index: {}]
  %s3 = inlined_call_operand.vmem [shape: f32[1,64], index: 3, kind: input, shape index: {}]
  %s4 = inlined_call_operand.vmem [shape: f32[1,64], index: 4, kind: input, shape index: {}]
  %s5 = inlined_call_operand.vmem [shape: bf16[2,16,64], index: 5, kind: output, shape index: {0}]
  %s6 = inlined_call_operand.vmem [shape: f32[2,1,8,64], index: 6, kind: output, shape index: {1}]
  %7 = xla_tuple %s5, %s6
  %s8 = sld [smem:[#allocation0]]
  $region61: #{point_cloud_global_embedding.13} parent=0
    _
  %s10 = ssub.s32 1, %s8
  %s11 = scalar_select 0, %s10, %s8
  loop: start=0, step=1, limit=4
  $region2: #{point_cloud_global_embedding.13} parent=0 // loop_pre_header
    _
  $region3: #{point_cloud_global_embedding.13} parent=0 // loop_header
    %s13 = sphi 0, %s17
    %p14 = scmp.ge.s32.totalorder %s13, 4
    %s20 = sphi 0, %s39
    %s21 = sphi 0, %s35
    %s22 = sphi 0, %s31
    %s23 = sphi 0, %s20
    %s24 = sphi 0, %s21
    %s25 = sphi 0, %s22
    %s26 = sphi 0, %s23
    %s27 = sphi 0, %s24
    %s28 = sphi 0, %s25
    %s44 = sphi 0, %s46
    %s47 = sphi 0, %s44
    %s48 = sphi 0, %s47
    %s64 = sphi 0, %s48
    %s70 = sphi 0, %s72
    %s73 = sphi 0, %s70
    %s74 = sphi 0, %s73
    %s90 = sphi 0, %s74
    %s96 = sphi 0, %s98
    %s99 = sphi 0, %s96
    %s100 = sphi 0, %s99
    %s116 = sphi 0, %s100
    %s120 = sphi 0, %s120
    %s122 = sphi 0, %s120
    %s123 = sphi 0, %s122
    %s137 = sphi 0, %s123
    %s141 = sphi 0, %s141
    %s143 = sphi 0, %s141
    %s144 = sphi 0, %s143
    %s158 = sphi 0, %s144
    %s168 = sphi 0, %s170
    %s171 = sphi 0, %s168
    %s172 = sphi 0, %s171
    %s188 = sphi 0, %s172
    %s198 = sphi 0, %s200
    %s201 = sphi 0, %s198
    %s202 = sphi 0, %s201
    %s218 = sphi 0, %s202
  $region4: #{point_cloud_global_embedding.13} parent=0 // loop_header_branch
    %16 = sbr.rel (%p14) target = $region8
  $region5: #{point_cloud_global_embedding.13} parent=0 // loop_body
    %s18 = ssub.s32 %s13, 1
    %s19 = ssub.s32 %s13, 2
    %s29 = sadd.s32 1, %s22
    %p30 = scmp.ge.s32.totalorder %s29, 1
    %s31 = scalar_select %p30, 0, %s29
    %s32 = sadd.s32 1, %s21
    %s33 = scalar_select %p30, %s32, %s21
    %p34 = scmp.ge.s32.totalorder %s33, 2
    %s35 = scalar_select %p34, 0, %s33
    %s36 = sadd.s32 1, %s20
    %s37 = scalar_select %p34, %s36, %s20
    %p38 = scmp.ge.s32.totalorder %s37, 1
    %s39 = scalar_select %p38, 0, %s37
    %s40 = ssub.s32 %s21, %s35
    %s41 = ssub.s32 %s20, %s39
    %s42 = sor.u32 %s40, %s41
    %p43 = scmp.eq.s32.totalorder %s42, 0
    %s45 = sadd.s32 %s44, 1
    %s46 = scalar_select %p43, %s44, %s45
    %p49 = pneg %p43
    %p50 = scmp.eq.s32.totalorder %s13, 1
    %p51 = por %p49, %p50
    %p52 = scmp.ne.s32.totalorder %s44, %s47
    %p53 = scmp.eq.s32.totalorder %s13, 0
    %p54 = por %p52, %p53
    %p55 = scmp.ne.s32.totalorder %s44, %s47
    %p56 = scmp.eq.s32.totalorder %s18, 1
    %p57 = por %p55, %p56
    %p58 = scmp.ne.s32.totalorder %s47, %s48
    %p59 = scmp.eq.s32.totalorder %s18, 0
    %p60 = por %p58, %p59
    %p61 = scmp.ne.s32.totalorder %s47, %s48
    %p62 = scmp.eq.s32.totalorder %s19, 1
    %p63 = por %p61, %p62
    %p65 = scmp.ne.s32.totalorder %s48, %s64
    %p66 = scmp.eq.s32.totalorder %s19, 0
    %p67 = por %p65, %p66
    %s68 = ssub.s32 %s22, %s31
    %p69 = scmp.eq.s32.totalorder %s68, 0
    %s71 = sadd.s32 %s70, 1
    %s72 = scalar_select %p69, %s70, %s71
    %p75 = pneg %p69
    %p76 = scmp.eq.s32.totalorder %s13, 1
    %p77 = por %p75, %p76
    %p78 = scmp.ne.s32.totalorder %s70, %s73
    %p79 = scmp.eq.s32.totalorder %s13, 0
    %p80 = por %p78, %p79
    %p81 = scmp.ne.s32.totalorder %s70, %s73
    %p82 = scmp.eq.s32.totalorder %s18, 1
    %p83 = por %p81, %p82
    %p84 = scmp.ne.s32.totalorder %s73, %s74
    %p85 = scmp.eq.s32.totalorder %s18, 0
    %p86 = por %p84, %p85
    %p87 = scmp.ne.s32.totalorder %s73, %s74
    %p88 = scmp.eq.s32.totalorder %s19, 1
    %p89 = por %p87, %p88
    %p91 = scmp.ne.s32.totalorder %s74, %s90
    %p92 = scmp.eq.s32.totalorder %s19, 0
    %p93 = por %p91, %p92
    %s94 = ssub.s32 %s22, %s31
    %p95 = scmp.eq.s32.totalorder %s94, 0
    %s97 = sadd.s32 %s96, 1
    %s98 = scalar_select %p95, %s96, %s97
    %p101 = pneg %p95
    %p102 = scmp.eq.s32.totalorder %s13, 1
    %p103 = por %p101, %p102
    %p104 = scmp.ne.s32.totalorder %s96, %s99
    %p105 = scmp.eq.s32.totalorder %s13, 0
    %p106 = por %p104, %p105
    %p107 = scmp.ne.s32.totalorder %s96, %s99
    %p108 = scmp.eq.s32.totalorder %s18, 1
    %p109 = por %p107, %p108
    %p110 = scmp.ne.s32.totalorder %s99, %s100
    %p111 = scmp.eq.s32.totalorder %s18, 0
    %p112 = por %p110, %p111
    %p113 = scmp.ne.s32.totalorder %s99, %s100
    %p114 = scmp.eq.s32.totalorder %s19, 1
    %p115 = por %p113, %p114
    %p117 = scmp.ne.s32.totalorder %s100, %s116
    %p118 = scmp.eq.s32.totalorder %s19, 0
    %p119 = por %p117, %p118
    %s121 = sadd.s32 %s120, 1
    %p124 = scmp.eq.s32.totalorder %s13, 1
    %p125 = scmp.ne.s32.totalorder %s120, %s122
    %p126 = scmp.eq.s32.totalorder %s13, 0
    %p127 = por %p125, %p126
    %p128 = scmp.ne.s32.totalorder %s120, %s122
    %p129 = scmp.eq.s32.totalorder %s18, 1
    %p130 = por %p128, %p129
    %p131 = scmp.ne.s32.totalorder %s122, %s123
    %p132 = scmp.eq.s32.totalorder %s18, 0
    %p133 = por %p131, %p132
    %p134 = scmp.ne.s32.totalorder %s122, %s123
    %p135 = scmp.eq.s32.totalorder %s19, 1
    %p136 = por %p134, %p135
    %p138 = scmp.ne.s32.totalorder %s123, %s137
    %p139 = scmp.eq.s32.totalorder %s19, 0
    %p140 = por %p138, %p139
    %s142 = sadd.s32 %s141, 1
    %p145 = scmp.eq.s32.totalorder %s13, 1
    %p146 = scmp.ne.s32.totalorder %s141, %s143
    %p147 = scmp.eq.s32.totalorder %s13, 0
    %p148 = por %p146, %p147
    %p149 = scmp.ne.s32.totalorder %s141, %s143
    %p150 = scmp.eq.s32.totalorder %s18, 1
    %p151 = por %p149, %p150
    %p152 = scmp.ne.s32.totalorder %s143, %s144
    %p153 = scmp.eq.s32.totalorder %s18, 0
    %p154 = por %p152, %p153
    %p155 = scmp.ne.s32.totalorder %s143, %s144
    %p156 = scmp.eq.s32.totalorder %s19, 1
    %p157 = por %p155, %p156
    %p159 = scmp.ne.s32.totalorder %s144, %s158
    %p160 = scmp.eq.s32.totalorder %s19, 0
    %p161 = por %p159, %p160
    %s162 = ssub.s32 %s21, %s35
    %s163 = ssub.s32 %s20, %s39
    %s164 = sor.u32 %s162, %s163
    %s165 = ssub.s32 %s22, %s31
    %s166 = sor.u32 %s164, %s165
    %p167 = scmp.eq.s32.totalorder %s166, 0
    %s169 = sadd.s32 %s168, 1
    %s170 = scalar_select %p167, %s168, %s169
    %p173 = pneg %p167
    %p174 = scmp.eq.s32.totalorder %s13, 1
    %p175 = por %p173, %p174
    %p176 = scmp.ne.s32.totalorder %s168, %s171
    %p177 = scmp.eq.s32.totalorder %s13, 0
    %p178 = por %p176, %p177
    %p179 = scmp.ne.s32.totalorder %s168, %s171
    %p180 = scmp.eq.s32.totalorder %s18, 1
    %p181 = por %p179, %p180
    %p182 = scmp.ne.s32.totalorder %s171, %s172
    %p183 = scmp.eq.s32.totalorder %s18, 0
    %p184 = por %p182, %p183
    %p185 = scmp.ne.s32.totalorder %s171, %s172
    %p186 = scmp.eq.s32.totalorder %s19, 1
    %p187 = por %p185, %p186
    %p189 = scmp.ne.s32.totalorder %s172, %s188
    %p190 = scmp.eq.s32.totalorder %s19, 0
    %p191 = por %p189, %p190
    %s192 = ssub.s32 %s21, %s35
    %s193 = ssub.s32 %s20, %s39
    %s194 = sor.u32 %s192, %s193
    %s195 = ssub.s32 %s22, %s31
    %s196 = sor.u32 %s194, %s195
    %p197 = scmp.eq.s32.totalorder %s196, 0
    %s199 = sadd.s32 %s198, 1
    %s200 = scalar_select %p197, %s198, %s199
    %p203 = pneg %p197
    %p204 = scmp.eq.s32.totalorder %s13, 1
    %p205 = por %p203, %p204
    %p206 = scmp.ne.s32.totalorder %s198, %s201
    %p207 = scmp.eq.s32.totalorder %s13, 0
    %p208 = por %p206, %p207
    %p209 = scmp.ne.s32.totalorder %s198, %s201
    %p210 = scmp.eq.s32.totalorder %s18, 1
    %p211 = por %p209, %p210
    %p212 = scmp.ne.s32.totalorder %s201, %s202
    %p213 = scmp.eq.s32.totalorder %s18, 0
    %p214 = por %p212, %p213
    %p215 = scmp.ne.s32.totalorder %s201, %s202
    %p216 = scmp.eq.s32.totalorder %s19, 1
    %p217 = por %p215, %p216
    %p219 = scmp.ne.s32.totalorder %s202, %s218
    %p220 = scmp.eq.s32.totalorder %s19, 0
    %p221 = por %p219, %p220
    %p222 = scmp.le.s32.totalorder 1, %s13
    %p223 = scmp.lt.s32.totalorder %s13, 3
    %p224 = pnand %p222, %p223
    %p225 = pneg %p224
    // Predicated region
    $region9: #{point_cloud_global_embedding.13} parent=5 // pred_check
      _
    $region10: #{point_cloud_global_embedding.13} parent=5 // pred_check_branch
      %227 = sbr.rel (%p224) target = $region12
    $region11: #{point_cloud_global_embedding.13} parent=5 // pred_region
      %s228 = ssub.s32 %s13, 1
      // Predicated region
      $region13: #{point_cloud_global_embedding.13} parent=11 // pred_check
        %p229 = pneg %p86
      $region14: #{point_cloud_global_embedding.13} parent=11 // pred_check_branch
        %231 = sbr.rel (%p229) target = $region16
      $region15: #{point_cloud_global_embedding.13} parent=11 // pred_region
        %p232 = scmp.lt.s32.totalorder %s25, 0
        %s233 = scalar_select %p232, %s25, 0
        %s234 = smul.addr %s233, 4
        %s235 = scalar_lea.vmem %s1, %s234
      $region16: #{point_cloud_global_embedding.13} parent=11 // pred_fallthru
        _
      // Predicated region
      $region17: #{point_cloud_global_embedding.13} parent=11 // pred_check
        %p236 = pneg %p112
      $region18: #{point_cloud_global_embedding.13} parent=11 // pred_check_branch
        %238 = sbr.rel (%p236) target = $region20
      $region19: #{point_cloud_global_embedding.13} parent=11 // pred_region
        %p239 = scmp.lt.s32.totalorder %s25, 0
        %s240 = scalar_select %p239, %s25, 0
        %s241 = scalar_lea.vmem %s2, %s240
      $region20: #{point_cloud_global_embedding.13} parent=11 // pred_fallthru
        _
      // Predicated region
      $region21: #{point_cloud_global_embedding.13} parent=11 // pred_check
        %p242 = pneg %p133
      $region22: #{point_cloud_global_embedding.13} parent=11 // pred_check_branch
        %244 = sbr.rel (%p242) target = $region24
      $region23: #{point_cloud_global_embedding.13} parent=11 // pred_region
        _
      $region24: #{point_cloud_global_embedding.13} parent=11 // pred_fallthru
        _
      // Predicated region
      $region25: #{point_cloud_global_embedding.13} parent=11 // pred_check
        %p245 = pneg %p154
      $region26: #{point_cloud_global_embedding.13} parent=11 // pred_check_branch
        %247 = sbr.rel (%p245) target = $region28
      $region27: #{point_cloud_global_embedding.13} parent=11 // pred_region
        _
      $region28: #{point_cloud_global_embedding.13} parent=11 // pred_fallthru
        _
    $region12: #{point_cloud_global_embedding.13} parent=5 // pred_fallthru
      _
    %p248 = scmp.lt.s32.totalorder %s13, 2
    // Predicated region
    $region29: #{point_cloud_global_embedding.13} parent=5 // pred_check
      %p249 = pneg %p248
    $region30: #{point_cloud_global_embedding.13} parent=5 // pred_check_branch
      %251 = sbr.rel (%p249) target = $region32
    $region31: #{point_cloud_global_embedding.13} parent=5 // pred_region
      // Predicated region
      $region33: #{point_cloud_global_embedding.13} parent=31 // pred_check
        %p252 = pneg %p54
      $region34: #{point_cloud_global_embedding.13} parent=31 // pred_check_branch
        %254 = sbr.rel (%p252) target = $region36
      $region35: #{point_cloud_global_embedding.13} parent=31 // pred_region
        %s255 = smul.u32 2, %s20
        %p256 = scmp.lt.s32.totalorder %s21, 1
        %s257 = scalar_select %p256, %s21, 1
        %p258 = scmp.lt.s32.totalorder %s255, 1
        %s259 = scalar_select %p258, %s255, 1
        %s260 = smul.addr %s257, 2
        %s261 = sadd.s32 %s259, %s260
        %s262 = smul.addr %s261, 4
        %s263 = scalar_lea.vmem %s0, %s262
        %s264 = smul.u32 2, %s20
      $region36: #{point_cloud_global_embedding.13} parent=31 // pred_fallthru
        _
    $region32: #{point_cloud_global_embedding.13} parent=5 // pred_fallthru
      _
    %p265 = scmp.le.s32.totalorder 1, %s13
    %p266 = scmp.lt.s32.totalorder %s13, 3
    %p267 = pnand %p265, %p266
    %p268 = pneg %p267
    // Predicated region
    $region37: #{point_cloud_global_embedding.13} parent=5 // pred_check
      _
    $region38: #{point_cloud_global_embedding.13} parent=5 // pred_check_branch
      %270 = sbr.rel (%p267) target = $region40
    $region39: #{point_cloud_global_embedding.13} parent=5 // pred_region
      %s271 = ssub.s32 %s13, 1
      %s272 = smul.u32 2, %s23
      %p273 = scmp.lt.s32.totalorder %s24, 1
      %s274 = scalar_select %p273, %s24, 1
      %p275 = scmp.lt.s32.totalorder %s272, 1
      %s276 = scalar_select %p275, %s272, 1
      %s277 = smul.addr %s274, 2
      %s278 = sadd.s32 %s276, %s277
      %s279 = smul.addr %s278, 4
      %s280 = scalar_lea.vmem %s0, %s279
      %p281 = pneg %p60
      %p282 = pneg %p57
      %p283 = scmp.lt.s32.totalorder %s25, 0
      %s284 = scalar_select %p283, %s25, 0
      %s285 = smul.addr %s284, 4
      %s286 = scalar_lea.vmem %s1, %s285
      %p287 = pneg %p86
      %p288 = pneg %p83
      %p289 = scmp.lt.s32.totalorder %s25, 0
      %s290 = scalar_select %p289, %s25, 0
      %s291 = scalar_lea.vmem %s2, %s290
      %p292 = pneg %p112
      %p293 = pneg %p109
      %p294 = pneg %p133
      %p295 = pneg %p130
      %p296 = pneg %p154
      %p297 = pneg %p151
      %p298 = pneg %p184
      %p299 = pneg %p181
      %s300 = smul.u32 2, %s23
      %p301 = scmp.lt.s32.totalorder %s24, 1
      %s302 = scalar_select %p301, %s24, 1
      %p303 = scmp.lt.s32.totalorder %s300, 1
      %s304 = scalar_select %p303, %s300, 1
      %p305 = scmp.lt.s32.totalorder %s25, 0
      %s306 = scalar_select %p305, %s25, 0
      %s307 = sadd.s32 %s306, %s304
      %s308 = smul.addr %s302, 2
      %s309 = sadd.s32 %s307, %s308
      %s310 = smul.addr %s309, 4
      %s311 = scalar_lea.vmem %s5, %s310
      %p312 = pneg %p214
      %p313 = pneg %p211
      %p314 = scmp.lt.s32.totalorder %s24, 1
      %s315 = scalar_select %p314, %s24, 1
      %p316 = scmp.lt.s32.totalorder %s23, 0
      %s317 = scalar_select %p316, %s23, 0
      %p318 = scmp.lt.s32.totalorder %s25, 0
      %s319 = scalar_select %p318, %s25, 0
      %s320 = sadd.s32 %s319, %s317
      %s321 = sadd.s32 %s320, %s315
      %s322 = smul.addr %s321, 8
      %s323 = scalar_lea.vmem %s6, %s322
      %s324 = smul.u32 2, %s23
      %p325 = scmp.lt.s32.totalorder %s24, 1
      %s326 = scalar_select %p325, %s24, 1
      %p327 = scmp.lt.s32.totalorder %s324, 1
      %s328 = scalar_select %p327, %s324, 1
      %s329 = smul.addr %s326, 2
      %s330 = sadd.s32 %s328, %s329
      %s331 = smul.addr %s330, 4
      %s332 = scalar_lea.vmem %s0, %s331
      %s333 = smul.u32 2, %s23
      %p334 = scmp.lt.s32.totalorder %s25, 0
      %s335 = scalar_select %p334, %s25, 0
      %s336 = smul.addr %s335, 4
      %s337 = scalar_lea.vmem %s1, %s336
      %p338 = scmp.lt.s32.totalorder %s25, 0
      %s339 = scalar_select %p338, %s25, 0
      %s340 = scalar_lea.vmem %s2, %s339
      %s341 = smul.u32 2, %s23
      %p342 = scmp.lt.s32.totalorder %s24, 1
      %s343 = scalar_select %p342, %s24, 1
      %p344 = scmp.lt.s32.totalorder %s341, 1
      %s345 = scalar_select %p344, %s341, 1
      %p346 = scmp.lt.s32.totalorder %s25, 0
      %s347 = scalar_select %p346, %s25, 0
      %s348 = sadd.s32 %s347, %s345
      %s349 = smul.addr %s343, 2
      %s350 = sadd.s32 %s348, %s349
      %s351 = smul.addr %s350, 4
      %s352 = scalar_lea.vmem %s5, %s351
      %s353 = smul.u32 2, %s23
      %p354 = scmp.lt.s32.totalorder %s24, 1
      %s355 = scalar_select %p354, %s24, 1
      %p356 = scmp.lt.s32.totalorder %s23, 0
      %s357 = scalar_select %p356, %s23, 0
      %p358 = scmp.lt.s32.totalorder %s25, 0
      %s359 = scalar_select %p358, %s25, 0
      %s360 = sadd.s32 %s359, %s357
      %s361 = sadd.s32 %s360, %s355
      %s362 = smul.addr %s361, 8
      %s363 = scalar_lea.vmem %s6, %s362
      %v365 = vld [vmem:[%s332] sm:$0xf]
      %v366 = vld [vmem:[%s332 + $0x4] sm:$0xf]
      %v367 = vunpack.c.l.bf16 %v365
      %v368 = vunpack.c.l.bf16 %v366
      %v369 = vld [vmem:[%s3] sm:$0x1]
      %v371 = vlaneseq
      %v372 = vshrl.u32 %v371, 7
      %v373 = vsub.s32 0, %v372
      %v374 = vrot.slane %v369, %v373
      %v376 = vmul.f32 %v367, %v374
      %v377 = vmul.f32 %v368, %v374
      %v378 = vld [vmem:[%s4] sm:$0x1]
      %v380 = vlaneseq
      %v381 = vshrl.u32 %v380, 7
      %v382 = vsub.s32 0, %v381
      %v383 = vrot.slane %v378, %v382
      %v385 = vadd.f32 %v376, %v383
      %v386 = vadd.f32 %v377, %v383
      %v387 = vmax.f32 %v385, 0.0
      %v388 = vmax.f32 %v386, 0.0
      %v389 = vld [vmem:[%s337] sm:$0xf]
      %v390 = vld [vmem:[%s337 + $0x4] sm:$0xf]
      %v391 = vld [vmem:[%s337 + $0x8] sm:$0xf]
      %v392 = vld [vmem:[%s337 + $0xc] sm:$0xf]
      %v393 = vld [vmem:[%s337 + $0x10] sm:$0xf]
      %v394 = vld [vmem:[%s337 + $0x14] sm:$0xf]
      %v395 = vld [vmem:[%s337 + $0x18] sm:$0xf]
      %v396 = vld [vmem:[%s337 + $0x1c] sm:$0xf]
      %v397 = vld [vmem:[%s340] sm:$0x1]
      %v398 = vpack.c.bf16 %v388, %v387
      %v400 = vlaneseq
      %v401 = vshrl.u32 %v400, 7
      %v402 = vsub.s32 0, %v401
      %v403 = vrot.slane %v397, %v402
      %v413 = vunpack.c.l.b16 %v389
      %v414 = vunpack.c.l.b16 %v390
      %v415 = vunpack.c.l.b16 %v391
      %v416 = vunpack.c.l.b16 %v392
      %v417 = vunpack.c.l.b16 %v393
      %v418 = vunpack.c.l.b16 %v394
      %v419 = vunpack.c.l.b16 %v395
      %v420 = vunpack.c.l.b16 %v396
      %v421 = vpack.c.b16 %v414, %v413
      %v422 = vpack.c.b16 %v416, %v415
      %v423 = vpack.c.b16 %v418, %v417
      %v424 = vpack.c.b16 %v420, %v419
      %vm429 = vcmask 523264
      %v431 = vsel %vm429, %v398, 0
      %433 = vmatprep.subr.bf16.mxu0 0
      %434 = vmatpush1.bf16.msra.mxu0 0
      %435 = vmatprep.subr.bf16.mxu0 0
      %436 = vmatpush1.bf16.msra.mxu0 0
      %437 = vmatprep.subr.bf16.mxu0 0
      %438 = vmatpush1.bf16.msra.mxu0 0
      %439 = vmatprep.subr.bf16.mxu0 0
      %440 = vmatpush1.bf16.msra.mxu0 0
      %441 = vmatprep.subr.bf16.mxu0 0
      %442 = vmatpush1.bf16.msra.mxu0 %v424
      %443 = vmatprep.subr.bf16.mxu0 0
      %444 = vmatpush1.bf16.msra.mxu0 %v423
      %445 = vmatprep.subr.bf16.mxu0 0
      %446 = vmatpush1.bf16.msra.mxu0 %v422
      %447 = vmatprep.subr.bf16.mxu0 0
      %448 = vmatpush1.bf16.msra.mxu0 %v421
      %449 = vmatprep.subr.bf16.mxu0 0
      %450 = vmatpush2.bf16.msra.mxu0 0
      %451 = vmatprep.subr.bf16.mxu0 0
      %452 = vmatpush2.bf16.msra.mxu0 0
      %453 = vmatprep.subr.bf16.mxu0 0
      %454 = vmatpush2.bf16.msra.mxu0 0
      %455 = vmatprep.subr.bf16.mxu0 0
      %456 = vmatpush2.bf16.msra.mxu0 0
      %457 = vmatprep.subr.bf16.mxu0 0
      %458 = vmatpush2.bf16.msra.mxu0 0
      %459 = vmatprep.subr.bf16.mxu0 0
      %460 = vmatpush2.bf16.msra.mxu0 0
      %461 = vmatprep.subr.bf16.mxu0 0
      %462 = vmatpush2.bf16.msra.mxu0 0
      %463 = vmatprep.subr.bf16.mxu0 0
      %464 = vmatpush2.bf16.msra.mxu0 0
      %465 = vmatprep.mubr.bf16.mxu0 0
      %466 = vmatmul.mubr.bf16.gmra.mxu0 %v431
      %v467 = vpop.f32.mrf.mxu0
      %v468 = vadd.f32 %v403, %v467
      %v469 = vpop.f32.mrf.mxu0
      %v470 = vpop.f32.mrf.mxu0
      %v471 = vadd.f32 %v403, %v470
      %v472 = vpop.f32.mrf.mxu0
      %473 = vdwg.mxu0
      %v474 = vsel %vm429, %v468, 0.0
      %v475 = vsel %vm429, %v471, 0.0
      %v476 = vadd.f32 %v474, %v475
      %v477 = vrot.slane %v476, 4
      %v478 = vadd.f32 %v476, %v477
      %v479 = vrot.slane %v478, 2
      %v480 = vadd.f32 %v478, %v479
      %v481 = vrot.slane %v480, 1
      %v482 = vadd.f32 %v480, %v481
      %v483 = vmul.f32 %v482, 0.0625
      %v484 = vsub.f32 %v468, %v483
      %v485 = vsub.f32 %v471, %v483
      %v486 = vmul.f32 %v484, %v484
      %v487 = vmul.f32 %v485, %v485
      %v488 = vsel %vm429, %v486, 0.0
      %v489 = vsel %vm429, %v487, 0.0
      %v490 = vadd.f32 %v488, %v489
      %v491 = vrot.slane %v490, 4
      %v492 = vadd.f32 %v490, %v491
      %v493 = vrot.slane %v492, 2
      %v494 = vadd.f32 %v492, %v493
      %v495 = vrot.slane %v494, 1
      %v496 = vadd.f32 %v494, %v495
      %v497 = vpack.c.bf16 %v471, %v468
      %v499 = vunpack.c.l.b16 %v497
      %v500 = vunpack.c.h.b16 %v497
      %v501 = vpack.c.b16 %v499, %v499
      %v502 = vpack.c.b16 %v500, %v500
      %vm505 = vcmask 519168
      %506 = vst.msk [vmem:[%s352] sm:$0xf] %vm505, %v501
      %507 = vst.msk [vmem:[%s352 + $0x4] sm:$0xf] %vm505, %v502
      %vm508 = vcmask 1040384
      %v509 = vsel %vm508, %v482, %v496
      %vm510 = vcmask 1041408
      %v511 = vsel %vm510, %v509, 0.0
      %512 = vst.msk [vmem:[%s363] sm:$0xff] %vm429, %v511
      %s513 = smul.u32 2, %s23
      %p514 = scmp.lt.s32.totalorder %s24, 1
      %s515 = scalar_select %p514, %s24, 1
      %p516 = scmp.lt.s32.totalorder %s513, 1
      %s517 = scalar_select %p516, %s513, 1
      %p518 = scmp.lt.s32.totalorder %s25, 0
      %s519 = scalar_select %p518, %s25, 0
      %s520 = sadd.s32 %s519, %s517
      %s521 = smul.addr %s515, 2
      %s522 = sadd.s32 %s520, %s521
      %s523 = smul.addr %s522, 4
      %s524 = scalar_lea.vmem %s5, %s523
      %p525 = scmp.lt.s32.totalorder %s24, 1
      %s526 = scalar_select %p525, %s24, 1
      %p527 = scmp.lt.s32.totalorder %s23, 0
      %s528 = scalar_select %p527, %s23, 0
      %p529 = scmp.lt.s32.totalorder %s25, 0
      %s530 = scalar_select %p529, %s25, 0
      %s531 = sadd.s32 %s530, %s528
      %s532 = sadd.s32 %s531, %s526
      %s533 = smul.addr %s532, 8
      %s534 = scalar_lea.vmem %s6, %s533
      // Predicated region
      $region41: #{point_cloud_global_embedding.13} parent=39 // pred_check
        %p535 = pneg %p181
      $region42: #{point_cloud_global_embedding.13} parent=39 // pred_check_branch
        %537 = sbr.rel (%p535) target = $region44
      $region43: #{point_cloud_global_embedding.13} parent=39 // pred_region
        %s538 = smul.u32 2, %s23
      $region44: #{point_cloud_global_embedding.13} parent=39 // pred_fallthru
        _
      // Predicated region
      $region45: #{point_cloud_global_embedding.13} parent=39 // pred_check
        %p539 = pneg %p211
      $region46: #{point_cloud_global_embedding.13} parent=39 // pred_check_branch
        %541 = sbr.rel (%p539) target = $region48
      $region47: #{point_cloud_global_embedding.13} parent=39 // pred_region
        _
      $region48: #{point_cloud_global_embedding.13} parent=39 // pred_fallthru
        _
    $region40: #{point_cloud_global_embedding.13} parent=5 // pred_fallthru
      _
    %p542 = scmp.le.s32.totalorder 2, %s13
    // Predicated region
    $region49: #{point_cloud_global_embedding.13} parent=5 // pred_check
      %p543 = pneg %p542
    $region50: #{point_cloud_global_embedding.13} parent=5 // pred_check_branch
      %545 = sbr.rel (%p543) target = $region52
    $region51: #{point_cloud_global_embedding.13} parent=5 // pred_region
      %s546 = ssub.s32 %s13, 2
      // Predicated region
      $region53: #{point_cloud_global_embedding.13} parent=51 // pred_check
        %p547 = pneg %p187
      $region54: #{point_cloud_global_embedding.13} parent=51 // pred_check_branch
        %549 = sbr.rel (%p547) target = $region56
      $region55: #{point_cloud_global_embedding.13} parent=51 // pred_region
        %s550 = smul.u32 2, %s26
        %p551 = scmp.lt.s32.totalorder %s27, 1
        %s552 = scalar_select %p551, %s27, 1
        %p553 = scmp.lt.s32.totalorder %s550, 1
        %s554 = scalar_select %p553, %s550, 1
        %p555 = scmp.lt.s32.totalorder %s28, 0
        %s556 = scalar_select %p555, %s28, 0
        %s557 = sadd.s32 %s556, %s554
        %s558 = smul.addr %s552, 2
        %s559 = sadd.s32 %s557, %s558
        %s560 = smul.addr %s559, 4
        %s561 = scalar_lea.vmem %s5, %s560
      $region56: #{point_cloud_global_embedding.13} parent=51 // pred_fallthru
        _
      // Predicated region
      $region57: #{point_cloud_global_embedding.13} parent=51 // pred_check
        %p562 = pneg %p217
      $region58: #{point_cloud_global_embedding.13} parent=51 // pred_check_branch
        %564 = sbr.rel (%p562) target = $region60
      $region59: #{point_cloud_global_embedding.13} parent=51 // pred_region
        %p565 = scmp.lt.s32.totalorder %s27, 1
        %s566 = scalar_select %p565, %s27, 1
        %p567 = scmp.lt.s32.totalorder %s26, 0
        %s568 = scalar_select %p567, %s26, 0
        %p569 = scmp.lt.s32.totalorder %s28, 0
        %s570 = scalar_select %p569, %s28, 0
        %s571 = sadd.s32 %s570, %s568
        %s572 = sadd.s32 %s571, %s566
        %s573 = smul.addr %s572, 8
        %s574 = scalar_lea.vmem %s6, %s573
      $region60: #{point_cloud_global_embedding.13} parent=51 // pred_fallthru
        _
    $region52: #{point_cloud_global_embedding.13} parent=5 // pred_fallthru
      _
  $region6: #{point_cloud_global_embedding.13} parent=0 // loop_footer
    %s17 = sadd.s32 1, %s13
  $region7: #{point_cloud_global_embedding.13} parent=0 // loop_footer_branch
    %12 = sbr.rel target = $region3
  $region8: #{point_cloud_global_embedding.13} parent=0 // loop_exit
    _

// kernel: point_cloud_global_embedding.14
$region0: #{point_cloud_global_embedding.14}
  #allocation0 [shape = 'u32[]', space=smem, size = 0x4, offset = 0x4, fixed_abs, tag = 'smem constant byte address 0x4 - core index']
  #allocation1 [shape = 'u32[144,128]{1,0:T(1,128)}', space=vmem, size = 0x12000, scoped, tag = 'internal scratch']
  %s0 = inlined_call_operand.vmem [shape: bf16[2,16,64], index: 0, kind: input, shape index: {}]
  %s1 = inlined_call_operand.vmem [shape: bf16[1,64,128], index: 1, kind: input, shape index: {}]
  %s2 = inlined_call_operand.vmem [shape: f32[1,128], index: 2, kind: input, shape index: {}]
  %s3 = inlined_call_operand.vmem [shape: f32[1,64], index: 3, kind: input, shape index: {}]
  %s4 = inlined_call_operand.vmem [shape: f32[1,64], index: 4, kind: input, shape index: {}]
  %s5 = inlined_call_operand.vmem [shape: bf16[2,16,128], index: 5, kind: output, shape index: {0}]
  %s6 = inlined_call_operand.vmem [shape: f32[2,1,8,128], index: 6, kind: output, shape index: {1}]
  %7 = xla_tuple %s5, %s6
  %s8 = sld [smem:[#allocation0]]
  $region61: #{point_cloud_global_embedding.14} parent=0
    _
  %s10 = ssub.s32 1, %s8
  %s11 = scalar_select 0, %s10, %s8
  loop: start=0, step=1, limit=4
  $region2: #{point_cloud_global_embedding.14} parent=0 // loop_pre_header
    _
  $region3: #{point_cloud_global_embedding.14} parent=0 // loop_header
    %s13 = sphi 0, %s17
    %p14 = scmp.ge.s32.totalorder %s13, 4
    %s20 = sphi 0, %s39
    %s21 = sphi 0, %s35
    %s22 = sphi 0, %s31
    %s23 = sphi 0, %s20
    %s24 = sphi 0, %s21
    %s25 = sphi 0, %s22
    %s26 = sphi 0, %s23
    %s27 = sphi 0, %s24
    %s28 = sphi 0, %s25
    %s44 = sphi 0, %s46
    %s47 = sphi 0, %s44
    %s48 = sphi 0, %s47
    %s64 = sphi 0, %s48
    %s70 = sphi 0, %s72
    %s73 = sphi 0, %s70
    %s74 = sphi 0, %s73
    %s90 = sphi 0, %s74
    %s96 = sphi 0, %s98
    %s99 = sphi 0, %s96
    %s100 = sphi 0, %s99
    %s116 = sphi 0, %s100
    %s120 = sphi 0, %s120
    %s122 = sphi 0, %s120
    %s123 = sphi 0, %s122
    %s137 = sphi 0, %s123
    %s141 = sphi 0, %s141
    %s143 = sphi 0, %s141
    %s144 = sphi 0, %s143
    %s158 = sphi 0, %s144
    %s168 = sphi 0, %s170
    %s171 = sphi 0, %s168
    %s172 = sphi 0, %s171
    %s188 = sphi 0, %s172
    %s198 = sphi 0, %s200
    %s201 = sphi 0, %s198
    %s202 = sphi 0, %s201
    %s218 = sphi 0, %s202
  $region4: #{point_cloud_global_embedding.14} parent=0 // loop_header_branch
    %16 = sbr.rel (%p14) target = $region8
  $region5: #{point_cloud_global_embedding.14} parent=0 // loop_body
    %s18 = ssub.s32 %s13, 1
    %s19 = ssub.s32 %s13, 2
    %s29 = sadd.s32 1, %s22
    %p30 = scmp.ge.s32.totalorder %s29, 1
    %s31 = scalar_select %p30, 0, %s29
    %s32 = sadd.s32 1, %s21
    %s33 = scalar_select %p30, %s32, %s21
    %p34 = scmp.ge.s32.totalorder %s33, 2
    %s35 = scalar_select %p34, 0, %s33
    %s36 = sadd.s32 1, %s20
    %s37 = scalar_select %p34, %s36, %s20
    %p38 = scmp.ge.s32.totalorder %s37, 1
    %s39 = scalar_select %p38, 0, %s37
    %s40 = ssub.s32 %s21, %s35
    %s41 = ssub.s32 %s20, %s39
    %s42 = sor.u32 %s40, %s41
    %p43 = scmp.eq.s32.totalorder %s42, 0
    %s45 = sadd.s32 %s44, 1
    %s46 = scalar_select %p43, %s44, %s45
    %p49 = pneg %p43
    %p50 = scmp.eq.s32.totalorder %s13, 1
    %p51 = por %p49, %p50
    %p52 = scmp.ne.s32.totalorder %s44, %s47
    %p53 = scmp.eq.s32.totalorder %s13, 0
    %p54 = por %p52, %p53
    %p55 = scmp.ne.s32.totalorder %s44, %s47
    %p56 = scmp.eq.s32.totalorder %s18, 1
    %p57 = por %p55, %p56
    %p58 = scmp.ne.s32.totalorder %s47, %s48
    %p59 = scmp.eq.s32.totalorder %s18, 0
    %p60 = por %p58, %p59
    %p61 = scmp.ne.s32.totalorder %s47, %s48
    %p62 = scmp.eq.s32.totalorder %s19, 1
    %p63 = por %p61, %p62
    %p65 = scmp.ne.s32.totalorder %s48, %s64
    %p66 = scmp.eq.s32.totalorder %s19, 0
    %p67 = por %p65, %p66
    %s68 = ssub.s32 %s22, %s31
    %p69 = scmp.eq.s32.totalorder %s68, 0
    %s71 = sadd.s32 %s70, 1
    %s72 = scalar_select %p69, %s70, %s71
    %p75 = pneg %p69
    %p76 = scmp.eq.s32.totalorder %s13, 1
    %p77 = por %p75, %p76
    %p78 = scmp.ne.s32.totalorder %s70, %s73
    %p79 = scmp.eq.s32.totalorder %s13, 0
    %p80 = por %p78, %p79
    %p81 = scmp.ne.s32.totalorder %s70, %s73
    %p82 = scmp.eq.s32.totalorder %s18, 1
    %p83 = por %p81, %p82
    %p84 = scmp.ne.s32.totalorder %s73, %s74
    %p85 = scmp.eq.s32.totalorder %s18, 0
    %p86 = por %p84, %p85
    %p87 = scmp.ne.s32.totalorder %s73, %s74
    %p88 = scmp.eq.s32.totalorder %s19, 1
    %p89 = por %p87, %p88
    %p91 = scmp.ne.s32.totalorder %s74, %s90
    %p92 = scmp.eq.s32.totalorder %s19, 0
    %p93 = por %p91, %p92
    %s94 = ssub.s32 %s22, %s31
    %p95 = scmp.eq.s32.totalorder %s94, 0
    %s97 = sadd.s32 %s96, 1
    %s98 = scalar_select %p95, %s96, %s97
    %p101 = pneg %p95
    %p102 = scmp.eq.s32.totalorder %s13, 1
    %p103 = por %p101, %p102
    %p104 = scmp.ne.s32.totalorder %s96, %s99
    %p105 = scmp.eq.s32.totalorder %s13, 0
    %p106 = por %p104, %p105
    %p107 = scmp.ne.s32.totalorder %s96, %s99
    %p108 = scmp.eq.s32.totalorder %s18, 1
    %p109 = por %p107, %p108
    %p110 = scmp.ne.s32.totalorder %s99, %s100
    %p111 = scmp.eq.s32.totalorder %s18, 0
    %p112 = por %p110, %p111
    %p113 = scmp.ne.s32.totalorder %s99, %s100
    %p114 = scmp.eq.s32.totalorder %s19, 1
    %p115 = por %p113, %p114
    %p117 = scmp.ne.s32.totalorder %s100, %s116
    %p118 = scmp.eq.s32.totalorder %s19, 0
    %p119 = por %p117, %p118
    %s121 = sadd.s32 %s120, 1
    %p124 = scmp.eq.s32.totalorder %s13, 1
    %p125 = scmp.ne.s32.totalorder %s120, %s122
    %p126 = scmp.eq.s32.totalorder %s13, 0
    %p127 = por %p125, %p126
    %p128 = scmp.ne.s32.totalorder %s120, %s122
    %p129 = scmp.eq.s32.totalorder %s18, 1
    %p130 = por %p128, %p129
    %p131 = scmp.ne.s32.totalorder %s122, %s123
    %p132 = scmp.eq.s32.totalorder %s18, 0
    %p133 = por %p131, %p132
    %p134 = scmp.ne.s32.totalorder %s122, %s123
    %p135 = scmp.eq.s32.totalorder %s19, 1
    %p136 = por %p134, %p135
    %p138 = scmp.ne.s32.totalorder %s123, %s137
    %p139 = scmp.eq.s32.totalorder %s19, 0
    %p140 = por %p138, %p139
    %s142 = sadd.s32 %s141, 1
    %p145 = scmp.eq.s32.totalorder %s13, 1
    %p146 = scmp.ne.s32.totalorder %s141, %s143
    %p147 = scmp.eq.s32.totalorder %s13, 0
    %p148 = por %p146, %p147
    %p149 = scmp.ne.s32.totalorder %s141, %s143
    %p150 = scmp.eq.s32.totalorder %s18, 1
    %p151 = por %p149, %p150
    %p152 = scmp.ne.s32.totalorder %s143, %s144
    %p153 = scmp.eq.s32.totalorder %s18, 0
    %p154 = por %p152, %p153
    %p155 = scmp.ne.s32.totalorder %s143, %s144
    %p156 = scmp.eq.s32.totalorder %s19, 1
    %p157 = por %p155, %p156
    %p159 = scmp.ne.s32.totalorder %s144, %s158
    %p160 = scmp.eq.s32.totalorder %s19, 0
    %p161 = por %p159, %p160
    %s162 = ssub.s32 %s21, %s35
    %s163 = ssub.s32 %s20, %s39
    %s164 = sor.u32 %s162, %s163
    %s165 = ssub.s32 %s22, %s31
    %s166 = sor.u32 %s164, %s165
    %p167 = scmp.eq.s32.totalorder %s166, 0
    %s169 = sadd.s32 %s168, 1
    %s170 = scalar_select %p167, %s168, %s169
    %p173 = pneg %p167
    %p174 = scmp.eq.s32.totalorder %s13, 1
    %p175 = por %p173, %p174
    %p176 = scmp.ne.s32.totalorder %s168, %s171
    %p177 = scmp.eq.s32.totalorder %s13, 0
    %p178 = por %p176, %p177
    %p179 = scmp.ne.s32.totalorder %s168, %s171
    %p180 = scmp.eq.s32.totalorder %s18, 1
    %p181 = por %p179, %p180
    %p182 = scmp.ne.s32.totalorder %s171, %s172
    %p183 = scmp.eq.s32.totalorder %s18, 0
    %p184 = por %p182, %p183
    %p185 = scmp.ne.s32.totalorder %s171, %s172
    %p186 = scmp.eq.s32.totalorder %s19, 1
    %p187 = por %p185, %p186
    %p189 = scmp.ne.s32.totalorder %s172, %s188
    %p190 = scmp.eq.s32.totalorder %s19, 0
    %p191 = por %p189, %p190
    %s192 = ssub.s32 %s21, %s35
    %s193 = ssub.s32 %s20, %s39
    %s194 = sor.u32 %s192, %s193
    %s195 = ssub.s32 %s22, %s31
    %s196 = sor.u32 %s194, %s195
    %p197 = scmp.eq.s32.totalorder %s196, 0
    %s199 = sadd.s32 %s198, 1
    %s200 = scalar_select %p197, %s198, %s199
    %p203 = pneg %p197
    %p204 = scmp.eq.s32.totalorder %s13, 1
    %p205 = por %p203, %p204
    %p206 = scmp.ne.s32.totalorder %s198, %s201
    %p207 = scmp.eq.s32.totalorder %s13, 0
    %p208 = por %p206, %p207
    %p209 = scmp.ne.s32.totalorder %s198, %s201
    %p210 = scmp.eq.s32.totalorder %s18, 1
    %p211 = por %p209, %p210
    %p212 = scmp.ne.s32.totalorder %s201, %s202
    %p213 = scmp.eq.s32.totalorder %s18, 0
    %p214 = por %p212, %p213
    %p215 = scmp.ne.s32.totalorder %s201, %s202
    %p216 = scmp.eq.s32.totalorder %s19, 1
    %p217 = por %p215, %p216
    %p219 = scmp.ne.s32.totalorder %s202, %s218
    %p220 = scmp.eq.s32.totalorder %s19, 0
    %p221 = por %p219, %p220
    %p222 = scmp.le.s32.totalorder 1, %s13
    %p223 = scmp.lt.s32.totalorder %s13, 3
    %p224 = pnand %p222, %p223
    %p225 = pneg %p224
    // Predicated region
    $region9: #{point_cloud_global_embedding.14} parent=5 // pred_check
      _
    $region10: #{point_cloud_global_embedding.14} parent=5 // pred_check_branch
      %227 = sbr.rel (%p224) target = $region12
    $region11: #{point_cloud_global_embedding.14} parent=5 // pred_region
      %s228 = ssub.s32 %s13, 1
      // Predicated region
      $region13: #{point_cloud_global_embedding.14} parent=11 // pred_check
        %p229 = pneg %p86
      $region14: #{point_cloud_global_embedding.14} parent=11 // pred_check_branch
        %231 = sbr.rel (%p229) target = $region16
      $region15: #{point_cloud_global_embedding.14} parent=11 // pred_region
        %p232 = scmp.lt.s32.totalorder %s25, 0
        %s233 = scalar_select %p232, %s25, 0
        %s234 = smul.addr %s233, 4
        %s235 = scalar_lea.vmem %s1, %s234
      $region16: #{point_cloud_global_embedding.14} parent=11 // pred_fallthru
        _
      // Predicated region
      $region17: #{point_cloud_global_embedding.14} parent=11 // pred_check
        %p236 = pneg %p112
      $region18: #{point_cloud_global_embedding.14} parent=11 // pred_check_branch
        %238 = sbr.rel (%p236) target = $region20
      $region19: #{point_cloud_global_embedding.14} parent=11 // pred_region
        %p239 = scmp.lt.s32.totalorder %s25, 0
        %s240 = scalar_select %p239, %s25, 0
        %s241 = scalar_lea.vmem %s2, %s240
      $region20: #{point_cloud_global_embedding.14} parent=11 // pred_fallthru
        _
      // Predicated region
      $region21: #{point_cloud_global_embedding.14} parent=11 // pred_check
        %p242 = pneg %p133
      $region22: #{point_cloud_global_embedding.14} parent=11 // pred_check_branch
        %244 = sbr.rel (%p242) target = $region24
      $region23: #{point_cloud_global_embedding.14} parent=11 // pred_region
        _
      $region24: #{point_cloud_global_embedding.14} parent=11 // pred_fallthru
        _
      // Predicated region
      $region25: #{point_cloud_global_embedding.14} parent=11 // pred_check
        %p245 = pneg %p154
      $region26: #{point_cloud_global_embedding.14} parent=11 // pred_check_branch
        %247 = sbr.rel (%p245) target = $region28
      $region27: #{point_cloud_global_embedding.14} parent=11 // pred_region
        _
      $region28: #{point_cloud_global_embedding.14} parent=11 // pred_fallthru
        _
    $region12: #{point_cloud_global_embedding.14} parent=5 // pred_fallthru
      _
    %p248 = scmp.lt.s32.totalorder %s13, 2
    // Predicated region
    $region29: #{point_cloud_global_embedding.14} parent=5 // pred_check
      %p249 = pneg %p248
    $region30: #{point_cloud_global_embedding.14} parent=5 // pred_check_branch
      %251 = sbr.rel (%p249) target = $region32
    $region31: #{point_cloud_global_embedding.14} parent=5 // pred_region
      // Predicated region
      $region33: #{point_cloud_global_embedding.14} parent=31 // pred_check
        %p252 = pneg %p54
      $region34: #{point_cloud_global_embedding.14} parent=31 // pred_check_branch
        %254 = sbr.rel (%p252) target = $region36
      $region35: #{point_cloud_global_embedding.14} parent=31 // pred_region
        %s255 = smul.u32 2, %s20
        %p256 = scmp.lt.s32.totalorder %s21, 1
        %s257 = scalar_select %p256, %s21, 1
        %p258 = scmp.lt.s32.totalorder %s255, 1
        %s259 = scalar_select %p258, %s255, 1
        %s260 = smul.addr %s257, 2
        %s261 = sadd.s32 %s259, %s260
        %s262 = smul.addr %s261, 4
        %s263 = scalar_lea.vmem %s0, %s262
        %s264 = smul.u32 2, %s20
      $region36: #{point_cloud_global_embedding.14} parent=31 // pred_fallthru
        _
    $region32: #{point_cloud_global_embedding.14} parent=5 // pred_fallthru
      _
    %p265 = scmp.le.s32.totalorder 1, %s13
    %p266 = scmp.lt.s32.totalorder %s13, 3
    %p267 = pnand %p265, %p266
    %p268 = pneg %p267
    // Predicated region
    $region37: #{point_cloud_global_embedding.14} parent=5 // pred_check
      _
    $region38: #{point_cloud_global_embedding.14} parent=5 // pred_check_branch
      %270 = sbr.rel (%p267) target = $region40
    $region39: #{point_cloud_global_embedding.14} parent=5 // pred_region
      %s271 = ssub.s32 %s13, 1
      %s272 = smul.u32 2, %s23
      %p273 = scmp.lt.s32.totalorder %s24, 1
      %s274 = scalar_select %p273, %s24, 1
      %p275 = scmp.lt.s32.totalorder %s272, 1
      %s276 = scalar_select %p275, %s272, 1
      %s277 = smul.addr %s274, 2
      %s278 = sadd.s32 %s276, %s277
      %s279 = smul.addr %s278, 4
      %s280 = scalar_lea.vmem %s0, %s279
      %p281 = pneg %p60
      %p282 = pneg %p57
      %p283 = scmp.lt.s32.totalorder %s25, 0
      %s284 = scalar_select %p283, %s25, 0
      %s285 = smul.addr %s284, 4
      %s286 = scalar_lea.vmem %s1, %s285
      %p287 = pneg %p86
      %p288 = pneg %p83
      %p289 = scmp.lt.s32.totalorder %s25, 0
      %s290 = scalar_select %p289, %s25, 0
      %s291 = scalar_lea.vmem %s2, %s290
      %p292 = pneg %p112
      %p293 = pneg %p109
      %p294 = pneg %p133
      %p295 = pneg %p130
      %p296 = pneg %p154
      %p297 = pneg %p151
      %p298 = pneg %p184
      %p299 = pneg %p181
      %s300 = smul.u32 2, %s23
      %p301 = scmp.lt.s32.totalorder %s24, 1
      %s302 = scalar_select %p301, %s24, 1
      %p303 = scmp.lt.s32.totalorder %s300, 1
      %s304 = scalar_select %p303, %s300, 1
      %p305 = scmp.lt.s32.totalorder %s25, 0
      %s306 = scalar_select %p305, %s25, 0
      %s307 = sadd.s32 %s306, %s304
      %s308 = smul.addr %s302, 2
      %s309 = sadd.s32 %s307, %s308
      %s310 = smul.addr %s309, 4
      %s311 = scalar_lea.vmem %s5, %s310
      %p312 = pneg %p214
      %p313 = pneg %p211
      %p314 = scmp.lt.s32.totalorder %s24, 1
      %s315 = scalar_select %p314, %s24, 1
      %p316 = scmp.lt.s32.totalorder %s23, 0
      %s317 = scalar_select %p316, %s23, 0
      %p318 = scmp.lt.s32.totalorder %s25, 0
      %s319 = scalar_select %p318, %s25, 0
      %s320 = sadd.s32 %s319, %s317
      %s321 = sadd.s32 %s320, %s315
      %s322 = smul.addr %s321, 8
      %s323 = scalar_lea.vmem %s6, %s322
      %s324 = smul.u32 2, %s23
      %p325 = scmp.lt.s32.totalorder %s24, 1
      %s326 = scalar_select %p325, %s24, 1
      %p327 = scmp.lt.s32.totalorder %s324, 1
      %s328 = scalar_select %p327, %s324, 1
      %s329 = smul.addr %s326, 2
      %s330 = sadd.s32 %s328, %s329
      %s331 = smul.addr %s330, 4
      %s332 = scalar_lea.vmem %s0, %s331
      %s333 = smul.u32 2, %s23
      %p334 = scmp.lt.s32.totalorder %s25, 0
      %s335 = scalar_select %p334, %s25, 0
      %s336 = smul.addr %s335, 4
      %s337 = scalar_lea.vmem %s1, %s336
      %p338 = scmp.lt.s32.totalorder %s25, 0
      %s339 = scalar_select %p338, %s25, 0
      %s340 = scalar_lea.vmem %s2, %s339
      %s341 = smul.u32 2, %s23
      %p342 = scmp.lt.s32.totalorder %s24, 1
      %s343 = scalar_select %p342, %s24, 1
      %p344 = scmp.lt.s32.totalorder %s341, 1
      %s345 = scalar_select %p344, %s341, 1
      %p346 = scmp.lt.s32.totalorder %s25, 0
      %s347 = scalar_select %p346, %s25, 0
      %s348 = sadd.s32 %s347, %s345
      %s349 = smul.addr %s343, 2
      %s350 = sadd.s32 %s348, %s349
      %s351 = smul.addr %s350, 4
      %s352 = scalar_lea.vmem %s5, %s351
      %s353 = smul.u32 2, %s23
      %p354 = scmp.lt.s32.totalorder %s24, 1
      %s355 = scalar_select %p354, %s24, 1
      %p356 = scmp.lt.s32.totalorder %s23, 0
      %s357 = scalar_select %p356, %s23, 0
      %p358 = scmp.lt.s32.totalorder %s25, 0
      %s359 = scalar_select %p358, %s25, 0
      %s360 = sadd.s32 %s359, %s357
      %s361 = sadd.s32 %s360, %s355
      %s362 = smul.addr %s361, 8
      %s363 = scalar_lea.vmem %s6, %s362
      %v365 = vld [vmem:[%s332] sm:$0xf]
      %v366 = vld [vmem:[%s332 + $0x4] sm:$0xf]
      %v367 = vunpack.c.l.bf16 %v365
      %v368 = vunpack.c.l.bf16 %v366
      %v369 = vld [vmem:[%s3] sm:$0x1]
      %v371 = vlaneseq
      %v372 = vshrl.u32 %v371, 7
      %v373 = vsub.s32 0, %v372
      %v374 = vrot.slane %v369, %v373
      %v376 = vmul.f32 %v367, %v374
      %v377 = vmul.f32 %v368, %v374
      %v378 = vld [vmem:[%s4] sm:$0x1]
      %v380 = vlaneseq
      %v381 = vshrl.u32 %v380, 7
      %v382 = vsub.s32 0, %v381
      %v383 = vrot.slane %v378, %v382
      %v385 = vadd.f32 %v376, %v383
      %v386 = vadd.f32 %v377, %v383
      %v387 = vmax.f32 %v385, 0.0
      %v388 = vmax.f32 %v386, 0.0
      %v389 = vld [vmem:[%s337] sm:$0xf]
      %v390 = vld [vmem:[%s337 + $0x4] sm:$0xf]
      %v391 = vld [vmem:[%s337 + $0x8] sm:$0xf]
      %v392 = vld [vmem:[%s337 + $0xc] sm:$0xf]
      %v393 = vld [vmem:[%s337 + $0x10] sm:$0xf]
      %v394 = vld [vmem:[%s337 + $0x14] sm:$0xf]
      %v395 = vld [vmem:[%s337 + $0x18] sm:$0xf]
      %v396 = vld [vmem:[%s337 + $0x1c] sm:$0xf]
      %v397 = vld [vmem:[%s340] sm:$0x1]
      %v398 = vpack.c.bf16 %v388, %v387
      %v400 = vlaneseq
      %v401 = vshrl.u32 %v400, 7
      %v402 = vsub.s32 0, %v401
      %v403 = vrot.slane %v397, %v402
      %v413 = vunpack.c.l.b16 %v389
      %v414 = vunpack.c.l.b16 %v390
      %v415 = vunpack.c.l.b16 %v391
      %v416 = vunpack.c.l.b16 %v392
      %v417 = vunpack.c.l.b16 %v393
      %v418 = vunpack.c.l.b16 %v394
      %v419 = vunpack.c.l.b16 %v395
      %v420 = vunpack.c.l.b16 %v396
      %v421 = vpack.c.b16 %v414, %v413
      %v422 = vpack.c.b16 %v416, %v415
      %v423 = vpack.c.b16 %v418, %v417
      %v424 = vpack.c.b16 %v420, %v419
      %vm429 = vcmask 523264
      %v431 = vsel %vm429, %v398, 0
      %433 = vmatprep.subr.bf16.mxu0 0
      %434 = vmatpush1.bf16.msra.mxu0 0
      %435 = vmatprep.subr.bf16.mxu0 0
      %436 = vmatpush1.bf16.msra.mxu0 0
      %437 = vmatprep.subr.bf16.mxu0 0
      %438 = vmatpush1.bf16.msra.mxu0 0
      %439 = vmatprep.subr.bf16.mxu0 0
      %440 = vmatpush1.bf16.msra.mxu0 0
      %441 = vmatprep.subr.bf16.mxu0 0
      %442 = vmatpush1.bf16.msra.mxu0 %v424
      %443 = vmatprep.subr.bf16.mxu0 0
      %444 = vmatpush1.bf16.msra.mxu0 %v423
      %445 = vmatprep.subr.bf16.mxu0 0
      %446 = vmatpush1.bf16.msra.mxu0 %v422
      %447 = vmatprep.subr.bf16.mxu0 0
      %448 = vmatpush1.bf16.msra.mxu0 %v421
      %449 = vmatprep.subr.bf16.mxu0 0
      %450 = vmatpush2.bf16.msra.mxu0 0
      %451 = vmatprep.subr.bf16.mxu0 0
      %452 = vmatpush2.bf16.msra.mxu0 0
      %453 = vmatprep.subr.bf16.mxu0 0
      %454 = vmatpush2.bf16.msra.mxu0 0
      %455 = vmatprep.subr.bf16.mxu0 0
      %456 = vmatpush2.bf16.msra.mxu0 0
      %457 = vmatprep.subr.bf16.mxu0 0
      %458 = vmatpush2.bf16.msra.mxu0 0
      %459 = vmatprep.subr.bf16.mxu0 0
      %460 = vmatpush2.bf16.msra.mxu0 0
      %461 = vmatprep.subr.bf16.mxu0 0
      %462 = vmatpush2.bf16.msra.mxu0 0
      %463 = vmatprep.subr.bf16.mxu0 0
      %464 = vmatpush2.bf16.msra.mxu0 0
      %465 = vmatprep.mubr.bf16.mxu0 0
      %466 = vmatmul.mubr.bf16.gmra.mxu0 %v431
      %v467 = vpop.f32.mrf.mxu0
      %v468 = vadd.f32 %v403, %v467
      %v469 = vpop.f32.mrf.mxu0
      %v470 = vpop.f32.mrf.mxu0
      %v471 = vadd.f32 %v403, %v470
      %v472 = vpop.f32.mrf.mxu0
      %473 = vdwg.mxu0
      %v474 = vadd.f32 %v468, %v471
      %v475 = vrot.slane %v474, 4
      %v476 = vadd.f32 %v474, %v475
      %v477 = vrot.slane %v476, 2
      %v478 = vadd.f32 %v476, %v477
      %v479 = vrot.slane %v478, 1
      %v480 = vadd.f32 %v478, %v479
      %v481 = vmul.f32 %v480, 0.0625
      %v482 = vsub.f32 %v468, %v481
      %v483 = vsub.f32 %v471, %v481
      %v484 = vmul.f32 %v482, %v482
      %v485 = vmul.f32 %v483, %v483
      %v486 = vadd.f32 %v484, %v485
      %v487 = vrot.slane %v486, 4
      %v488 = vadd.f32 %v486, %v487
      %v489 = vrot.slane %v488, 2
      %v490 = vadd.f32 %v488, %v489
      %v491 = vrot.slane %v490, 1
      %v492 = vadd.f32 %v490, %v491
      %v493 = vpack.c.bf16 %v471, %v468
      %v495 = vunpack.c.l.b16 %v493
      %v496 = vunpack.c.h.b16 %v493
      %v497 = vpack.c.b16 %v495, %v495
      %v498 = vpack.c.b16 %v496, %v496
      %501 = vst [vmem:[%s352] sm:$0xf] %v497
      %502 = vst [vmem:[%s352 + $0x4] sm:$0xf] %v498
      %vm503 = vcmask 1040384
      %v504 = vsel %vm503, %v480, %v492
      %vm505 = vcmask 1041408
      %v506 = vsel %vm505, %v504, 0.0
      %507 = vst [vmem:[%s363] sm:$0xff] %v506
      %s508 = smul.u32 2, %s23
      %p509 = scmp.lt.s32.totalorder %s24, 1
      %s510 = scalar_select %p509, %s24, 1
      %p511 = scmp.lt.s32.totalorder %s508, 1
      %s512 = scalar_select %p511, %s508, 1
      %p513 = scmp.lt.s32.totalorder %s25, 0
      %s514 = scalar_select %p513, %s25, 0
      %s515 = sadd.s32 %s514, %s512
      %s516 = smul.addr %s510, 2
      %s517 = sadd.s32 %s515, %s516
      %s518 = smul.addr %s517, 4
      %s519 = scalar_lea.vmem %s5, %s518
      %p520 = scmp.lt.s32.totalorder %s24, 1
      %s521 = scalar_select %p520, %s24, 1
      %p522 = scmp.lt.s32.totalorder %s23, 0
      %s523 = scalar_select %p522, %s23, 0
      %p524 = scmp.lt.s32.totalorder %s25, 0
      %s525 = scalar_select %p524, %s25, 0
      %s526 = sadd.s32 %s525, %s523
      %s527 = sadd.s32 %s526, %s521
      %s528 = smul.addr %s527, 8
      %s529 = scalar_lea.vmem %s6, %s528
      // Predicated region
      $region41: #{point_cloud_global_embedding.14} parent=39 // pred_check
        %p530 = pneg %p181
      $region42: #{point_cloud_global_embedding.14} parent=39 // pred_check_branch
        %532 = sbr.rel (%p530) target = $region44
      $region43: #{point_cloud_global_embedding.14} parent=39 // pred_region
        %s533 = smul.u32 2, %s23
      $region44: #{point_cloud_global_embedding.14} parent=39 // pred_fallthru
        _
      // Predicated region
      $region45: #{point_cloud_global_embedding.14} parent=39 // pred_check
        %p534 = pneg %p211
      $region46: #{point_cloud_global_embedding.14} parent=39 // pred_check_branch
        %536 = sbr.rel (%p534) target = $region48
      $region47: #{point_cloud_global_embedding.14} parent=39 // pred_region
        _
      $region48: #{point_cloud_global_embedding.14} parent=39 // pred_fallthru
        _
    $region40: #{point_cloud_global_embedding.14} parent=5 // pred_fallthru
      _
    %p537 = scmp.le.s32.totalorder 2, %s13
    // Predicated region
    $region49: #{point_cloud_global_embedding.14} parent=5 // pred_check
      %p538 = pneg %p537
    $region50: #{point_cloud_global_embedding.14} parent=5 // pred_check_branch
      %540 = sbr.rel (%p538) target = $region52
    $region51: #{point_cloud_global_embedding.14} parent=5 // pred_region
      %s541 = ssub.s32 %s13, 2
      // Predicated region
      $region53: #{point_cloud_global_embedding.14} parent=51 // pred_check
        %p542 = pneg %p187
      $region54: #{point_cloud_global_embedding.14} parent=51 // pred_check_branch
        %544 = sbr.rel (%p542) target = $region56
      $region55: #{point_cloud_global_embedding.14} parent=51 // pred_region
        %s545 = smul.u32 2, %s26
        %p546 = scmp.lt.s32.totalorder %s27, 1
        %s547 = scalar_select %p546, %s27, 1
        %p548 = scmp.lt.s32.totalorder %s545, 1
        %s549 = scalar_select %p548, %s545, 1
        %p550 = scmp.lt.s32.totalorder %s28, 0
        %s551 = scalar_select %p550, %s28, 0
        %s552 = sadd.s32 %s551, %s549
        %s553 = smul.addr %s547, 2
        %s554 = sadd.s32 %s552, %s553
        %s555 = smul.addr %s554, 4
        %s556 = scalar_lea.vmem %s5, %s555
      $region56: #{point_cloud_global_embedding.14} parent=51 // pred_fallthru
        _
      // Predicated region
      $region57: #{point_cloud_global_embedding.14} parent=51 // pred_check
        %p557 = pneg %p217
      $region58: #{point_cloud_global_embedding.14} parent=51 // pred_check_branch
        %559 = sbr.rel (%p557) target = $region60
      $region59: #{point_cloud_global_embedding.14} parent=51 // pred_region
        %p560 = scmp.lt.s32.totalorder %s27, 1
        %s561 = scalar_select %p560, %s27, 1
        %p562 = scmp.lt.s32.totalorder %s26, 0
        %s563 = scalar_select %p562, %s26, 0
        %p564 = scmp.lt.s32.totalorder %s28, 0
        %s565 = scalar_select %p564, %s28, 0
        %s566 = sadd.s32 %s565, %s563
        %s567 = sadd.s32 %s566, %s561
        %s568 = smul.addr %s567, 8
        %s569 = scalar_lea.vmem %s6, %s568
      $region60: #{point_cloud_global_embedding.14} parent=51 // pred_fallthru
        _
    $region52: #{point_cloud_global_embedding.14} parent=5 // pred_fallthru
      _
  $region6: #{point_cloud_global_embedding.14} parent=0 // loop_footer
    %s17 = sadd.s32 1, %s13
  $region7: #{point_cloud_global_embedding.14} parent=0 // loop_footer_branch
    %12 = sbr.rel target = $region3
  $region8: #{point_cloud_global_embedding.14} parent=0 // loop_exit
    _

// kernel: point_cloud_global_embedding.15
$region0: #{point_cloud_global_embedding.15}
  #allocation0 [shape = 'u32[]', space=smem, size = 0x4, offset = 0x4, fixed_abs, tag = 'smem constant byte address 0x4 - core index']
  #allocation1 [shape = 'u32[144,128]{1,0:T(1,128)}', space=vmem, size = 0x12000, scoped, tag = 'internal scratch']
  %s0 = inlined_call_operand.vmem [shape: bf16[2,16,128], index: 0, kind: input, shape index: {}]
  %s1 = inlined_call_operand.vmem [shape: bf16[1,128,1024], index: 1, kind: input, shape index: {}]
  %s2 = inlined_call_operand.vmem [shape: f32[1,1024], index: 2, kind: input, shape index: {}]
  %s3 = inlined_call_operand.vmem [shape: f32[1,128], index: 3, kind: input, shape index: {}]
  %s4 = inlined_call_operand.vmem [shape: f32[1,128], index: 4, kind: input, shape index: {}]
  %s5 = inlined_call_operand.vmem [shape: f32[2,1,8,1024], index: 5, kind: output, shape index: {}]
  %s6 = sld [smem:[#allocation0]]
  $region53: #{point_cloud_global_embedding.15} parent=0
    _
  %s8 = ssub.s32 1, %s6
  %s9 = scalar_select 0, %s8, %s6
  loop: start=0, step=1, limit=4
  $region2: #{point_cloud_global_embedding.15} parent=0 // loop_pre_header
    _
  $region3: #{point_cloud_global_embedding.15} parent=0 // loop_header
    %s11 = sphi 0, %s15
    %p12 = scmp.ge.s32.totalorder %s11, 4
    %s18 = sphi 0, %s37
    %s19 = sphi 0, %s33
    %s20 = sphi 0, %s29
    %s21 = sphi 0, %s18
    %s22 = sphi 0, %s19
    %s23 = sphi 0, %s20
    %s24 = sphi 0, %s21
    %s25 = sphi 0, %s22
    %s26 = sphi 0, %s23
    %s42 = sphi 0, %s44
    %s45 = sphi 0, %s42
    %s46 = sphi 0, %s45
    %s62 = sphi 0, %s46
    %s68 = sphi 0, %s70
    %s71 = sphi 0, %s68
    %s72 = sphi 0, %s71
    %s88 = sphi 0, %s72
    %s94 = sphi 0, %s96
    %s97 = sphi 0, %s94
    %s98 = sphi 0, %s97
    %s114 = sphi 0, %s98
    %s118 = sphi 0, %s118
    %s120 = sphi 0, %s118
    %s121 = sphi 0, %s120
    %s135 = sphi 0, %s121
    %s139 = sphi 0, %s139
    %s141 = sphi 0, %s139
    %s142 = sphi 0, %s141
    %s156 = sphi 0, %s142
    %s166 = sphi 0, %s168
    %s169 = sphi 0, %s166
    %s170 = sphi 0, %s169
    %s186 = sphi 0, %s170
  $region4: #{point_cloud_global_embedding.15} parent=0 // loop_header_branch
    %14 = sbr.rel (%p12) target = $region8
  $region5: #{point_cloud_global_embedding.15} parent=0 // loop_body
    %s16 = ssub.s32 %s11, 1
    %s17 = ssub.s32 %s11, 2
    %s27 = sadd.s32 1, %s20
    %p28 = scmp.ge.s32.totalorder %s27, 1
    %s29 = scalar_select %p28, 0, %s27
    %s30 = sadd.s32 1, %s19
    %s31 = scalar_select %p28, %s30, %s19
    %p32 = scmp.ge.s32.totalorder %s31, 2
    %s33 = scalar_select %p32, 0, %s31
    %s34 = sadd.s32 1, %s18
    %s35 = scalar_select %p32, %s34, %s18
    %p36 = scmp.ge.s32.totalorder %s35, 1
    %s37 = scalar_select %p36, 0, %s35
    %s38 = ssub.s32 %s19, %s33
    %s39 = ssub.s32 %s18, %s37
    %s40 = sor.u32 %s38, %s39
    %p41 = scmp.eq.s32.totalorder %s40, 0
    %s43 = sadd.s32 %s42, 1
    %s44 = scalar_select %p41, %s42, %s43
    %p47 = pneg %p41
    %p48 = scmp.eq.s32.totalorder %s11, 1
    %p49 = por %p47, %p48
    %p50 = scmp.ne.s32.totalorder %s42, %s45
    %p51 = scmp.eq.s32.totalorder %s11, 0
    %p52 = por %p50, %p51
    %p53 = scmp.ne.s32.totalorder %s42, %s45
    %p54 = scmp.eq.s32.totalorder %s16, 1
    %p55 = por %p53, %p54
    %p56 = scmp.ne.s32.totalorder %s45, %s46
    %p57 = scmp.eq.s32.totalorder %s16, 0
    %p58 = por %p56, %p57
    %p59 = scmp.ne.s32.totalorder %s45, %s46
    %p60 = scmp.eq.s32.totalorder %s17, 1
    %p61 = por %p59, %p60
    %p63 = scmp.ne.s32.totalorder %s46, %s62
    %p64 = scmp.eq.s32.totalorder %s17, 0
    %p65 = por %p63, %p64
    %s66 = ssub.s32 %s20, %s29
    %p67 = scmp.eq.s32.totalorder %s66, 0
    %s69 = sadd.s32 %s68, 1
    %s70 = scalar_select %p67, %s68, %s69
    %p73 = pneg %p67
    %p74 = scmp.eq.s32.totalorder %s11, 1
    %p75 = por %p73, %p74
    %p76 = scmp.ne.s32.totalorder %s68, %s71
    %p77 = scmp.eq.s32.totalorder %s11, 0
    %p78 = por %p76, %p77
    %p79 = scmp.ne.s32.totalorder %s68, %s71
    %p80 = scmp.eq.s32.totalorder %s16, 1
    %p81 = por %p79, %p80
    %p82 = scmp.ne.s32.totalorder %s71, %s72
    %p83 = scmp.eq.s32.totalorder %s16, 0
    %p84 = por %p82, %p83
    %p85 = scmp.ne.s32.totalorder %s71, %s72
    %p86 = scmp.eq.s32.totalorder %s17, 1
    %p87 = por %p85, %p86
    %p89 = scmp.ne.s32.totalorder %s72, %s88
    %p90 = scmp.eq.s32.totalorder %s17, 0
    %p91 = por %p89, %p90
    %s92 = ssub.s32 %s20, %s29
    %p93 = scmp.eq.s32.totalorder %s92, 0
    %s95 = sadd.s32 %s94, 1
    %s96 = scalar_select %p93, %s94, %s95
    %p99 = pneg %p93
    %p100 = scmp.eq.s32.totalorder %s11, 1
    %p101 = por %p99, %p100
    %p102 = scmp.ne.s32.totalorder %s94, %s97
    %p103 = scmp.eq.s32.totalorder %s11, 0
    %p104 = por %p102, %p103
    %p105 = scmp.ne.s32.totalorder %s94, %s97
    %p106 = scmp.eq.s32.totalorder %s16, 1
    %p107 = por %p105, %p106
    %p108 = scmp.ne.s32.totalorder %s97, %s98
    %p109 = scmp.eq.s32.totalorder %s16, 0
    %p110 = por %p108, %p109
    %p111 = scmp.ne.s32.totalorder %s97, %s98
    %p112 = scmp.eq.s32.totalorder %s17, 1
    %p113 = por %p111, %p112
    %p115 = scmp.ne.s32.totalorder %s98, %s114
    %p116 = scmp.eq.s32.totalorder %s17, 0
    %p117 = por %p115, %p116
    %s119 = sadd.s32 %s118, 1
    %p122 = scmp.eq.s32.totalorder %s11, 1
    %p123 = scmp.ne.s32.totalorder %s118, %s120
    %p124 = scmp.eq.s32.totalorder %s11, 0
    %p125 = por %p123, %p124
    %p126 = scmp.ne.s32.totalorder %s118, %s120
    %p127 = scmp.eq.s32.totalorder %s16, 1
    %p128 = por %p126, %p127
    %p129 = scmp.ne.s32.totalorder %s120, %s121
    %p130 = scmp.eq.s32.totalorder %s16, 0
    %p131 = por %p129, %p130
    %p132 = scmp.ne.s32.totalorder %s120, %s121
    %p133 = scmp.eq.s32.totalorder %s17, 1
    %p134 = por %p132, %p133
    %p136 = scmp.ne.s32.totalorder %s121, %s135
    %p137 = scmp.eq.s32.totalorder %s17, 0
    %p138 = por %p136, %p137
    %s140 = sadd.s32 %s139, 1
    %p143 = scmp.eq.s32.totalorder %s11, 1
    %p144 = scmp.ne.s32.totalorder %s139, %s141
    %p145 = scmp.eq.s32.totalorder %s11, 0
    %p146 = por %p144, %p145
    %p147 = scmp.ne.s32.totalorder %s139, %s141
    %p148 = scmp.eq.s32.totalorder %s16, 1
    %p149 = por %p147, %p148
    %p150 = scmp.ne.s32.totalorder %s141, %s142
    %p151 = scmp.eq.s32.totalorder %s16, 0
    %p152 = por %p150, %p151
    %p153 = scmp.ne.s32.totalorder %s141, %s142
    %p154 = scmp.eq.s32.totalorder %s17, 1
    %p155 = por %p153, %p154
    %p157 = scmp.ne.s32.totalorder %s142, %s156
    %p158 = scmp.eq.s32.totalorder %s17, 0
    %p159 = por %p157, %p158
    %s160 = ssub.s32 %s19, %s33
    %s161 = ssub.s32 %s18, %s37
    %s162 = sor.u32 %s160, %s161
    %s163 = ssub.s32 %s20, %s29
    %s164 = sor.u32 %s162, %s163
    %p165 = scmp.eq.s32.totalorder %s164, 0
    %s167 = sadd.s32 %s166, 1
    %s168 = scalar_select %p165, %s166, %s167
    %p171 = pneg %p165
    %p172 = scmp.eq.s32.totalorder %s11, 1
    %p173 = por %p171, %p172
    %p174 = scmp.ne.s32.totalorder %s166, %s169
    %p175 = scmp.eq.s32.totalorder %s11, 0
    %p176 = por %p174, %p175
    %p177 = scmp.ne.s32.totalorder %s166, %s169
    %p178 = scmp.eq.s32.totalorder %s16, 1
    %p179 = por %p177, %p178
    %p180 = scmp.ne.s32.totalorder %s169, %s170
    %p181 = scmp.eq.s32.totalorder %s16, 0
    %p182 = por %p180, %p181
    %p183 = scmp.ne.s32.totalorder %s169, %s170
    %p184 = scmp.eq.s32.totalorder %s17, 1
    %p185 = por %p183, %p184
    %p187 = scmp.ne.s32.totalorder %s170, %s186
    %p188 = scmp.eq.s32.totalorder %s17, 0
    %p189 = por %p187, %p188
    %p190 = scmp.le.s32.totalorder 1, %s11
    %p191 = scmp.lt.s32.totalorder %s11, 3
    %p192 = pnand %p190, %p191
    %p193 = pneg %p192
    // Predicated region
    $region9: #{point_cloud_global_embedding.15} parent=5 // pred_check
      _
    $region10: #{point_cloud_global_embedding.15} parent=5 // pred_check_branch
      %195 = sbr.rel (%p192) target = $region12
    $region11: #{point_cloud_global_embedding.15} parent=5 // pred_region
      %s196 = ssub.s32 %s11, 1
      // Predicated region
      $region13: #{point_cloud_global_embedding.15} parent=11 // pred_check
        %p197 = pneg %p84
      $region14: #{point_cloud_global_embedding.15} parent=11 // pred_check_branch
        %199 = sbr.rel (%p197) target = $region16
      $region15: #{point_cloud_global_embedding.15} parent=11 // pred_region
        %s200 = smul.u32 8, %s23
        %p201 = scmp.lt.s32.totalorder %s200, 7
        %s202 = scalar_select %p201, %s200, 7
        %s203 = smul.addr %s202, 4
        %s204 = scalar_lea.vmem %s1, %s203
        %s205 = smul.u32 8, %s23
      $region16: #{point_cloud_global_embedding.15} parent=11 // pred_fallthru
        _
      // Predicated region
      $region17: #{point_cloud_global_embedding.15} parent=11 // pred_check
        %p206 = pneg %p110
      $region18: #{point_cloud_global_embedding.15} parent=11 // pred_check_branch
        %208 = sbr.rel (%p206) target = $region20
      $region19: #{point_cloud_global_embedding.15} parent=11 // pred_region
        %s209 = smul.u32 8, %s23
        %p210 = scmp.lt.s32.totalorder %s209, 7
        %s211 = scalar_select %p210, %s209, 7
        %s212 = scalar_lea.vmem %s2, %s211
        %s213 = smul.u32 8, %s23
      $region20: #{point_cloud_global_embedding.15} parent=11 // pred_fallthru
        _
      // Predicated region
      $region21: #{point_cloud_global_embedding.15} parent=11 // pred_check
        %p214 = pneg %p131
      $region22: #{point_cloud_global_embedding.15} parent=11 // pred_check_branch
        %216 = sbr.rel (%p214) target = $region24
      $region23: #{point_cloud_global_embedding.15} parent=11 // pred_region
        _
      $region24: #{point_cloud_global_embedding.15} parent=11 // pred_fallthru
        _
      // Predicated region
      $region25: #{point_cloud_global_embedding.15} parent=11 // pred_check
        %p217 = pneg %p152
      $region26: #{point_cloud_global_embedding.15} parent=11 // pred_check_branch
        %219 = sbr.rel (%p217) target = $region28
      $region27: #{point_cloud_global_embedding.15} parent=11 // pred_region
        _
      $region28: #{point_cloud_global_embedding.15} parent=11 // pred_fallthru
        _
    $region12: #{point_cloud_global_embedding.15} parent=5 // pred_fallthru
      _
    %p220 = scmp.lt.s32.totalorder %s11, 2
    // Predicated region
    $region29: #{point_cloud_global_embedding.15} parent=5 // pred_check
      %p221 = pneg %p220
    $region30: #{point_cloud_global_embedding.15} parent=5 // pred_check_branch
      %223 = sbr.rel (%p221) target = $region32
    $region31: #{point_cloud_global_embedding.15} parent=5 // pred_region
      // Predicated region
      $region33: #{point_cloud_global_embedding.15} parent=31 // pred_check
        %p224 = pneg %p52
      $region34: #{point_cloud_global_embedding.15} parent=31 // pred_check_branch
        %226 = sbr.rel (%p224) target = $region36
      $region35: #{point_cloud_global_embedding.15} parent=31 // pred_region
        %s227 = smul.u32 2, %s18
        %p228 = scmp.lt.s32.totalorder %s19, 1
        %s229 = scalar_select %p228, %s19, 1
        %p230 = scmp.lt.s32.totalorder %s227, 1
        %s231 = scalar_select %p230, %s227, 1
        %s232 = smul.addr %s229, 2
        %s233 = sadd.s32 %s231, %s232
        %s234 = smul.addr %s233, 4
        %s235 = scalar_lea.vmem %s0, %s234
        %s236 = smul.u32 2, %s18
      $region36: #{point_cloud_global_embedding.15} parent=31 // pred_fallthru
        _
    $region32: #{point_cloud_global_embedding.15} parent=5 // pred_fallthru
      _
    %p237 = scmp.le.s32.totalorder 1, %s11
    %p238 = scmp.lt.s32.totalorder %s11, 3
    %p239 = pnand %p237, %p238
    %p240 = pneg %p239
    // Predicated region
    $region37: #{point_cloud_global_embedding.15} parent=5 // pred_check
      _
    $region38: #{point_cloud_global_embedding.15} parent=5 // pred_check_branch
      %242 = sbr.rel (%p239) target = $region40
    $region39: #{point_cloud_global_embedding.15} parent=5 // pred_region
      %s243 = ssub.s32 %s11, 1
      %s244 = smul.u32 2, %s21
      %p245 = scmp.lt.s32.totalorder %s22, 1
      %s246 = scalar_select %p245, %s22, 1
      %p247 = scmp.lt.s32.totalorder %s244, 1
      %s248 = scalar_select %p247, %s244, 1
      %s249 = smul.addr %s246, 2
      %s250 = sadd.s32 %s248, %s249
      %s251 = smul.addr %s250, 4
      %s252 = scalar_lea.vmem %s0, %s251
      %p253 = pneg %p58
      %p254 = pneg %p55
      %s255 = smul.u32 8, %s23
      %p256 = scmp.lt.s32.totalorder %s255, 7
      %s257 = scalar_select %p256, %s255, 7
      %s258 = smul.addr %s257, 4
      %s259 = scalar_lea.vmem %s1, %s258
      %p260 = pneg %p84
      %p261 = pneg %p81
      %s262 = smul.u32 8, %s23
      %p263 = scmp.lt.s32.totalorder %s262, 7
      %s264 = scalar_select %p263, %s262, 7
      %s265 = scalar_lea.vmem %s2, %s264
      %p266 = pneg %p110
      %p267 = pneg %p107
      %p268 = pneg %p131
      %p269 = pneg %p128
      %p270 = pneg %p152
      %p271 = pneg %p149
      %p272 = pneg %p182
      %p273 = pneg %p179
      %s274 = smul.u32 8, %s23
      %p275 = scmp.lt.s32.totalorder %s22, 1
      %s276 = scalar_select %p275, %s22, 1
      %p277 = scmp.lt.s32.totalorder %s21, 0
      %s278 = scalar_select %p277, %s21, 0
      %p279 = scmp.lt.s32.totalorder %s274, 7
      %s280 = scalar_select %p279, %s274, 7
      %s281 = smul.addr %s278, 8
      %s282 = sadd.s32 %s280, %s281
      %s283 = smul.addr %s276, 8
      %s284 = sadd.s32 %s282, %s283
      %s285 = smul.addr %s284, 8
      %s286 = scalar_lea.vmem %s5, %s285
      %s287 = smul.u32 2, %s21
      %p288 = scmp.lt.s32.totalorder %s22, 1
      %s289 = scalar_select %p288, %s22, 1
      %p290 = scmp.lt.s32.totalorder %s287, 1
      %s291 = scalar_select %p290, %s287, 1
      %s292 = smul.addr %s289, 2
      %s293 = sadd.s32 %s291, %s292
      %s294 = smul.addr %s293, 4
      %s295 = scalar_lea.vmem %s0, %s294
      %s296 = smul.u32 2, %s21
      %s297 = smul.u32 8, %s23
      %p298 = scmp.lt.s32.totalorder %s297, 7
      %s299 = scalar_select %p298, %s297, 7
      %s300 = smul.addr %s299, 4
      %s301 = scalar_lea.vmem %s1, %s300
      %s302 = smul.u32 8, %s23
      %s303 = smul.u32 8, %s23
      %p304 = scmp.lt.s32.totalorder %s303, 7
      %s305 = scalar_select %p304, %s303, 7
      %s306 = scalar_lea.vmem %s2, %s305
      %s307 = smul.u32 8, %s23
      %s308 = smul.u32 8, %s23
      %p309 = scmp.lt.s32.totalorder %s22, 1
      %s310 = scalar_select %p309, %s22, 1
      %p311 = scmp.lt.s32.totalorder %s21, 0
      %s312 = scalar_select %p311, %s21, 0
      %p313 = scmp.lt.s32.totalorder %s308, 7
      %s314 = scalar_select %p313, %s308, 7
      %s315 = smul.addr %s312, 8
      %s316 = sadd.s32 %s314, %s315
      %s317 = smul.addr %s310, 8
      %s318 = sadd.s32 %s316, %s317
      %s319 = smul.addr %s318, 8
      %s320 = scalar_lea.vmem %s5, %s319
      %s321 = smul.u32 8, %s23
      %v323 = vld [vmem:[%s295] sm:$0xf]
      %v324 = vld [vmem:[%s295 + $0x4] sm:$0xf]
      %v325 = vunpack.c.l.bf16 %v323
      %v326 = vunpack.c.l.bf16 %v324
      %v327 = vld [vmem:[%s3] sm:$0x1]
      %v329 = vlaneseq
      %v330 = vshrl.u32 %v329, 7
      %v331 = vsub.s32 0, %v330
      %v332 = vrot.slane %v327, %v331
      %v334 = vmul.f32 %v325, %v332
      %v335 = vmul.f32 %v326, %v332
      %v336 = vld [vmem:[%s4] sm:$0x1]
      %v338 = vlaneseq
      %v339 = vshrl.u32 %v338, 7
      %v340 = vsub.s32 0, %v339
      %v341 = vrot.slane %v336, %v340
      %v343 = vadd.f32 %v334, %v341
      %v344 = vadd.f32 %v335, %v341
      %v345 = vmax.f32 %v343, 0.0
      %v346 = vmax.f32 %v344, 0.0
      %v347 = vld [vmem:[%s301] sm:$0xff]
      %v348 = vld [vmem:[%s301 + $0x8] sm:$0xff]
      %v349 = vld [vmem:[%s301 + $0x10] sm:$0xff]
      %v350 = vld [vmem:[%s301 + $0x18] sm:$0xff]
      %v351 = vld [vmem:[%s301 + $0x20] sm:$0xff]
      %v352 = vld [vmem:[%s301 + $0x28] sm:$0xff]
      %v353 = vld [vmem:[%s301 + $0x30] sm:$0xff]
      %v354 = vld [vmem:[%s301 + $0x38] sm:$0xff]
      %v355 = vld [vmem:[%s301 + $0x40] sm:$0xff]
      %v356 = vld [vmem:[%s301 + $0x48] sm:$0xff]
      %v357 = vld [vmem:[%s301 + $0x50] sm:$0xff]
      %v358 = vld [vmem:[%s301 + $0x58] sm:$0xff]
      %v359 = vld [vmem:[%s301 + $0x60] sm:$0xff]
      %v360 = vld [vmem:[%s301 + $0x68] sm:$0xff]
      %v361 = vld [vmem:[%s301 + $0x70] sm:$0xff]
      %v362 = vld [vmem:[%s301 + $0x78] sm:$0xff]
      %v363 = vld [vmem:[%s301 + $0x80] sm:$0xff]
      %v364 = vld [vmem:[%s301 + $0x88] sm:$0xff]
      %v365 = vld [vmem:[%s301 + $0x90] sm:$0xff]
      %v366 = vld [vmem:[%s301 + $0x98] sm:$0xff]
      %v367 = vld [vmem:[%s301 + $0xa0] sm:$0xff]
      %v368 = vld [vmem:[%s301 + $0xa8] sm:$0xff]
      %v369 = vld [vmem:[%s301 + $0xb0] sm:$0xff]
      %v370 = vld [vmem:[%s301 + $0xb8] sm:$0xff]
      %v371 = vld [vmem:[%s301 + $0xc0] sm:$0xff]
      %v372 = vld [vmem:[%s301 + $0xc8] sm:$0xff]
      %v373 = vld [vmem:[%s301 + $0xd0] sm:$0xff]
      %v374 = vld [vmem:[%s301 + $0xd8] sm:$0xff]
      %v375 = vld [vmem:[%s301 + $0xe0] sm:$0xff]
      %v376 = vld [vmem:[%s301 + $0xe8] sm:$0xff]
      %v377 = vld [vmem:[%s301 + $0xf0] sm:$0xff]
      %v378 = vld [vmem:[%s301 + $0xf8] sm:$0xff]
      %v379 = vld [vmem:[%s301 + $0x100] sm:$0xff]
      %v380 = vld [vmem:[%s301 + $0x108] sm:$0xff]
      %v381 = vld [vmem:[%s301 + $0x110] sm:$0xff]
      %v382 = vld [vmem:[%s301 + $0x118] sm:$0xff]
      %v383 = vld [vmem:[%s301 + $0x120] sm:$0xff]
      %v384 = vld [vmem:[%s301 + $0x128] sm:$0xff]
      %v385 = vld [vmem:[%s301 + $0x130] sm:$0xff]
      %v386 = vld [vmem:[%s301 + $0x138] sm:$0xff]
      %v387 = vld [vmem:[%s301 + $0x140] sm:$0xff]
      %v388 = vld [vmem:[%s301 + $0x148] sm:$0xff]
      %v389 = vld [vmem:[%s301 + $0x150] sm:$0xff]
      %v390 = vld [vmem:[%s301 + $0x158] sm:$0xff]
      %v391 = vld [vmem:[%s301 + $0x160] sm:$0xff]
      %v392 = vld [vmem:[%s301 + $0x168] sm:$0xff]
      %v393 = vld [vmem:[%s301 + $0x170] sm:$0xff]
      %v394 = vld [vmem:[%s301 + $0x178] sm:$0xff]
      %v395 = vld [vmem:[%s301 + $0x180] sm:$0xff]
      %v396 = vld [vmem:[%s301 + $0x188] sm:$0xff]
      %v397 = vld [vmem:[%s301 + $0x190] sm:$0xff]
      %v398 = vld [vmem:[%s301 + $0x198] sm:$0xff]
      %v399 = vld [vmem:[%s301 + $0x1a0] sm:$0xff]
      %v400 = vld [vmem:[%s301 + $0x1a8] sm:$0xff]
      %v401 = vld [vmem:[%s301 + $0x1b0] sm:$0xff]
      %v402 = vld [vmem:[%s301 + $0x1b8] sm:$0xff]
      %v403 = vld [vmem:[%s301 + $0x1c0] sm:$0xff]
      %v404 = vld [vmem:[%s301 + $0x1c8] sm:$0xff]
      %v405 = vld [vmem:[%s301 + $0x1d0] sm:$0xff]
      %v406 = vld [vmem:[%s301 + $0x1d8] sm:$0xff]
      %v407 = vld [vmem:[%s301 + $0x1e0] sm:$0xff]
      %v408 = vld [vmem:[%s301 + $0x1e8] sm:$0xff]
      %v409 = vld [vmem:[%s301 + $0x1f0] sm:$0xff]
      %v410 = vld [vmem:[%s301 + $0x1f8] sm:$0xff]
      %v411 = vld [vmem:[%s306] sm:$0xff]
      %v412 = vpack.c.bf16 %v346, %v345
      %v414 = vlaneseq
      %v415 = vshrl.u32 %v414, 7
      %v416 = vsub.s32 0, %v415
      %v417 = vrot.slane %v411, %v416
      %v418 = vlaneseq
      %v419 = vshrl.u32 %v418, 7
      %v420 = vsub.s32 1, %v419
      %v421 = vrot.slane %v411, %v420
      %v422 = vlaneseq
      %v423 = vshrl.u32 %v422, 7
      %v424 = vsub.s32 2, %v423
      %v425 = vrot.slane %v411, %v424
      %v426 = vlaneseq
      %v427 = vshrl.u32 %v426, 7
      %v428 = vsub.s32 3, %v427
      %v429 = vrot.slane %v411, %v428
      %v430 = vlaneseq
      %v431 = vshrl.u32 %v430, 7
      %v432 = vsub.s32 4, %v431
      %v433 = vrot.slane %v411, %v432
      %v434 = vlaneseq
      %v435 = vshrl.u32 %v434, 7
      %v436 = vsub.s32 5, %v435
      %v437 = vrot.slane %v411, %v436
      %v438 = vlaneseq
      %v439 = vshrl.u32 %v438, 7
      %v440 = vsub.s32 6, %v439
      %v441 = vrot.slane %v411, %v440
      %v442 = vlaneseq
      %v443 = vshrl.u32 %v442, 7
      %v444 = vsub.s32 7, %v443
      %v445 = vrot.slane %v411, %v444
      %v518 = vunpack.c.l.b16 %v347
      %v519 = vunpack.c.h.b16 %v347
      %v520 = vunpack.c.l.b16 %v348
      %v521 = vunpack.c.h.b16 %v348
      %v522 = vunpack.c.l.b16 %v349
      %v523 = vunpack.c.h.b16 %v349
      %v524 = vunpack.c.l.b16 %v350
      %v525 = vunpack.c.h.b16 %v350
      %v526 = vunpack.c.l.b16 %v351
      %v527 = vunpack.c.h.b16 %v351
      %v528 = vunpack.c.l.b16 %v352
      %v529 = vunpack.c.h.b16 %v352
      %v530 = vunpack.c.l.b16 %v353
      %v531 = vunpack.c.h.b16 %v353
      %v532 = vunpack.c.l.b16 %v354
      %v533 = vunpack.c.h.b16 %v354
      %v534 = vunpack.c.l.b16 %v355
      %v535 = vunpack.c.h.b16 %v355
      %v536 = vunpack.c.l.b16 %v356
      %v537 = vunpack.c.h.b16 %v356
      %v538 = vunpack.c.l.b16 %v357
      %v539 = vunpack.c.h.b16 %v357
      %v540 = vunpack.c.l.b16 %v358
      %v541 = vunpack.c.h.b16 %v358
      %v542 = vunpack.c.l.b16 %v359
      %v543 = vunpack.c.h.b16 %v359
      %v544 = vunpack.c.l.b16 %v360
      %v545 = vunpack.c.h.b16 %v360
      %v546 = vunpack.c.l.b16 %v361
      %v547 = vunpack.c.h.b16 %v361
      %v548 = vunpack.c.l.b16 %v362
      %v549 = vunpack.c.h.b16 %v362
      %v550 = vunpack.c.l.b16 %v363
      %v551 = vunpack.c.h.b16 %v363
      %v552 = vunpack.c.l.b16 %v364
      %v553 = vunpack.c.h.b16 %v364
      %v554 = vunpack.c.l.b16 %v365
      %v555 = vunpack.c.h.b16 %v365
      %v556 = vunpack.c.l.b16 %v366
      %v557 = vunpack.c.h.b16 %v366
      %v558 = vunpack.c.l.b16 %v367
      %v559 = vunpack.c.h.b16 %v367
      %v560 = vunpack.c.l.b16 %v368
      %v561 = vunpack.c.h.b16 %v368
      %v562 = vunpack.c.l.b16 %v369
      %v563 = vunpack.c.h.b16 %v369
      %v564 = vunpack.c.l.b16 %v370
      %v565 = vunpack.c.h.b16 %v370
      %v566 = vunpack.c.l.b16 %v371
      %v567 = vunpack.c.h.b16 %v371
      %v568 = vunpack.c.l.b16 %v372
      %v569 = vunpack.c.h.b16 %v372
      %v570 = vunpack.c.l.b16 %v373
      %v571 = vunpack.c.h.b16 %v373
      %v572 = vunpack.c.l.b16 %v374
      %v573 = vunpack.c.h.b16 %v374
      %v574 = vunpack.c.l.b16 %v375
      %v575 = vunpack.c.h.b16 %v375
      %v576 = vunpack.c.l.b16 %v376
      %v577 = vunpack.c.h.b16 %v376
      %v578 = vunpack.c.l.b16 %v377
      %v579 = vunpack.c.h.b16 %v377
      %v580 = vunpack.c.l.b16 %v378
      %v581 = vunpack.c.h.b16 %v378
      %v582 = vunpack.c.l.b16 %v379
      %v583 = vunpack.c.h.b16 %v379
      %v584 = vunpack.c.l.b16 %v380
      %v585 = vunpack.c.h.b16 %v380
      %v586 = vunpack.c.l.b16 %v381
      %v587 = vunpack.c.h.b16 %v381
      %v588 = vunpack.c.l.b16 %v382
      %v589 = vunpack.c.h.b16 %v382
      %v590 = vunpack.c.l.b16 %v383
      %v591 = vunpack.c.h.b16 %v383
      %v592 = vunpack.c.l.b16 %v384
      %v593 = vunpack.c.h.b16 %v384
      %v594 = vunpack.c.l.b16 %v385
      %v595 = vunpack.c.h.b16 %v385
      %v596 = vunpack.c.l.b16 %v386
      %v597 = vunpack.c.h.b16 %v386
      %v598 = vunpack.c.l.b16 %v387
      %v599 = vunpack.c.h.b16 %v387
      %v600 = vunpack.c.l.b16 %v388
      %v601 = vunpack.c.h.b16 %v388
      %v602 = vunpack.c.l.b16 %v389
      %v603 = vunpack.c.h.b16 %v389
      %v604 = vunpack.c.l.b16 %v390
      %v605 = vunpack.c.h.b16 %v390
      %v606 = vunpack.c.l.b16 %v391
      %v607 = vunpack.c.h.b16 %v391
      %v608 = vunpack.c.l.b16 %v392
      %v609 = vunpack.c.h.b16 %v392
      %v610 = vunpack.c.l.b16 %v393
      %v611 = vunpack.c.h.b16 %v393
      %v612 = vunpack.c.l.b16 %v394
      %v613 = vunpack.c.h.b16 %v394
      %v614 = vunpack.c.l.b16 %v395
      %v615 = vunpack.c.h.b16 %v395
      %v616 = vunpack.c.l.b16 %v396
      %v617 = vunpack.c.h.b16 %v396
      %v618 = vunpack.c.l.b16 %v397
      %v619 = vunpack.c.h.b16 %v397
      %v620 = vunpack.c.l.b16 %v398
      %v621 = vunpack.c.h.b16 %v398
      %v622 = vunpack.c.l.b16 %v399
      %v623 = vunpack.c.h.b16 %v399
      %v624 = vunpack.c.l.b16 %v400
      %v625 = vunpack.c.h.b16 %v400
      %v626 = vunpack.c.l.b16 %v401
      %v627 = vunpack.c.h.b16 %v401
      %v628 = vunpack.c.l.b16 %v402
      %v629 = vunpack.c.h.b16 %v402
      %v630 = vunpack.c.l.b16 %v403
      %v631 = vunpack.c.h.b16 %v403
      %v632 = vunpack.c.l.b16 %v404
      %v633 = vunpack.c.h.b16 %v404
      %v634 = vunpack.c.l.b16 %v405
      %v635 = vunpack.c.h.b16 %v405
      %v636 = vunpack.c.l.b16 %v406
      %v637 = vunpack.c.h.b16 %v406
      %v638 = vunpack.c.l.b16 %v407
      %v639 = vunpack.c.h.b16 %v407
      %v640 = vunpack.c.l.b16 %v408
      %v641 = vunpack.c.h.b16 %v408
      %v642 = vunpack.c.l.b16 %v409
      %v643 = vunpack.c.h.b16 %v409
      %v644 = vunpack.c.l.b16 %v410
      %v645 = vunpack.c.h.b16 %v410
      %v646 = vpack.c.b16 %v526, %v518
      %v647 = vpack.c.b16 %v527, %v519
      %v648 = vpack.c.b16 %v528, %v520
      %v649 = vpack.c.b16 %v529, %v521
      %v650 = vpack.c.b16 %v530, %v522
      %v651 = vpack.c.b16 %v531, %v523
      %v652 = vpack.c.b16 %v532, %v524
      %v653 = vpack.c.b16 %v533, %v525
      %v654 = vpack.c.b16 %v542, %v534
      %v655 = vpack.c.b16 %v543, %v535
      %v656 = vpack.c.b16 %v544, %v536
      %v657 = vpack.c.b16 %v545, %v537
      %v658 = vpack.c.b16 %v546, %v538
      %v659 = vpack.c.b16 %v547, %v539
      %v660 = vpack.c.b16 %v548, %v540
      %v661 = vpack.c.b16 %v549, %v541
      %v662 = vpack.c.b16 %v558, %v550
      %v663 = vpack.c.b16 %v559, %v551
      %v664 = vpack.c.b16 %v560, %v552
      %v665 = vpack.c.b16 %v561, %v553
      %v666 = vpack.c.b16 %v562, %v554
      %v667 = vpack.c.b16 %v563, %v555
      %v668 = vpack.c.b16 %v564, %v556
      %v669 = vpack.c.b16 %v565, %v557
      %v670 = vpack.c.b16 %v574, %v566
      %v671 = vpack.c.b16 %v575, %v567
      %v672 = vpack.c.b16 %v576, %v568
      %v673 = vpack.c.b16 %v577, %v569
      %v674 = vpack.c.b16 %v578, %v570
      %v675 = vpack.c.b16 %v579, %v571
      %v676 = vpack.c.b16 %v580, %v572
      %v677 = vpack.c.b16 %v581, %v573
      %v678 = vpack.c.b16 %v590, %v582
      %v679 = vpack.c.b16 %v591, %v583
      %v680 = vpack.c.b16 %v592, %v584
      %v681 = vpack.c.b16 %v593, %v585
      %v682 = vpack.c.b16 %v594, %v586
      %v683 = vpack.c.b16 %v595, %v587
      %v684 = vpack.c.b16 %v596, %v588
      %v685 = vpack.c.b16 %v597, %v589
      %v686 = vpack.c.b16 %v606, %v598
      %v687 = vpack.c.b16 %v607, %v599
      %v688 = vpack.c.b16 %v608, %v600
      %v689 = vpack.c.b16 %v609, %v601
      %v690 = vpack.c.b16 %v610, %v602
      %v691 = vpack.c.b16 %v611, %v603
      %v692 = vpack.c.b16 %v612, %v604
      %v693 = vpack.c.b16 %v613, %v605
      %v694 = vpack.c.b16 %v622, %v614
      %v695 = vpack.c.b16 %v623, %v615
      %v696 = vpack.c.b16 %v624, %v616
      %v697 = vpack.c.b16 %v625, %v617
      %v698 = vpack.c.b16 %v626, %v618
      %v699 = vpack.c.b16 %v627, %v619
      %v700 = vpack.c.b16 %v628, %v620
      %v701 = vpack.c.b16 %v629, %v621
      %v702 = vpack.c.b16 %v638, %v630
      %v703 = vpack.c.b16 %v639, %v631
      %v704 = vpack.c.b16 %v640, %v632
      %v705 = vpack.c.b16 %v641, %v633
      %v706 = vpack.c.b16 %v642, %v634
      %v707 = vpack.c.b16 %v643, %v635
      %v708 = vpack.c.b16 %v644, %v636
      %v709 = vpack.c.b16 %v645, %v637
      %774 = vmatprep.subr.bf16.mxu0 %v703
      %775 = vmatpush1.bf16.msra.mxu0 %v702
      %776 = vmatprep.subr.bf16.mxu0 %v695
      %777 = vmatpush1.bf16.msra.mxu0 %v694
      %778 = vmatprep.subr.bf16.mxu0 %v687
      %779 = vmatpush1.bf16.msra.mxu0 %v686
      %780 = vmatprep.subr.bf16.mxu0 %v679
      %781 = vmatpush1.bf16.msra.mxu0 %v678
      %782 = vmatprep.subr.bf16.mxu0 %v671
      %783 = vmatpush1.bf16.msra.mxu0 %v670
      %784 = vmatprep.subr.bf16.mxu0 %v663
      %785 = vmatpush1.bf16.msra.mxu0 %v662
      %786 = vmatprep.subr.bf16.mxu0 %v655
      %787 = vmatpush1.bf16.msra.mxu0 %v654
      %788 = vmatprep.subr.bf16.mxu0 %v647
      %789 = vmatpush1.bf16.msra.mxu0 %v646
      %790 = vmatprep.subr.bf16.mxu0 0
      %791 = vmatpush2.bf16.msra.mxu0 0
      %792 = vmatprep.subr.bf16.mxu0 0
      %793 = vmatpush2.bf16.msra.mxu0 0
      %794 = vmatprep.subr.bf16.mxu0 0
      %795 = vmatpush2.bf16.msra.mxu0 0
      %796 = vmatprep.subr.bf16.mxu0 0
      %797 = vmatpush2.bf16.msra.mxu0 0
      %798 = vmatprep.subr.bf16.mxu0 0
      %799 = vmatpush2.bf16.msra.mxu0 0
      %800 = vmatprep.subr.bf16.mxu0 0
      %801 = vmatpush2.bf16.msra.mxu0 0
      %802 = vmatprep.subr.bf16.mxu0 0
      %803 = vmatpush2.bf16.msra.mxu0 0
      %804 = vmatprep.subr.bf16.mxu0 0
      %805 = vmatpush2.bf16.msra.mxu0 0
      %806 = vmatprep.mubr.bf16.mxu0 0
      %807 = vmatmul.mubr.bf16.gmra.mxu0 %v412
      %v808 = vpop.f32.mrf.mxu0
      %v809 = vadd.f32 %v417, %v808
      %v810 = vpop.f32.mrf.mxu0
      %v811 = vadd.f32 %v421, %v810
      %v812 = vpop.f32.mrf.mxu0
      %v813 = vadd.f32 %v417, %v812
      %v814 = vpop.f32.mrf.mxu0
      %v815 = vadd.f32 %v421, %v814
      %816 = vdwg.mxu0
      %817 = vmatprep.subr.bf16.mxu0 %v705
      %818 = vmatpush1.bf16.msra.mxu0 %v704
      %819 = vmatprep.subr.bf16.mxu0 %v697
      %820 = vmatpush1.bf16.msra.mxu0 %v696
      %821 = vmatprep.subr.bf16.mxu0 %v689
      %822 = vmatpush1.bf16.msra.mxu0 %v688
      %823 = vmatprep.subr.bf16.mxu0 %v681
      %824 = vmatpush1.bf16.msra.mxu0 %v680
      %825 = vmatprep.subr.bf16.mxu0 %v673
      %826 = vmatpush1.bf16.msra.mxu0 %v672
      %827 = vmatprep.subr.bf16.mxu0 %v665
      %828 = vmatpush1.bf16.msra.mxu0 %v664
      %829 = vmatprep.subr.bf16.mxu0 %v657
      %830 = vmatpush1.bf16.msra.mxu0 %v656
      %831 = vmatprep.subr.bf16.mxu0 %v649
      %832 = vmatpush1.bf16.msra.mxu0 %v648
      %833 = vmatprep.subr.bf16.mxu0 0
      %834 = vmatpush2.bf16.msra.mxu0 0
      %835 = vmatprep.subr.bf16.mxu0 0
      %836 = vmatpush2.bf16.msra.mxu0 0
      %837 = vmatprep.subr.bf16.mxu0 0
      %838 = vmatpush2.bf16.msra.mxu0 0
      %839 = vmatprep.subr.bf16.mxu0 0
      %840 = vmatpush2.bf16.msra.mxu0 0
      %841 = vmatprep.subr.bf16.mxu0 0
      %842 = vmatpush2.bf16.msra.mxu0 0
      %843 = vmatprep.subr.bf16.mxu0 0
      %844 = vmatpush2.bf16.msra.mxu0 0
      %845 = vmatprep.subr.bf16.mxu0 0
      %846 = vmatpush2.bf16.msra.mxu0 0
      %847 = vmatprep.subr.bf16.mxu0 0
      %848 = vmatpush2.bf16.msra.mxu0 0
      %849 = vmatprep.mubr.bf16.mxu0 0
      %850 = vmatmul.mubr.bf16.gmra.mxu0 %v412
      %v851 = vpop.f32.mrf.mxu0
      %v852 = vadd.f32 %v425, %v851
      %v853 = vpop.f32.mrf.mxu0
      %v854 = vadd.f32 %v429, %v853
      %v855 = vpop.f32.mrf.mxu0
      %v856 = vadd.f32 %v425, %v855
      %v857 = vpop.f32.mrf.mxu0
      %v858 = vadd.f32 %v429, %v857
      %859 = vdwg.mxu0
      %860 = vmatprep.subr.bf16.mxu0 %v707
      %861 = vmatpush1.bf16.msra.mxu0 %v706
      %862 = vmatprep.subr.bf16.mxu0 %v699
      %863 = vmatpush1.bf16.msra.mxu0 %v698
      %864 = vmatprep.subr.bf16.mxu0 %v691
      %865 = vmatpush1.bf16.msra.mxu0 %v690
      %866 = vmatprep.subr.bf16.mxu0 %v683
      %867 = vmatpush1.bf16.msra.mxu0 %v682
      %868 = vmatprep.subr.bf16.mxu0 %v675
      %869 = vmatpush1.bf16.msra.mxu0 %v674
      %870 = vmatprep.subr.bf16.mxu0 %v667
      %871 = vmatpush1.bf16.msra.mxu0 %v666
      %872 = vmatprep.subr.bf16.mxu0 %v659
      %873 = vmatpush1.bf16.msra.mxu0 %v658
      %874 = vmatprep.subr.bf16.mxu0 %v651
      %875 = vmatpush1.bf16.msra.mxu0 %v650
      %876 = vmatprep.subr.bf16.mxu0 0
      %877 = vmatpush2.bf16.msra.mxu0 0
      %878 = vmatprep.subr.bf16.mxu0 0
      %879 = vmatpush2.bf16.msra.mxu0 0
      %880 = vmatprep.subr.bf16.mxu0 0
      %881 = vmatpush2.bf16.msra.mxu0 0
      %882 = vmatprep.subr.bf16.mxu0 0
      %883 = vmatpush2.bf16.msra.mxu0 0
      %884 = vmatprep.subr.bf16.mxu0 0
      %885 = vmatpush2.bf16.msra.mxu0 0
      %886 = vmatprep.subr.bf16.mxu0 0
      %887 = vmatpush2.bf16.msra.mxu0 0
      %888 = vmatprep.subr.bf16.mxu0 0
      %889 = vmatpush2.bf16.msra.mxu0 0
      %890 = vmatprep.subr.bf16.mxu0 0
      %891 = vmatpush2.bf16.msra.mxu0 0
      %892 = vmatprep.mubr.bf16.mxu0 0
      %893 = vmatmul.mubr.bf16.gmra.mxu0 %v412
      %v894 = vpop.f32.mrf.mxu0
      %v895 = vadd.f32 %v433, %v894
      %v896 = vpop.f32.mrf.mxu0
      %v897 = vadd.f32 %v437, %v896
      %v898 = vpop.f32.mrf.mxu0
      %v899 = vadd.f32 %v433, %v898
      %v900 = vpop.f32.mrf.mxu0
      %v901 = vadd.f32 %v437, %v900
      %902 = vdwg.mxu0
      %903 = vmatprep.subr.bf16.mxu0 %v709
      %904 = vmatpush1.bf16.msra.mxu0 %v708
      %905 = vmatprep.subr.bf16.mxu0 %v701
      %906 = vmatpush1.bf16.msra.mxu0 %v700
      %907 = vmatprep.subr.bf16.mxu0 %v693
      %908 = vmatpush1.bf16.msra.mxu0 %v692
      %909 = vmatprep.subr.bf16.mxu0 %v685
      %910 = vmatpush1.bf16.msra.mxu0 %v684
      %911 = vmatprep.subr.bf16.mxu0 %v677
      %912 = vmatpush1.bf16.msra.mxu0 %v676
      %913 = vmatprep.subr.bf16.mxu0 %v669
      %914 = vmatpush1.bf16.msra.mxu0 %v668
      %915 = vmatprep.subr.bf16.mxu0 %v661
      %916 = vmatpush1.bf16.msra.mxu0 %v660
      %917 = vmatprep.subr.bf16.mxu0 %v653
      %918 = vmatpush1.bf16.msra.mxu0 %v652
      %919 = vmatprep.subr.bf16.mxu0 0
      %920 = vmatpush2.bf16.msra.mxu0 0
      %921 = vmatprep.subr.bf16.mxu0 0
      %922 = vmatpush2.bf16.msra.mxu0 0
      %923 = vmatprep.subr.bf16.mxu0 0
      %924 = vmatpush2.bf16.msra.mxu0 0
      %925 = vmatprep.subr.bf16.mxu0 0
      %926 = vmatpush2.bf16.msra.mxu0 0
      %927 = vmatprep.subr.bf16.mxu0 0
      %928 = vmatpush2.bf16.msra.mxu0 0
      %929 = vmatprep.subr.bf16.mxu0 0
      %930 = vmatpush2.bf16.msra.mxu0 0
      %931 = vmatprep.subr.bf16.mxu0 0
      %932 = vmatpush2.bf16.msra.mxu0 0
      %933 = vmatprep.subr.bf16.mxu0 0
      %934 = vmatpush2.bf16.msra.mxu0 0
      %935 = vmatprep.mubr.bf16.mxu0 0
      %936 = vmatmul.mubr.bf16.gmra.mxu0 %v412
      %v937 = vpop.f32.mrf.mxu0
      %v938 = vadd.f32 %v441, %v937
      %v939 = vpop.f32.mrf.mxu0
      %v940 = vadd.f32 %v445, %v939
      %v941 = vpop.f32.mrf.mxu0
      %v942 = vadd.f32 %v441, %v941
      %v943 = vpop.f32.mrf.mxu0
      %v944 = vadd.f32 %v445, %v943
      %945 = vdwg.mxu0
      %v946 = vadd.f32 %v345, %v346
      %v947 = vrot.slane %v946, 4
      %v948 = vadd.f32 %v946, %v947
      %v949 = vrot.slane %v948, 2
      %v950 = vadd.f32 %v948, %v949
      %v951 = vrot.slane %v950, 1
      %v952 = vadd.f32 %v950, %v951
      %v953 = vmul.f32 %v952, 0.0625
      %v954 = vsub.f32 %v345, %v953
      %v955 = vsub.f32 %v346, %v953
      %v956 = vunpack.c.l.bf16 %v347
      %v957 = vunpack.c.h.bf16 %v347
      %v958 = vunpack.c.l.bf16 %v348
      %v959 = vunpack.c.h.bf16 %v348
      %v960 = vunpack.c.l.bf16 %v349
      %v961 = vunpack.c.h.bf16 %v349
      %v962 = vunpack.c.l.bf16 %v350
      %v963 = vunpack.c.h.bf16 %v350
      %v964 = vunpack.c.l.bf16 %v351
      %v965 = vunpack.c.h.bf16 %v351
      %v966 = vunpack.c.l.bf16 %v352
      %v967 = vunpack.c.h.bf16 %v352
      %v968 = vunpack.c.l.bf16 %v353
      %v969 = vunpack.c.h.bf16 %v353
      %v970 = vunpack.c.l.bf16 %v354
      %v971 = vunpack.c.h.bf16 %v354
      %v972 = vunpack.c.l.bf16 %v355
      %v973 = vunpack.c.h.bf16 %v355
      %v974 = vunpack.c.l.bf16 %v356
      %v975 = vunpack.c.h.bf16 %v356
      %v976 = vunpack.c.l.bf16 %v357
      %v977 = vunpack.c.h.bf16 %v357
      %v978 = vunpack.c.l.bf16 %v358
      %v979 = vunpack.c.h.bf16 %v358
      %v980 = vunpack.c.l.bf16 %v359
      %v981 = vunpack.c.h.bf16 %v359
      %v982 = vunpack.c.l.bf16 %v360
      %v983 = vunpack.c.h.bf16 %v360
      %v984 = vunpack.c.l.bf16 %v361
      %v985 = vunpack.c.h.bf16 %v361
      %v986 = vunpack.c.l.bf16 %v362
      %v987 = vunpack.c.h.bf16 %v362
      %v988 = vunpack.c.l.bf16 %v363
      %v989 = vunpack.c.h.bf16 %v363
      %v990 = vunpack.c.l.bf16 %v364
      %v991 = vunpack.c.h.bf16 %v364
      %v992 = vunpack.c.l.bf16 %v365
      %v993 = vunpack.c.h.bf16 %v365
      %v994 = vunpack.c.l.bf16 %v366
      %v995 = vunpack.c.h.bf16 %v366
      %v996 = vunpack.c.l.bf16 %v367
      %v997 = vunpack.c.h.bf16 %v367
      %v998 = vunpack.c.l.bf16 %v368
      %v999 = vunpack.c.h.bf16 %v368
      %v1000 = vunpack.c.l.bf16 %v369
      %v1001 = vunpack.c.h.bf16 %v369
      %v1002 = vunpack.c.l.bf16 %v370
      %v1003 = vunpack.c.h.bf16 %v370
      %v1004 = vunpack.c.l.bf16 %v371
      %v1005 = vunpack.c.h.bf16 %v371
      %v1006 = vunpack.c.l.bf16 %v372
      %v1007 = vunpack.c.h.bf16 %v372
      %v1008 = vunpack.c.l.bf16 %v373
      %v1009 = vunpack.c.h.bf16 %v373
      %v1010 = vunpack.c.l.bf16 %v374
      %v1011 = vunpack.c.h.bf16 %v374
      %v1012 = vunpack.c.l.bf16 %v375
      %v1013 = vunpack.c.h.bf16 %v375
      %v1014 = vunpack.c.l.bf16 %v376
      %v1015 = vunpack.c.h.bf16 %v376
      %v1016 = vunpack.c.l.bf16 %v377
      %v1017 = vunpack.c.h.bf16 %v377
      %v1018 = vunpack.c.l.bf16 %v378
      %v1019 = vunpack.c.h.bf16 %v378
      %v1020 = vunpack.c.l.bf16 %v379
      %v1021 = vunpack.c.h.bf16 %v379
      %v1022 = vunpack.c.l.bf16 %v380
      %v1023 = vunpack.c.h.bf16 %v380
      %v1024 = vunpack.c.l.bf16 %v381
      %v1025 = vunpack.c.h.bf16 %v381
      %v1026 = vunpack.c.l.bf16 %v382
      %v1027 = vunpack.c.h.bf16 %v382
      %v1028 = vunpack.c.l.bf16 %v383
      %v1029 = vunpack.c.h.bf16 %v383
      %v1030 = vunpack.c.l.bf16 %v384
      %v1031 = vunpack.c.h.bf16 %v384
      %v1032 = vunpack.c.l.bf16 %v385
      %v1033 = vunpack.c.h.bf16 %v385
      %v1034 = vunpack.c.l.bf16 %v386
      %v1035 = vunpack.c.h.bf16 %v386
      %v1036 = vunpack.c.l.bf16 %v387
      %v1037 = vunpack.c.h.bf16 %v387
      %v1038 = vunpack.c.l.bf16 %v388
      %v1039 = vunpack.c.h.bf16 %v388
      %v1040 = vunpack.c.l.bf16 %v389
      %v1041 = vunpack.c.h.bf16 %v389
      %v1042 = vunpack.c.l.bf16 %v390
      %v1043 = vunpack.c.h.bf16 %v390
      %v1044 = vunpack.c.l.bf16 %v391
      %v1045 = vunpack.c.h.bf16 %v391
      %v1046 = vunpack.c.l.bf16 %v392
      %v1047 = vunpack.c.h.bf16 %v392
      %v1048 = vunpack.c.l.bf16 %v393
      %v1049 = vunpack.c.h.bf16 %v393
      %v1050 = vunpack.c.l.bf16 %v394
      %v1051 = vunpack.c.h.bf16 %v394
      %v1052 = vunpack.c.l.bf16 %v395
      %v1053 = vunpack.c.h.bf16 %v395
      %v1054 = vunpack.c.l.bf16 %v396
      %v1055 = vunpack.c.h.bf16 %v396
      %v1056 = vunpack.c.l.bf16 %v397
      %v1057 = vunpack.c.h.bf16 %v397
      %v1058 = vunpack.c.l.bf16 %v398
      %v1059 = vunpack.c.h.bf16 %v398
      %v1060 = vunpack.c.l.bf16 %v399
      %v1061 = vunpack.c.h.bf16 %v399
      %v1062 = vunpack.c.l.bf16 %v400
      %v1063 = vunpack.c.h.bf16 %v400
      %v1064 = vunpack.c.l.bf16 %v401
      %v1065 = vunpack.c.h.bf16 %v401
      %v1066 = vunpack.c.l.bf16 %v402
      %v1067 = vunpack.c.h.bf16 %v402
      %v1068 = vunpack.c.l.bf16 %v403
      %v1069 = vunpack.c.h.bf16 %v403
      %v1070 = vunpack.c.l.bf16 %v404
      %v1071 = vunpack.c.h.bf16 %v404
      %v1072 = vunpack.c.l.bf16 %v405
      %v1073 = vunpack.c.h.bf16 %v405
      %v1074 = vunpack.c.l.bf16 %v406
      %v1075 = vunpack.c.h.bf16 %v406
      %v1076 = vunpack.c.l.bf16 %v407
      %v1077 = vunpack.c.h.bf16 %v407
      %v1078 = vunpack.c.l.bf16 %v408
      %v1079 = vunpack.c.h.bf16 %v408
      %v1080 = vunpack.c.l.bf16 %v409
      %v1081 = vunpack.c.h.bf16 %v409
      %v1082 = vunpack.c.l.bf16 %v410
      %v1083 = vunpack.c.h.bf16 %v410
      %v1084 = vmul.f32 %v411, 16.0
      %v1086 = vlaneseq
      %v1087 = vshrl.u32 %v1086, 7
      %v1088 = vsub.s32 0, %v1087
      %v1089 = vrot.slane %v1084, %v1088
      %v1090 = vlaneseq
      %v1091 = vshrl.u32 %v1090, 7
      %v1092 = vsub.s32 1, %v1091
      %v1093 = vrot.slane %v1084, %v1092
      %v1094 = vlaneseq
      %v1095 = vshrl.u32 %v1094, 7
      %v1096 = vsub.s32 2, %v1095
      %v1097 = vrot.slane %v1084, %v1096
      %v1098 = vlaneseq
      %v1099 = vshrl.u32 %v1098, 7
      %v1100 = vsub.s32 3, %v1099
      %v1101 = vrot.slane %v1084, %v1100
      %v1102 = vlaneseq
      %v1103 = vshrl.u32 %v1102, 7
      %v1104 = vsub.s32 4, %v1103
      %v1105 = vrot.slane %v1084, %v1104
      %v1106 = vlaneseq
      %v1107 = vshrl.u32 %v1106, 7
      %v1108 = vsub.s32 5, %v1107
      %v1109 = vrot.slane %v1084, %v1108
      %v1110 = vlaneseq
      %v1111 = vshrl.u32 %v1110, 7
      %v1112 = vsub.s32 6, %v1111
      %v1113 = vrot.slane %v1084, %v1112
      %v1114 = vlaneseq
      %v1115 = vshrl.u32 %v1114, 7
      %v1116 = vsub.s32 7, %v1115
      %v1117 = vrot.slane %v1084, %v1116
      %1126 = vmatprep.subr.mxu0 %v1077
      %1127 = vmatpush1.msra.mxu0 %v1076
      %1128 = vmatprep.subr.mxu0 %v1069
      %1129 = vmatpush1.msra.mxu0 %v1068
      %1130 = vmatprep.subr.mxu0 %v1061
      %1131 = vmatpush1.msra.mxu0 %v1060
      %1132 = vmatprep.subr.mxu0 %v1053
      %1133 = vmatpush1.msra.mxu0 %v1052
      %1134 = vmatprep.subr.mxu0 %v1045
      %1135 = vmatpush1.msra.mxu0 %v1044
      %1136 = vmatprep.subr.mxu0 %v1037
      %1137 = vmatpush1.msra.mxu0 %v1036
      %1138 = vmatprep.subr.mxu0 %v1029
      %1139 = vmatpush1.msra.mxu0 %v1028
      %1140 = vmatprep.subr.mxu0 %v1021
      %1141 = vmatpush1.msra.mxu0 %v1020
      %1142 = vmatprep.subr.mxu0 %v1013
      %1143 = vmatpush1.msra.mxu0 %v1012
      %1144 = vmatprep.subr.mxu0 %v1005
      %1145 = vmatpush1.msra.mxu0 %v1004
      %1146 = vmatprep.subr.mxu0 %v997
      %1147 = vmatpush1.msra.mxu0 %v996
      %1148 = vmatprep.subr.mxu0 %v989
      %1149 = vmatpush1.msra.mxu0 %v988
      %1150 = vmatprep.subr.mxu0 %v981
      %1151 = vmatpush1.msra.mxu0 %v980
      %1152 = vmatprep.subr.mxu0 %v973
      %1153 = vmatpush1.msra.mxu0 %v972
      %1154 = vmatprep.subr.mxu0 %v965
      %1155 = vmatpush1.msra.mxu0 %v964
      %1156 = vmatprep.subr.mxu0 %v957
      %1157 = vmatpush1.msra.mxu0 %v956
      %1158 = vmatprep.subr.mxu0 0.0
      %1159 = vmatpush2.msra.mxu0 0.0
      %1160 = vmatprep.subr.mxu0 0.0
      %1161 = vmatpush2.msra.mxu0 0.0
      %1162 = vmatprep.subr.mxu0 0.0
      %1163 = vmatpush2.msra.mxu0 0.0
      %1164 = vmatprep.subr.mxu0 0.0
      %1165 = vmatpush2.msra.mxu0 0.0
      %1166 = vmatprep.subr.mxu0 0.0
      %1167 = vmatpush2.msra.mxu0 0.0
      %1168 = vmatprep.subr.mxu0 0.0
      %1169 = vmatpush2.msra.mxu0 0.0
      %1170 = vmatprep.subr.mxu0 0.0
      %1171 = vmatpush2.msra.mxu0 0.0
      %1172 = vmatprep.subr.mxu0 0.0
      %1173 = vmatpush2.msra.mxu0 0.0
      %1174 = vmatprep.subr.mxu0 0.0
      %1175 = vmatpush2.msra.mxu0 0.0
      %1176 = vmatprep.subr.mxu0 0.0
      %1177 = vmatpush2.msra.mxu0 0.0
      %1178 = vmatprep.subr.mxu0 0.0
      %1179 = vmatpush2.msra.mxu0 0.0
      %1180 = vmatprep.subr.mxu0 0.0
      %1181 = vmatpush2.msra.mxu0 0.0
      %1182 = vmatprep.subr.mxu0 0.0
      %1183 = vmatpush2.msra.mxu0 0.0
      %1184 = vmatprep.subr.mxu0 0.0
      %1185 = vmatpush2.msra.mxu0 0.0
      %1186 = vmatprep.subr.mxu0 0.0
      %1187 = vmatpush2.msra.mxu0 0.0
      %1188 = vmatprep.subr.mxu0 0.0
      %1189 = vmatpush2.msra.mxu0 0.0
      %1190 = vmatprep.mubr.f32.mxu0 0.0
      %1191 = vmatmul.mubr.f32.gmra.mxu0 %v952
      %v1192 = vpop.f32.mrf.mxu0
      %v1193 = vadd.f32 %v1089, %v1192
      %v1194 = vpop.f32.mrf.mxu0
      %v1195 = vadd.f32 %v1093, %v1194
      %1196 = vdwg.mxu0
      %1197 = vmatprep.subr.mxu0 %v1079
      %1198 = vmatpush1.msra.mxu0 %v1078
      %1199 = vmatprep.subr.mxu0 %v1071
      %1200 = vmatpush1.msra.mxu0 %v1070
      %1201 = vmatprep.subr.mxu0 %v1063
      %1202 = vmatpush1.msra.mxu0 %v1062
      %1203 = vmatprep.subr.mxu0 %v1055
      %1204 = vmatpush1.msra.mxu0 %v1054
      %1205 = vmatprep.subr.mxu0 %v1047
      %1206 = vmatpush1.msra.mxu0 %v1046
      %1207 = vmatprep.subr.mxu0 %v1039
      %1208 = vmatpush1.msra.mxu0 %v1038
      %1209 = vmatprep.subr.mxu0 %v1031
      %1210 = vmatpush1.msra.mxu0 %v1030
      %1211 = vmatprep.subr.mxu0 %v1023
      %1212 = vmatpush1.msra.mxu0 %v1022
      %1213 = vmatprep.subr.mxu0 %v1015
      %1214 = vmatpush1.msra.mxu0 %v1014
      %1215 = vmatprep.subr.mxu0 %v1007
      %1216 = vmatpush1.msra.mxu0 %v1006
      %1217 = vmatprep.subr.mxu0 %v999
      %1218 = vmatpush1.msra.mxu0 %v998
      %1219 = vmatprep.subr.mxu0 %v991
      %1220 = vmatpush1.msra.mxu0 %v990
      %1221 = vmatprep.subr.mxu0 %v983
      %1222 = vmatpush1.msra.mxu0 %v982
      %1223 = vmatprep.subr.mxu0 %v975
      %1224 = vmatpush1.msra.mxu0 %v974
      %1225 = vmatprep.subr.mxu0 %v967
      %1226 = vmatpush1.msra.mxu0 %v966
      %1227 = vmatprep.subr.mxu0 %v959
      %1228 = vmatpush1.msra.mxu0 %v958
      %1229 = vmatprep.subr.mxu0 0.0
      %1230 = vmatpush2.msra.mxu0 0.0
      %1231 = vmatprep.subr.mxu0 0.0
      %1232 = vmatpush2.msra.mxu0 0.0
      %1233 = vmatprep.subr.mxu0 0.0
      %1234 = vmatpush2.msra.mxu0 0.0
      %1235 = vmatprep.subr.mxu0 0.0
      %1236 = vmatpush2.msra.mxu0 0.0
      %1237 = vmatprep.subr.mxu0 0.0
      %1238 = vmatpush2.msra.mxu0 0.0
      %1239 = vmatprep.subr.mxu0 0.0
      %1240 = vmatpush2.msra.mxu0 0.0
      %1241 = vmatprep.subr.mxu0 0.0
      %1242 = vmatpush2.msra.mxu0 0.0
      %1243 = vmatprep.subr.mxu0 0.0
      %1244 = vmatpush2.msra.mxu0 0.0
      %1245 = vmatprep.subr.mxu0 0.0
      %1246 = vmatpush2.msra.mxu0 0.0
      %1247 = vmatprep.subr.mxu0 0.0
      %1248 = vmatpush2.msra.mxu0 0.0
      %1249 = vmatprep.subr.mxu0 0.0
      %1250 = vmatpush2.msra.mxu0 0.0
      %1251 = vmatprep.subr.mxu0 0.0
      %1252 = vmatpush2.msra.mxu0 0.0
      %1253 = vmatprep.subr.mxu0 0.0
      %1254 = vmatpush2.msra.mxu0 0.0
      %1255 = vmatprep.subr.mxu0 0.0
      %1256 = vmatpush2.msra.mxu0 0.0
      %1257 = vmatprep.subr.mxu0 0.0
      %1258 = vmatpush2.msra.mxu0 0.0
      %1259 = vmatprep.subr.mxu0 0.0
      %1260 = vmatpush2.msra.mxu0 0.0
      %1261 = vmatprep.mubr.f32.mxu0 0.0
      %1262 = vmatmul.mubr.f32.gmra.mxu0 %v952
      %v1263 = vpop.f32.mrf.mxu0
      %v1264 = vadd.f32 %v1097, %v1263
      %v1265 = vpop.f32.mrf.mxu0
      %v1266 = vadd.f32 %v1101, %v1265
      %1267 = vdwg.mxu0
      %1268 = vmatprep.subr.mxu0 %v1081
      %1269 = vmatpush1.msra.mxu0 %v1080
      %1270 = vmatprep.subr.mxu0 %v1073
      %1271 = vmatpush1.msra.mxu0 %v1072
      %1272 = vmatprep.subr.mxu0 %v1065
      %1273 = vmatpush1.msra.mxu0 %v1064
      %1274 = vmatprep.subr.mxu0 %v1057
      %1275 = vmatpush1.msra.mxu0 %v1056
      %1276 = vmatprep.subr.mxu0 %v1049
      %1277 = vmatpush1.msra.mxu0 %v1048
      %1278 = vmatprep.subr.mxu0 %v1041
      %1279 = vmatpush1.msra.mxu0 %v1040
      %1280 = vmatprep.subr.mxu0 %v1033
      %1281 = vmatpush1.msra.mxu0 %v1032
      %1282 = vmatprep.subr.mxu0 %v1025
      %1283 = vmatpush1.msra.mxu0 %v1024
      %1284 = vmatprep.subr.mxu0 %v1017
      %1285 = vmatpush1.msra.mxu0 %v1016
      %1286 = vmatprep.subr.mxu0 %v1009
      %1287 = vmatpush1.msra.mxu0 %v1008
      %1288 = vmatprep.subr.mxu0 %v1001
      %1289 = vmatpush1.msra.mxu0 %v1000
      %1290 = vmatprep.subr.mxu0 %v993
      %1291 = vmatpush1.msra.mxu0 %v992
      %1292 = vmatprep.subr.mxu0 %v985
      %1293 = vmatpush1.msra.mxu0 %v984
      %1294 = vmatprep.subr.mxu0 %v977
      %1295 = vmatpush1.msra.mxu0 %v976
      %1296 = vmatprep.subr.mxu0 %v969
      %1297 = vmatpush1.msra.mxu0 %v968
      %1298 = vmatprep.subr.mxu0 %v961
      %1299 = vmatpush1.msra.mxu0 %v960
      %1300 = vmatprep.subr.mxu0 0.0
      %1301 = vmatpush2.msra.mxu0 0.0
      %1302 = vmatprep.subr.mxu0 0.0
      %1303 = vmatpush2.msra.mxu0 0.0
      %1304 = vmatprep.subr.mxu0 0.0
      %1305 = vmatpush2.msra.mxu0 0.0
      %1306 = vmatprep.subr.mxu0 0.0
      %1307 = vmatpush2.msra.mxu0 0.0
      %1308 = vmatprep.subr.mxu0 0.0
      %1309 = vmatpush2.msra.mxu0 0.0
      %1310 = vmatprep.subr.mxu0 0.0
      %1311 = vmatpush2.msra.mxu0 0.0
      %1312 = vmatprep.subr.mxu0 0.0
      %1313 = vmatpush2.msra.mxu0 0.0
      %1314 = vmatprep.subr.mxu0 0.0
      %1315 = vmatpush2.msra.mxu0 0.0
      %1316 = vmatprep.subr.mxu0 0.0
      %1317 = vmatpush2.msra.mxu0 0.0
      %1318 = vmatprep.subr.mxu0 0.0
      %1319 = vmatpush2.msra.mxu0 0.0
      %1320 = vmatprep.subr.mxu0 0.0
      %1321 = vmatpush2.msra.mxu0 0.0
      %1322 = vmatprep.subr.mxu0 0.0
      %1323 = vmatpush2.msra.mxu0 0.0
      %1324 = vmatprep.subr.mxu0 0.0
      %1325 = vmatpush2.msra.mxu0 0.0
      %1326 = vmatprep.subr.mxu0 0.0
      %1327 = vmatpush2.msra.mxu0 0.0
      %1328 = vmatprep.subr.mxu0 0.0
      %1329 = vmatpush2.msra.mxu0 0.0
      %1330 = vmatprep.subr.mxu0 0.0
      %1331 = vmatpush2.msra.mxu0 0.0
      %1332 = vmatprep.mubr.f32.mxu0 0.0
      %1333 = vmatmul.mubr.f32.gmra.mxu0 %v952
      %v1334 = vpop.f32.mrf.mxu0
      %v1335 = vadd.f32 %v1105, %v1334
      %v1336 = vpop.f32.mrf.mxu0
      %v1337 = vadd.f32 %v1109, %v1336
      %1338 = vdwg.mxu0
      %1339 = vmatprep.subr.mxu0 %v1083
      %1340 = vmatpush1.msra.mxu0 %v1082
      %1341 = vmatprep.subr.mxu0 %v1075
      %1342 = vmatpush1.msra.mxu0 %v1074
      %1343 = vmatprep.subr.mxu0 %v1067
      %1344 = vmatpush1.msra.mxu0 %v1066
      %1345 = vmatprep.subr.mxu0 %v1059
      %1346 = vmatpush1.msra.mxu0 %v1058
      %1347 = vmatprep.subr.mxu0 %v1051
      %1348 = vmatpush1.msra.mxu0 %v1050
      %1349 = vmatprep.subr.mxu0 %v1043
      %1350 = vmatpush1.msra.mxu0 %v1042
      %1351 = vmatprep.subr.mxu0 %v1035
      %1352 = vmatpush1.msra.mxu0 %v1034
      %1353 = vmatprep.subr.mxu0 %v1027
      %1354 = vmatpush1.msra.mxu0 %v1026
      %1355 = vmatprep.subr.mxu0 %v1019
      %1356 = vmatpush1.msra.mxu0 %v1018
      %1357 = vmatprep.subr.mxu0 %v1011
      %1358 = vmatpush1.msra.mxu0 %v1010
      %1359 = vmatprep.subr.mxu0 %v1003
      %1360 = vmatpush1.msra.mxu0 %v1002
      %1361 = vmatprep.subr.mxu0 %v995
      %1362 = vmatpush1.msra.mxu0 %v994
      %1363 = vmatprep.subr.mxu0 %v987
      %1364 = vmatpush1.msra.mxu0 %v986
      %1365 = vmatprep.subr.mxu0 %v979
      %1366 = vmatpush1.msra.mxu0 %v978
      %1367 = vmatprep.subr.mxu0 %v971
      %1368 = vmatpush1.msra.mxu0 %v970
      %1369 = vmatprep.subr.mxu0 %v963
      %1370 = vmatpush1.msra.mxu0 %v962
      %1371 = vmatprep.subr.mxu0 0.0
      %1372 = vmatpush2.msra.mxu0 0.0
      %1373 = vmatprep.subr.mxu0 0.0
      %1374 = vmatpush2.msra.mxu0 0.0
      %1375 = vmatprep.subr.mxu0 0.0
      %1376 = vmatpush2.msra.mxu0 0.0
      %1377 = vmatprep.subr.mxu0 0.0
      %1378 = vmatpush2.msra.mxu0 0.0
      %1379 = vmatprep.subr.mxu0 0.0
      %1380 = vmatpush2.msra.mxu0 0.0
      %1381 = vmatprep.subr.mxu0 0.0
      %1382 = vmatpush2.msra.mxu0 0.0
      %1383 = vmatprep.subr.mxu0 0.0
      %1384 = vmatpush2.msra.mxu0 0.0
      %1385 = vmatprep.subr.mxu0 0.0
      %1386 = vmatpush2.msra.mxu0 0.0
      %1387 = vmatprep.subr.mxu0 0.0
      %1388 = vmatpush2.msra.mxu0 0.0
      %1389 = vmatprep.subr.mxu0 0.0
      %1390 = vmatpush2.msra.mxu0 0.0
      %1391 = vmatprep.subr.mxu0 0.0
      %1392 = vmatpush2.msra.mxu0 0.0
      %1393 = vmatprep.subr.mxu0 0.0
      %1394 = vmatpush2.msra.mxu0 0.0
      %1395 = vmatprep.subr.mxu0 0.0
      %1396 = vmatpush2.msra.mxu0 0.0
      %1397 = vmatprep.subr.mxu0 0.0
      %1398 = vmatpush2.msra.mxu0 0.0
      %1399 = vmatprep.subr.mxu0 0.0
      %1400 = vmatpush2.msra.mxu0 0.0
      %1401 = vmatprep.subr.mxu0 0.0
      %1402 = vmatpush2.msra.mxu0 0.0
      %1403 = vmatprep.mubr.f32.mxu0 0.0
      %1404 = vmatmul.mubr.f32.gmra.mxu0 %v952
      %v1405 = vpop.f32.mrf.mxu0
      %v1406 = vadd.f32 %v1113, %v1405
      %v1407 = vpop.f32.mrf.mxu0
      %v1408 = vadd.f32 %v1117, %v1407
      %1409 = vdwg.mxu0
      %v1410 = vpack.c.bf16 %v955, %v954
      %1411 = vxpose.xlu0.c.b16.start [1/8] %v1410, 128
      %1412 = vxpose.xlu0.c.b16.cont [2/8] 0, 128
      %1413 = vxpose.xlu0.c.b16.cont [3/8] 0, 128
      %1414 = vxpose.xlu0.c.b16.cont [4/8] 0, 128
      %1415 = vxpose.xlu0.c.b16.cont [5/8] 0, 128
      %1416 = vxpose.xlu0.c.b16.cont [6/8] 0, 128
      %1417 = vxpose.xlu0.c.b16.cont [7/8] 0, 128
      %1418 = vxpose.xlu0.c.b16.end [8/8] 0, 128
      %v1419 = vpop.trf.xlu0
      %v1420 = vpop.trf.xlu0
      %v1421 = vpop.trf.xlu0
      %v1422 = vpop.trf.xlu0
      %v1423 = vpop.trf.xlu0
      %v1424 = vpop.trf.xlu0
      %v1425 = vpop.trf.xlu0
      %v1426 = vpop.trf.xlu0
      %vm1427 = vcmask 130048
      %v1429 = vsel %vm1427, %v1419, 0
      %v1432 = vsel %vm1427, %v1420, 0
      %v1435 = vsel %vm1427, %v1421, 0
      %v1438 = vsel %vm1427, %v1422, 0
      %v1441 = vsel %vm1427, %v1423, 0
      %v1444 = vsel %vm1427, %v1424, 0
      %v1447 = vsel %vm1427, %v1425, 0
      %v1450 = vsel %vm1427, %v1426, 0
      %1452 = vmatprep.subr.bf16.mxu0 0
      %1453 = vmatpush1.bf16.msra.mxu0 0
      %1454 = vmatprep.subr.bf16.mxu0 0
      %1455 = vmatpush1.bf16.msra.mxu0 0
      %1456 = vmatprep.subr.bf16.mxu0 0
      %1457 = vmatpush1.bf16.msra.mxu0 0
      %1458 = vmatprep.subr.bf16.mxu0 0
      %1459 = vmatpush1.bf16.msra.mxu0 0
      %1460 = vmatprep.subr.bf16.mxu0 0
      %1461 = vmatpush1.bf16.msra.mxu0 0
      %1462 = vmatprep.subr.bf16.mxu0 0
      %1463 = vmatpush1.bf16.msra.mxu0 0
      %1464 = vmatprep.subr.bf16.mxu0 0
      %1465 = vmatpush1.bf16.msra.mxu0 0
      %1466 = vmatprep.subr.bf16.mxu0 0
      %1467 = vmatpush1.bf16.msra.mxu0 %v1410
      %1468 = vmatprep.subr.bf16.mxu0 0
      %1469 = vmatpush2.bf16.msra.mxu0 0
      %1470 = vmatprep.subr.bf16.mxu0 0
      %1471 = vmatpush2.bf16.msra.mxu0 0
      %1472 = vmatprep.subr.bf16.mxu0 0
      %1473 = vmatpush2.bf16.msra.mxu0 0
      %1474 = vmatprep.subr.bf16.mxu0 0
      %1475 = vmatpush2.bf16.msra.mxu0 0
      %1476 = vmatprep.subr.bf16.mxu0 0
      %1477 = vmatpush2.bf16.msra.mxu0 0
      %1478 = vmatprep.subr.bf16.mxu0 0
      %1479 = vmatpush2.bf16.msra.mxu0 0
      %1480 = vmatprep.subr.bf16.mxu0 0
      %1481 = vmatpush2.bf16.msra.mxu0 0
      %1482 = vmatprep.subr.bf16.mxu0 0
      %1483 = vmatpush2.bf16.msra.mxu0 0
      %1484 = vmatprep.mubr.bf16.mxu0 0
      %1485 = vmatmul.mubr.bf16.gmra.mxu0 %v1429
      %v1486 = vpop.f32.mrf.mxu0
      %v1487 = vadd.f32 0.0, %v1486
      %v1488 = vpop.f32.mrf.mxu0
      %v1489 = vpop.f32.mrf.mxu0
      %v1490 = vadd.f32 0.0, %v1489
      %v1491 = vpop.f32.mrf.mxu0
      %1492 = vmatprep.mubr.bf16.mxu0 0
      %1493 = vmatmul.mubr.bf16.gmra.mxu0 %v1432
      %v1494 = vpop.f32.mrf.mxu0
      %v1495 = vadd.f32 0.0, %v1494
      %v1496 = vpop.f32.mrf.mxu0
      %v1497 = vpop.f32.mrf.mxu0
      %v1498 = vadd.f32 0.0, %v1497
      %v1499 = vpop.f32.mrf.mxu0
      %1500 = vmatprep.mubr.bf16.mxu0 0
      %1501 = vmatmul.mubr.bf16.gmra.mxu0 %v1435
      %v1502 = vpop.f32.mrf.mxu0
      %v1503 = vadd.f32 0.0, %v1502
      %v1504 = vpop.f32.mrf.mxu0
      %v1505 = vpop.f32.mrf.mxu0
      %v1506 = vadd.f32 0.0, %v1505
      %v1507 = vpop.f32.mrf.mxu0
      %1508 = vmatprep.mubr.bf16.mxu0 0
      %1509 = vmatmul.mubr.bf16.gmra.mxu0 %v1438
      %v1510 = vpop.f32.mrf.mxu0
      %v1511 = vadd.f32 0.0, %v1510
      %v1512 = vpop.f32.mrf.mxu0
      %v1513 = vpop.f32.mrf.mxu0
      %v1514 = vadd.f32 0.0, %v1513
      %v1515 = vpop.f32.mrf.mxu0
      %1516 = vmatprep.mubr.bf16.mxu0 0
      %1517 = vmatmul.mubr.bf16.gmra.mxu0 %v1441
      %v1518 = vpop.f32.mrf.mxu0
      %v1519 = vadd.f32 0.0, %v1518
      %v1520 = vpop.f32.mrf.mxu0
      %v1521 = vpop.f32.mrf.mxu0
      %v1522 = vadd.f32 0.0, %v1521
      %v1523 = vpop.f32.mrf.mxu0
      %1524 = vmatprep.mubr.bf16.mxu0 0
      %1525 = vmatmul.mubr.bf16.gmra.mxu0 %v1444
      %v1526 = vpop.f32.mrf.mxu0
      %v1527 = vadd.f32 0.0, %v1526
      %v1528 = vpop.f32.mrf.mxu0
      %v1529 = vpop.f32.mrf.mxu0
      %v1530 = vadd.f32 0.0, %v1529
      %v1531 = vpop.f32.mrf.mxu0
      %1532 = vmatprep.mubr.bf16.mxu0 0
      %1533 = vmatmul.mubr.bf16.gmra.mxu0 %v1447
      %v1534 = vpop.f32.mrf.mxu0
      %v1535 = vadd.f32 0.0, %v1534
      %v1536 = vpop.f32.mrf.mxu0
      %v1537 = vpop.f32.mrf.mxu0
      %v1538 = vadd.f32 0.0, %v1537
      %v1539 = vpop.f32.mrf.mxu0
      %1540 = vmatprep.mubr.bf16.mxu0 0
      %1541 = vmatmul.mubr.bf16.gmra.mxu0 %v1450
      %v1542 = vpop.f32.mrf.mxu0
      %v1543 = vadd.f32 0.0, %v1542
      %v1544 = vpop.f32.mrf.mxu0
      %v1545 = vpop.f32.mrf.mxu0
      %v1546 = vadd.f32 0.0, %v1545
      %v1547 = vpop.f32.mrf.mxu0
      %1548 = vdwg.mxu0
      %v1549 = vpack.c.bf16 %v1490, %v1487
      %v1550 = vpack.c.bf16 %v1498, %v1495
      %v1551 = vpack.c.bf16 %v1506, %v1503
      %v1552 = vpack.c.bf16 %v1514, %v1511
      %v1553 = vpack.c.bf16 %v1522, %v1519
      %v1554 = vpack.c.bf16 %v1530, %v1527
      %v1555 = vpack.c.bf16 %v1538, %v1535
      %v1556 = vpack.c.bf16 %v1546, %v1543
      %1557 = vmatprep.subr.bf16.mxu0 %v703
      %1558 = vmatpush1.bf16.msra.mxu0 %v702
      %1559 = vmatprep.subr.bf16.mxu0 %v695
      %1560 = vmatpush1.bf16.msra.mxu0 %v694
      %1561 = vmatprep.subr.bf16.mxu0 %v687
      %1562 = vmatpush1.bf16.msra.mxu0 %v686
      %1563 = vmatprep.subr.bf16.mxu0 %v679
      %1564 = vmatpush1.bf16.msra.mxu0 %v678
      %1565 = vmatprep.subr.bf16.mxu0 %v671
      %1566 = vmatpush1.bf16.msra.mxu0 %v670
      %1567 = vmatprep.subr.bf16.mxu0 %v663
      %1568 = vmatpush1.bf16.msra.mxu0 %v662
      %1569 = vmatprep.subr.bf16.mxu0 %v655
      %1570 = vmatpush1.bf16.msra.mxu0 %v654
      %1571 = vmatprep.subr.bf16.mxu0 %v647
      %1572 = vmatpush1.bf16.msra.mxu0 %v646
      %1573 = vmatprep.subr.bf16.mxu0 0
      %1574 = vmatpush2.bf16.msra.mxu0 0
      %1575 = vmatprep.subr.bf16.mxu0 0
      %1576 = vmatpush2.bf16.msra.mxu0 0
      %1577 = vmatprep.subr.bf16.mxu0 0
      %1578 = vmatpush2.bf16.msra.mxu0 0
      %1579 = vmatprep.subr.bf16.mxu0 0
      %1580 = vmatpush2.bf16.msra.mxu0 0
      %1581 = vmatprep.subr.bf16.mxu0 0
      %1582 = vmatpush2.bf16.msra.mxu0 0
      %1583 = vmatprep.subr.bf16.mxu0 0
      %1584 = vmatpush2.bf16.msra.mxu0 0
      %1585 = vmatprep.subr.bf16.mxu0 0
      %1586 = vmatpush2.bf16.msra.mxu0 0
      %1587 = vmatprep.subr.bf16.mxu0 0
      %1588 = vmatpush2.bf16.msra.mxu0 0
      %1589 = vmatprep.mubr.bf16.mxu0 0
      %1590 = vmatmul.mubr.bf16.gmra.mxu0 %v1549
      %v1591 = vpop.f32.mrf.mxu0
      %v1592 = vadd.f32 0.0, %v1591
      %v1593 = vpop.f32.mrf.mxu0
      %v1594 = vadd.f32 0.0, %v1593
      %v1595 = vpop.f32.mrf.mxu0
      %v1596 = vadd.f32 0.0, %v1595
      %v1597 = vpop.f32.mrf.mxu0
      %v1598 = vadd.f32 0.0, %v1597
      %1599 = vmatprep.mubr.bf16.mxu0 0
      %1600 = vmatmul.mubr.bf16.gmra.mxu0 %v1550
      %v1601 = vpop.f32.mrf.mxu0
      %v1602 = vadd.f32 0.0, %v1601
      %v1603 = vpop.f32.mrf.mxu0
      %v1604 = vadd.f32 0.0, %v1603
      %v1605 = vpop.f32.mrf.mxu0
      %v1606 = vadd.f32 0.0, %v1605
      %v1607 = vpop.f32.mrf.mxu0
      %v1608 = vadd.f32 0.0, %v1607
      %1609 = vmatprep.mubr.bf16.mxu0 0
      %1610 = vmatmul.mubr.bf16.gmra.mxu0 %v1551
      %v1611 = vpop.f32.mrf.mxu0
      %v1612 = vadd.f32 0.0, %v1611
      %v1613 = vpop.f32.mrf.mxu0
      %v1614 = vadd.f32 0.0, %v1613
      %v1615 = vpop.f32.mrf.mxu0
      %v1616 = vadd.f32 0.0, %v1615
      %v1617 = vpop.f32.mrf.mxu0
      %v1618 = vadd.f32 0.0, %v1617
      %1619 = vmatprep.mubr.bf16.mxu0 0
      %1620 = vmatmul.mubr.bf16.gmra.mxu0 %v1552
      %v1621 = vpop.f32.mrf.mxu0
      %v1622 = vadd.f32 0.0, %v1621
      %v1623 = vpop.f32.mrf.mxu0
      %v1624 = vadd.f32 0.0, %v1623
      %v1625 = vpop.f32.mrf.mxu0
      %v1626 = vadd.f32 0.0, %v1625
      %v1627 = vpop.f32.mrf.mxu0
      %v1628 = vadd.f32 0.0, %v1627
      %1629 = vmatprep.mubr.bf16.mxu0 0
      %1630 = vmatmul.mubr.bf16.gmra.mxu0 %v1553
      %v1631 = vpop.f32.mrf.mxu0
      %v1632 = vadd.f32 0.0, %v1631
      %v1633 = vpop.f32.mrf.mxu0
      %v1634 = vadd.f32 0.0, %v1633
      %v1635 = vpop.f32.mrf.mxu0
      %v1636 = vadd.f32 0.0, %v1635
      %v1637 = vpop.f32.mrf.mxu0
      %v1638 = vadd.f32 0.0, %v1637
      %1639 = vmatprep.mubr.bf16.mxu0 0
      %1640 = vmatmul.mubr.bf16.gmra.mxu0 %v1554
      %v1641 = vpop.f32.mrf.mxu0
      %v1642 = vadd.f32 0.0, %v1641
      %v1643 = vpop.f32.mrf.mxu0
      %v1644 = vadd.f32 0.0, %v1643
      %v1645 = vpop.f32.mrf.mxu0
      %v1646 = vadd.f32 0.0, %v1645
      %v1647 = vpop.f32.mrf.mxu0
      %v1648 = vadd.f32 0.0, %v1647
      %1649 = vmatprep.mubr.bf16.mxu0 0
      %1650 = vmatmul.mubr.bf16.gmra.mxu0 %v1555
      %v1651 = vpop.f32.mrf.mxu0
      %v1652 = vadd.f32 0.0, %v1651
      %v1653 = vpop.f32.mrf.mxu0
      %v1654 = vadd.f32 0.0, %v1653
      %v1655 = vpop.f32.mrf.mxu0
      %v1656 = vadd.f32 0.0, %v1655
      %v1657 = vpop.f32.mrf.mxu0
      %v1658 = vadd.f32 0.0, %v1657
      %1659 = vmatprep.mubr.bf16.mxu0 0
      %1660 = vmatmul.mubr.bf16.gmra.mxu0 %v1556
      %v1661 = vpop.f32.mrf.mxu0
      %v1662 = vadd.f32 0.0, %v1661
      %v1663 = vpop.f32.mrf.mxu0
      %v1664 = vadd.f32 0.0, %v1663
      %v1665 = vpop.f32.mrf.mxu0
      %v1666 = vadd.f32 0.0, %v1665
      %v1667 = vpop.f32.mrf.mxu0
      %v1668 = vadd.f32 0.0, %v1667
      %1669 = vdwg.mxu0
      %1670 = vmatprep.subr.bf16.mxu0 %v705
      %1671 = vmatpush1.bf16.msra.mxu0 %v704
      %1672 = vmatprep.subr.bf16.mxu0 %v697
      %1673 = vmatpush1.bf16.msra.mxu0 %v696
      %1674 = vmatprep.subr.bf16.mxu0 %v689
      %1675 = vmatpush1.bf16.msra.mxu0 %v688
      %1676 = vmatprep.subr.bf16.mxu0 %v681
      %1677 = vmatpush1.bf16.msra.mxu0 %v680
      %1678 = vmatprep.subr.bf16.mxu0 %v673
      %1679 = vmatpush1.bf16.msra.mxu0 %v672
      %1680 = vmatprep.subr.bf16.mxu0 %v665
      %1681 = vmatpush1.bf16.msra.mxu0 %v664
      %1682 = vmatprep.subr.bf16.mxu0 %v657
      %1683 = vmatpush1.bf16.msra.mxu0 %v656
      %1684 = vmatprep.subr.bf16.mxu0 %v649
      %1685 = vmatpush1.bf16.msra.mxu0 %v648
      %1686 = vmatprep.subr.bf16.mxu0 0
      %1687 = vmatpush2.bf16.msra.mxu0 0
      %1688 = vmatprep.subr.bf16.mxu0 0
      %1689 = vmatpush2.bf16.msra.mxu0 0
      %1690 = vmatprep.subr.bf16.mxu0 0
      %1691 = vmatpush2.bf16.msra.mxu0 0
      %1692 = vmatprep.subr.bf16.mxu0 0
      %1693 = vmatpush2.bf16.msra.mxu0 0
      %1694 = vmatprep.subr.bf16.mxu0 0
      %1695 = vmatpush2.bf16.msra.mxu0 0
      %1696 = vmatprep.subr.bf16.mxu0 0
      %1697 = vmatpush2.bf16.msra.mxu0 0
      %1698 = vmatprep.subr.bf16.mxu0 0
      %1699 = vmatpush2.bf16.msra.mxu0 0
      %1700 = vmatprep.subr.bf16.mxu0 0
      %1701 = vmatpush2.bf16.msra.mxu0 0
      %1702 = vmatprep.mubr.bf16.mxu0 0
      %1703 = vmatmul.mubr.bf16.gmra.mxu0 %v1549
      %v1704 = vpop.f32.mrf.mxu0
      %v1705 = vadd.f32 0.0, %v1704
      %v1706 = vpop.f32.mrf.mxu0
      %v1707 = vadd.f32 0.0, %v1706
      %v1708 = vpop.f32.mrf.mxu0
      %v1709 = vadd.f32 0.0, %v1708
      %v1710 = vpop.f32.mrf.mxu0
      %v1711 = vadd.f32 0.0, %v1710
      %1712 = vmatprep.mubr.bf16.mxu0 0
      %1713 = vmatmul.mubr.bf16.gmra.mxu0 %v1550
      %v1714 = vpop.f32.mrf.mxu0
      %v1715 = vadd.f32 0.0, %v1714
      %v1716 = vpop.f32.mrf.mxu0
      %v1717 = vadd.f32 0.0, %v1716
      %v1718 = vpop.f32.mrf.mxu0
      %v1719 = vadd.f32 0.0, %v1718
      %v1720 = vpop.f32.mrf.mxu0
      %v1721 = vadd.f32 0.0, %v1720
      %1722 = vmatprep.mubr.bf16.mxu0 0
      %1723 = vmatmul.mubr.bf16.gmra.mxu0 %v1551
      %v1724 = vpop.f32.mrf.mxu0
      %v1725 = vadd.f32 0.0, %v1724
      %v1726 = vpop.f32.mrf.mxu0
      %v1727 = vadd.f32 0.0, %v1726
      %v1728 = vpop.f32.mrf.mxu0
      %v1729 = vadd.f32 0.0, %v1728
      %v1730 = vpop.f32.mrf.mxu0
      %v1731 = vadd.f32 0.0, %v1730
      %1732 = vmatprep.mubr.bf16.mxu0 0
      %1733 = vmatmul.mubr.bf16.gmra.mxu0 %v1552
      %v1734 = vpop.f32.mrf.mxu0
      %v1735 = vadd.f32 0.0, %v1734
      %v1736 = vpop.f32.mrf.mxu0
      %v1737 = vadd.f32 0.0, %v1736
      %v1738 = vpop.f32.mrf.mxu0
      %v1739 = vadd.f32 0.0, %v1738
      %v1740 = vpop.f32.mrf.mxu0
      %v1741 = vadd.f32 0.0, %v1740
      %1742 = vmatprep.mubr.bf16.mxu0 0
      %1743 = vmatmul.mubr.bf16.gmra.mxu0 %v1553
      %v1744 = vpop.f32.mrf.mxu0
      %v1745 = vadd.f32 0.0, %v1744
      %v1746 = vpop.f32.mrf.mxu0
      %v1747 = vadd.f32 0.0, %v1746
      %v1748 = vpop.f32.mrf.mxu0
      %v1749 = vadd.f32 0.0, %v1748
      %v1750 = vpop.f32.mrf.mxu0
      %v1751 = vadd.f32 0.0, %v1750
      %1752 = vmatprep.mubr.bf16.mxu0 0
      %1753 = vmatmul.mubr.bf16.gmra.mxu0 %v1554
      %v1754 = vpop.f32.mrf.mxu0
      %v1755 = vadd.f32 0.0, %v1754
      %v1756 = vpop.f32.mrf.mxu0
      %v1757 = vadd.f32 0.0, %v1756
      %v1758 = vpop.f32.mrf.mxu0
      %v1759 = vadd.f32 0.0, %v1758
      %v1760 = vpop.f32.mrf.mxu0
      %v1761 = vadd.f32 0.0, %v1760
      %1762 = vmatprep.mubr.bf16.mxu0 0
      %1763 = vmatmul.mubr.bf16.gmra.mxu0 %v1555
      %v1764 = vpop.f32.mrf.mxu0
      %v1765 = vadd.f32 0.0, %v1764
      %v1766 = vpop.f32.mrf.mxu0
      %v1767 = vadd.f32 0.0, %v1766
      %v1768 = vpop.f32.mrf.mxu0
      %v1769 = vadd.f32 0.0, %v1768
      %v1770 = vpop.f32.mrf.mxu0
      %v1771 = vadd.f32 0.0, %v1770
      %1772 = vmatprep.mubr.bf16.mxu0 0
      %1773 = vmatmul.mubr.bf16.gmra.mxu0 %v1556
      %v1774 = vpop.f32.mrf.mxu0
      %v1775 = vadd.f32 0.0, %v1774
      %v1776 = vpop.f32.mrf.mxu0
      %v1777 = vadd.f32 0.0, %v1776
      %v1778 = vpop.f32.mrf.mxu0
      %v1779 = vadd.f32 0.0, %v1778
      %v1780 = vpop.f32.mrf.mxu0
      %v1781 = vadd.f32 0.0, %v1780
      %1782 = vdwg.mxu0
      %1783 = vmatprep.subr.bf16.mxu0 %v707
      %1784 = vmatpush1.bf16.msra.mxu0 %v706
      %1785 = vmatprep.subr.bf16.mxu0 %v699
      %1786 = vmatpush1.bf16.msra.mxu0 %v698
      %1787 = vmatprep.subr.bf16.mxu0 %v691
      %1788 = vmatpush1.bf16.msra.mxu0 %v690
      %1789 = vmatprep.subr.bf16.mxu0 %v683
      %1790 = vmatpush1.bf16.msra.mxu0 %v682
      %1791 = vmatprep.subr.bf16.mxu0 %v675
      %1792 = vmatpush1.bf16.msra.mxu0 %v674
      %1793 = vmatprep.subr.bf16.mxu0 %v667
      %1794 = vmatpush1.bf16.msra.mxu0 %v666
      %1795 = vmatprep.subr.bf16.mxu0 %v659
      %1796 = vmatpush1.bf16.msra.mxu0 %v658
      %1797 = vmatprep.subr.bf16.mxu0 %v651
      %1798 = vmatpush1.bf16.msra.mxu0 %v650
      %1799 = vmatprep.subr.bf16.mxu0 0
      %1800 = vmatpush2.bf16.msra.mxu0 0
      %1801 = vmatprep.subr.bf16.mxu0 0
      %1802 = vmatpush2.bf16.msra.mxu0 0
      %1803 = vmatprep.subr.bf16.mxu0 0
      %1804 = vmatpush2.bf16.msra.mxu0 0
      %1805 = vmatprep.subr.bf16.mxu0 0
      %1806 = vmatpush2.bf16.msra.mxu0 0
      %1807 = vmatprep.subr.bf16.mxu0 0
      %1808 = vmatpush2.bf16.msra.mxu0 0
      %1809 = vmatprep.subr.bf16.mxu0 0
      %1810 = vmatpush2.bf16.msra.mxu0 0
      %1811 = vmatprep.subr.bf16.mxu0 0
      %1812 = vmatpush2.bf16.msra.mxu0 0
      %1813 = vmatprep.subr.bf16.mxu0 0
      %1814 = vmatpush2.bf16.msra.mxu0 0
      %1815 = vmatprep.mubr.bf16.mxu0 0
      %1816 = vmatmul.mubr.bf16.gmra.mxu0 %v1549
      %v1817 = vpop.f32.mrf.mxu0
      %v1818 = vadd.f32 0.0, %v1817
      %v1819 = vpop.f32.mrf.mxu0
      %v1820 = vadd.f32 0.0, %v1819
      %v1821 = vpop.f32.mrf.mxu0
      %v1822 = vadd.f32 0.0, %v1821
      %v1823 = vpop.f32.mrf.mxu0
      %v1824 = vadd.f32 0.0, %v1823
      %1825 = vmatprep.mubr.bf16.mxu0 0
      %1826 = vmatmul.mubr.bf16.gmra.mxu0 %v1550
      %v1827 = vpop.f32.mrf.mxu0
      %v1828 = vadd.f32 0.0, %v1827
      %v1829 = vpop.f32.mrf.mxu0
      %v1830 = vadd.f32 0.0, %v1829
      %v1831 = vpop.f32.mrf.mxu0
      %v1832 = vadd.f32 0.0, %v1831
      %v1833 = vpop.f32.mrf.mxu0
      %v1834 = vadd.f32 0.0, %v1833
      %1835 = vmatprep.mubr.bf16.mxu0 0
      %1836 = vmatmul.mubr.bf16.gmra.mxu0 %v1551
      %v1837 = vpop.f32.mrf.mxu0
      %v1838 = vadd.f32 0.0, %v1837
      %v1839 = vpop.f32.mrf.mxu0
      %v1840 = vadd.f32 0.0, %v1839
      %v1841 = vpop.f32.mrf.mxu0
      %v1842 = vadd.f32 0.0, %v1841
      %v1843 = vpop.f32.mrf.mxu0
      %v1844 = vadd.f32 0.0, %v1843
      %1845 = vmatprep.mubr.bf16.mxu0 0
      %1846 = vmatmul.mubr.bf16.gmra.mxu0 %v1552
      %v1847 = vpop.f32.mrf.mxu0
      %v1848 = vadd.f32 0.0, %v1847
      %v1849 = vpop.f32.mrf.mxu0
      %v1850 = vadd.f32 0.0, %v1849
      %v1851 = vpop.f32.mrf.mxu0
      %v1852 = vadd.f32 0.0, %v1851
      %v1853 = vpop.f32.mrf.mxu0
      %v1854 = vadd.f32 0.0, %v1853
      %1855 = vmatprep.mubr.bf16.mxu0 0
      %1856 = vmatmul.mubr.bf16.gmra.mxu0 %v1553
      %v1857 = vpop.f32.mrf.mxu0
      %v1858 = vadd.f32 0.0, %v1857
      %v1859 = vpop.f32.mrf.mxu0
      %v1860 = vadd.f32 0.0, %v1859
      %v1861 = vpop.f32.mrf.mxu0
      %v1862 = vadd.f32 0.0, %v1861
      %v1863 = vpop.f32.mrf.mxu0
      %v1864 = vadd.f32 0.0, %v1863
      %1865 = vmatprep.mubr.bf16.mxu0 0
      %1866 = vmatmul.mubr.bf16.gmra.mxu0 %v1554
      %v1867 = vpop.f32.mrf.mxu0
      %v1868 = vadd.f32 0.0, %v1867
      %v1869 = vpop.f32.mrf.mxu0
      %v1870 = vadd.f32 0.0, %v1869
      %v1871 = vpop.f32.mrf.mxu0
      %v1872 = vadd.f32 0.0, %v1871
      %v1873 = vpop.f32.mrf.mxu0
      %v1874 = vadd.f32 0.0, %v1873
      %1875 = vmatprep.mubr.bf16.mxu0 0
      %1876 = vmatmul.mubr.bf16.gmra.mxu0 %v1555
      %v1877 = vpop.f32.mrf.mxu0
      %v1878 = vadd.f32 0.0, %v1877
      %v1879 = vpop.f32.mrf.mxu0
      %v1880 = vadd.f32 0.0, %v1879
      %v1881 = vpop.f32.mrf.mxu0
      %v1882 = vadd.f32 0.0, %v1881
      %v1883 = vpop.f32.mrf.mxu0
      %v1884 = vadd.f32 0.0, %v1883
      %1885 = vmatprep.mubr.bf16.mxu0 0
      %1886 = vmatmul.mubr.bf16.gmra.mxu0 %v1556
      %v1887 = vpop.f32.mrf.mxu0
      %v1888 = vadd.f32 0.0, %v1887
      %v1889 = vpop.f32.mrf.mxu0
      %v1890 = vadd.f32 0.0, %v1889
      %v1891 = vpop.f32.mrf.mxu0
      %v1892 = vadd.f32 0.0, %v1891
      %v1893 = vpop.f32.mrf.mxu0
      %v1894 = vadd.f32 0.0, %v1893
      %1895 = vdwg.mxu0
      %1896 = vmatprep.subr.bf16.mxu0 %v709
      %1897 = vmatpush1.bf16.msra.mxu0 %v708
      %1898 = vmatprep.subr.bf16.mxu0 %v701
      %1899 = vmatpush1.bf16.msra.mxu0 %v700
      %1900 = vmatprep.subr.bf16.mxu0 %v693
      %1901 = vmatpush1.bf16.msra.mxu0 %v692
      %1902 = vmatprep.subr.bf16.mxu0 %v685
      %1903 = vmatpush1.bf16.msra.mxu0 %v684
      %1904 = vmatprep.subr.bf16.mxu0 %v677
      %1905 = vmatpush1.bf16.msra.mxu0 %v676
      %1906 = vmatprep.subr.bf16.mxu0 %v669
      %1907 = vmatpush1.bf16.msra.mxu0 %v668
      %1908 = vmatprep.subr.bf16.mxu0 %v661
      %1909 = vmatpush1.bf16.msra.mxu0 %v660
      %1910 = vmatprep.subr.bf16.mxu0 %v653
      %1911 = vmatpush1.bf16.msra.mxu0 %v652
      %1912 = vmatprep.subr.bf16.mxu0 0
      %1913 = vmatpush2.bf16.msra.mxu0 0
      %1914 = vmatprep.subr.bf16.mxu0 0
      %1915 = vmatpush2.bf16.msra.mxu0 0
      %1916 = vmatprep.subr.bf16.mxu0 0
      %1917 = vmatpush2.bf16.msra.mxu0 0
      %1918 = vmatprep.subr.bf16.mxu0 0
      %1919 = vmatpush2.bf16.msra.mxu0 0
      %1920 = vmatprep.subr.bf16.mxu0 0
      %1921 = vmatpush2.bf16.msra.mxu0 0
      %1922 = vmatprep.subr.bf16.mxu0 0
      %1923 = vmatpush2.bf16.msra.mxu0 0
      %1924 = vmatprep.subr.bf16.mxu0 0
      %1925 = vmatpush2.bf16.msra.mxu0 0
      %1926 = vmatprep.subr.bf16.mxu0 0
      %1927 = vmatpush2.bf16.msra.mxu0 0
      %1928 = vmatprep.mubr.bf16.mxu0 0
      %1929 = vmatmul.mubr.bf16.gmra.mxu0 %v1549
      %v1930 = vpop.f32.mrf.mxu0
      %v1931 = vadd.f32 0.0, %v1930
      %v1932 = vpop.f32.mrf.mxu0
      %v1933 = vadd.f32 0.0, %v1932
      %v1934 = vpop.f32.mrf.mxu0
      %v1935 = vadd.f32 0.0, %v1934
      %v1936 = vpop.f32.mrf.mxu0
      %v1937 = vadd.f32 0.0, %v1936
      %1938 = vmatprep.mubr.bf16.mxu0 0
      %1939 = vmatmul.mubr.bf16.gmra.mxu0 %v1550
      %v1940 = vpop.f32.mrf.mxu0
      %v1941 = vadd.f32 0.0, %v1940
      %v1942 = vpop.f32.mrf.mxu0
      %v1943 = vadd.f32 0.0, %v1942
      %v1944 = vpop.f32.mrf.mxu0
      %v1945 = vadd.f32 0.0, %v1944
      %v1946 = vpop.f32.mrf.mxu0
      %v1947 = vadd.f32 0.0, %v1946
      %1948 = vmatprep.mubr.bf16.mxu0 0
      %1949 = vmatmul.mubr.bf16.gmra.mxu0 %v1551
      %v1950 = vpop.f32.mrf.mxu0
      %v1951 = vadd.f32 0.0, %v1950
      %v1952 = vpop.f32.mrf.mxu0
      %v1953 = vadd.f32 0.0, %v1952
      %v1954 = vpop.f32.mrf.mxu0
      %v1955 = vadd.f32 0.0, %v1954
      %v1956 = vpop.f32.mrf.mxu0
      %v1957 = vadd.f32 0.0, %v1956
      %1958 = vmatprep.mubr.bf16.mxu0 0
      %1959 = vmatmul.mubr.bf16.gmra.mxu0 %v1552
      %v1960 = vpop.f32.mrf.mxu0
      %v1961 = vadd.f32 0.0, %v1960
      %v1962 = vpop.f32.mrf.mxu0
      %v1963 = vadd.f32 0.0, %v1962
      %v1964 = vpop.f32.mrf.mxu0
      %v1965 = vadd.f32 0.0, %v1964
      %v1966 = vpop.f32.mrf.mxu0
      %v1967 = vadd.f32 0.0, %v1966
      %1968 = vmatprep.mubr.bf16.mxu0 0
      %1969 = vmatmul.mubr.bf16.gmra.mxu0 %v1553
      %v1970 = vpop.f32.mrf.mxu0
      %v1971 = vadd.f32 0.0, %v1970
      %v1972 = vpop.f32.mrf.mxu0
      %v1973 = vadd.f32 0.0, %v1972
      %v1974 = vpop.f32.mrf.mxu0
      %v1975 = vadd.f32 0.0, %v1974
      %v1976 = vpop.f32.mrf.mxu0
      %v1977 = vadd.f32 0.0, %v1976
      %1978 = vmatprep.mubr.bf16.mxu0 0
      %1979 = vmatmul.mubr.bf16.gmra.mxu0 %v1554
      %v1980 = vpop.f32.mrf.mxu0
      %v1981 = vadd.f32 0.0, %v1980
      %v1982 = vpop.f32.mrf.mxu0
      %v1983 = vadd.f32 0.0, %v1982
      %v1984 = vpop.f32.mrf.mxu0
      %v1985 = vadd.f32 0.0, %v1984
      %v1986 = vpop.f32.mrf.mxu0
      %v1987 = vadd.f32 0.0, %v1986
      %1988 = vmatprep.mubr.bf16.mxu0 0
      %1989 = vmatmul.mubr.bf16.gmra.mxu0 %v1555
      %v1990 = vpop.f32.mrf.mxu0
      %v1991 = vadd.f32 0.0, %v1990
      %v1992 = vpop.f32.mrf.mxu0
      %v1993 = vadd.f32 0.0, %v1992
      %v1994 = vpop.f32.mrf.mxu0
      %v1995 = vadd.f32 0.0, %v1994
      %v1996 = vpop.f32.mrf.mxu0
      %v1997 = vadd.f32 0.0, %v1996
      %1998 = vmatprep.mubr.bf16.mxu0 0
      %1999 = vmatmul.mubr.bf16.gmra.mxu0 %v1556
      %v2000 = vpop.f32.mrf.mxu0
      %v2001 = vadd.f32 0.0, %v2000
      %v2002 = vpop.f32.mrf.mxu0
      %v2003 = vadd.f32 0.0, %v2002
      %v2004 = vpop.f32.mrf.mxu0
      %v2005 = vadd.f32 0.0, %v2004
      %v2006 = vpop.f32.mrf.mxu0
      %v2007 = vadd.f32 0.0, %v2006
      %2008 = vdwg.mxu0
      %v2009 = vmul.f32 %v956, %v1592
      %v2010 = vmul.f32 %v957, %v1594
      %v2011 = vmul.f32 %v958, %v1705
      %v2012 = vmul.f32 %v959, %v1707
      %v2013 = vmul.f32 %v960, %v1818
      %v2014 = vmul.f32 %v961, %v1820
      %v2015 = vmul.f32 %v962, %v1931
      %v2016 = vmul.f32 %v963, %v1933
      %v2017 = vmul.f32 %v964, %v1596
      %v2018 = vmul.f32 %v965, %v1598
      %v2019 = vmul.f32 %v966, %v1709
      %v2020 = vmul.f32 %v967, %v1711
      %v2021 = vmul.f32 %v968, %v1822
      %v2022 = vmul.f32 %v969, %v1824
      %v2023 = vmul.f32 %v970, %v1935
      %v2024 = vmul.f32 %v971, %v1937
      %v2025 = vmul.f32 %v972, %v1602
      %v2026 = vmul.f32 %v973, %v1604
      %v2027 = vmul.f32 %v974, %v1715
      %v2028 = vmul.f32 %v975, %v1717
      %v2029 = vmul.f32 %v976, %v1828
      %v2030 = vmul.f32 %v977, %v1830
      %v2031 = vmul.f32 %v978, %v1941
      %v2032 = vmul.f32 %v979, %v1943
      %v2033 = vmul.f32 %v980, %v1606
      %v2034 = vmul.f32 %v981, %v1608
      %v2035 = vmul.f32 %v982, %v1719
      %v2036 = vmul.f32 %v983, %v1721
      %v2037 = vmul.f32 %v984, %v1832
      %v2038 = vmul.f32 %v985, %v1834
      %v2039 = vmul.f32 %v986, %v1945
      %v2040 = vmul.f32 %v987, %v1947
      %v2041 = vmul.f32 %v988, %v1612
      %v2042 = vmul.f32 %v989, %v1614
      %v2043 = vmul.f32 %v990, %v1725
      %v2044 = vmul.f32 %v991, %v1727
      %v2045 = vmul.f32 %v992, %v1838
      %v2046 = vmul.f32 %v993, %v1840
      %v2047 = vmul.f32 %v994, %v1951
      %v2048 = vmul.f32 %v995, %v1953
      %v2049 = vmul.f32 %v996, %v1616
      %v2050 = vmul.f32 %v997, %v1618
      %v2051 = vmul.f32 %v998, %v1729
      %v2052 = vmul.f32 %v999, %v1731
      %v2053 = vmul.f32 %v1000, %v1842
      %v2054 = vmul.f32 %v1001, %v1844
      %v2055 = vmul.f32 %v1002, %v1955
      %v2056 = vmul.f32 %v1003, %v1957
      %v2057 = vmul.f32 %v1004, %v1622
      %v2058 = vmul.f32 %v1005, %v1624
      %v2059 = vmul.f32 %v1006, %v1735
      %v2060 = vmul.f32 %v1007, %v1737
      %v2061 = vmul.f32 %v1008, %v1848
      %v2062 = vmul.f32 %v1009, %v1850
      %v2063 = vmul.f32 %v1010, %v1961
      %v2064 = vmul.f32 %v1011, %v1963
      %v2065 = vmul.f32 %v1012, %v1626
      %v2066 = vmul.f32 %v1013, %v1628
      %v2067 = vmul.f32 %v1014, %v1739
      %v2068 = vmul.f32 %v1015, %v1741
      %v2069 = vmul.f32 %v1016, %v1852
      %v2070 = vmul.f32 %v1017, %v1854
      %v2071 = vmul.f32 %v1018, %v1965
      %v2072 = vmul.f32 %v1019, %v1967
      %v2073 = vmul.f32 %v1020, %v1632
      %v2074 = vmul.f32 %v1021, %v1634
      %v2075 = vmul.f32 %v1022, %v1745
      %v2076 = vmul.f32 %v1023, %v1747
      %v2077 = vmul.f32 %v1024, %v1858
      %v2078 = vmul.f32 %v1025, %v1860
      %v2079 = vmul.f32 %v1026, %v1971
      %v2080 = vmul.f32 %v1027, %v1973
      %v2081 = vmul.f32 %v1028, %v1636
      %v2082 = vmul.f32 %v1029, %v1638
      %v2083 = vmul.f32 %v1030, %v1749
      %v2084 = vmul.f32 %v1031, %v1751
      %v2085 = vmul.f32 %v1032, %v1862
      %v2086 = vmul.f32 %v1033, %v1864
      %v2087 = vmul.f32 %v1034, %v1975
      %v2088 = vmul.f32 %v1035, %v1977
      %v2089 = vmul.f32 %v1036, %v1642
      %v2090 = vmul.f32 %v1037, %v1644
      %v2091 = vmul.f32 %v1038, %v1755
      %v2092 = vmul.f32 %v1039, %v1757
      %v2093 = vmul.f32 %v1040, %v1868
      %v2094 = vmul.f32 %v1041, %v1870
      %v2095 = vmul.f32 %v1042, %v1981
      %v2096 = vmul.f32 %v1043, %v1983
      %v2097 = vmul.f32 %v1044, %v1646
      %v2098 = vmul.f32 %v1045, %v1648
      %v2099 = vmul.f32 %v1046, %v1759
      %v2100 = vmul.f32 %v1047, %v1761
      %v2101 = vmul.f32 %v1048, %v1872
      %v2102 = vmul.f32 %v1049, %v1874
      %v2103 = vmul.f32 %v1050, %v1985
      %v2104 = vmul.f32 %v1051, %v1987
      %v2105 = vmul.f32 %v1052, %v1652
      %v2106 = vmul.f32 %v1053, %v1654
      %v2107 = vmul.f32 %v1054, %v1765
      %v2108 = vmul.f32 %v1055, %v1767
      %v2109 = vmul.f32 %v1056, %v1878
      %v2110 = vmul.f32 %v1057, %v1880
      %v2111 = vmul.f32 %v1058, %v1991
      %v2112 = vmul.f32 %v1059, %v1993
      %v2113 = vmul.f32 %v1060, %v1656
      %v2114 = vmul.f32 %v1061, %v1658
      %v2115 = vmul.f32 %v1062, %v1769
      %v2116 = vmul.f32 %v1063, %v1771
      %v2117 = vmul.f32 %v1064, %v1882
      %v2118 = vmul.f32 %v1065, %v1884
      %v2119 = vmul.f32 %v1066, %v1995
      %v2120 = vmul.f32 %v1067, %v1997
      %v2121 = vmul.f32 %v1068, %v1662
      %v2122 = vmul.f32 %v1069, %v1664
      %v2123 = vmul.f32 %v1070, %v1775
      %v2124 = vmul.f32 %v1071, %v1777
      %v2125 = vmul.f32 %v1072, %v1888
      %v2126 = vmul.f32 %v1073, %v1890
      %v2127 = vmul.f32 %v1074, %v2001
      %v2128 = vmul.f32 %v1075, %v2003
      %v2129 = vmul.f32 %v1076, %v1666
      %v2130 = vmul.f32 %v1077, %v1668
      %v2131 = vmul.f32 %v1078, %v1779
      %v2132 = vmul.f32 %v1079, %v1781
      %v2133 = vmul.f32 %v1080, %v1892
      %v2134 = vmul.f32 %v1081, %v1894
      %v2135 = vmul.f32 %v1082, %v2005
      %v2136 = vmul.f32 %v1083, %v2007
      %v2137 = vadd.f32 %v2009, %v2017
      %v2138 = vadd.f32 %v2137, %v2025
      %v2139 = vadd.f32 %v2138, %v2033
      %v2140 = vadd.f32 %v2139, %v2041
      %v2141 = vadd.f32 %v2140, %v2049
      %v2142 = vadd.f32 %v2141, %v2057
      %v2143 = vadd.f32 %v2142, %v2065
      %v2144 = vadd.f32 %v2143, %v2073
      %v2145 = vadd.f32 %v2144, %v2081
      %v2146 = vadd.f32 %v2145, %v2089
      %v2147 = vadd.f32 %v2146, %v2097
      %v2148 = vadd.f32 %v2147, %v2105
      %v2149 = vadd.f32 %v2148, %v2113
      %v2150 = vadd.f32 %v2149, %v2121
      %v2151 = vadd.f32 %v2150, %v2129
      %v2152 = vrot.slane %v2151, 4
      %v2153 = vadd.f32 %v2151, %v2152
      %v2154 = vrot.slane %v2153, 2
      %v2155 = vadd.f32 %v2153, %v2154
      %v2156 = vrot.slane %v2155, 1
      %v2157 = vadd.f32 %v2155, %v2156
      %v2158 = vadd.f32 %v2010, %v2018
      %v2159 = vadd.f32 %v2158, %v2026
      %v2160 = vadd.f32 %v2159, %v2034
      %v2161 = vadd.f32 %v2160, %v2042
      %v2162 = vadd.f32 %v2161, %v2050
      %v2163 = vadd.f32 %v2162, %v2058
      %v2164 = vadd.f32 %v2163, %v2066
      %v2165 = vadd.f32 %v2164, %v2074
      %v2166 = vadd.f32 %v2165, %v2082
      %v2167 = vadd.f32 %v2166, %v2090
      %v2168 = vadd.f32 %v2167, %v2098
      %v2169 = vadd.f32 %v2168, %v2106
      %v2170 = vadd.f32 %v2169, %v2114
      %v2171 = vadd.f32 %v2170, %v2122
      %v2172 = vadd.f32 %v2171, %v2130
      %v2173 = vrot.slane %v2172, 4
      %v2174 = vadd.f32 %v2172, %v2173
      %v2175 = vrot.slane %v2174, 2
      %v2176 = vadd.f32 %v2174, %v2175
      %v2177 = vrot.slane %v2176, 1
      %v2178 = vadd.f32 %v2176, %v2177
      %v2179 = vadd.f32 %v2011, %v2019
      %v2180 = vadd.f32 %v2179, %v2027
      %v2181 = vadd.f32 %v2180, %v2035
      %v2182 = vadd.f32 %v2181, %v2043
      %v2183 = vadd.f32 %v2182, %v2051
      %v2184 = vadd.f32 %v2183, %v2059
      %v2185 = vadd.f32 %v2184, %v2067
      %v2186 = vadd.f32 %v2185, %v2075
      %v2187 = vadd.f32 %v2186, %v2083
      %v2188 = vadd.f32 %v2187, %v2091
      %v2189 = vadd.f32 %v2188, %v2099
      %v2190 = vadd.f32 %v2189, %v2107
      %v2191 = vadd.f32 %v2190, %v2115
      %v2192 = vadd.f32 %v2191, %v2123
      %v2193 = vadd.f32 %v2192, %v2131
      %v2194 = vrot.slane %v2193, 4
      %v2195 = vadd.f32 %v2193, %v2194
      %v2196 = vrot.slane %v2195, 2
      %v2197 = vadd.f32 %v2195, %v2196
      %v2198 = vrot.slane %v2197, 1
      %v2199 = vadd.f32 %v2197, %v2198
      %v2200 = vadd.f32 %v2012, %v2020
      %v2201 = vadd.f32 %v2200, %v2028
      %v2202 = vadd.f32 %v2201, %v2036
      %v2203 = vadd.f32 %v2202, %v2044
      %v2204 = vadd.f32 %v2203, %v2052
      %v2205 = vadd.f32 %v2204, %v2060
      %v2206 = vadd.f32 %v2205, %v2068
      %v2207 = vadd.f32 %v2206, %v2076
      %v2208 = vadd.f32 %v2207, %v2084
      %v2209 = vadd.f32 %v2208, %v2092
      %v2210 = vadd.f32 %v2209, %v2100
      %v2211 = vadd.f32 %v2210, %v2108
      %v2212 = vadd.f32 %v2211, %v2116
      %v2213 = vadd.f32 %v2212, %v2124
      %v2214 = vadd.f32 %v2213, %v2132
      %v2215 = vrot.slane %v2214, 4
      %v2216 = vadd.f32 %v2214, %v2215
      %v2217 = vrot.slane %v2216, 2
      %v2218 = vadd.f32 %v2216, %v2217
      %v2219 = vrot.slane %v2218, 1
      %v2220 = vadd.f32 %v2218, %v2219
      %v2221 = vadd.f32 %v2013, %v2021
      %v2222 = vadd.f32 %v2221, %v2029
      %v2223 = vadd.f32 %v2222, %v2037
      %v2224 = vadd.f32 %v2223, %v2045
      %v2225 = vadd.f32 %v2224, %v2053
      %v2226 = vadd.f32 %v2225, %v2061
      %v2227 = vadd.f32 %v2226, %v2069
      %v2228 = vadd.f32 %v2227, %v2077
      %v2229 = vadd.f32 %v2228, %v2085
      %v2230 = vadd.f32 %v2229, %v2093
      %v2231 = vadd.f32 %v2230, %v2101
      %v2232 = vadd.f32 %v2231, %v2109
      %v2233 = vadd.f32 %v2232, %v2117
      %v2234 = vadd.f32 %v2233, %v2125
      %v2235 = vadd.f32 %v2234, %v2133
      %v2236 = vrot.slane %v2235, 4
      %v2237 = vadd.f32 %v2235, %v2236
      %v2238 = vrot.slane %v2237, 2
      %v2239 = vadd.f32 %v2237, %v2238
      %v2240 = vrot.slane %v2239, 1
      %v2241 = vadd.f32 %v2239, %v2240
      %v2242 = vadd.f32 %v2014, %v2022
      %v2243 = vadd.f32 %v2242, %v2030
      %v2244 = vadd.f32 %v2243, %v2038
      %v2245 = vadd.f32 %v2244, %v2046
      %v2246 = vadd.f32 %v2245, %v2054
      %v2247 = vadd.f32 %v2246, %v2062
      %v2248 = vadd.f32 %v2247, %v2070
      %v2249 = vadd.f32 %v2248, %v2078
      %v2250 = vadd.f32 %v2249, %v2086
      %v2251 = vadd.f32 %v2250, %v2094
      %v2252 = vadd.f32 %v2251, %v2102
      %v2253 = vadd.f32 %v2252, %v2110
      %v2254 = vadd.f32 %v2253, %v2118
      %v2255 = vadd.f32 %v2254, %v2126
      %v2256 = vadd.f32 %v2255, %v2134
      %v2257 = vrot.slane %v2256, 4
      %v2258 = vadd.f32 %v2256, %v2257
      %v2259 = vrot.slane %v2258, 2
      %v2260 = vadd.f32 %v2258, %v2259
      %v2261 = vrot.slane %v2260, 1
      %v2262 = vadd.f32 %v2260, %v2261
      %v2263 = vadd.f32 %v2015, %v2023
      %v2264 = vadd.f32 %v2263, %v2031
      %v2265 = vadd.f32 %v2264, %v2039
      %v2266 = vadd.f32 %v2265, %v2047
      %v2267 = vadd.f32 %v2266, %v2055
      %v2268 = vadd.f32 %v2267, %v2063
      %v2269 = vadd.f32 %v2268, %v2071
      %v2270 = vadd.f32 %v2269, %v2079
      %v2271 = vadd.f32 %v2270, %v2087
      %v2272 = vadd.f32 %v2271, %v2095
      %v2273 = vadd.f32 %v2272, %v2103
      %v2274 = vadd.f32 %v2273, %v2111
      %v2275 = vadd.f32 %v2274, %v2119
      %v2276 = vadd.f32 %v2275, %v2127
      %v2277 = vadd.f32 %v2276, %v2135
      %v2278 = vrot.slane %v2277, 4
      %v2279 = vadd.f32 %v2277, %v2278
      %v2280 = vrot.slane %v2279, 2
      %v2281 = vadd.f32 %v2279, %v2280
      %v2282 = vrot.slane %v2281, 1
      %v2283 = vadd.f32 %v2281, %v2282
      %v2284 = vadd.f32 %v2016, %v2024
      %v2285 = vadd.f32 %v2284, %v2032
      %v2286 = vadd.f32 %v2285, %v2040
      %v2287 = vadd.f32 %v2286, %v2048
      %v2288 = vadd.f32 %v2287, %v2056
      %v2289 = vadd.f32 %v2288, %v2064
      %v2290 = vadd.f32 %v2289, %v2072
      %v2291 = vadd.f32 %v2290, %v2080
      %v2292 = vadd.f32 %v2291, %v2088
      %v2293 = vadd.f32 %v2292, %v2096
      %v2294 = vadd.f32 %v2293, %v2104
      %v2295 = vadd.f32 %v2294, %v2112
      %v2296 = vadd.f32 %v2295, %v2120
      %v2297 = vadd.f32 %v2296, %v2128
      %v2298 = vadd.f32 %v2297, %v2136
      %v2299 = vrot.slane %v2298, 4
      %v2300 = vadd.f32 %v2298, %v2299
      %v2301 = vrot.slane %v2300, 2
      %v2302 = vadd.f32 %v2300, %v2301
      %v2303 = vrot.slane %v2302, 1
      %v2304 = vadd.f32 %v2302, %v2303
      %v2305 = vmax.f32 %v809, %v813
      %v2306 = vrot.slane %v2305, 4
      %v2307 = vmax.f32 %v2305, %v2306
      %v2308 = vrot.slane %v2307, 2
      %v2309 = vmax.f32 %v2307, %v2308
      %v2310 = vrot.slane %v2309, 1
      %v2311 = vmax.f32 %v2309, %v2310
      %v2312 = vmax.f32 %v811, %v815
      %v2313 = vrot.slane %v2312, 4
      %v2314 = vmax.f32 %v2312, %v2313
      %v2315 = vrot.slane %v2314, 2
      %v2316 = vmax.f32 %v2314, %v2315
      %v2317 = vrot.slane %v2316, 1
      %v2318 = vmax.f32 %v2316, %v2317
      %v2319 = vmax.f32 %v852, %v856
      %v2320 = vrot.slane %v2319, 4
      %v2321 = vmax.f32 %v2319, %v2320
      %v2322 = vrot.slane %v2321, 2
      %v2323 = vmax.f32 %v2321, %v2322
      %v2324 = vrot.slane %v2323, 1
      %v2325 = vmax.f32 %v2323, %v2324
      %v2326 = vmax.f32 %v854, %v858
      %v2327 = vrot.slane %v2326, 4
      %v2328 = vmax.f32 %v2326, %v2327
      %v2329 = vrot.slane %v2328, 2
      %v2330 = vmax.f32 %v2328, %v2329
      %v2331 = vrot.slane %v2330, 1
      %v2332 = vmax.f32 %v2330, %v2331
      %v2333 = vmax.f32 %v895, %v899
      %v2334 = vrot.slane %v2333, 4
      %v2335 = vmax.f32 %v2333, %v2334
      %v2336 = vrot.slane %v2335, 2
      %v2337 = vmax.f32 %v2335, %v2336
      %v2338 = vrot.slane %v2337, 1
      %v2339 = vmax.f32 %v2337, %v2338
      %v2340 = vmax.f32 %v897, %v901
      %v2341 = vrot.slane %v2340, 4
      %v2342 = vmax.f32 %v2340, %v2341
      %v2343 = vrot.slane %v2342, 2
      %v2344 = vmax.f32 %v2342, %v2343
      %v2345 = vrot.slane %v2344, 1
      %v2346 = vmax.f32 %v2344, %v2345
      %v2347 = vmax.f32 %v938, %v942
      %v2348 = vrot.slane %v2347, 4
      %v2349 = vmax.f32 %v2347, %v2348
      %v2350 = vrot.slane %v2349, 2
      %v2351 = vmax.f32 %v2349, %v2350
      %v2352 = vrot.slane %v2351, 1
      %v2353 = vmax.f32 %v2351, %v2352
      %v2354 = vmax.f32 %v940, %v944
      %v2355 = vrot.slane %v2354, 4
      %v2356 = vmax.f32 %v2354, %v2355
      %v2357 = vrot.slane %v2356, 2
      %v2358 = vmax.f32 %v2356, %v2357
      %v2359 = vrot.slane %v2358, 1
      %v2360 = vmax.f32 %v2358, %v2359
      %v2361 = vmin.f32 %v809, %v813
      %v2362 = vrot.slane %v2361, 4
      %v2363 = vmin.f32 %v2361, %v2362
      %v2364 = vrot.slane %v2363, 2
      %v2365 = vmin.f32 %v2363, %v2364
      %v2366 = vrot.slane %v2365, 1
      %v2367 = vmin.f32 %v2365, %v2366
      %v2368 = vmin.f32 %v811, %v815
      %v2369 = vrot.slane %v2368, 4
      %v2370 = vmin.f32 %v2368, %v2369
      %v2371 = vrot.slane %v2370, 2
      %v2372 = vmin.f32 %v2370, %v2371
      %v2373 = vrot.slane %v2372, 1
      %v2374 = vmin.f32 %v2372, %v2373
      %v2375 = vmin.f32 %v852, %v856
      %v2376 = vrot.slane %v2375, 4
      %v2377 = vmin.f32 %v2375, %v2376
      %v2378 = vrot.slane %v2377, 2
      %v2379 = vmin.f32 %v2377, %v2378
      %v2380 = vrot.slane %v2379, 1
      %v2381 = vmin.f32 %v2379, %v2380
      %v2382 = vmin.f32 %v854, %v858
      %v2383 = vrot.slane %v2382, 4
      %v2384 = vmin.f32 %v2382, %v2383
      %v2385 = vrot.slane %v2384, 2
      %v2386 = vmin.f32 %v2384, %v2385
      %v2387 = vrot.slane %v2386, 1
      %v2388 = vmin.f32 %v2386, %v2387
      %v2389 = vmin.f32 %v895, %v899
      %v2390 = vrot.slane %v2389, 4
      %v2391 = vmin.f32 %v2389, %v2390
      %v2392 = vrot.slane %v2391, 2
      %v2393 = vmin.f32 %v2391, %v2392
      %v2394 = vrot.slane %v2393, 1
      %v2395 = vmin.f32 %v2393, %v2394
      %v2396 = vmin.f32 %v897, %v901
      %v2397 = vrot.slane %v2396, 4
      %v2398 = vmin.f32 %v2396, %v2397
      %v2399 = vrot.slane %v2398, 2
      %v2400 = vmin.f32 %v2398, %v2399
      %v2401 = vrot.slane %v2400, 1
      %v2402 = vmin.f32 %v2400, %v2401
      %v2403 = vmin.f32 %v938, %v942
      %v2404 = vrot.slane %v2403, 4
      %v2405 = vmin.f32 %v2403, %v2404
      %v2406 = vrot.slane %v2405, 2
      %v2407 = vmin.f32 %v2405, %v2406
      %v2408 = vrot.slane %v2407, 1
      %v2409 = vmin.f32 %v2407, %v2408
      %v2410 = vmin.f32 %v940, %v944
      %v2411 = vrot.slane %v2410, 4
      %v2412 = vmin.f32 %v2410, %v2411
      %v2413 = vrot.slane %v2412, 2
      %v2414 = vmin.f32 %v2412, %v2413
      %v2415 = vrot.slane %v2414, 1
      %v2416 = vmin.f32 %v2414, %v2415
      %vm2417 = vcmask 1040384
      %v2418 = vsel %vm2417, %v1193, %v2157
      %v2419 = vsel %vm2417, %v1195, %v2178
      %v2420 = vsel %vm2417, %v1264, %v2199
      %v2421 = vsel %vm2417, %v1266, %v2220
      %v2422 = vsel %vm2417, %v1335, %v2241
      %v2423 = vsel %vm2417, %v1337, %v2262
      %v2424 = vsel %vm2417, %v1406, %v2283
      %v2425 = vsel %vm2417, %v1408, %v2304
      %vm2426 = vcmask 1041408
      %v2427 = vsel %vm2426, %v2418, %v2311
      %v2428 = vsel %vm2426, %v2419, %v2318
      %v2429 = vsel %vm2426, %v2420, %v2325
      %v2430 = vsel %vm2426, %v2421, %v2332
      %v2431 = vsel %vm2426, %v2422, %v2339
      %v2432 = vsel %vm2426, %v2423, %v2346
      %v2433 = vsel %vm2426, %v2424, %v2353
      %v2434 = vsel %vm2426, %v2425, %v2360
      %vm2435 = vcmask 1042432
      %v2436 = vsel %vm2435, %v2427, %v2367
      %v2437 = vsel %vm2435, %v2428, %v2374
      %v2438 = vsel %vm2435, %v2429, %v2381
      %v2439 = vsel %vm2435, %v2430, %v2388
      %v2440 = vsel %vm2435, %v2431, %v2395
      %v2441 = vsel %vm2435, %v2432, %v2402
      %v2442 = vsel %vm2435, %v2433, %v2409
      %v2443 = vsel %vm2435, %v2434, %v2416
      %vm2444 = vcmask 1043456
      %v2445 = vsel %vm2444, %v2436, 0.0
      %v2446 = vsel %vm2444, %v2437, 0.0
      %v2447 = vsel %vm2444, %v2438, 0.0
      %v2448 = vsel %vm2444, %v2439, 0.0
      %v2449 = vsel %vm2444, %v2440, 0.0
      %v2450 = vsel %vm2444, %v2441, 0.0
      %v2451 = vsel %vm2444, %v2442, 0.0
      %v2452 = vsel %vm2444, %v2443, 0.0
      %2453 = vst [vmem:[%s320] sm:$0xff] %v2445
      %2454 = vst [vmem:[%s320 + $0x8] sm:$0xff] %v2446
      %2455 = vst [vmem:[%s320 + $0x10] sm:$0xff] %v2447
      %2456 = vst [vmem:[%s320 + $0x18] sm:$0xff] %v2448
      %2457 = vst [vmem:[%s320 + $0x20] sm:$0xff] %v2449
      %2458 = vst [vmem:[%s320 + $0x28] sm:$0xff] %v2450
      %2459 = vst [vmem:[%s320 + $0x30] sm:$0xff] %v2451
      %2460 = vst [vmem:[%s320 + $0x38] sm:$0xff] %v2452
      %s2461 = smul.u32 8, %s23
      %p2462 = scmp.lt.s32.totalorder %s22, 1
      %s2463 = scalar_select %p2462, %s22, 1
      %p2464 = scmp.lt.s32.totalorder %s21, 0
      %s2465 = scalar_select %p2464, %s21, 0
      %p2466 = scmp.lt.s32.totalorder %s2461, 7
      %s2467 = scalar_select %p2466, %s2461, 7
      %s2468 = smul.addr %s2465, 8
      %s2469 = sadd.s32 %s2467, %s2468
      %s2470 = smul.addr %s2463, 8
      %s2471 = sadd.s32 %s2469, %s2470
      %s2472 = smul.addr %s2471, 8
      %s2473 = scalar_lea.vmem %s5, %s2472
      // Predicated region
      $region41: #{point_cloud_global_embedding.15} parent=39 // pred_check
        %p2474 = pneg %p179
      $region42: #{point_cloud_global_embedding.15} parent=39 // pred_check_branch
        %2476 = sbr.rel (%p2474) target = $region44
      $region43: #{point_cloud_global_embedding.15} parent=39 // pred_region
        %s2477 = smul.u32 8, %s23
      $region44: #{point_cloud_global_embedding.15} parent=39 // pred_fallthru
        _
    $region40: #{point_cloud_global_embedding.15} parent=5 // pred_fallthru
      _
    %p2478 = scmp.le.s32.totalorder 2, %s11
    // Predicated region
    $region45: #{point_cloud_global_embedding.15} parent=5 // pred_check
      %p2479 = pneg %p2478
    $region46: #{point_cloud_global_embedding.15} parent=5 // pred_check_branch
      %2481 = sbr.rel (%p2479) target = $region48
    $region47: #{point_cloud_global_embedding.15} parent=5 // pred_region
      %s2482 = ssub.s32 %s11, 2
      // Predicated region
      $region49: #{point_cloud_global_embedding.15} parent=47 // pred_check
        %p2483 = pneg %p185
      $region50: #{point_cloud_global_embedding.15} parent=47 // pred_check_branch
        %2485 = sbr.rel (%p2483) target = $region52
      $region51: #{point_cloud_global_embedding.15} parent=47 // pred_region
        %s2486 = smul.u32 8, %s26
        %p2487 = scmp.lt.s32.totalorder %s25, 1
        %s2488 = scalar_select %p2487, %s25, 1
        %p2489 = scmp.lt.s32.totalorder %s24, 0
        %s2490 = scalar_select %p2489, %s24, 0
        %p2491 = scmp.lt.s32.totalorder %s2486, 7
        %s2492 = scalar_select %p2491, %s2486, 7
        %s2493 = smul.addr %s2490, 8
        %s2494 = sadd.s32 %s2492, %s2493
        %s2495 = smul.addr %s2488, 8
        %s2496 = sadd.s32 %s2494, %s2495
        %s2497 = smul.addr %s2496, 8
        %s2498 = scalar_lea.vmem %s5, %s2497
      $region52: #{point_cloud_global_embedding.15} parent=47 // pred_fallthru
        _
    $region48: #{point_cloud_global_embedding.15} parent=5 // pred_fallthru
      _
  $region6: #{point_cloud_global_embedding.15} parent=0 // loop_footer
    %s15 = sadd.s32 1, %s11
  $region7: #{point_cloud_global_embedding.15} parent=0 // loop_footer_branch
    %10 = sbr.rel target = $region3
  $region8: #{point_cloud_global_embedding.15} parent=0 // loop_exit
    _

// kernel: point_cloud_global_embedding.16
$region0: #{point_cloud_global_embedding.16}
  #allocation0 [shape = 'u32[]', space=smem, size = 0x4, offset = 0x4, fixed_abs, tag = 'smem constant byte address 0x4 - core index']
  #allocation1 [shape = 'u32[144,128]{1,0:T(1,128)}', space=vmem, size = 0x12000, scoped, tag = 'internal scratch']
  %s0 = inlined_call_operand.vmem [shape: bf16[2,16,64], index: 0, kind: input, shape index: {}]
  %s1 = inlined_call_operand.vmem [shape: bf16[2,64,128], index: 1, kind: input, shape index: {}]
  %s2 = inlined_call_operand.vmem [shape: f32[1,128], index: 2, kind: input, shape index: {}]
  %s3 = inlined_call_operand.vmem [shape: f32[1,64], index: 3, kind: input, shape index: {}]
  %s4 = inlined_call_operand.vmem [shape: f32[1,64], index: 4, kind: input, shape index: {}]
  %s5 = inlined_call_operand.vmem [shape: bf16[2,16,128], index: 5, kind: output, shape index: {0}]
  %s6 = inlined_call_operand.vmem [shape: f32[2,1,8,128], index: 6, kind: output, shape index: {1}]
  %7 = xla_tuple %s5, %s6
  %s8 = sld [smem:[#allocation0]]
  $region61: #{point_cloud_global_embedding.16} parent=0
    _
  %s10 = ssub.s32 1, %s8
  %s11 = scalar_select 0, %s10, %s8
  loop: start=0, step=1, limit=4
  $region2: #{point_cloud_global_embedding.16} parent=0 // loop_pre_header
    _
  $region3: #{point_cloud_global_embedding.16} parent=0 // loop_header
    %s13 = sphi 0, %s17
    %p14 = scmp.ge.s32.totalorder %s13, 4
    %s20 = sphi 0, %s39
    %s21 = sphi 0, %s35
    %s22 = sphi 0, %s31
    %s23 = sphi 0, %s20
    %s24 = sphi 0, %s21
    %s25 = sphi 0, %s22
    %s26 = sphi 0, %s23
    %s27 = sphi 0, %s24
    %s28 = sphi 0, %s25
    %s44 = sphi 0, %s46
    %s47 = sphi 0, %s44
    %s48 = sphi 0, %s47
    %s64 = sphi 0, %s48
    %s72 = sphi 0, %s74
    %s75 = sphi 0, %s72
    %s76 = sphi 0, %s75
    %s92 = sphi 0, %s76
    %s98 = sphi 0, %s100
    %s101 = sphi 0, %s98
    %s102 = sphi 0, %s101
    %s118 = sphi 0, %s102
    %s122 = sphi 0, %s122
    %s124 = sphi 0, %s122
    %s125 = sphi 0, %s124
    %s139 = sphi 0, %s125
    %s143 = sphi 0, %s143
    %s145 = sphi 0, %s143
    %s146 = sphi 0, %s145
    %s160 = sphi 0, %s146
    %s170 = sphi 0, %s172
    %s173 = sphi 0, %s170
    %s174 = sphi 0, %s173
    %s190 = sphi 0, %s174
    %s200 = sphi 0, %s202
    %s203 = sphi 0, %s200
    %s204 = sphi 0, %s203
    %s220 = sphi 0, %s204
  $region4: #{point_cloud_global_embedding.16} parent=0 // loop_header_branch
    %16 = sbr.rel (%p14) target = $region8
  $region5: #{point_cloud_global_embedding.16} parent=0 // loop_body
    %s18 = ssub.s32 %s13, 1
    %s19 = ssub.s32 %s13, 2
    %s29 = sadd.s32 1, %s22
    %p30 = scmp.ge.s32.totalorder %s29, 1
    %s31 = scalar_select %p30, 0, %s29
    %s32 = sadd.s32 1, %s21
    %s33 = scalar_select %p30, %s32, %s21
    %p34 = scmp.ge.s32.totalorder %s33, 2
    %s35 = scalar_select %p34, 0, %s33
    %s36 = sadd.s32 1, %s20
    %s37 = scalar_select %p34, %s36, %s20
    %p38 = scmp.ge.s32.totalorder %s37, 1
    %s39 = scalar_select %p38, 0, %s37
    %s40 = ssub.s32 %s21, %s35
    %s41 = ssub.s32 %s20, %s39
    %s42 = sor.u32 %s40, %s41
    %p43 = scmp.eq.s32.totalorder %s42, 0
    %s45 = sadd.s32 %s44, 1
    %s46 = scalar_select %p43, %s44, %s45
    %p49 = pneg %p43
    %p50 = scmp.eq.s32.totalorder %s13, 1
    %p51 = por %p49, %p50
    %p52 = scmp.ne.s32.totalorder %s44, %s47
    %p53 = scmp.eq.s32.totalorder %s13, 0
    %p54 = por %p52, %p53
    %p55 = scmp.ne.s32.totalorder %s44, %s47
    %p56 = scmp.eq.s32.totalorder %s18, 1
    %p57 = por %p55, %p56
    %p58 = scmp.ne.s32.totalorder %s47, %s48
    %p59 = scmp.eq.s32.totalorder %s18, 0
    %p60 = por %p58, %p59
    %p61 = scmp.ne.s32.totalorder %s47, %s48
    %p62 = scmp.eq.s32.totalorder %s19, 1
    %p63 = por %p61, %p62
    %p65 = scmp.ne.s32.totalorder %s48, %s64
    %p66 = scmp.eq.s32.totalorder %s19, 0
    %p67 = por %p65, %p66
    %s68 = ssub.s32 %s21, %s35
    %s69 = ssub.s32 %s22, %s31
    %s70 = sor.u32 %s68, %s69
    %p71 = scmp.eq.s32.totalorder %s70, 0
    %s73 = sadd.s32 %s72, 1
    %s74 = scalar_select %p71, %s72, %s73
    %p77 = pneg %p71
    %p78 = scmp.eq.s32.totalorder %s13, 1
    %p79 = por %p77, %p78
    %p80 = scmp.ne.s32.totalorder %s72, %s75
    %p81 = scmp.eq.s32.totalorder %s13, 0
    %p82 = por %p80, %p81
    %p83 = scmp.ne.s32.totalorder %s72, %s75
    %p84 = scmp.eq.s32.totalorder %s18, 1
    %p85 = por %p83, %p84
    %p86 = scmp.ne.s32.totalorder %s75, %s76
    %p87 = scmp.eq.s32.totalorder %s18, 0
    %p88 = por %p86, %p87
    %p89 = scmp.ne.s32.totalorder %s75, %s76
    %p90 = scmp.eq.s32.totalorder %s19, 1
    %p91 = por %p89, %p90
    %p93 = scmp.ne.s32.totalorder %s76, %s92
    %p94 = scmp.eq.s32.totalorder %s19, 0
    %p95 = por %p93, %p94
    %s96 = ssub.s32 %s22, %s31
    %p97 = scmp.eq.s32.totalorder %s96, 0
    %s99 = sadd.s32 %s98, 1
    %s100 = scalar_select %p97, %s98, %s99
    %p103 = pneg %p97
    %p104 = scmp.eq.s32.totalorder %s13, 1
    %p105 = por %p103, %p104
    %p106 = scmp.ne.s32.totalorder %s98, %s101
    %p107 = scmp.eq.s32.totalorder %s13, 0
    %p108 = por %p106, %p107
    %p109 = scmp.ne.s32.totalorder %s98, %s101
    %p110 = scmp.eq.s32.totalorder %s18, 1
    %p111 = por %p109, %p110
    %p112 = scmp.ne.s32.totalorder %s101, %s102
    %p113 = scmp.eq.s32.totalorder %s18, 0
    %p114 = por %p112, %p113
    %p115 = scmp.ne.s32.totalorder %s101, %s102
    %p116 = scmp.eq.s32.totalorder %s19, 1
    %p117 = por %p115, %p116
    %p119 = scmp.ne.s32.totalorder %s102, %s118
    %p120 = scmp.eq.s32.totalorder %s19, 0
    %p121 = por %p119, %p120
    %s123 = sadd.s32 %s122, 1
    %p126 = scmp.eq.s32.totalorder %s13, 1
    %p127 = scmp.ne.s32.totalorder %s122, %s124
    %p128 = scmp.eq.s32.totalorder %s13, 0
    %p129 = por %p127, %p128
    %p130 = scmp.ne.s32.totalorder %s122, %s124
    %p131 = scmp.eq.s32.totalorder %s18, 1
    %p132 = por %p130, %p131
    %p133 = scmp.ne.s32.totalorder %s124, %s125
    %p134 = scmp.eq.s32.totalorder %s18, 0
    %p135 = por %p133, %p134
    %p136 = scmp.ne.s32.totalorder %s124, %s125
    %p137 = scmp.eq.s32.totalorder %s19, 1
    %p138 = por %p136, %p137
    %p140 = scmp.ne.s32.totalorder %s125, %s139
    %p141 = scmp.eq.s32.totalorder %s19, 0
    %p142 = por %p140, %p141
    %s144 = sadd.s32 %s143, 1
    %p147 = scmp.eq.s32.totalorder %s13, 1
    %p148 = scmp.ne.s32.totalorder %s143, %s145
    %p149 = scmp.eq.s32.totalorder %s13, 0
    %p150 = por %p148, %p149
    %p151 = scmp.ne.s32.totalorder %s143, %s145
    %p152 = scmp.eq.s32.totalorder %s18, 1
    %p153 = por %p151, %p152
    %p154 = scmp.ne.s32.totalorder %s145, %s146
    %p155 = scmp.eq.s32.totalorder %s18, 0
    %p156 = por %p154, %p155
    %p157 = scmp.ne.s32.totalorder %s145, %s146
    %p158 = scmp.eq.s32.totalorder %s19, 1
    %p159 = por %p157, %p158
    %p161 = scmp.ne.s32.totalorder %s146, %s160
    %p162 = scmp.eq.s32.totalorder %s19, 0
    %p163 = por %p161, %p162
    %s164 = ssub.s32 %s21, %s35
    %s165 = ssub.s32 %s20, %s39
    %s166 = sor.u32 %s164, %s165
    %s167 = ssub.s32 %s22, %s31
    %s168 = sor.u32 %s166, %s167
    %p169 = scmp.eq.s32.totalorder %s168, 0
    %s171 = sadd.s32 %s170, 1
    %s172 = scalar_select %p169, %s170, %s171
    %p175 = pneg %p169
    %p176 = scmp.eq.s32.totalorder %s13, 1
    %p177 = por %p175, %p176
    %p178 = scmp.ne.s32.totalorder %s170, %s173
    %p179 = scmp.eq.s32.totalorder %s13, 0
    %p180 = por %p178, %p179
    %p181 = scmp.ne.s32.totalorder %s170, %s173
    %p182 = scmp.eq.s32.totalorder %s18, 1
    %p183 = por %p181, %p182
    %p184 = scmp.ne.s32.totalorder %s173, %s174
    %p185 = scmp.eq.s32.totalorder %s18, 0
    %p186 = por %p184, %p185
    %p187 = scmp.ne.s32.totalorder %s173, %s174
    %p188 = scmp.eq.s32.totalorder %s19, 1
    %p189 = por %p187, %p188
    %p191 = scmp.ne.s32.totalorder %s174, %s190
    %p192 = scmp.eq.s32.totalorder %s19, 0
    %p193 = por %p191, %p192
    %s194 = ssub.s32 %s21, %s35
    %s195 = ssub.s32 %s20, %s39
    %s196 = sor.u32 %s194, %s195
    %s197 = ssub.s32 %s22, %s31
    %s198 = sor.u32 %s196, %s197
    %p199 = scmp.eq.s32.totalorder %s198, 0
    %s201 = sadd.s32 %s200, 1
    %s202 = scalar_select %p199, %s200, %s201
    %p205 = pneg %p199
    %p206 = scmp.eq.s32.totalorder %s13, 1
    %p207 = por %p205, %p206
    %p208 = scmp.ne.s32.totalorder %s200, %s203
    %p209 = scmp.eq.s32.totalorder %s13, 0
    %p210 = por %p208, %p209
    %p211 = scmp.ne.s32.totalorder %s200, %s203
    %p212 = scmp.eq.s32.totalorder %s18, 1
    %p213 = por %p211, %p212
    %p214 = scmp.ne.s32.totalorder %s203, %s204
    %p215 = scmp.eq.s32.totalorder %s18, 0
    %p216 = por %p214, %p215
    %p217 = scmp.ne.s32.totalorder %s203, %s204
    %p218 = scmp.eq.s32.totalorder %s19, 1
    %p219 = por %p217, %p218
    %p221 = scmp.ne.s32.totalorder %s204, %s220
    %p222 = scmp.eq.s32.totalorder %s19, 0
    %p223 = por %p221, %p222
    %p224 = scmp.le.s32.totalorder 1, %s13
    %p225 = scmp.lt.s32.totalorder %s13, 3
    %p226 = pnand %p224, %p225
    %p227 = pneg %p226
    // Predicated region
    $region9: #{point_cloud_global_embedding.16} parent=5 // pred_check
      _
    $region10: #{point_cloud_global_embedding.16} parent=5 // pred_check_branch
      %229 = sbr.rel (%p226) target = $region12
    $region11: #{point_cloud_global_embedding.16} parent=5 // pred_region
      %s230 = ssub.s32 %s13, 1
      // Predicated region
      $region13: #{point_cloud_global_embedding.16} parent=11 // pred_check
        %p231 = pneg %p114
      $region14: #{point_cloud_global_embedding.16} parent=11 // pred_check_branch
        %233 = sbr.rel (%p231) target = $region16
      $region15: #{point_cloud_global_embedding.16} parent=11 // pred_region
        %p234 = scmp.lt.s32.totalorder %s25, 0
        %s235 = scalar_select %p234, %s25, 0
        %s236 = scalar_lea.vmem %s2, %s235
      $region16: #{point_cloud_global_embedding.16} parent=11 // pred_fallthru
        _
      // Predicated region
      $region17: #{point_cloud_global_embedding.16} parent=11 // pred_check
        %p237 = pneg %p135
      $region18: #{point_cloud_global_embedding.16} parent=11 // pred_check_branch
        %239 = sbr.rel (%p237) target = $region20
      $region19: #{point_cloud_global_embedding.16} parent=11 // pred_region
        _
      $region20: #{point_cloud_global_embedding.16} parent=11 // pred_fallthru
        _
      // Predicated region
      $region21: #{point_cloud_global_embedding.16} parent=11 // pred_check
        %p240 = pneg %p156
      $region22: #{point_cloud_global_embedding.16} parent=11 // pred_check_branch
        %242 = sbr.rel (%p240) target = $region24
      $region23: #{point_cloud_global_embedding.16} parent=11 // pred_region
        _
      $region24: #{point_cloud_global_embedding.16} parent=11 // pred_fallthru
        _
    $region12: #{point_cloud_global_embedding.16} parent=5 // pred_fallthru
      _
    %p243 = scmp.lt.s32.totalorder %s13, 2
    // Predicated region
    $region25: #{point_cloud_global_embedding.16} parent=5 // pred_check
      %p244 = pneg %p243
    $region26: #{point_cloud_global_embedding.16} parent=5 // pred_check_branch
      %246 = sbr.rel (%p244) target = $region28
    $region27: #{point_cloud_global_embedding.16} parent=5 // pred_region
      // Predicated region
      $region29: #{point_cloud_global_embedding.16} parent=27 // pred_check
        %p247 = pneg %p54
      $region30: #{point_cloud_global_embedding.16} parent=27 // pred_check_branch
        %249 = sbr.rel (%p247) target = $region32
      $region31: #{point_cloud_global_embedding.16} parent=27 // pred_region
        %s250 = smul.u32 2, %s20
        %p251 = scmp.lt.s32.totalorder %s21, 1
        %s252 = scalar_select %p251, %s21, 1
        %p253 = scmp.lt.s32.totalorder %s250, 1
        %s254 = scalar_select %p253, %s250, 1
        %s255 = smul.addr %s252, 2
        %s256 = sadd.s32 %s254, %s255
        %s257 = smul.addr %s256, 4
        %s258 = scalar_lea.vmem %s0, %s257
        %s259 = smul.u32 2, %s20
      $region32: #{point_cloud_global_embedding.16} parent=27 // pred_fallthru
        _
      // Predicated region
      $region33: #{point_cloud_global_embedding.16} parent=27 // pred_check
        %p260 = pneg %p82
      $region34: #{point_cloud_global_embedding.16} parent=27 // pred_check_branch
        %262 = sbr.rel (%p260) target = $region36
      $region35: #{point_cloud_global_embedding.16} parent=27 // pred_region
        %p263 = scmp.lt.s32.totalorder %s21, 1
        %s264 = scalar_select %p263, %s21, 1
        %p265 = scmp.lt.s32.totalorder %s22, 0
        %s266 = scalar_select %p265, %s22, 0
        %s267 = smul.addr %s264, 8
        %s268 = sadd.s32 %s266, %s267
        %s269 = smul.addr %s268, 4
        %s270 = scalar_lea.vmem %s1, %s269
      $region36: #{point_cloud_global_embedding.16} parent=27 // pred_fallthru
        _
    $region28: #{point_cloud_global_embedding.16} parent=5 // pred_fallthru
      _
    %p271 = scmp.le.s32.totalorder 1, %s13
    %p272 = scmp.lt.s32.totalorder %s13, 3
    %p273 = pnand %p271, %p272
    %p274 = pneg %p273
    // Predicated region
    $region37: #{point_cloud_global_embedding.16} parent=5 // pred_check
      _
    $region38: #{point_cloud_global_embedding.16} parent=5 // pred_check_branch
      %276 = sbr.rel (%p273) target = $region40
    $region39: #{point_cloud_global_embedding.16} parent=5 // pred_region
      %s277 = ssub.s32 %s13, 1
      %s278 = smul.u32 2, %s23
      %p279 = scmp.lt.s32.totalorder %s24, 1
      %s280 = scalar_select %p279, %s24, 1
      %p281 = scmp.lt.s32.totalorder %s278, 1
      %s282 = scalar_select %p281, %s278, 1
      %s283 = smul.addr %s280, 2
      %s284 = sadd.s32 %s282, %s283
      %s285 = smul.addr %s284, 4
      %s286 = scalar_lea.vmem %s0, %s285
      %p287 = pneg %p60
      %p288 = pneg %p57
      %p289 = scmp.lt.s32.totalorder %s24, 1
      %s290 = scalar_select %p289, %s24, 1
      %p291 = scmp.lt.s32.totalorder %s25, 0
      %s292 = scalar_select %p291, %s25, 0
      %s293 = smul.addr %s290, 8
      %s294 = sadd.s32 %s292, %s293
      %s295 = smul.addr %s294, 4
      %s296 = scalar_lea.vmem %s1, %s295
      %p297 = pneg %p88
      %p298 = pneg %p85
      %p299 = scmp.lt.s32.totalorder %s25, 0
      %s300 = scalar_select %p299, %s25, 0
      %s301 = scalar_lea.vmem %s2, %s300
      %p302 = pneg %p114
      %p303 = pneg %p111
      %p304 = pneg %p135
      %p305 = pneg %p132
      %p306 = pneg %p156
      %p307 = pneg %p153
      %p308 = pneg %p186
      %p309 = pneg %p183
      %s310 = smul.u32 2, %s23
      %p311 = scmp.lt.s32.totalorder %s24, 1
      %s312 = scalar_select %p311, %s24, 1
      %p313 = scmp.lt.s32.totalorder %s310, 1
      %s314 = scalar_select %p313, %s310, 1
      %p315 = scmp.lt.s32.totalorder %s25, 0
      %s316 = scalar_select %p315, %s25, 0
      %s317 = sadd.s32 %s316, %s314
      %s318 = smul.addr %s312, 2
      %s319 = sadd.s32 %s317, %s318
      %s320 = smul.addr %s319, 4
      %s321 = scalar_lea.vmem %s5, %s320
      %p322 = pneg %p216
      %p323 = pneg %p213
      %p324 = scmp.lt.s32.totalorder %s24, 1
      %s325 = scalar_select %p324, %s24, 1
      %p326 = scmp.lt.s32.totalorder %s23, 0
      %s327 = scalar_select %p326, %s23, 0
      %p328 = scmp.lt.s32.totalorder %s25, 0
      %s329 = scalar_select %p328, %s25, 0
      %s330 = sadd.s32 %s329, %s327
      %s331 = sadd.s32 %s330, %s325
      %s332 = smul.addr %s331, 8
      %s333 = scalar_lea.vmem %s6, %s332
      %s334 = smul.u32 2, %s23
      %p335 = scmp.lt.s32.totalorder %s24, 1
      %s336 = scalar_select %p335, %s24, 1
      %p337 = scmp.lt.s32.totalorder %s334, 1
      %s338 = scalar_select %p337, %s334, 1
      %s339 = smul.addr %s336, 2
      %s340 = sadd.s32 %s338, %s339
      %s341 = smul.addr %s340, 4
      %s342 = scalar_lea.vmem %s0, %s341
      %s343 = smul.u32 2, %s23
      %p344 = scmp.lt.s32.totalorder %s24, 1
      %s345 = scalar_select %p344, %s24, 1
      %p346 = scmp.lt.s32.totalorder %s25, 0
      %s347 = scalar_select %p346, %s25, 0
      %s348 = smul.addr %s345, 8
      %s349 = sadd.s32 %s347, %s348
      %s350 = smul.addr %s349, 4
      %s351 = scalar_lea.vmem %s1, %s350
      %p352 = scmp.lt.s32.totalorder %s25, 0
      %s353 = scalar_select %p352, %s25, 0
      %s354 = scalar_lea.vmem %s2, %s353
      %s355 = smul.u32 2, %s23
      %p356 = scmp.lt.s32.totalorder %s24, 1
      %s357 = scalar_select %p356, %s24, 1
      %p358 = scmp.lt.s32.totalorder %s355, 1
      %s359 = scalar_select %p358, %s355, 1
      %p360 = scmp.lt.s32.totalorder %s25, 0
      %s361 = scalar_select %p360, %s25, 0
      %s362 = sadd.s32 %s361, %s359
      %s363 = smul.addr %s357, 2
      %s364 = sadd.s32 %s362, %s363
      %s365 = smul.addr %s364, 4
      %s366 = scalar_lea.vmem %s5, %s365
      %s367 = smul.u32 2, %s23
      %p368 = scmp.lt.s32.totalorder %s24, 1
      %s369 = scalar_select %p368, %s24, 1
      %p370 = scmp.lt.s32.totalorder %s23, 0
      %s371 = scalar_select %p370, %s23, 0
      %p372 = scmp.lt.s32.totalorder %s25, 0
      %s373 = scalar_select %p372, %s25, 0
      %s374 = sadd.s32 %s373, %s371
      %s375 = sadd.s32 %s374, %s369
      %s376 = smul.addr %s375, 8
      %s377 = scalar_lea.vmem %s6, %s376
      %v379 = vld [vmem:[%s342] sm:$0xf]
      %v380 = vld [vmem:[%s342 + $0x4] sm:$0xf]
      %v381 = vunpack.c.l.bf16 %v379
      %v382 = vunpack.c.l.bf16 %v380
      %v383 = vld [vmem:[%s3] sm:$0x1]
      %v385 = vlaneseq
      %v386 = vshrl.u32 %v385, 7
      %v387 = vsub.s32 0, %v386
      %v388 = vrot.slane %v383, %v387
      %v390 = vmul.f32 %v381, %v388
      %v391 = vmul.f32 %v382, %v388
      %v392 = vld [vmem:[%s4] sm:$0x1]
      %v394 = vlaneseq
      %v395 = vshrl.u32 %v394, 7
      %v396 = vsub.s32 0, %v395
      %v397 = vrot.slane %v392, %v396
      %v399 = vadd.f32 %v390, %v397
      %v400 = vadd.f32 %v391, %v397
      %v401 = vmax.f32 %v399, 0.0
      %v402 = vmax.f32 %v400, 0.0
      %v403 = vld [vmem:[%s351] sm:$0xf]
      %v404 = vld [vmem:[%s351 + $0x4] sm:$0xf]
      %v405 = vld [vmem:[%s351 + $0x8] sm:$0xf]
      %v406 = vld [vmem:[%s351 + $0xc] sm:$0xf]
      %v407 = vld [vmem:[%s351 + $0x10] sm:$0xf]
      %v408 = vld [vmem:[%s351 + $0x14] sm:$0xf]
      %v409 = vld [vmem:[%s351 + $0x18] sm:$0xf]
      %v410 = vld [vmem:[%s351 + $0x1c] sm:$0xf]
      %v411 = vld [vmem:[%s354] sm:$0x1]
      %v412 = vpack.c.bf16 %v402, %v401
      %v414 = vlaneseq
      %v415 = vshrl.u32 %v414, 7
      %v416 = vsub.s32 0, %v415
      %v417 = vrot.slane %v411, %v416
      %v427 = vunpack.c.l.b16 %v403
      %v428 = vunpack.c.l.b16 %v404
      %v429 = vunpack.c.l.b16 %v405
      %v430 = vunpack.c.l.b16 %v406
      %v431 = vunpack.c.l.b16 %v407
      %v432 = vunpack.c.l.b16 %v408
      %v433 = vunpack.c.l.b16 %v409
      %v434 = vunpack.c.l.b16 %v410
      %v435 = vpack.c.b16 %v428, %v427
      %v436 = vpack.c.b16 %v430, %v429
      %v437 = vpack.c.b16 %v432, %v431
      %v438 = vpack.c.b16 %v434, %v433
      %vm443 = vcmask 523264
      %v445 = vsel %vm443, %v412, 0
      %447 = vmatprep.subr.bf16.mxu0 0
      %448 = vmatpush1.bf16.msra.mxu0 0
      %449 = vmatprep.subr.bf16.mxu0 0
      %450 = vmatpush1.bf16.msra.mxu0 0
      %451 = vmatprep.subr.bf16.mxu0 0
      %452 = vmatpush1.bf16.msra.mxu0 0
      %453 = vmatprep.subr.bf16.mxu0 0
      %454 = vmatpush1.bf16.msra.mxu0 0
      %455 = vmatprep.subr.bf16.mxu0 0
      %456 = vmatpush1.bf16.msra.mxu0 %v438
      %457 = vmatprep.subr.bf16.mxu0 0
      %458 = vmatpush1.bf16.msra.mxu0 %v437
      %459 = vmatprep.subr.bf16.mxu0 0
      %460 = vmatpush1.bf16.msra.mxu0 %v436
      %461 = vmatprep.subr.bf16.mxu0 0
      %462 = vmatpush1.bf16.msra.mxu0 %v435
      %463 = vmatprep.subr.bf16.mxu0 0
      %464 = vmatpush2.bf16.msra.mxu0 0
      %465 = vmatprep.subr.bf16.mxu0 0
      %466 = vmatpush2.bf16.msra.mxu0 0
      %467 = vmatprep.subr.bf16.mxu0 0
      %468 = vmatpush2.bf16.msra.mxu0 0
      %469 = vmatprep.subr.bf16.mxu0 0
      %470 = vmatpush2.bf16.msra.mxu0 0
      %471 = vmatprep.subr.bf16.mxu0 0
      %472 = vmatpush2.bf16.msra.mxu0 0
      %473 = vmatprep.subr.bf16.mxu0 0
      %474 = vmatpush2.bf16.msra.mxu0 0
      %475 = vmatprep.subr.bf16.mxu0 0
      %476 = vmatpush2.bf16.msra.mxu0 0
      %477 = vmatprep.subr.bf16.mxu0 0
      %478 = vmatpush2.bf16.msra.mxu0 0
      %479 = vmatprep.mubr.bf16.mxu0 0
      %480 = vmatmul.mubr.bf16.gmra.mxu0 %v445
      %v481 = vpop.f32.mrf.mxu0
      %v482 = vadd.f32 %v417, %v481
      %v483 = vpop.f32.mrf.mxu0
      %v484 = vpop.f32.mrf.mxu0
      %v485 = vadd.f32 %v417, %v484
      %v486 = vpop.f32.mrf.mxu0
      %487 = vdwg.mxu0
      %v488 = vadd.f32 %v482, %v485
      %v489 = vrot.slane %v488, 4
      %v490 = vadd.f32 %v488, %v489
      %v491 = vrot.slane %v490, 2
      %v492 = vadd.f32 %v490, %v491
      %v493 = vrot.slane %v492, 1
      %v494 = vadd.f32 %v492, %v493
      %v495 = vmul.f32 %v494, 0.0625
      %v496 = vsub.f32 %v482, %v495
      %v497 = vsub.f32 %v485, %v495
      %v498 = vmul.f32 %v496, %v496
      %v499 = vmul.f32 %v497, %v497
      %v500 = vadd.f32 %v498, %v499
      %v501 = vrot.slane %v500, 4
      %v502 = vadd.f32 %v500, %v501
      %v503 = vrot.slane %v502, 2
      %v504 = vadd.f32 %v502, %v503
      %v505 = vrot.slane %v504, 1
      %v506 = vadd.f32 %v504, %v505
      %v507 = vpack.c.bf16 %v485, %v482
      %v509 = vunpack.c.l.b16 %v507
      %v510 = vunpack.c.h.b16 %v507
      %v511 = vpack.c.b16 %v509, %v509
      %v512 = vpack.c.b16 %v510, %v510
      %515 = vst [vmem:[%s366] sm:$0xf] %v511
      %516 = vst [vmem:[%s366 + $0x4] sm:$0xf] %v512
      %vm517 = vcmask 1040384
      %v518 = vsel %vm517, %v494, %v506
      %vm519 = vcmask 1041408
      %v520 = vsel %vm519, %v518, 0.0
      %521 = vst [vmem:[%s377] sm:$0xff] %v520
      %s522 = smul.u32 2, %s23
      %p523 = scmp.lt.s32.totalorder %s24, 1
      %s524 = scalar_select %p523, %s24, 1
      %p525 = scmp.lt.s32.totalorder %s522, 1
      %s526 = scalar_select %p525, %s522, 1
      %p527 = scmp.lt.s32.totalorder %s25, 0
      %s528 = scalar_select %p527, %s25, 0
      %s529 = sadd.s32 %s528, %s526
      %s530 = smul.addr %s524, 2
      %s531 = sadd.s32 %s529, %s530
      %s532 = smul.addr %s531, 4
      %s533 = scalar_lea.vmem %s5, %s532
      %p534 = scmp.lt.s32.totalorder %s24, 1
      %s535 = scalar_select %p534, %s24, 1
      %p536 = scmp.lt.s32.totalorder %s23, 0
      %s537 = scalar_select %p536, %s23, 0
      %p538 = scmp.lt.s32.totalorder %s25, 0
      %s539 = scalar_select %p538, %s25, 0
      %s540 = sadd.s32 %s539, %s537
      %s541 = sadd.s32 %s540, %s535
      %s542 = smul.addr %s541, 8
      %s543 = scalar_lea.vmem %s6, %s542
      // Predicated region
      $region41: #{point_cloud_global_embedding.16} parent=39 // pred_check
        %p544 = pneg %p183
      $region42: #{point_cloud_global_embedding.16} parent=39 // pred_check_branch
        %546 = sbr.rel (%p544) target = $region44
      $region43: #{point_cloud_global_embedding.16} parent=39 // pred_region
        %s547 = smul.u32 2, %s23
      $region44: #{point_cloud_global_embedding.16} parent=39 // pred_fallthru
        _
      // Predicated region
      $region45: #{point_cloud_global_embedding.16} parent=39 // pred_check
        %p548 = pneg %p213
      $region46: #{point_cloud_global_embedding.16} parent=39 // pred_check_branch
        %550 = sbr.rel (%p548) target = $region48
      $region47: #{point_cloud_global_embedding.16} parent=39 // pred_region
        _
      $region48: #{point_cloud_global_embedding.16} parent=39 // pred_fallthru
        _
    $region40: #{point_cloud_global_embedding.16} parent=5 // pred_fallthru
      _
    %p551 = scmp.le.s32.totalorder 2, %s13
    // Predicated region
    $region49: #{point_cloud_global_embedding.16} parent=5 // pred_check
      %p552 = pneg %p551
    $region50: #{point_cloud_global_embedding.16} parent=5 // pred_check_branch
      %554 = sbr.rel (%p552) target = $region52
    $region51: #{point_cloud_global_embedding.16} parent=5 // pred_region
      %s555 = ssub.s32 %s13, 2
      // Predicated region
      $region53: #{point_cloud_global_embedding.16} parent=51 // pred_check
        %p556 = pneg %p189
      $region54: #{point_cloud_global_embedding.16} parent=51 // pred_check_branch
        %558 = sbr.rel (%p556) target = $region56
      $region55: #{point_cloud_global_embedding.16} parent=51 // pred_region
        %s559 = smul.u32 2, %s26
        %p560 = scmp.lt.s32.totalorder %s27, 1
        %s561 = scalar_select %p560, %s27, 1
        %p562 = scmp.lt.s32.totalorder %s559, 1
        %s563 = scalar_select %p562, %s559, 1
        %p564 = scmp.lt.s32.totalorder %s28, 0
        %s565 = scalar_select %p564, %s28, 0
        %s566 = sadd.s32 %s565, %s563
        %s567 = smul.addr %s561, 2
        %s568 = sadd.s32 %s566, %s567
        %s569 = smul.addr %s568, 4
        %s570 = scalar_lea.vmem %s5, %s569
      $region56: #{point_cloud_global_embedding.16} parent=51 // pred_fallthru
        _
      // Predicated region
      $region57: #{point_cloud_global_embedding.16} parent=51 // pred_check
        %p571 = pneg %p219
      $region58: #{point_cloud_global_embedding.16} parent=51 // pred_check_branch
        %573 = sbr.rel (%p571) target = $region60
      $region59: #{point_cloud_global_embedding.16} parent=51 // pred_region
        %p574 = scmp.lt.s32.totalorder %s27, 1
        %s575 = scalar_select %p574, %s27, 1
        %p576 = scmp.lt.s32.totalorder %s26, 0
        %s577 = scalar_select %p576, %s26, 0
        %p578 = scmp.lt.s32.totalorder %s28, 0
        %s579 = scalar_select %p578, %s28, 0
        %s580 = sadd.s32 %s579, %s577
        %s581 = sadd.s32 %s580, %s575
        %s582 = smul.addr %s581, 8
        %s583 = scalar_lea.vmem %s6, %s582
      $region60: #{point_cloud_global_embedding.16} parent=51 // pred_fallthru
        _
    $region52: #{point_cloud_global_embedding.16} parent=5 // pred_fallthru
      _
  $region6: #{point_cloud_global_embedding.16} parent=0 // loop_footer
    %s17 = sadd.s32 1, %s13
  $region7: #{point_cloud_global_embedding.16} parent=0 // loop_footer_branch
    %12 = sbr.rel target = $region3
  $region8: #{point_cloud_global_embedding.16} parent=0 // loop_exit
    _

</llo_original>
